<compile_context>
chip_gen: v5e
topology: v5e:2x2
jax: 0.10.0
libtpu: 0.0.40
codegen_flags: <defaults>
</compile_context>

<pallas_src>
import numpy as np
import jax
import jax.numpy as jnp
from jax.experimental import pallas as pl
from jax.experimental.pallas import tpu as pltpu

K1P = 32          # 25 conv1 patch values padded to a multiple of 8
R1 = 6 * 6 * 16   # 576 redundant stage-1 rows per image ((a,b) slab x (hp,wp))
CP = 128          # lane-padded channel width


def _patch_gather_indices():
    """Flat indices into a 28*28 image for the stage-1 patch tensor.

    Per-image layout: [4 stage-1 pool offsets] x [576 redundant stage-1 output
    positions ordered (a, b, hp, wp)] x [25 conv1 taps (ki, kj)].
    Stage-1 position (y1, x1) = (2*hp + a, 2*wp + b); the redundancy makes every
    stage-2 tap slab a contiguous 16-row chunk inside the kernel.
    """
    a, b, hp, wp = np.meshgrid(np.arange(6), np.arange(6),
                               np.arange(4), np.arange(4), indexing="ij")
    y1 = (2 * hp + a).reshape(-1)                     # (576,)
    x1 = (2 * wp + b).reshape(-1)
    o1y = np.array([0, 0, 1, 1])                      # stage-1 pool offsets
    o1x = np.array([0, 1, 0, 1])
    ki, kj = np.meshgrid(np.arange(5), np.arange(5), indexing="ij")
    ki = ki.reshape(-1)
    kj = kj.reshape(-1)                               # (25,) ordered (ki, kj)
    rows = 2 * y1[None, :, None] + o1y[:, None, None] + ki[None, None, :]
    cols = 2 * x1[None, :, None] + o1x[:, None, None] + kj[None, None, :]
    return (rows * 28 + cols).reshape(-1).astype(np.int32)   # (4*576*25,)


_FLAT_IDX = _patch_gather_indices()


def fused_submodel_kernel(p_ref, w1_ref, b1_ref, w2_ref, b2_ref, o_ref, h1_ref):
    """Both conv->pool->relu stages for one block of images.

    p_ref : (B, 4, 576, 32)  bf16  stage-1 patches (pool offset, redundant row, K)
    w1_ref: (32, 128)        bf16  conv1 weights (K x padded Cout)
    b1_ref: (1, 128)         f32   conv1 bias (zero-padded)
    w2_ref: (25, 128, 128)   bf16  conv2 weights: one (Cin x Cout) matrix per tap
    b2_ref: (1, 128)         f32   conv2 bias (zero-padded)
    o_ref : (B, 16, 128)     f32   final output (4x4 positions, lane-dense channels)
    h1_ref: (B, 576, 128)    bf16  VMEM scratch: stage-1 result (never leaves VMEM)
    """
    nb = p_ref.shape[0]
    r1 = p_ref.shape[2]          # 576
    k1 = p_ref.shape[3]          # 32

    # ---- Stage 1: conv1 (matmul) + 2x2 max-pool + bias + ReLU ----------------
    p = p_ref[...]                                   # (B, 4, 576, 32) bf16
    w1 = w1_ref[...]
    b1 = b1_ref[...]
    h1 = None
    for o1 in range(4):                              # 4 stage-1 pool offsets
        lhs = p[:, o1].reshape(nb * r1, k1)
        acc = jnp.dot(lhs, w1, preferred_element_type=jnp.float32)   # (B*576, 128)
        # bias / relu commute with the pool max; running pairwise max in bf16
        cand = jnp.maximum(acc + b1, 0.0).astype(jnp.bfloat16)
        h1 = cand if h1 is None else jnp.maximum(h1, cand)
    h1_ref[...] = h1.reshape(nb, r1, CP)             # stays resident in VMEM

    # ---- Stage 2: conv2 (25 tap matmuls) + 2x2 max-pool + bias + ReLU --------
    w2 = w2_ref[...]                                 # (25, 128, 128) bf16
    b2 = b2_ref[...]
    out = None
    for dy in range(2):                              # stage-2 pool offsets
        for dx in range(2):
            acc2 = None
            for ki in range(5):                      # conv2 taps
                for kj in range(5):
                    s = (dy + ki) * 6 + (dx + kj)    # slab index (a*6 + b)
                    slab = h1_ref[:, s * 16:(s + 1) * 16, :].reshape(nb * 16, CP)
                    d = jnp.dot(slab, w2[ki * 5 + kj],
                                preferred_element_type=jnp.float32)  # (B*16, 128)
                    acc2 = d if acc2 is None else acc2 + d
            out = acc2 if out is None else jnp.maximum(out, acc2)
    out = jnp.maximum(out + b2, 0.0)                 # bias after max, then ReLU
    o_ref[...] = out.reshape(nb, 16, CP)             # lane-dense store


def _pick_batch_block(n):
    """Images per grid step: amortize per-step overhead, keep >=2 grid steps
    (both v7x TensorCores busy), and stay inside every generation's default
    scoped-VMEM budget (incl. v5e's 16 MiB)."""
    for b in (8, 4, 2):
        if n % b == 0 and n // b >= 2:
            return b
    return 1


def sub_model_forward(x_nchw, params):
    """SubModel.forward: (N,1,28,28) NCHW f32 -> (N,20,4,4) f32."""
    w1, b1, w2, b2 = params          # (5,5,1,10), (10,), (5,5,10,20), (20,)
    n, c, h, w = x_nchw.shape
    assert (c, h, w) == (1, 28, 28), "kernel is specialized to 1x28x28 inputs"

    # XLA-side prep: one constant-index gather builds all stage-1 patches (bf16).
    img = x_nchw.reshape(n, 28 * 28).astype(jnp.bfloat16)
    patches = jnp.take(img, jnp.asarray(_FLAT_IDX), axis=1)        # (N, 4*576*25)
    patches = patches.reshape(n, 4, R1, 25)
    patches = jnp.pad(patches, ((0, 0), (0, 0), (0, 0), (0, K1P - 25)))  # (N,4,576,32)

    w1m = jnp.pad(w1.reshape(25, 10).astype(jnp.float32),
                  ((0, K1P - 25), (0, CP - 10))).astype(jnp.bfloat16)     # (32,128)
    b1m = jnp.pad(b1.astype(jnp.float32).reshape(1, 10), ((0, 0), (0, CP - 10)))
    w2m = jnp.pad(w2.reshape(25, 10, 20).astype(jnp.float32),
                  ((0, 0), (0, CP - 10), (0, CP - 20))).astype(jnp.bfloat16)  # (25,128,128)
    b2m = jnp.pad(b2.astype(jnp.float32).reshape(1, 20), ((0, 0), (0, CP - 20)))

    bb = _pick_batch_block(n)
    grid = (n // bb,)

    out = pl.pallas_call(
        fused_submodel_kernel,
        out_shape=jax.ShapeDtypeStruct((n, 16, CP), jnp.float32),
        grid=grid,
        in_specs=[
            pl.BlockSpec((bb, 4, R1, K1P), lambda i: (i, 0, 0, 0)),
            pl.BlockSpec((K1P, CP), lambda i: (0, 0)),
            pl.BlockSpec((1, CP), lambda i: (0, 0)),
            pl.BlockSpec((25, CP, CP), lambda i: (0, 0, 0)),
            pl.BlockSpec((1, CP), lambda i: (0, 0)),
        ],
        out_specs=pl.BlockSpec((bb, 16, CP), lambda i: (i, 0, 0)),
        scratch_shapes=[pltpu.VMEM((bb, R1, CP), jnp.bfloat16)],
        compiler_params=pltpu.CompilerParams(dimension_semantics=("parallel",)),
    )(patches, w1m, b1m, w2m, b2m)

    out = out[:, :, :20].reshape(n, 4, 4, 20)    # drop channel padding
    return jnp.transpose(out, (0, 3, 1, 2))      # NHWC -> NCHW


def init_params(key):
    """Deterministic init mimicking PyTorch Conv2d default (uniform +-1/sqrt(fan_in)).

    Weights stored as (kh, kw, cin, cout) to match the patch reduction ordering.
    """
    k1, k2, k3, k4 = jax.random.split(key, 4)
    s1 = 1.0 / jnp.sqrt(1 * 5 * 5)
    s2 = 1.0 / jnp.sqrt(10 * 5 * 5)
    w1_t = jax.random.uniform(k1, (10, 1, 5, 5), jnp.float32, -s1, s1)
    b1 = jax.random.uniform(k2, (10,), jnp.float32, -s1, s1)
    w2_t = jax.random.uniform(k3, (20, 10, 5, 5), jnp.float32, -s2, s2)
    b2 = jax.random.uniform(k4, (20,), jnp.float32, -s2, s2)
    w1 = jnp.transpose(w1_t, (2, 3, 1, 0))   # (5,5,1,10)
    w2 = jnp.transpose(w2_t, (2, 3, 1, 0))   # (5,5,10,20)
    return (w1, b1, w2, b2)


# TODO(synk): nn.Dropout2d is identity in eval mode; training-mode channel
# dropout (random channel mask + 1/(1-p) scaling) is not implemented.

if __name__ == "__main__":
    key = jax.random.PRNGKey(0)
    pkey, xkey = jax.random.split(key)
    params = init_params(pkey)

    # MNIST-like input implied by the parent model (fc1 expects 320 = 20*4*4).
    x = jax.random.normal(xkey, (2, 1, 28, 28), dtype=jnp.float32)

    out = jax.jit(sub_model_forward)(x, params)
    out = jax.block_until_ready(out)

    assert out.shape == (2, 20, 4, 4), out.shape
    assert out.dtype == jnp.float32
    assert bool(jnp.all(out >= 0.0))  # post-ReLU
    print("KERNEL_OK")
</pallas_src>

<mosaic_0001>
module attributes {stable_mosaic.version = 11 : i64} {
  func.func @fused_submodel_kernel(%arg0: i32, %arg1: memref<1x4x576x32xbf16, #tpu.memory_space<vmem>>, %arg2: memref<32x128xbf16, #tpu.memory_space<vmem>>, %arg3: memref<1x128xf32, #tpu.memory_space<vmem>>, %arg4: memref<25x128x128xbf16, #tpu.memory_space<vmem>>, %arg5: memref<1x128xf32, #tpu.memory_space<vmem>>, %arg6: memref<1x16x128xf32, #tpu.memory_space<vmem>>, %arg7: memref<1x576x128xbf16, #tpu.memory_space<vmem>>) attributes {dimension_semantics = [#tpu.dimension_semantics<parallel>], iteration_bounds = array<i64: 2>, scalar_prefetch = 0 : i64, scratch_operands = 1 : i64, tpu.core_type = #tpu.core_type<tc>, window_params = [{transform_indices = @transform_0, window_bounds = array<i64: 1, 4, 576, 32>}, {pipeline_mode = #tpu.pipeline_mode<synchronous>, transform_indices = @transform_1, window_bounds = array<i64: 32, 128>}, {pipeline_mode = #tpu.pipeline_mode<synchronous>, transform_indices = @transform_2, window_bounds = array<i64: 1, 128>}, {pipeline_mode = #tpu.pipeline_mode<synchronous>, transform_indices = @transform_3, window_bounds = array<i64: 25, 128, 128>}, {pipeline_mode = #tpu.pipeline_mode<synchronous>, transform_indices = @transform_4, window_bounds = array<i64: 1, 128>}, {transform_indices = @transform_5, window_bounds = array<i64: 1, 16, 128>}]} {
    %c0 = arith.constant 0 : index
    %c0_0 = arith.constant 0 : index
    %c0_1 = arith.constant 0 : index
    %c0_2 = arith.constant 0 : index
    %0 = vector.load %arg1[%c0, %c0_0, %c0_1, %c0_2] : memref<1x4x576x32xbf16, #tpu.memory_space<vmem>>, vector<1x4x576x32xbf16>
    %c0_3 = arith.constant 0 : index
    %c0_4 = arith.constant 0 : index
    %1 = vector.load %arg2[%c0_3, %c0_4] : memref<32x128xbf16, #tpu.memory_space<vmem>>, vector<32x128xbf16>
    %c0_5 = arith.constant 0 : index
    %c0_6 = arith.constant 0 : index
    %2 = vector.load %arg3[%c0_5, %c0_6] : memref<1x128xf32, #tpu.memory_space<vmem>>, vector<1x128xf32>
    %3 = vector.extract_strided_slice %0 {offsets = [0, 0, 0, 0], sizes = [1, 1, 576, 32], strides = [1, 1, 1, 1]} : vector<1x4x576x32xbf16> to vector<1x1x576x32xbf16>
    %4 = vector.shape_cast %3 : vector<1x1x576x32xbf16> to vector<1x576x32xbf16>
    %5 = vector.shape_cast %4 : vector<1x576x32xbf16> to vector<576x32xbf16>
    %cst = arith.constant dense<0.000000e+00> : vector<576x128xf32>
    %6 = tpu.matmul %5, %1, %cst {dimension_numbers = #tpu.dot_dimension_numbers<[1], [0], [0], [1], [0, 0, 1, 1], [], []>} : vector<576x32xbf16>, vector<32x128xbf16>, vector<576x128xf32> -> vector<576x128xf32>
    %7 = vector.broadcast %2 : vector<1x128xf32> to vector<576x128xf32>
    %8 = arith.addf %6, %7 : vector<576x128xf32>
    %cst_7 = arith.constant 0.000000e+00 : f32
    %9 = vector.broadcast %cst_7 : f32 to vector<576x128xf32>
    %10 = arith.maximumf %8, %9 : vector<576x128xf32>
    %11 = arith.truncf %10 : vector<576x128xf32> to vector<576x128xbf16>
    %12 = vector.extract_strided_slice %0 {offsets = [0, 1, 0, 0], sizes = [1, 1, 576, 32], strides = [1, 1, 1, 1]} : vector<1x4x576x32xbf16> to vector<1x1x576x32xbf16>
    %13 = vector.shape_cast %12 : vector<1x1x576x32xbf16> to vector<1x576x32xbf16>
    %14 = vector.shape_cast %13 : vector<1x576x32xbf16> to vector<576x32xbf16>
    %cst_8 = arith.constant dense<0.000000e+00> : vector<576x128xf32>
    %15 = tpu.matmul %14, %1, %cst_8 {dimension_numbers = #tpu.dot_dimension_numbers<[1], [0], [0], [1], [0, 0, 1, 1], [], []>} : vector<576x32xbf16>, vector<32x128xbf16>, vector<576x128xf32> -> vector<576x128xf32>
    %16 = vector.broadcast %2 : vector<1x128xf32> to vector<576x128xf32>
    %17 = arith.addf %15, %16 : vector<576x128xf32>
    %cst_9 = arith.constant 0.000000e+00 : f32
    %18 = vector.broadcast %cst_9 : f32 to vector<576x128xf32>
    %19 = arith.maximumf %17, %18 : vector<576x128xf32>
    %20 = arith.truncf %19 : vector<576x128xf32> to vector<576x128xbf16>
    %21 = arith.maximumf %11, %20 : vector<576x128xbf16>
    %22 = vector.extract_strided_slice %0 {offsets = [0, 2, 0, 0], sizes = [1, 1, 576, 32], strides = [1, 1, 1, 1]} : vector<1x4x576x32xbf16> to vector<1x1x576x32xbf16>
    %23 = vector.shape_cast %22 : vector<1x1x576x32xbf16> to vector<1x576x32xbf16>
    %24 = vector.shape_cast %23 : vector<1x576x32xbf16> to vector<576x32xbf16>
    %cst_10 = arith.constant dense<0.000000e+00> : vector<576x128xf32>
    %25 = tpu.matmul %24, %1, %cst_10 {dimension_numbers = #tpu.dot_dimension_numbers<[1], [0], [0], [1], [0, 0, 1, 1], [], []>} : vector<576x32xbf16>, vector<32x128xbf16>, vector<576x128xf32> -> vector<576x128xf32>
    %26 = vector.broadcast %2 : vector<1x128xf32> to vector<576x128xf32>
    %27 = arith.addf %25, %26 : vector<576x128xf32>
    %cst_11 = arith.constant 0.000000e+00 : f32
    %28 = vector.broadcast %cst_11 : f32 to vector<576x128xf32>
    %29 = arith.maximumf %27, %28 : vector<576x128xf32>
    %30 = arith.truncf %29 : vector<576x128xf32> to vector<576x128xbf16>
    %31 = arith.maximumf %21, %30 : vector<576x128xbf16>
    %32 = vector.extract_strided_slice %0 {offsets = [0, 3, 0, 0], sizes = [1, 1, 576, 32], strides = [1, 1, 1, 1]} : vector<1x4x576x32xbf16> to vector<1x1x576x32xbf16>
    %33 = vector.shape_cast %32 : vector<1x1x576x32xbf16> to vector<1x576x32xbf16>
    %34 = vector.shape_cast %33 : vector<1x576x32xbf16> to vector<576x32xbf16>
    %cst_12 = arith.constant dense<0.000000e+00> : vector<576x128xf32>
    %35 = tpu.matmul %34, %1, %cst_12 {dimension_numbers = #tpu.dot_dimension_numbers<[1], [0], [0], [1], [0, 0, 1, 1], [], []>} : vector<576x32xbf16>, vector<32x128xbf16>, vector<576x128xf32> -> vector<576x128xf32>
    %36 = vector.broadcast %2 : vector<1x128xf32> to vector<576x128xf32>
    %37 = arith.addf %35, %36 : vector<576x128xf32>
    %cst_13 = arith.constant 0.000000e+00 : f32
    %38 = vector.broadcast %cst_13 : f32 to vector<576x128xf32>
    %39 = arith.maximumf %37, %38 : vector<576x128xf32>
    %40 = arith.truncf %39 : vector<576x128xf32> to vector<576x128xbf16>
    %41 = arith.maximumf %31, %40 : vector<576x128xbf16>
    %42 = vector.shape_cast %41 : vector<576x128xbf16> to vector<1x576x128xbf16>
    %c0_14 = arith.constant 0 : index
    %c0_15 = arith.constant 0 : index
    %c0_16 = arith.constant 0 : index
    %43 = vector.load %arg7[%c0_14, %c0_15, %c0_16] : memref<1x576x128xbf16, #tpu.memory_space<vmem>>, vector<1x576x128xbf16>
    tpu.vector_store %arg7[%c0_14, %c0_15, %c0_16], %42 {strides = array<i32>} : memref<1x576x128xbf16, #tpu.memory_space<vmem>>, vector<1x576x128xbf16>,
    %c0_17 = arith.constant 0 : index
    %c0_18 = arith.constant 0 : index
    %c0_19 = arith.constant 0 : index
    %44 = vector.load %arg4[%c0_17, %c0_18, %c0_19] : memref<25x128x128xbf16, #tpu.memory_space<vmem>>, vector<25x128x128xbf16>
    %c0_20 = arith.constant 0 : index
    %c0_21 = arith.constant 0 : index
    %45 = vector.load %arg5[%c0_20, %c0_21] : memref<1x128xf32, #tpu.memory_space<vmem>>, vector<1x128xf32>
    %c0_22 = arith.constant 0 : index
    %c0_23 = arith.constant 0 : index
    %c0_24 = arith.constant 0 : index
    %46 = vector.load %arg7[%c0_22, %c0_23, %c0_24] : memref<1x576x128xbf16, #tpu.memory_space<vmem>>, vector<1x16x128xbf16>
    %47 = vector.shape_cast %46 : vector<1x16x128xbf16> to vector<16x128xbf16>
    %48 = vector.extract_strided_slice %44 {offsets = [0, 0, 0], sizes = [1, 128, 128], strides = [1, 1, 1]} : vector<25x128x128xbf16> to vector<1x128x128xbf16>
    %49 = vector.shape_cast %48 : vector<1x128x128xbf16> to vector<128x128xbf16>
    %cst_25 = arith.constant dense<0.000000e+00> : vector<16x128xf32>
    %50 = tpu.matmul %47, %49, %cst_25 {dimension_numbers = #tpu.dot_dimension_numbers<[1], [0], [0], [1], [0, 0, 1, 1], [], []>} : vector<16x128xbf16>, vector<128x128xbf16>, vector<16x128xf32> -> vector<16x128xf32>
    %c0_26 = arith.constant 0 : index
    %c16 = arith.constant 16 : index
    %c0_27 = arith.constant 0 : index
    %51 = vector.load %arg7[%c0_26, %c16, %c0_27] : memref<1x576x128xbf16, #tpu.memory_space<vmem>>, vector<1x16x128xbf16>
    %52 = vector.shape_cast %51 : vector<1x16x128xbf16> to vector<16x128xbf16>
    %53 = vector.extract_strided_slice %44 {offsets = [1, 0, 0], sizes = [1, 128, 128], strides = [1, 1, 1]} : vector<25x128x128xbf16> to vector<1x128x128xbf16>
    %54 = vector.shape_cast %53 : vector<1x128x128xbf16> to vector<128x128xbf16>
    %cst_28 = arith.constant dense<0.000000e+00> : vector<16x128xf32>
    %55 = tpu.matmul %52, %54, %cst_28 {dimension_numbers = #tpu.dot_dimension_numbers<[1], [0], [0], [1], [0, 0, 1, 1], [], []>} : vector<16x128xbf16>, vector<128x128xbf16>, vector<16x128xf32> -> vector<16x128xf32>
    %56 = arith.addf %50, %55 : vector<16x128xf32>
    %c0_29 = arith.constant 0 : index
    %c32 = arith.constant 32 : index
    %c0_30 = arith.constant 0 : index
    %57 = vector.load %arg7[%c0_29, %c32, %c0_30] : memref<1x576x128xbf16, #tpu.memory_space<vmem>>, vector<1x16x128xbf16>
    %58 = vector.shape_cast %57 : vector<1x16x128xbf16> to vector<16x128xbf16>
    %59 = vector.extract_strided_slice %44 {offsets = [2, 0, 0], sizes = [1, 128, 128], strides = [1, 1, 1]} : vector<25x128x128xbf16> to vector<1x128x128xbf16>
    %60 = vector.shape_cast %59 : vector<1x128x128xbf16> to vector<128x128xbf16>
    %cst_31 = arith.constant dense<0.000000e+00> : vector<16x128xf32>
    %61 = tpu.matmul %58, %60, %cst_31 {dimension_numbers = #tpu.dot_dimension_numbers<[1], [0], [0], [1], [0, 0, 1, 1], [], []>} : vector<16x128xbf16>, vector<128x128xbf16>, vector<16x128xf32> -> vector<16x128xf32>
    %62 = arith.addf %56, %61 : vector<16x128xf32>
    %c0_32 = arith.constant 0 : index
    %c48 = arith.constant 48 : index
    %c0_33 = arith.constant 0 : index
    %63 = vector.load %arg7[%c0_32, %c48, %c0_33] : memref<1x576x128xbf16, #tpu.memory_space<vmem>>, vector<1x16x128xbf16>
    %64 = vector.shape_cast %63 : vector<1x16x128xbf16> to vector<16x128xbf16>
    %65 = vector.extract_strided_slice %44 {offsets = [3, 0, 0], sizes = [1, 128, 128], strides = [1, 1, 1]} : vector<25x128x128xbf16> to vector<1x128x128xbf16>
    %66 = vector.shape_cast %65 : vector<1x128x128xbf16> to vector<128x128xbf16>
    %cst_34 = arith.constant dense<0.000000e+00> : vector<16x128xf32>
    %67 = tpu.matmul %64, %66, %cst_34 {dimension_numbers = #tpu.dot_dimension_numbers<[1], [0], [0], [1], [0, 0, 1, 1], [], []>} : vector<16x128xbf16>, vector<128x128xbf16>, vector<16x128xf32> -> vector<16x128xf32>
    %68 = arith.addf %62, %67 : vector<16x128xf32>
    %c0_35 = arith.constant 0 : index
    %c64 = arith.constant 64 : index
    %c0_36 = arith.constant 0 : index
    %69 = vector.load %arg7[%c0_35, %c64, %c0_36] : memref<1x576x128xbf16, #tpu.memory_space<vmem>>, vector<1x16x128xbf16>
    %70 = vector.shape_cast %69 : vector<1x16x128xbf16> to vector<16x128xbf16>
    %71 = vector.extract_strided_slice %44 {offsets = [4, 0, 0], sizes = [1, 128, 128], strides = [1, 1, 1]} : vector<25x128x128xbf16> to vector<1x128x128xbf16>
    %72 = vector.shape_cast %71 : vector<1x128x128xbf16> to vector<128x128xbf16>
    %cst_37 = arith.constant dense<0.000000e+00> : vector<16x128xf32>
    %73 = tpu.matmul %70, %72, %cst_37 {dimension_numbers = #tpu.dot_dimension_numbers<[1], [0], [0], [1], [0, 0, 1, 1], [], []>} : vector<16x128xbf16>, vector<128x128xbf16>, vector<16x128xf32> -> vector<16x128xf32>
    %74 = arith.addf %68, %73 : vector<16x128xf32>
    %c0_38 = arith.constant 0 : index
    %c96 = arith.constant 96 : index
    %c0_39 = arith.constant 0 : index
    %75 = vector.load %arg7[%c0_38, %c96, %c0_39] : memref<1x576x128xbf16, #tpu.memory_space<vmem>>, vector<1x16x128xbf16>
    %76 = vector.shape_cast %75 : vector<1x16x128xbf16> to vector<16x128xbf16>
    %77 = vector.extract_strided_slice %44 {offsets = [5, 0, 0], sizes = [1, 128, 128], strides = [1, 1, 1]} : vector<25x128x128xbf16> to vector<1x128x128xbf16>
    %78 = vector.shape_cast %77 : vector<1x128x128xbf16> to vector<128x128xbf16>
    %cst_40 = arith.constant dense<0.000000e+00> : vector<16x128xf32>
    %79 = tpu.matmul %76, %78, %cst_40 {dimension_numbers = #tpu.dot_dimension_numbers<[1], [0], [0], [1], [0, 0, 1, 1], [], []>} : vector<16x128xbf16>, vector<128x128xbf16>, vector<16x128xf32> -> vector<16x128xf32>
    %80 = arith.addf %74, %79 : vector<16x128xf32>
    %c0_41 = arith.constant 0 : index
    %c112 = arith.constant 112 : index
    %c0_42 = arith.constant 0 : index
    %81 = vector.load %arg7[%c0_41, %c112, %c0_42] : memref<1x576x128xbf16, #tpu.memory_space<vmem>>, vector<1x16x128xbf16>
    %82 = vector.shape_cast %81 : vector<1x16x128xbf16> to vector<16x128xbf16>
    %83 = vector.extract_strided_slice %44 {offsets = [6, 0, 0], sizes = [1, 128, 128], strides = [1, 1, 1]} : vector<25x128x128xbf16> to vector<1x128x128xbf16>
    %84 = vector.shape_cast %83 : vector<1x128x128xbf16> to vector<128x128xbf16>
    %cst_43 = arith.constant dense<0.000000e+00> : vector<16x128xf32>
    %85 = tpu.matmul %82, %84, %cst_43 {dimension_numbers = #tpu.dot_dimension_numbers<[1], [0], [0], [1], [0, 0, 1, 1], [], []>} : vector<16x128xbf16>, vector<128x128xbf16>, vector<16x128xf32> -> vector<16x128xf32>
    %86 = arith.addf %80, %85 : vector<16x128xf32>
    %c0_44 = arith.constant 0 : index
    %c128 = arith.constant 128 : index
    %c0_45 = arith.constant 0 : index
    %87 = vector.load %arg7[%c0_44, %c128, %c0_45] : memref<1x576x128xbf16, #tpu.memory_space<vmem>>, vector<1x16x128xbf16>
    %88 = vector.shape_cast %87 : vector<1x16x128xbf16> to vector<16x128xbf16>
    %89 = vector.extract_strided_slice %44 {offsets = [7, 0, 0], sizes = [1, 128, 128], strides = [1, 1, 1]} : vector<25x128x128xbf16> to vector<1x128x128xbf16>
    %90 = vector.shape_cast %89 : vector<1x128x128xbf16> to vector<128x128xbf16>
    %cst_46 = arith.constant dense<0.000000e+00> : vector<16x128xf32>
    %91 = tpu.matmul %88, %90, %cst_46 {dimension_numbers = #tpu.dot_dimension_numbers<[1], [0], [0], [1], [0, 0, 1, 1], [], []>} : vector<16x128xbf16>, vector<128x128xbf16>, vector<16x128xf32> -> vector<16x128xf32>
    %92 = arith.addf %86, %91 : vector<16x128xf32>
    %c0_47 = arith.constant 0 : index
    %c144 = arith.constant 144 : index
    %c0_48 = arith.constant 0 : index
    %93 = vector.load %arg7[%c0_47, %c144, %c0_48] : memref<1x576x128xbf16, #tpu.memory_space<vmem>>, vector<1x16x128xbf16>
    %94 = vector.shape_cast %93 : vector<1x16x128xbf16> to vector<16x128xbf16>
    %95 = vector.extract_strided_slice %44 {offsets = [8, 0, 0], sizes = [1, 128, 128], strides = [1, 1, 1]} : vector<25x128x128xbf16> to vector<1x128x128xbf16>
    %96 = vector.shape_cast %95 : vector<1x128x128xbf16> to vector<128x128xbf16>
    %cst_49 = arith.constant dense<0.000000e+00> : vector<16x128xf32>
    %97 = tpu.matmul %94, %96, %cst_49 {dimension_numbers = #tpu.dot_dimension_numbers<[1], [0], [0], [1], [0, 0, 1, 1], [], []>} : vector<16x128xbf16>, vector<128x128xbf16>, vector<16x128xf32> -> vector<16x128xf32>
    %98 = arith.addf %92, %97 : vector<16x128xf32>
    %c0_50 = arith.constant 0 : index
    %c160 = arith.constant 160 : index
    %c0_51 = arith.constant 0 : index
    %99 = vector.load %arg7[%c0_50, %c160, %c0_51] : memref<1x576x128xbf16, #tpu.memory_space<vmem>>, vector<1x16x128xbf16>
    %100 = vector.shape_cast %99 : vector<1x16x128xbf16> to vector<16x128xbf16>
    %101 = vector.extract_strided_slice %44 {offsets = [9, 0, 0], sizes = [1, 128, 128], strides = [1, 1, 1]} : vector<25x128x128xbf16> to vector<1x128x128xbf16>
    %102 = vector.shape_cast %101 : vector<1x128x128xbf16> to vector<128x128xbf16>
    %cst_52 = arith.constant dense<0.000000e+00> : vector<16x128xf32>
    %103 = tpu.matmul %100, %102, %cst_52 {dimension_numbers = #tpu.dot_dimension_numbers<[1], [0], [0], [1], [0, 0, 1, 1], [], []>} : vector<16x128xbf16>, vector<128x128xbf16>, vector<16x128xf32> -> vector<16x128xf32>
    %104 = arith.addf %98, %103 : vector<16x128xf32>
    %c0_53 = arith.constant 0 : index
    %c192 = arith.constant 192 : index
    %c0_54 = arith.constant 0 : index
    %105 = vector.load %arg7[%c0_53, %c192, %c0_54] : memref<1x576x128xbf16, #tpu.memory_space<vmem>>, vector<1x16x128xbf16>
    %106 = vector.shape_cast %105 : vector<1x16x128xbf16> to vector<16x128xbf16>
    %107 = vector.extract_strided_slice %44 {offsets = [10, 0, 0], sizes = [1, 128, 128], strides = [1, 1, 1]} : vector<25x128x128xbf16> to vector<1x128x128xbf16>
    %108 = vector.shape_cast %107 : vector<1x128x128xbf16> to vector<128x128xbf16>
    %cst_55 = arith.constant dense<0.000000e+00> : vector<16x128xf32>
    %109 = tpu.matmul %106, %108, %cst_55 {dimension_numbers = #tpu.dot_dimension_numbers<[1], [0], [0], [1], [0, 0, 1, 1], [], []>} : vector<16x128xbf16>, vector<128x128xbf16>, vector<16x128xf32> -> vector<16x128xf32>
    %110 = arith.addf %104, %109 : vector<16x128xf32>
    %c0_56 = arith.constant 0 : index
    %c208 = arith.constant 208 : index
    %c0_57 = arith.constant 0 : index
    %111 = vector.load %arg7[%c0_56, %c208, %c0_57] : memref<1x576x128xbf16, #tpu.memory_space<vmem>>, vector<1x16x128xbf16>
    %112 = vector.shape_cast %111 : vector<1x16x128xbf16> to vector<16x128xbf16>
    %113 = vector.extract_strided_slice %44 {offsets = [11, 0, 0], sizes = [1, 128, 128], strides = [1, 1, 1]} : vector<25x128x128xbf16> to vector<1x128x128xbf16>
    %114 = vector.shape_cast %113 : vector<1x128x128xbf16> to vector<128x128xbf16>
    %cst_58 = arith.constant dense<0.000000e+00> : vector<16x128xf32>
    %115 = tpu.matmul %112, %114, %cst_58 {dimension_numbers = #tpu.dot_dimension_numbers<[1], [0], [0], [1], [0, 0, 1, 1], [], []>} : vector<16x128xbf16>, vector<128x128xbf16>, vector<16x128xf32> -> vector<16x128xf32>
    %116 = arith.addf %110, %115 : vector<16x128xf32>
    %c0_59 = arith.constant 0 : index
    %c224 = arith.constant 224 : index
    %c0_60 = arith.constant 0 : index
    %117 = vector.load %arg7[%c0_59, %c224, %c0_60] : memref<1x576x128xbf16, #tpu.memory_space<vmem>>, vector<1x16x128xbf16>
    %118 = vector.shape_cast %117 : vector<1x16x128xbf16> to vector<16x128xbf16>
    %119 = vector.extract_strided_slice %44 {offsets = [12, 0, 0], sizes = [1, 128, 128], strides = [1, 1, 1]} : vector<25x128x128xbf16> to vector<1x128x128xbf16>
    %120 = vector.shape_cast %119 : vector<1x128x128xbf16> to vector<128x128xbf16>
    %cst_61 = arith.constant dense<0.000000e+00> : vector<16x128xf32>
    %121 = tpu.matmul %118, %120, %cst_61 {dimension_numbers = #tpu.dot_dimension_numbers<[1], [0], [0], [1], [0, 0, 1, 1], [], []>} : vector<16x128xbf16>, vector<128x128xbf16>, vector<16x128xf32> -> vector<16x128xf32>
    %122 = arith.addf %116, %121 : vector<16x128xf32>
    %c0_62 = arith.constant 0 : index
    %c240 = arith.constant 240 : index
    %c0_63 = arith.constant 0 : index
    %123 = vector.load %arg7[%c0_62, %c240, %c0_63] : memref<1x576x128xbf16, #tpu.memory_space<vmem>>, vector<1x16x128xbf16>
    %124 = vector.shape_cast %123 : vector<1x16x128xbf16> to vector<16x128xbf16>
    %125 = vector.extract_strided_slice %44 {offsets = [13, 0, 0], sizes = [1, 128, 128], strides = [1, 1, 1]} : vector<25x128x128xbf16> to vector<1x128x128xbf16>
    %126 = vector.shape_cast %125 : vector<1x128x128xbf16> to vector<128x128xbf16>
    %cst_64 = arith.constant dense<0.000000e+00> : vector<16x128xf32>
    %127 = tpu.matmul %124, %126, %cst_64 {dimension_numbers = #tpu.dot_dimension_numbers<[1], [0], [0], [1], [0, 0, 1, 1], [], []>} : vector<16x128xbf16>, vector<128x128xbf16>, vector<16x128xf32> -> vector<16x128xf32>
    %128 = arith.addf %122, %127 : vector<16x128xf32>
    %c0_65 = arith.constant 0 : index
    %c256 = arith.constant 256 : index
    %c0_66 = arith.constant 0 : index
    %129 = vector.load %arg7[%c0_65, %c256, %c0_66] : memref<1x576x128xbf16, #tpu.memory_space<vmem>>, vector<1x16x128xbf16>
    %130 = vector.shape_cast %129 : vector<1x16x128xbf16> to vector<16x128xbf16>
    %131 = vector.extract_strided_slice %44 {offsets = [14, 0, 0], sizes = [1, 128, 128], strides = [1, 1, 1]} : vector<25x128x128xbf16> to vector<1x128x128xbf16>
    %132 = vector.shape_cast %131 : vector<1x128x128xbf16> to vector<128x128xbf16>
    %cst_67 = arith.constant dense<0.000000e+00> : vector<16x128xf32>
    %133 = tpu.matmul %130, %132, %cst_67 {dimension_numbers = #tpu.dot_dimension_numbers<[1], [0], [0], [1], [0, 0, 1, 1], [], []>} : vector<16x128xbf16>, vector<128x128xbf16>, vector<16x128xf32> -> vector<16x128xf32>
    %134 = arith.addf %128, %133 : vector<16x128xf32>
    %c0_68 = arith.constant 0 : index
    %c288 = arith.constant 288 : index
    %c0_69 = arith.constant 0 : index
    %135 = vector.load %arg7[%c0_68, %c288, %c0_69] : memref<1x576x128xbf16, #tpu.memory_space<vmem>>, vector<1x16x128xbf16>
    %136 = vector.shape_cast %135 : vector<1x16x128xbf16> to vector<16x128xbf16>
    %137 = vector.extract_strided_slice %44 {offsets = [15, 0, 0], sizes = [1, 128, 128], strides = [1, 1, 1]} : vector<25x128x128xbf16> to vector<1x128x128xbf16>
    %138 = vector.shape_cast %137 : vector<1x128x128xbf16> to vector<128x128xbf16>
    %cst_70 = arith.constant dense<0.000000e+00> : vector<16x128xf32>
    %139 = tpu.matmul %136, %138, %cst_70 {dimension_numbers = #tpu.dot_dimension_numbers<[1], [0], [0], [1], [0, 0, 1, 1], [], []>} : vector<16x128xbf16>, vector<128x128xbf16>, vector<16x128xf32> -> vector<16x128xf32>
    %140 = arith.addf %134, %139 : vector<16x128xf32>
    %c0_71 = arith.constant 0 : index
    %c304 = arith.constant 304 : index
    %c0_72 = arith.constant 0 : index
    %141 = vector.load %arg7[%c0_71, %c304, %c0_72] : memref<1x576x128xbf16, #tpu.memory_space<vmem>>, vector<1x16x128xbf16>
    %142 = vector.shape_cast %141 : vector<1x16x128xbf16> to vector<16x128xbf16>
    %143 = vector.extract_strided_slice %44 {offsets = [16, 0, 0], sizes = [1, 128, 128], strides = [1, 1, 1]} : vector<25x128x128xbf16> to vector<1x128x128xbf16>
    %144 = vector.shape_cast %143 : vector<1x128x128xbf16> to vector<128x128xbf16>
    %cst_73 = arith.constant dense<0.000000e+00> : vector<16x128xf32>
    %145 = tpu.matmul %142, %144, %cst_73 {dimension_numbers = #tpu.dot_dimension_numbers<[1], [0], [0], [1], [0, 0, 1, 1], [], []>} : vector<16x128xbf16>, vector<128x128xbf16>, vector<16x128xf32> -> vector<16x128xf32>
    %146 = arith.addf %140, %145 : vector<16x128xf32>
    %c0_74 = arith.constant 0 : index
    %c320 = arith.constant 320 : index
    %c0_75 = arith.constant 0 : index
    %147 = vector.load %arg7[%c0_74, %c320, %c0_75] : memref<1x576x128xbf16, #tpu.memory_space<vmem>>, vector<1x16x128xbf16>
    %148 = vector.shape_cast %147 : vector<1x16x128xbf16> to vector<16x128xbf16>
    %149 = vector.extract_strided_slice %44 {offsets = [17, 0, 0], sizes = [1, 128, 128], strides = [1, 1, 1]} : vector<25x128x128xbf16> to vector<1x128x128xbf16>
    %150 = vector.shape_cast %149 : vector<1x128x128xbf16> to vector<128x128xbf16>
    %cst_76 = arith.constant dense<0.000000e+00> : vector<16x128xf32>
    %151 = tpu.matmul %148, %150, %cst_76 {dimension_numbers = #tpu.dot_dimension_numbers<[1], [0], [0], [1], [0, 0, 1, 1], [], []>} : vector<16x128xbf16>, vector<128x128xbf16>, vector<16x128xf32> -> vector<16x128xf32>
    %152 = arith.addf %146, %151 : vector<16x128xf32>
    %c0_77 = arith.constant 0 : index
    %c336 = arith.constant 336 : index
    %c0_78 = arith.constant 0 : index
    %153 = vector.load %arg7[%c0_77, %c336, %c0_78] : memref<1x576x128xbf16, #tpu.memory_space<vmem>>, vector<1x16x128xbf16>
    %154 = vector.shape_cast %153 : vector<1x16x128xbf16> to vector<16x128xbf16>
    %155 = vector.extract_strided_slice %44 {offsets = [18, 0, 0], sizes = [1, 128, 128], strides = [1, 1, 1]} : vector<25x128x128xbf16> to vector<1x128x128xbf16>
    %156 = vector.shape_cast %155 : vector<1x128x128xbf16> to vector<128x128xbf16>
    %cst_79 = arith.constant dense<0.000000e+00> : vector<16x128xf32>
    %157 = tpu.matmul %154, %156, %cst_79 {dimension_numbers = #tpu.dot_dimension_numbers<[1], [0], [0], [1], [0, 0, 1, 1], [], []>} : vector<16x128xbf16>, vector<128x128xbf16>, vector<16x128xf32> -> vector<16x128xf32>
    %158 = arith.addf %152, %157 : vector<16x128xf32>
    %c0_80 = arith.constant 0 : index
    %c352 = arith.constant 352 : index
    %c0_81 = arith.constant 0 : index
    %159 = vector.load %arg7[%c0_80, %c352, %c0_81] : memref<1x576x128xbf16, #tpu.memory_space<vmem>>, vector<1x16x128xbf16>
    %160 = vector.shape_cast %159 : vector<1x16x128xbf16> to vector<16x128xbf16>
    %161 = vector.extract_strided_slice %44 {offsets = [19, 0, 0], sizes = [1, 128, 128], strides = [1, 1, 1]} : vector<25x128x128xbf16> to vector<1x128x128xbf16>
    %162 = vector.shape_cast %161 : vector<1x128x128xbf16> to vector<128x128xbf16>
    %cst_82 = arith.constant dense<0.000000e+00> : vector<16x128xf32>
    %163 = tpu.matmul %160, %162, %cst_82 {dimension_numbers = #tpu.dot_dimension_numbers<[1], [0], [0], [1], [0, 0, 1, 1], [], []>} : vector<16x128xbf16>, vector<128x128xbf16>, vector<16x128xf32> -> vector<16x128xf32>
    %164 = arith.addf %158, %163 : vector<16x128xf32>
    %c0_83 = arith.constant 0 : index
    %c384 = arith.constant 384 : index
    %c0_84 = arith.constant 0 : index
    %165 = vector.load %arg7[%c0_83, %c384, %c0_84] : memref<1x576x128xbf16, #tpu.memory_space<vmem>>, vector<1x16x128xbf16>
    %166 = vector.shape_cast %165 : vector<1x16x128xbf16> to vector<16x128xbf16>
    %167 = vector.extract_strided_slice %44 {offsets = [20, 0, 0], sizes = [1, 128, 128], strides = [1, 1, 1]} : vector<25x128x128xbf16> to vector<1x128x128xbf16>
    %168 = vector.shape_cast %167 : vector<1x128x128xbf16> to vector<128x128xbf16>
    %cst_85 = arith.constant dense<0.000000e+00> : vector<16x128xf32>
    %169 = tpu.matmul %166, %168, %cst_85 {dimension_numbers = #tpu.dot_dimension_numbers<[1], [0], [0], [1], [0, 0, 1, 1], [], []>} : vector<16x128xbf16>, vector<128x128xbf16>, vector<16x128xf32> -> vector<16x128xf32>
    %170 = arith.addf %164, %169 : vector<16x128xf32>
    %c0_86 = arith.constant 0 : index
    %c400 = arith.constant 400 : index
    %c0_87 = arith.constant 0 : index
    %171 = vector.load %arg7[%c0_86, %c400, %c0_87] : memref<1x576x128xbf16, #tpu.memory_space<vmem>>, vector<1x16x128xbf16>
    %172 = vector.shape_cast %171 : vector<1x16x128xbf16> to vector<16x128xbf16>
    %173 = vector.extract_strided_slice %44 {offsets = [21, 0, 0], sizes = [1, 128, 128], strides = [1, 1, 1]} : vector<25x128x128xbf16> to vector<1x128x128xbf16>
    %174 = vector.shape_cast %173 : vector<1x128x128xbf16> to vector<128x128xbf16>
    %cst_88 = arith.constant dense<0.000000e+00> : vector<16x128xf32>
    %175 = tpu.matmul %172, %174, %cst_88 {dimension_numbers = #tpu.dot_dimension_numbers<[1], [0], [0], [1], [0, 0, 1, 1], [], []>} : vector<16x128xbf16>, vector<128x128xbf16>, vector<16x128xf32> -> vector<16x128xf32>
    %176 = arith.addf %170, %175 : vector<16x128xf32>
    %c0_89 = arith.constant 0 : index
    %c416 = arith.constant 416 : index
    %c0_90 = arith.constant 0 : index
    %177 = vector.load %arg7[%c0_89, %c416, %c0_90] : memref<1x576x128xbf16, #tpu.memory_space<vmem>>, vector<1x16x128xbf16>
    %178 = vector.shape_cast %177 : vector<1x16x128xbf16> to vector<16x128xbf16>
    %179 = vector.extract_strided_slice %44 {offsets = [22, 0, 0], sizes = [1, 128, 128], strides = [1, 1, 1]} : vector<25x128x128xbf16> to vector<1x128x128xbf16>
    %180 = vector.shape_cast %179 : vector<1x128x128xbf16> to vector<128x128xbf16>
    %cst_91 = arith.constant dense<0.000000e+00> : vector<16x128xf32>
    %181 = tpu.matmul %178, %180, %cst_91 {dimension_numbers = #tpu.dot_dimension_numbers<[1], [0], [0], [1], [0, 0, 1, 1], [], []>} : vector<16x128xbf16>, vector<128x128xbf16>, vector<16x128xf32> -> vector<16x128xf32>
    %182 = arith.addf %176, %181 : vector<16x128xf32>
    %c0_92 = arith.constant 0 : index
    %c432 = arith.constant 432 : index
    %c0_93 = arith.constant 0 : index
    %183 = vector.load %arg7[%c0_92, %c432, %c0_93] : memref<1x576x128xbf16, #tpu.memory_space<vmem>>, vector<1x16x128xbf16>
    %184 = vector.shape_cast %183 : vector<1x16x128xbf16> to vector<16x128xbf16>
    %185 = vector.extract_strided_slice %44 {offsets = [23, 0, 0], sizes = [1, 128, 128], strides = [1, 1, 1]} : vector<25x128x128xbf16> to vector<1x128x128xbf16>
    %186 = vector.shape_cast %185 : vector<1x128x128xbf16> to vector<128x128xbf16>
    %cst_94 = arith.constant dense<0.000000e+00> : vector<16x128xf32>
    %187 = tpu.matmul %184, %186, %cst_94 {dimension_numbers = #tpu.dot_dimension_numbers<[1], [0], [0], [1], [0, 0, 1, 1], [], []>} : vector<16x128xbf16>, vector<128x128xbf16>, vector<16x128xf32> -> vector<16x128xf32>
    %188 = arith.addf %182, %187 : vector<16x128xf32>
    %c0_95 = arith.constant 0 : index
    %c448 = arith.constant 448 : index
    %c0_96 = arith.constant 0 : index
    %189 = vector.load %arg7[%c0_95, %c448, %c0_96] : memref<1x576x128xbf16, #tpu.memory_space<vmem>>, vector<1x16x128xbf16>
    %190 = vector.shape_cast %189 : vector<1x16x128xbf16> to vector<16x128xbf16>
    %191 = vector.extract_strided_slice %44 {offsets = [24, 0, 0], sizes = [1, 128, 128], strides = [1, 1, 1]} : vector<25x128x128xbf16> to vector<1x128x128xbf16>
    %192 = vector.shape_cast %191 : vector<1x128x128xbf16> to vector<128x128xbf16>
    %cst_97 = arith.constant dense<0.000000e+00> : vector<16x128xf32>
    %193 = tpu.matmul %190, %192, %cst_97 {dimension_numbers = #tpu.dot_dimension_numbers<[1], [0], [0], [1], [0, 0, 1, 1], [], []>} : vector<16x128xbf16>, vector<128x128xbf16>, vector<16x128xf32> -> vector<16x128xf32>
    %194 = arith.addf %188, %193 : vector<16x128xf32>
    %c0_98 = arith.constant 0 : index
    %c16_99 = arith.constant 16 : index
    %c0_100 = arith.constant 0 : index
    %195 = vector.load %arg7[%c0_98, %c16_99, %c0_100] : memref<1x576x128xbf16, #tpu.memory_space<vmem>>, vector<1x16x128xbf16>
    %196 = vector.shape_cast %195 : vector<1x16x128xbf16> to vector<16x128xbf16>
    %197 = vector.extract_strided_slice %44 {offsets = [0, 0, 0], sizes = [1, 128, 128], strides = [1, 1, 1]} : vector<25x128x128xbf16> to vector<1x128x128xbf16>
    %198 = vector.shape_cast %197 : vector<1x128x128xbf16> to vector<128x128xbf16>
    %cst_101 = arith.constant dense<0.000000e+00> : vector<16x128xf32>
    %199 = tpu.matmul %196, %198, %cst_101 {dimension_numbers = #tpu.dot_dimension_numbers<[1], [0], [0], [1], [0, 0, 1, 1], [], []>} : vector<16x128xbf16>, vector<128x128xbf16>, vector<16x128xf32> -> vector<16x128xf32>
    %c0_102 = arith.constant 0 : index
    %c32_103 = arith.constant 32 : index
    %c0_104 = arith.constant 0 : index
    %200 = vector.load %arg7[%c0_102, %c32_103, %c0_104] : memref<1x576x128xbf16, #tpu.memory_space<vmem>>, vector<1x16x128xbf16>
    %201 = vector.shape_cast %200 : vector<1x16x128xbf16> to vector<16x128xbf16>
    %202 = vector.extract_strided_slice %44 {offsets = [1, 0, 0], sizes = [1, 128, 128], strides = [1, 1, 1]} : vector<25x128x128xbf16> to vector<1x128x128xbf16>
    %203 = vector.shape_cast %202 : vector<1x128x128xbf16> to vector<128x128xbf16>
    %cst_105 = arith.constant dense<0.000000e+00> : vector<16x128xf32>
    %204 = tpu.matmul %201, %203, %cst_105 {dimension_numbers = #tpu.dot_dimension_numbers<[1], [0], [0], [1], [0, 0, 1, 1], [], []>} : vector<16x128xbf16>, vector<128x128xbf16>, vector<16x128xf32> -> vector<16x128xf32>
    %205 = arith.addf %199, %204 : vector<16x128xf32>
    %c0_106 = arith.constant 0 : index
    %c48_107 = arith.constant 48 : index
    %c0_108 = arith.constant 0 : index
    %206 = vector.load %arg7[%c0_106, %c48_107, %c0_108] : memref<1x576x128xbf16, #tpu.memory_space<vmem>>, vector<1x16x128xbf16>
    %207 = vector.shape_cast %206 : vector<1x16x128xbf16> to vector<16x128xbf16>
    %208 = vector.extract_strided_slice %44 {offsets = [2, 0, 0], sizes = [1, 128, 128], strides = [1, 1, 1]} : vector<25x128x128xbf16> to vector<1x128x128xbf16>
    %209 = vector.shape_cast %208 : vector<1x128x128xbf16> to vector<128x128xbf16>
    %cst_109 = arith.constant dense<0.000000e+00> : vector<16x128xf32>
    %210 = tpu.matmul %207, %209, %cst_109 {dimension_numbers = #tpu.dot_dimension_numbers<[1], [0], [0], [1], [0, 0, 1, 1], [], []>} : vector<16x128xbf16>, vector<128x128xbf16>, vector<16x128xf32> -> vector<16x128xf32>
    %211 = arith.addf %205, %210 : vector<16x128xf32>
    %c0_110 = arith.constant 0 : index
    %c64_111 = arith.constant 64 : index
    %c0_112 = arith.constant 0 : index
    %212 = vector.load %arg7[%c0_110, %c64_111, %c0_112] : memref<1x576x128xbf16, #tpu.memory_space<vmem>>, vector<1x16x128xbf16>
    %213 = vector.shape_cast %212 : vector<1x16x128xbf16> to vector<16x128xbf16>
    %214 = vector.extract_strided_slice %44 {offsets = [3, 0, 0], sizes = [1, 128, 128], strides = [1, 1, 1]} : vector<25x128x128xbf16> to vector<1x128x128xbf16>
    %215 = vector.shape_cast %214 : vector<1x128x128xbf16> to vector<128x128xbf16>
    %cst_113 = arith.constant dense<0.000000e+00> : vector<16x128xf32>
    %216 = tpu.matmul %213, %215, %cst_113 {dimension_numbers = #tpu.dot_dimension_numbers<[1], [0], [0], [1], [0, 0, 1, 1], [], []>} : vector<16x128xbf16>, vector<128x128xbf16>, vector<16x128xf32> -> vector<16x128xf32>
    %217 = arith.addf %211, %216 : vector<16x128xf32>
    %c0_114 = arith.constant 0 : index
    %c80 = arith.constant 80 : index
    %c0_115 = arith.constant 0 : index
    %218 = vector.load %arg7[%c0_114, %c80, %c0_115] : memref<1x576x128xbf16, #tpu.memory_space<vmem>>, vector<1x16x128xbf16>
    %219 = vector.shape_cast %218 : vector<1x16x128xbf16> to vector<16x128xbf16>
    %220 = vector.extract_strided_slice %44 {offsets = [4, 0, 0], sizes = [1, 128, 128], strides = [1, 1, 1]} : vector<25x128x128xbf16> to vector<1x128x128xbf16>
    %221 = vector.shape_cast %220 : vector<1x128x128xbf16> to vector<128x128xbf16>
    %cst_116 = arith.constant dense<0.000000e+00> : vector<16x128xf32>
    %222 = tpu.matmul %219, %221, %cst_116 {dimension_numbers = #tpu.dot_dimension_numbers<[1], [0], [0], [1], [0, 0, 1, 1], [], []>} : vector<16x128xbf16>, vector<128x128xbf16>, vector<16x128xf32> -> vector<16x128xf32>
    %223 = arith.addf %217, %222 : vector<16x128xf32>
    %c0_117 = arith.constant 0 : index
    %c112_118 = arith.constant 112 : index
    %c0_119 = arith.constant 0 : index
    %224 = vector.load %arg7[%c0_117, %c112_118, %c0_119] : memref<1x576x128xbf16, #tpu.memory_space<vmem>>, vector<1x16x128xbf16>
    %225 = vector.shape_cast %224 : vector<1x16x128xbf16> to vector<16x128xbf16>
    %226 = vector.extract_strided_slice %44 {offsets = [5, 0, 0], sizes = [1, 128, 128], strides = [1, 1, 1]} : vector<25x128x128xbf16> to vector<1x128x128xbf16>
    %227 = vector.shape_cast %226 : vector<1x128x128xbf16> to vector<128x128xbf16>
    %cst_120 = arith.constant dense<0.000000e+00> : vector<16x128xf32>
    %228 = tpu.matmul %225, %227, %cst_120 {dimension_numbers = #tpu.dot_dimension_numbers<[1], [0], [0], [1], [0, 0, 1, 1], [], []>} : vector<16x128xbf16>, vector<128x128xbf16>, vector<16x128xf32> -> vector<16x128xf32>
    %229 = arith.addf %223, %228 : vector<16x128xf32>
    %c0_121 = arith.constant 0 : index
    %c128_122 = arith.constant 128 : index
    %c0_123 = arith.constant 0 : index
    %230 = vector.load %arg7[%c0_121, %c128_122, %c0_123] : memref<1x576x128xbf16, #tpu.memory_space<vmem>>, vector<1x16x128xbf16>
    %231 = vector.shape_cast %230 : vector<1x16x128xbf16> to vector<16x128xbf16>
    %232 = vector.extract_strided_slice %44 {offsets = [6, 0, 0], sizes = [1, 128, 128], strides = [1, 1, 1]} : vector<25x128x128xbf16> to vector<1x128x128xbf16>
    %233 = vector.shape_cast %232 : vector<1x128x128xbf16> to vector<128x128xbf16>
    %cst_124 = arith.constant dense<0.000000e+00> : vector<16x128xf32>
    %234 = tpu.matmul %231, %233, %cst_124 {dimension_numbers = #tpu.dot_dimension_numbers<[1], [0], [0], [1], [0, 0, 1, 1], [], []>} : vector<16x128xbf16>, vector<128x128xbf16>, vector<16x128xf32> -> vector<16x128xf32>
    %235 = arith.addf %229, %234 : vector<16x128xf32>
    %c0_125 = arith.constant 0 : index
    %c144_126 = arith.constant 144 : index
    %c0_127 = arith.constant 0 : index
    %236 = vector.load %arg7[%c0_125, %c144_126, %c0_127] : memref<1x576x128xbf16, #tpu.memory_space<vmem>>, vector<1x16x128xbf16>
    %237 = vector.shape_cast %236 : vector<1x16x128xbf16> to vector<16x128xbf16>
    %238 = vector.extract_strided_slice %44 {offsets = [7, 0, 0], sizes = [1, 128, 128], strides = [1, 1, 1]} : vector<25x128x128xbf16> to vector<1x128x128xbf16>
    %239 = vector.shape_cast %238 : vector<1x128x128xbf16> to vector<128x128xbf16>
    %cst_128 = arith.constant dense<0.000000e+00> : vector<16x128xf32>
    %240 = tpu.matmul %237, %239, %cst_128 {dimension_numbers = #tpu.dot_dimension_numbers<[1], [0], [0], [1], [0, 0, 1, 1], [], []>} : vector<16x128xbf16>, vector<128x128xbf16>, vector<16x128xf32> -> vector<16x128xf32>
    %241 = arith.addf %235, %240 : vector<16x128xf32>
    %c0_129 = arith.constant 0 : index
    %c160_130 = arith.constant 160 : index
    %c0_131 = arith.constant 0 : index
    %242 = vector.load %arg7[%c0_129, %c160_130, %c0_131] : memref<1x576x128xbf16, #tpu.memory_space<vmem>>, vector<1x16x128xbf16>
    %243 = vector.shape_cast %242 : vector<1x16x128xbf16> to vector<16x128xbf16>
    %244 = vector.extract_strided_slice %44 {offsets = [8, 0, 0], sizes = [1, 128, 128], strides = [1, 1, 1]} : vector<25x128x128xbf16> to vector<1x128x128xbf16>
    %245 = vector.shape_cast %244 : vector<1x128x128xbf16> to vector<128x128xbf16>
    %cst_132 = arith.constant dense<0.000000e+00> : vector<16x128xf32>
    %246 = tpu.matmul %243, %245, %cst_132 {dimension_numbers = #tpu.dot_dimension_numbers<[1], [0], [0], [1], [0, 0, 1, 1], [], []>} : vector<16x128xbf16>, vector<128x128xbf16>, vector<16x128xf32> -> vector<16x128xf32>
    %247 = arith.addf %241, %246 : vector<16x128xf32>
    %c0_133 = arith.constant 0 : index
    %c176 = arith.constant 176 : index
    %c0_134 = arith.constant 0 : index
    %248 = vector.load %arg7[%c0_133, %c176, %c0_134] : memref<1x576x128xbf16, #tpu.memory_space<vmem>>, vector<1x16x128xbf16>
    %249 = vector.shape_cast %248 : vector<1x16x128xbf16> to vector<16x128xbf16>
    %250 = vector.extract_strided_slice %44 {offsets = [9, 0, 0], sizes = [1, 128, 128], strides = [1, 1, 1]} : vector<25x128x128xbf16> to vector<1x128x128xbf16>
    %251 = vector.shape_cast %250 : vector<1x128x128xbf16> to vector<128x128xbf16>
    %cst_135 = arith.constant dense<0.000000e+00> : vector<16x128xf32>
    %252 = tpu.matmul %249, %251, %cst_135 {dimension_numbers = #tpu.dot_dimension_numbers<[1], [0], [0], [1], [0, 0, 1, 1], [], []>} : vector<16x128xbf16>, vector<128x128xbf16>, vector<16x128xf32> -> vector<16x128xf32>
    %253 = arith.addf %247, %252 : vector<16x128xf32>
    %c0_136 = arith.constant 0 : index
    %c208_137 = arith.constant 208 : index
    %c0_138 = arith.constant 0 : index
    %254 = vector.load %arg7[%c0_136, %c208_137, %c0_138] : memref<1x576x128xbf16, #tpu.memory_space<vmem>>, vector<1x16x128xbf16>
    %255 = vector.shape_cast %254 : vector<1x16x128xbf16> to vector<16x128xbf16>
    %256 = vector.extract_strided_slice %44 {offsets = [10, 0, 0], sizes = [1, 128, 128], strides = [1, 1, 1]} : vector<25x128x128xbf16> to vector<1x128x128xbf16>
    %257 = vector.shape_cast %256 : vector<1x128x128xbf16> to vector<128x128xbf16>
    %cst_139 = arith.constant dense<0.000000e+00> : vector<16x128xf32>
    %258 = tpu.matmul %255, %257, %cst_139 {dimension_numbers = #tpu.dot_dimension_numbers<[1], [0], [0], [1], [0, 0, 1, 1], [], []>} : vector<16x128xbf16>, vector<128x128xbf16>, vector<16x128xf32> -> vector<16x128xf32>
    %259 = arith.addf %253, %258 : vector<16x128xf32>
    %c0_140 = arith.constant 0 : index
    %c224_141 = arith.constant 224 : index
    %c0_142 = arith.constant 0 : index
    %260 = vector.load %arg7[%c0_140, %c224_141, %c0_142] : memref<1x576x128xbf16, #tpu.memory_space<vmem>>, vector<1x16x128xbf16>
    %261 = vector.shape_cast %260 : vector<1x16x128xbf16> to vector<16x128xbf16>
    %262 = vector.extract_strided_slice %44 {offsets = [11, 0, 0], sizes = [1, 128, 128], strides = [1, 1, 1]} : vector<25x128x128xbf16> to vector<1x128x128xbf16>
    %263 = vector.shape_cast %262 : vector<1x128x128xbf16> to vector<128x128xbf16>
    %cst_143 = arith.constant dense<0.000000e+00> : vector<16x128xf32>
    %264 = tpu.matmul %261, %263, %cst_143 {dimension_numbers = #tpu.dot_dimension_numbers<[1], [0], [0], [1], [0, 0, 1, 1], [], []>} : vector<16x128xbf16>, vector<128x128xbf16>, vector<16x128xf32> -> vector<16x128xf32>
    %265 = arith.addf %259, %264 : vector<16x128xf32>
    %c0_144 = arith.constant 0 : index
    %c240_145 = arith.constant 240 : index
    %c0_146 = arith.constant 0 : index
    %266 = vector.load %arg7[%c0_144, %c240_145, %c0_146] : memref<1x576x128xbf16, #tpu.memory_space<vmem>>, vector<1x16x128xbf16>
    %267 = vector.shape_cast %266 : vector<1x16x128xbf16> to vector<16x128xbf16>
    %268 = vector.extract_strided_slice %44 {offsets = [12, 0, 0], sizes = [1, 128, 128], strides = [1, 1, 1]} : vector<25x128x128xbf16> to vector<1x128x128xbf16>
    %269 = vector.shape_cast %268 : vector<1x128x128xbf16> to vector<128x128xbf16>
    %cst_147 = arith.constant dense<0.000000e+00> : vector<16x128xf32>
    %270 = tpu.matmul %267, %269, %cst_147 {dimension_numbers = #tpu.dot_dimension_numbers<[1], [0], [0], [1], [0, 0, 1, 1], [], []>} : vector<16x128xbf16>, vector<128x128xbf16>, vector<16x128xf32> -> vector<16x128xf32>
    %271 = arith.addf %265, %270 : vector<16x128xf32>
    %c0_148 = arith.constant 0 : index
    %c256_149 = arith.constant 256 : index
    %c0_150 = arith.constant 0 : index
    %272 = vector.load %arg7[%c0_148, %c256_149, %c0_150] : memref<1x576x128xbf16, #tpu.memory_space<vmem>>, vector<1x16x128xbf16>
    %273 = vector.shape_cast %272 : vector<1x16x128xbf16> to vector<16x128xbf16>
    %274 = vector.extract_strided_slice %44 {offsets = [13, 0, 0], sizes = [1, 128, 128], strides = [1, 1, 1]} : vector<25x128x128xbf16> to vector<1x128x128xbf16>
    %275 = vector.shape_cast %274 : vector<1x128x128xbf16> to vector<128x128xbf16>
    %cst_151 = arith.constant dense<0.000000e+00> : vector<16x128xf32>
    %276 = tpu.matmul %273, %275, %cst_151 {dimension_numbers = #tpu.dot_dimension_numbers<[1], [0], [0], [1], [0, 0, 1, 1], [], []>} : vector<16x128xbf16>, vector<128x128xbf16>, vector<16x128xf32> -> vector<16x128xf32>
    %277 = arith.addf %271, %276 : vector<16x128xf32>
    %c0_152 = arith.constant 0 : index
    %c272 = arith.constant 272 : index
    %c0_153 = arith.constant 0 : index
    %278 = vector.load %arg7[%c0_152, %c272, %c0_153] : memref<1x576x128xbf16, #tpu.memory_space<vmem>>, vector<1x16x128xbf16>
    %279 = vector.shape_cast %278 : vector<1x16x128xbf16> to vector<16x128xbf16>
    %280 = vector.extract_strided_slice %44 {offsets = [14, 0, 0], sizes = [1, 128, 128], strides = [1, 1, 1]} : vector<25x128x128xbf16> to vector<1x128x128xbf16>
    %281 = vector.shape_cast %280 : vector<1x128x128xbf16> to vector<128x128xbf16>
    %cst_154 = arith.constant dense<0.000000e+00> : vector<16x128xf32>
    %282 = tpu.matmul %279, %281, %cst_154 {dimension_numbers = #tpu.dot_dimension_numbers<[1], [0], [0], [1], [0, 0, 1, 1], [], []>} : vector<16x128xbf16>, vector<128x128xbf16>, vector<16x128xf32> -> vector<16x128xf32>
    %283 = arith.addf %277, %282 : vector<16x128xf32>
    %c0_155 = arith.constant 0 : index
    %c304_156 = arith.constant 304 : index
    %c0_157 = arith.constant 0 : index
    %284 = vector.load %arg7[%c0_155, %c304_156, %c0_157] : memref<1x576x128xbf16, #tpu.memory_space<vmem>>, vector<1x16x128xbf16>
    %285 = vector.shape_cast %284 : vector<1x16x128xbf16> to vector<16x128xbf16>
    %286 = vector.extract_strided_slice %44 {offsets = [15, 0, 0], sizes = [1, 128, 128], strides = [1, 1, 1]} : vector<25x128x128xbf16> to vector<1x128x128xbf16>
    %287 = vector.shape_cast %286 : vector<1x128x128xbf16> to vector<128x128xbf16>
    %cst_158 = arith.constant dense<0.000000e+00> : vector<16x128xf32>
    %288 = tpu.matmul %285, %287, %cst_158 {dimension_numbers = #tpu.dot_dimension_numbers<[1], [0], [0], [1], [0, 0, 1, 1], [], []>} : vector<16x128xbf16>, vector<128x128xbf16>, vector<16x128xf32> -> vector<16x128xf32>
    %289 = arith.addf %283, %288 : vector<16x128xf32>
    %c0_159 = arith.constant 0 : index
    %c320_160 = arith.constant 320 : index
    %c0_161 = arith.constant 0 : index
    %290 = vector.load %arg7[%c0_159, %c320_160, %c0_161] : memref<1x576x128xbf16, #tpu.memory_space<vmem>>, vector<1x16x128xbf16>
    %291 = vector.shape_cast %290 : vector<1x16x128xbf16> to vector<16x128xbf16>
    %292 = vector.extract_strided_slice %44 {offsets = [16, 0, 0], sizes = [1, 128, 128], strides = [1, 1, 1]} : vector<25x128x128xbf16> to vector<1x128x128xbf16>
    %293 = vector.shape_cast %292 : vector<1x128x128xbf16> to vector<128x128xbf16>
    %cst_162 = arith.constant dense<0.000000e+00> : vector<16x128xf32>
    %294 = tpu.matmul %291, %293, %cst_162 {dimension_numbers = #tpu.dot_dimension_numbers<[1], [0], [0], [1], [0, 0, 1, 1], [], []>} : vector<16x128xbf16>, vector<128x128xbf16>, vector<16x128xf32> -> vector<16x128xf32>
    %295 = arith.addf %289, %294 : vector<16x128xf32>
    %c0_163 = arith.constant 0 : index
    %c336_164 = arith.constant 336 : index
    %c0_165 = arith.constant 0 : index
    %296 = vector.load %arg7[%c0_163, %c336_164, %c0_165] : memref<1x576x128xbf16, #tpu.memory_space<vmem>>, vector<1x16x128xbf16>
    %297 = vector.shape_cast %296 : vector<1x16x128xbf16> to vector<16x128xbf16>
    %298 = vector.extract_strided_slice %44 {offsets = [17, 0, 0], sizes = [1, 128, 128], strides = [1, 1, 1]} : vector<25x128x128xbf16> to vector<1x128x128xbf16>
    %299 = vector.shape_cast %298 : vector<1x128x128xbf16> to vector<128x128xbf16>
    %cst_166 = arith.constant dense<0.000000e+00> : vector<16x128xf32>
    %300 = tpu.matmul %297, %299, %cst_166 {dimension_numbers = #tpu.dot_dimension_numbers<[1], [0], [0], [1], [0, 0, 1, 1], [], []>} : vector<16x128xbf16>, vector<128x128xbf16>, vector<16x128xf32> -> vector<16x128xf32>
    %301 = arith.addf %295, %300 : vector<16x128xf32>
    %c0_167 = arith.constant 0 : index
    %c352_168 = arith.constant 352 : index
    %c0_169 = arith.constant 0 : index
    %302 = vector.load %arg7[%c0_167, %c352_168, %c0_169] : memref<1x576x128xbf16, #tpu.memory_space<vmem>>, vector<1x16x128xbf16>
    %303 = vector.shape_cast %302 : vector<1x16x128xbf16> to vector<16x128xbf16>
    %304 = vector.extract_strided_slice %44 {offsets = [18, 0, 0], sizes = [1, 128, 128], strides = [1, 1, 1]} : vector<25x128x128xbf16> to vector<1x128x128xbf16>
    %305 = vector.shape_cast %304 : vector<1x128x128xbf16> to vector<128x128xbf16>
    %cst_170 = arith.constant dense<0.000000e+00> : vector<16x128xf32>
    %306 = tpu.matmul %303, %305, %cst_170 {dimension_numbers = #tpu.dot_dimension_numbers<[1], [0], [0], [1], [0, 0, 1, 1], [], []>} : vector<16x128xbf16>, vector<128x128xbf16>, vector<16x128xf32> -> vector<16x128xf32>
    %307 = arith.addf %301, %306 : vector<16x128xf32>
    %c0_171 = arith.constant 0 : index
    %c368 = arith.constant 368 : index
    %c0_172 = arith.constant 0 : index
    %308 = vector.load %arg7[%c0_171, %c368, %c0_172] : memref<1x576x128xbf16, #tpu.memory_space<vmem>>, vector<1x16x128xbf16>
    %309 = vector.shape_cast %308 : vector<1x16x128xbf16> to vector<16x128xbf16>
    %310 = vector.extract_strided_slice %44 {offsets = [19, 0, 0], sizes = [1, 128, 128], strides = [1, 1, 1]} : vector<25x128x128xbf16> to vector<1x128x128xbf16>
    %311 = vector.shape_cast %310 : vector<1x128x128xbf16> to vector<128x128xbf16>
    %cst_173 = arith.constant dense<0.000000e+00> : vector<16x128xf32>
    %312 = tpu.matmul %309, %311, %cst_173 {dimension_numbers = #tpu.dot_dimension_numbers<[1], [0], [0], [1], [0, 0, 1, 1], [], []>} : vector<16x128xbf16>, vector<128x128xbf16>, vector<16x128xf32> -> vector<16x128xf32>
    %313 = arith.addf %307, %312 : vector<16x128xf32>
    %c0_174 = arith.constant 0 : index
    %c400_175 = arith.constant 400 : index
    %c0_176 = arith.constant 0 : index
    %314 = vector.load %arg7[%c0_174, %c400_175, %c0_176] : memref<1x576x128xbf16, #tpu.memory_space<vmem>>, vector<1x16x128xbf16>
    %315 = vector.shape_cast %314 : vector<1x16x128xbf16> to vector<16x128xbf16>
    %316 = vector.extract_strided_slice %44 {offsets = [20, 0, 0], sizes = [1, 128, 128], strides = [1, 1, 1]} : vector<25x128x128xbf16> to vector<1x128x128xbf16>
    %317 = vector.shape_cast %316 : vector<1x128x128xbf16> to vector<128x128xbf16>
    %cst_177 = arith.constant dense<0.000000e+00> : vector<16x128xf32>
    %318 = tpu.matmul %315, %317, %cst_177 {dimension_numbers = #tpu.dot_dimension_numbers<[1], [0], [0], [1], [0, 0, 1, 1], [], []>} : vector<16x128xbf16>, vector<128x128xbf16>, vector<16x128xf32> -> vector<16x128xf32>
    %319 = arith.addf %313, %318 : vector<16x128xf32>
    %c0_178 = arith.constant 0 : index
    %c416_179 = arith.constant 416 : index
    %c0_180 = arith.constant 0 : index
    %320 = vector.load %arg7[%c0_178, %c416_179, %c0_180] : memref<1x576x128xbf16, #tpu.memory_space<vmem>>, vector<1x16x128xbf16>
    %321 = vector.shape_cast %320 : vector<1x16x128xbf16> to vector<16x128xbf16>
    %322 = vector.extract_strided_slice %44 {offsets = [21, 0, 0], sizes = [1, 128, 128], strides = [1, 1, 1]} : vector<25x128x128xbf16> to vector<1x128x128xbf16>
    %323 = vector.shape_cast %322 : vector<1x128x128xbf16> to vector<128x128xbf16>
    %cst_181 = arith.constant dense<0.000000e+00> : vector<16x128xf32>
    %324 = tpu.matmul %321, %323, %cst_181 {dimension_numbers = #tpu.dot_dimension_numbers<[1], [0], [0], [1], [0, 0, 1, 1], [], []>} : vector<16x128xbf16>, vector<128x128xbf16>, vector<16x128xf32> -> vector<16x128xf32>
    %325 = arith.addf %319, %324 : vector<16x128xf32>
    %c0_182 = arith.constant 0 : index
    %c432_183 = arith.constant 432 : index
    %c0_184 = arith.constant 0 : index
    %326 = vector.load %arg7[%c0_182, %c432_183, %c0_184] : memref<1x576x128xbf16, #tpu.memory_space<vmem>>, vector<1x16x128xbf16>
    %327 = vector.shape_cast %326 : vector<1x16x128xbf16> to vector<16x128xbf16>
    %328 = vector.extract_strided_slice %44 {offsets = [22, 0, 0], sizes = [1, 128, 128], strides = [1, 1, 1]} : vector<25x128x128xbf16> to vector<1x128x128xbf16>
    %329 = vector.shape_cast %328 : vector<1x128x128xbf16> to vector<128x128xbf16>
    %cst_185 = arith.constant dense<0.000000e+00> : vector<16x128xf32>
    %330 = tpu.matmul %327, %329, %cst_185 {dimension_numbers = #tpu.dot_dimension_numbers<[1], [0], [0], [1], [0, 0, 1, 1], [], []>} : vector<16x128xbf16>, vector<128x128xbf16>, vector<16x128xf32> -> vector<16x128xf32>
    %331 = arith.addf %325, %330 : vector<16x128xf32>
    %c0_186 = arith.constant 0 : index
    %c448_187 = arith.constant 448 : index
    %c0_188 = arith.constant 0 : index
    %332 = vector.load %arg7[%c0_186, %c448_187, %c0_188] : memref<1x576x128xbf16, #tpu.memory_space<vmem>>, vector<1x16x128xbf16>
    %333 = vector.shape_cast %332 : vector<1x16x128xbf16> to vector<16x128xbf16>
    %334 = vector.extract_strided_slice %44 {offsets = [23, 0, 0], sizes = [1, 128, 128], strides = [1, 1, 1]} : vector<25x128x128xbf16> to vector<1x128x128xbf16>
    %335 = vector.shape_cast %334 : vector<1x128x128xbf16> to vector<128x128xbf16>
    %cst_189 = arith.constant dense<0.000000e+00> : vector<16x128xf32>
    %336 = tpu.matmul %333, %335, %cst_189 {dimension_numbers = #tpu.dot_dimension_numbers<[1], [0], [0], [1], [0, 0, 1, 1], [], []>} : vector<16x128xbf16>, vector<128x128xbf16>, vector<16x128xf32> -> vector<16x128xf32>
    %337 = arith.addf %331, %336 : vector<16x128xf32>
    %c0_190 = arith.constant 0 : index
    %c464 = arith.constant 464 : index
    %c0_191 = arith.constant 0 : index
    %338 = vector.load %arg7[%c0_190, %c464, %c0_191] : memref<1x576x128xbf16, #tpu.memory_space<vmem>>, vector<1x16x128xbf16>
    %339 = vector.shape_cast %338 : vector<1x16x128xbf16> to vector<16x128xbf16>
    %340 = vector.extract_strided_slice %44 {offsets = [24, 0, 0], sizes = [1, 128, 128], strides = [1, 1, 1]} : vector<25x128x128xbf16> to vector<1x128x128xbf16>
    %341 = vector.shape_cast %340 : vector<1x128x128xbf16> to vector<128x128xbf16>
    %cst_192 = arith.constant dense<0.000000e+00> : vector<16x128xf32>
    %342 = tpu.matmul %339, %341, %cst_192 {dimension_numbers = #tpu.dot_dimension_numbers<[1], [0], [0], [1], [0, 0, 1, 1], [], []>} : vector<16x128xbf16>, vector<128x128xbf16>, vector<16x128xf32> -> vector<16x128xf32>
    %343 = arith.addf %337, %342 : vector<16x128xf32>
    %344 = arith.maximumf %194, %343 : vector<16x128xf32>
    %c0_193 = arith.constant 0 : index
    %c96_194 = arith.constant 96 : index
    %c0_195 = arith.constant 0 : index
    %345 = vector.load %arg7[%c0_193, %c96_194, %c0_195] : memref<1x576x128xbf16, #tpu.memory_space<vmem>>, vector<1x16x128xbf16>
    %346 = vector.shape_cast %345 : vector<1x16x128xbf16> to vector<16x128xbf16>
    %347 = vector.extract_strided_slice %44 {offsets = [0, 0, 0], sizes = [1, 128, 128], strides = [1, 1, 1]} : vector<25x128x128xbf16> to vector<1x128x128xbf16>
    %348 = vector.shape_cast %347 : vector<1x128x128xbf16> to vector<128x128xbf16>
    %cst_196 = arith.constant dense<0.000000e+00> : vector<16x128xf32>
    %349 = tpu.matmul %346, %348, %cst_196 {dimension_numbers = #tpu.dot_dimension_numbers<[1], [0], [0], [1], [0, 0, 1, 1], [], []>} : vector<16x128xbf16>, vector<128x128xbf16>, vector<16x128xf32> -> vector<16x128xf32>
    %c0_197 = arith.constant 0 : index
    %c112_198 = arith.constant 112 : index
    %c0_199 = arith.constant 0 : index
    %350 = vector.load %arg7[%c0_197, %c112_198, %c0_199] : memref<1x576x128xbf16, #tpu.memory_space<vmem>>, vector<1x16x128xbf16>
    %351 = vector.shape_cast %350 : vector<1x16x128xbf16> to vector<16x128xbf16>
    %352 = vector.extract_strided_slice %44 {offsets = [1, 0, 0], sizes = [1, 128, 128], strides = [1, 1, 1]} : vector<25x128x128xbf16> to vector<1x128x128xbf16>
    %353 = vector.shape_cast %352 : vector<1x128x128xbf16> to vector<128x128xbf16>
    %cst_200 = arith.constant dense<0.000000e+00> : vector<16x128xf32>
    %354 = tpu.matmul %351, %353, %cst_200 {dimension_numbers = #tpu.dot_dimension_numbers<[1], [0], [0], [1], [0, 0, 1, 1], [], []>} : vector<16x128xbf16>, vector<128x128xbf16>, vector<16x128xf32> -> vector<16x128xf32>
    %355 = arith.addf %349, %354 : vector<16x128xf32>
    %c0_201 = arith.constant 0 : index
    %c128_202 = arith.constant 128 : index
    %c0_203 = arith.constant 0 : index
    %356 = vector.load %arg7[%c0_201, %c128_202, %c0_203] : memref<1x576x128xbf16, #tpu.memory_space<vmem>>, vector<1x16x128xbf16>
    %357 = vector.shape_cast %356 : vector<1x16x128xbf16> to vector<16x128xbf16>
    %358 = vector.extract_strided_slice %44 {offsets = [2, 0, 0], sizes = [1, 128, 128], strides = [1, 1, 1]} : vector<25x128x128xbf16> to vector<1x128x128xbf16>
    %359 = vector.shape_cast %358 : vector<1x128x128xbf16> to vector<128x128xbf16>
    %cst_204 = arith.constant dense<0.000000e+00> : vector<16x128xf32>
    %360 = tpu.matmul %357, %359, %cst_204 {dimension_numbers = #tpu.dot_dimension_numbers<[1], [0], [0], [1], [0, 0, 1, 1], [], []>} : vector<16x128xbf16>, vector<128x128xbf16>, vector<16x128xf32> -> vector<16x128xf32>
    %361 = arith.addf %355, %360 : vector<16x128xf32>
    %c0_205 = arith.constant 0 : index
    %c144_206 = arith.constant 144 : index
    %c0_207 = arith.constant 0 : index
    %362 = vector.load %arg7[%c0_205, %c144_206, %c0_207] : memref<1x576x128xbf16, #tpu.memory_space<vmem>>, vector<1x16x128xbf16>
    %363 = vector.shape_cast %362 : vector<1x16x128xbf16> to vector<16x128xbf16>
    %364 = vector.extract_strided_slice %44 {offsets = [3, 0, 0], sizes = [1, 128, 128], strides = [1, 1, 1]} : vector<25x128x128xbf16> to vector<1x128x128xbf16>
    %365 = vector.shape_cast %364 : vector<1x128x128xbf16> to vector<128x128xbf16>
    %cst_208 = arith.constant dense<0.000000e+00> : vector<16x128xf32>
    %366 = tpu.matmul %363, %365, %cst_208 {dimension_numbers = #tpu.dot_dimension_numbers<[1], [0], [0], [1], [0, 0, 1, 1], [], []>} : vector<16x128xbf16>, vector<128x128xbf16>, vector<16x128xf32> -> vector<16x128xf32>
    %367 = arith.addf %361, %366 : vector<16x128xf32>
    %c0_209 = arith.constant 0 : index
    %c160_210 = arith.constant 160 : index
    %c0_211 = arith.constant 0 : index
    %368 = vector.load %arg7[%c0_209, %c160_210, %c0_211] : memref<1x576x128xbf16, #tpu.memory_space<vmem>>, vector<1x16x128xbf16>
    %369 = vector.shape_cast %368 : vector<1x16x128xbf16> to vector<16x128xbf16>
    %370 = vector.extract_strided_slice %44 {offsets = [4, 0, 0], sizes = [1, 128, 128], strides = [1, 1, 1]} : vector<25x128x128xbf16> to vector<1x128x128xbf16>
    %371 = vector.shape_cast %370 : vector<1x128x128xbf16> to vector<128x128xbf16>
    %cst_212 = arith.constant dense<0.000000e+00> : vector<16x128xf32>
    %372 = tpu.matmul %369, %371, %cst_212 {dimension_numbers = #tpu.dot_dimension_numbers<[1], [0], [0], [1], [0, 0, 1, 1], [], []>} : vector<16x128xbf16>, vector<128x128xbf16>, vector<16x128xf32> -> vector<16x128xf32>
    %373 = arith.addf %367, %372 : vector<16x128xf32>
    %c0_213 = arith.constant 0 : index
    %c192_214 = arith.constant 192 : index
    %c0_215 = arith.constant 0 : index
    %374 = vector.load %arg7[%c0_213, %c192_214, %c0_215] : memref<1x576x128xbf16, #tpu.memory_space<vmem>>, vector<1x16x128xbf16>
    %375 = vector.shape_cast %374 : vector<1x16x128xbf16> to vector<16x128xbf16>
    %376 = vector.extract_strided_slice %44 {offsets = [5, 0, 0], sizes = [1, 128, 128], strides = [1, 1, 1]} : vector<25x128x128xbf16> to vector<1x128x128xbf16>
    %377 = vector.shape_cast %376 : vector<1x128x128xbf16> to vector<128x128xbf16>
    %cst_216 = arith.constant dense<0.000000e+00> : vector<16x128xf32>
    %378 = tpu.matmul %375, %377, %cst_216 {dimension_numbers = #tpu.dot_dimension_numbers<[1], [0], [0], [1], [0, 0, 1, 1], [], []>} : vector<16x128xbf16>, vector<128x128xbf16>, vector<16x128xf32> -> vector<16x128xf32>
    %379 = arith.addf %373, %378 : vector<16x128xf32>
    %c0_217 = arith.constant 0 : index
    %c208_218 = arith.constant 208 : index
    %c0_219 = arith.constant 0 : index
    %380 = vector.load %arg7[%c0_217, %c208_218, %c0_219] : memref<1x576x128xbf16, #tpu.memory_space<vmem>>, vector<1x16x128xbf16>
    %381 = vector.shape_cast %380 : vector<1x16x128xbf16> to vector<16x128xbf16>
    %382 = vector.extract_strided_slice %44 {offsets = [6, 0, 0], sizes = [1, 128, 128], strides = [1, 1, 1]} : vector<25x128x128xbf16> to vector<1x128x128xbf16>
    %383 = vector.shape_cast %382 : vector<1x128x128xbf16> to vector<128x128xbf16>
    %cst_220 = arith.constant dense<0.000000e+00> : vector<16x128xf32>
    %384 = tpu.matmul %381, %383, %cst_220 {dimension_numbers = #tpu.dot_dimension_numbers<[1], [0], [0], [1], [0, 0, 1, 1], [], []>} : vector<16x128xbf16>, vector<128x128xbf16>, vector<16x128xf32> -> vector<16x128xf32>
    %385 = arith.addf %379, %384 : vector<16x128xf32>
    %c0_221 = arith.constant 0 : index
    %c224_222 = arith.constant 224 : index
    %c0_223 = arith.constant 0 : index
    %386 = vector.load %arg7[%c0_221, %c224_222, %c0_223] : memref<1x576x128xbf16, #tpu.memory_space<vmem>>, vector<1x16x128xbf16>
    %387 = vector.shape_cast %386 : vector<1x16x128xbf16> to vector<16x128xbf16>
    %388 = vector.extract_strided_slice %44 {offsets = [7, 0, 0], sizes = [1, 128, 128], strides = [1, 1, 1]} : vector<25x128x128xbf16> to vector<1x128x128xbf16>
    %389 = vector.shape_cast %388 : vector<1x128x128xbf16> to vector<128x128xbf16>
    %cst_224 = arith.constant dense<0.000000e+00> : vector<16x128xf32>
    %390 = tpu.matmul %387, %389, %cst_224 {dimension_numbers = #tpu.dot_dimension_numbers<[1], [0], [0], [1], [0, 0, 1, 1], [], []>} : vector<16x128xbf16>, vector<128x128xbf16>, vector<16x128xf32> -> vector<16x128xf32>
    %391 = arith.addf %385, %390 : vector<16x128xf32>
    %c0_225 = arith.constant 0 : index
    %c240_226 = arith.constant 240 : index
    %c0_227 = arith.constant 0 : index
    %392 = vector.load %arg7[%c0_225, %c240_226, %c0_227] : memref<1x576x128xbf16, #tpu.memory_space<vmem>>, vector<1x16x128xbf16>
    %393 = vector.shape_cast %392 : vector<1x16x128xbf16> to vector<16x128xbf16>
    %394 = vector.extract_strided_slice %44 {offsets = [8, 0, 0], sizes = [1, 128, 128], strides = [1, 1, 1]} : vector<25x128x128xbf16> to vector<1x128x128xbf16>
    %395 = vector.shape_cast %394 : vector<1x128x128xbf16> to vector<128x128xbf16>
    %cst_228 = arith.constant dense<0.000000e+00> : vector<16x128xf32>
    %396 = tpu.matmul %393, %395, %cst_228 {dimension_numbers = #tpu.dot_dimension_numbers<[1], [0], [0], [1], [0, 0, 1, 1], [], []>} : vector<16x128xbf16>, vector<128x128xbf16>, vector<16x128xf32> -> vector<16x128xf32>
    %397 = arith.addf %391, %396 : vector<16x128xf32>
    %c0_229 = arith.constant 0 : index
    %c256_230 = arith.constant 256 : index
    %c0_231 = arith.constant 0 : index
    %398 = vector.load %arg7[%c0_229, %c256_230, %c0_231] : memref<1x576x128xbf16, #tpu.memory_space<vmem>>, vector<1x16x128xbf16>
    %399 = vector.shape_cast %398 : vector<1x16x128xbf16> to vector<16x128xbf16>
    %400 = vector.extract_strided_slice %44 {offsets = [9, 0, 0], sizes = [1, 128, 128], strides = [1, 1, 1]} : vector<25x128x128xbf16> to vector<1x128x128xbf16>
    %401 = vector.shape_cast %400 : vector<1x128x128xbf16> to vector<128x128xbf16>
    %cst_232 = arith.constant dense<0.000000e+00> : vector<16x128xf32>
    %402 = tpu.matmul %399, %401, %cst_232 {dimension_numbers = #tpu.dot_dimension_numbers<[1], [0], [0], [1], [0, 0, 1, 1], [], []>} : vector<16x128xbf16>, vector<128x128xbf16>, vector<16x128xf32> -> vector<16x128xf32>
    %403 = arith.addf %397, %402 : vector<16x128xf32>
    %c0_233 = arith.constant 0 : index
    %c288_234 = arith.constant 288 : index
    %c0_235 = arith.constant 0 : index
    %404 = vector.load %arg7[%c0_233, %c288_234, %c0_235] : memref<1x576x128xbf16, #tpu.memory_space<vmem>>, vector<1x16x128xbf16>
    %405 = vector.shape_cast %404 : vector<1x16x128xbf16> to vector<16x128xbf16>
    %406 = vector.extract_strided_slice %44 {offsets = [10, 0, 0], sizes = [1, 128, 128], strides = [1, 1, 1]} : vector<25x128x128xbf16> to vector<1x128x128xbf16>
    %407 = vector.shape_cast %406 : vector<1x128x128xbf16> to vector<128x128xbf16>
    %cst_236 = arith.constant dense<0.000000e+00> : vector<16x128xf32>
    %408 = tpu.matmul %405, %407, %cst_236 {dimension_numbers = #tpu.dot_dimension_numbers<[1], [0], [0], [1], [0, 0, 1, 1], [], []>} : vector<16x128xbf16>, vector<128x128xbf16>, vector<16x128xf32> -> vector<16x128xf32>
    %409 = arith.addf %403, %408 : vector<16x128xf32>
    %c0_237 = arith.constant 0 : index
    %c304_238 = arith.constant 304 : index
    %c0_239 = arith.constant 0 : index
    %410 = vector.load %arg7[%c0_237, %c304_238, %c0_239] : memref<1x576x128xbf16, #tpu.memory_space<vmem>>, vector<1x16x128xbf16>
    %411 = vector.shape_cast %410 : vector<1x16x128xbf16> to vector<16x128xbf16>
    %412 = vector.extract_strided_slice %44 {offsets = [11, 0, 0], sizes = [1, 128, 128], strides = [1, 1, 1]} : vector<25x128x128xbf16> to vector<1x128x128xbf16>
    %413 = vector.shape_cast %412 : vector<1x128x128xbf16> to vector<128x128xbf16>
    %cst_240 = arith.constant dense<0.000000e+00> : vector<16x128xf32>
    %414 = tpu.matmul %411, %413, %cst_240 {dimension_numbers = #tpu.dot_dimension_numbers<[1], [0], [0], [1], [0, 0, 1, 1], [], []>} : vector<16x128xbf16>, vector<128x128xbf16>, vector<16x128xf32> -> vector<16x128xf32>
    %415 = arith.addf %409, %414 : vector<16x128xf32>
    %c0_241 = arith.constant 0 : index
    %c320_242 = arith.constant 320 : index
    %c0_243 = arith.constant 0 : index
    %416 = vector.load %arg7[%c0_241, %c320_242, %c0_243] : memref<1x576x128xbf16, #tpu.memory_space<vmem>>, vector<1x16x128xbf16>
    %417 = vector.shape_cast %416 : vector<1x16x128xbf16> to vector<16x128xbf16>
    %418 = vector.extract_strided_slice %44 {offsets = [12, 0, 0], sizes = [1, 128, 128], strides = [1, 1, 1]} : vector<25x128x128xbf16> to vector<1x128x128xbf16>
    %419 = vector.shape_cast %418 : vector<1x128x128xbf16> to vector<128x128xbf16>
    %cst_244 = arith.constant dense<0.000000e+00> : vector<16x128xf32>
    %420 = tpu.matmul %417, %419, %cst_244 {dimension_numbers = #tpu.dot_dimension_numbers<[1], [0], [0], [1], [0, 0, 1, 1], [], []>} : vector<16x128xbf16>, vector<128x128xbf16>, vector<16x128xf32> -> vector<16x128xf32>
    %421 = arith.addf %415, %420 : vector<16x128xf32>
    %c0_245 = arith.constant 0 : index
    %c336_246 = arith.constant 336 : index
    %c0_247 = arith.constant 0 : index
    %422 = vector.load %arg7[%c0_245, %c336_246, %c0_247] : memref<1x576x128xbf16, #tpu.memory_space<vmem>>, vector<1x16x128xbf16>
    %423 = vector.shape_cast %422 : vector<1x16x128xbf16> to vector<16x128xbf16>
    %424 = vector.extract_strided_slice %44 {offsets = [13, 0, 0], sizes = [1, 128, 128], strides = [1, 1, 1]} : vector<25x128x128xbf16> to vector<1x128x128xbf16>
    %425 = vector.shape_cast %424 : vector<1x128x128xbf16> to vector<128x128xbf16>
    %cst_248 = arith.constant dense<0.000000e+00> : vector<16x128xf32>
    %426 = tpu.matmul %423, %425, %cst_248 {dimension_numbers = #tpu.dot_dimension_numbers<[1], [0], [0], [1], [0, 0, 1, 1], [], []>} : vector<16x128xbf16>, vector<128x128xbf16>, vector<16x128xf32> -> vector<16x128xf32>
    %427 = arith.addf %421, %426 : vector<16x128xf32>
    %c0_249 = arith.constant 0 : index
    %c352_250 = arith.constant 352 : index
    %c0_251 = arith.constant 0 : index
    %428 = vector.load %arg7[%c0_249, %c352_250, %c0_251] : memref<1x576x128xbf16, #tpu.memory_space<vmem>>, vector<1x16x128xbf16>
    %429 = vector.shape_cast %428 : vector<1x16x128xbf16> to vector<16x128xbf16>
    %430 = vector.extract_strided_slice %44 {offsets = [14, 0, 0], sizes = [1, 128, 128], strides = [1, 1, 1]} : vector<25x128x128xbf16> to vector<1x128x128xbf16>
    %431 = vector.shape_cast %430 : vector<1x128x128xbf16> to vector<128x128xbf16>
    %cst_252 = arith.constant dense<0.000000e+00> : vector<16x128xf32>
    %432 = tpu.matmul %429, %431, %cst_252 {dimension_numbers = #tpu.dot_dimension_numbers<[1], [0], [0], [1], [0, 0, 1, 1], [], []>} : vector<16x128xbf16>, vector<128x128xbf16>, vector<16x128xf32> -> vector<16x128xf32>
    %433 = arith.addf %427, %432 : vector<16x128xf32>
    %c0_253 = arith.constant 0 : index
    %c384_254 = arith.constant 384 : index
    %c0_255 = arith.constant 0 : index
    %434 = vector.load %arg7[%c0_253, %c384_254, %c0_255] : memref<1x576x128xbf16, #tpu.memory_space<vmem>>, vector<1x16x128xbf16>
    %435 = vector.shape_cast %434 : vector<1x16x128xbf16> to vector<16x128xbf16>
    %436 = vector.extract_strided_slice %44 {offsets = [15, 0, 0], sizes = [1, 128, 128], strides = [1, 1, 1]} : vector<25x128x128xbf16> to vector<1x128x128xbf16>
    %437 = vector.shape_cast %436 : vector<1x128x128xbf16> to vector<128x128xbf16>
    %cst_256 = arith.constant dense<0.000000e+00> : vector<16x128xf32>
    %438 = tpu.matmul %435, %437, %cst_256 {dimension_numbers = #tpu.dot_dimension_numbers<[1], [0], [0], [1], [0, 0, 1, 1], [], []>} : vector<16x128xbf16>, vector<128x128xbf16>, vector<16x128xf32> -> vector<16x128xf32>
    %439 = arith.addf %433, %438 : vector<16x128xf32>
    %c0_257 = arith.constant 0 : index
    %c400_258 = arith.constant 400 : index
    %c0_259 = arith.constant 0 : index
    %440 = vector.load %arg7[%c0_257, %c400_258, %c0_259] : memref<1x576x128xbf16, #tpu.memory_space<vmem>>, vector<1x16x128xbf16>
    %441 = vector.shape_cast %440 : vector<1x16x128xbf16> to vector<16x128xbf16>
    %442 = vector.extract_strided_slice %44 {offsets = [16, 0, 0], sizes = [1, 128, 128], strides = [1, 1, 1]} : vector<25x128x128xbf16> to vector<1x128x128xbf16>
    %443 = vector.shape_cast %442 : vector<1x128x128xbf16> to vector<128x128xbf16>
    %cst_260 = arith.constant dense<0.000000e+00> : vector<16x128xf32>
    %444 = tpu.matmul %441, %443, %cst_260 {dimension_numbers = #tpu.dot_dimension_numbers<[1], [0], [0], [1], [0, 0, 1, 1], [], []>} : vector<16x128xbf16>, vector<128x128xbf16>, vector<16x128xf32> -> vector<16x128xf32>
    %445 = arith.addf %439, %444 : vector<16x128xf32>
    %c0_261 = arith.constant 0 : index
    %c416_262 = arith.constant 416 : index
    %c0_263 = arith.constant 0 : index
    %446 = vector.load %arg7[%c0_261, %c416_262, %c0_263] : memref<1x576x128xbf16, #tpu.memory_space<vmem>>, vector<1x16x128xbf16>
    %447 = vector.shape_cast %446 : vector<1x16x128xbf16> to vector<16x128xbf16>
    %448 = vector.extract_strided_slice %44 {offsets = [17, 0, 0], sizes = [1, 128, 128], strides = [1, 1, 1]} : vector<25x128x128xbf16> to vector<1x128x128xbf16>
    %449 = vector.shape_cast %448 : vector<1x128x128xbf16> to vector<128x128xbf16>
    %cst_264 = arith.constant dense<0.000000e+00> : vector<16x128xf32>
    %450 = tpu.matmul %447, %449, %cst_264 {dimension_numbers = #tpu.dot_dimension_numbers<[1], [0], [0], [1], [0, 0, 1, 1], [], []>} : vector<16x128xbf16>, vector<128x128xbf16>, vector<16x128xf32> -> vector<16x128xf32>
    %451 = arith.addf %445, %450 : vector<16x128xf32>
    %c0_265 = arith.constant 0 : index
    %c432_266 = arith.constant 432 : index
    %c0_267 = arith.constant 0 : index
    %452 = vector.load %arg7[%c0_265, %c432_266, %c0_267] : memref<1x576x128xbf16, #tpu.memory_space<vmem>>, vector<1x16x128xbf16>
    %453 = vector.shape_cast %452 : vector<1x16x128xbf16> to vector<16x128xbf16>
    %454 = vector.extract_strided_slice %44 {offsets = [18, 0, 0], sizes = [1, 128, 128], strides = [1, 1, 1]} : vector<25x128x128xbf16> to vector<1x128x128xbf16>
    %455 = vector.shape_cast %454 : vector<1x128x128xbf16> to vector<128x128xbf16>
    %cst_268 = arith.constant dense<0.000000e+00> : vector<16x128xf32>
    %456 = tpu.matmul %453, %455, %cst_268 {dimension_numbers = #tpu.dot_dimension_numbers<[1], [0], [0], [1], [0, 0, 1, 1], [], []>} : vector<16x128xbf16>, vector<128x128xbf16>, vector<16x128xf32> -> vector<16x128xf32>
    %457 = arith.addf %451, %456 : vector<16x128xf32>
    %c0_269 = arith.constant 0 : index
    %c448_270 = arith.constant 448 : index
    %c0_271 = arith.constant 0 : index
    %458 = vector.load %arg7[%c0_269, %c448_270, %c0_271] : memref<1x576x128xbf16, #tpu.memory_space<vmem>>, vector<1x16x128xbf16>
    %459 = vector.shape_cast %458 : vector<1x16x128xbf16> to vector<16x128xbf16>
    %460 = vector.extract_strided_slice %44 {offsets = [19, 0, 0], sizes = [1, 128, 128], strides = [1, 1, 1]} : vector<25x128x128xbf16> to vector<1x128x128xbf16>
    %461 = vector.shape_cast %460 : vector<1x128x128xbf16> to vector<128x128xbf16>
    %cst_272 = arith.constant dense<0.000000e+00> : vector<16x128xf32>
    %462 = tpu.matmul %459, %461, %cst_272 {dimension_numbers = #tpu.dot_dimension_numbers<[1], [0], [0], [1], [0, 0, 1, 1], [], []>} : vector<16x128xbf16>, vector<128x128xbf16>, vector<16x128xf32> -> vector<16x128xf32>
    %463 = arith.addf %457, %462 : vector<16x128xf32>
    %c0_273 = arith.constant 0 : index
    %c480 = arith.constant 480 : index
    %c0_274 = arith.constant 0 : index
    %464 = vector.load %arg7[%c0_273, %c480, %c0_274] : memref<1x576x128xbf16, #tpu.memory_space<vmem>>, vector<1x16x128xbf16>
    %465 = vector.shape_cast %464 : vector<1x16x128xbf16> to vector<16x128xbf16>
    %466 = vector.extract_strided_slice %44 {offsets = [20, 0, 0], sizes = [1, 128, 128], strides = [1, 1, 1]} : vector<25x128x128xbf16> to vector<1x128x128xbf16>
    %467 = vector.shape_cast %466 : vector<1x128x128xbf16> to vector<128x128xbf16>
    %cst_275 = arith.constant dense<0.000000e+00> : vector<16x128xf32>
    %468 = tpu.matmul %465, %467, %cst_275 {dimension_numbers = #tpu.dot_dimension_numbers<[1], [0], [0], [1], [0, 0, 1, 1], [], []>} : vector<16x128xbf16>, vector<128x128xbf16>, vector<16x128xf32> -> vector<16x128xf32>
    %469 = arith.addf %463, %468 : vector<16x128xf32>
    %c0_276 = arith.constant 0 : index
    %c496 = arith.constant 496 : index
    %c0_277 = arith.constant 0 : index
    %470 = vector.load %arg7[%c0_276, %c496, %c0_277] : memref<1x576x128xbf16, #tpu.memory_space<vmem>>, vector<1x16x128xbf16>
    %471 = vector.shape_cast %470 : vector<1x16x128xbf16> to vector<16x128xbf16>
    %472 = vector.extract_strided_slice %44 {offsets = [21, 0, 0], sizes = [1, 128, 128], strides = [1, 1, 1]} : vector<25x128x128xbf16> to vector<1x128x128xbf16>
    %473 = vector.shape_cast %472 : vector<1x128x128xbf16> to vector<128x128xbf16>
    %cst_278 = arith.constant dense<0.000000e+00> : vector<16x128xf32>
    %474 = tpu.matmul %471, %473, %cst_278 {dimension_numbers = #tpu.dot_dimension_numbers<[1], [0], [0], [1], [0, 0, 1, 1], [], []>} : vector<16x128xbf16>, vector<128x128xbf16>, vector<16x128xf32> -> vector<16x128xf32>
    %475 = arith.addf %469, %474 : vector<16x128xf32>
    %c0_279 = arith.constant 0 : index
    %c512 = arith.constant 512 : index
    %c0_280 = arith.constant 0 : index
    %476 = vector.load %arg7[%c0_279, %c512, %c0_280] : memref<1x576x128xbf16, #tpu.memory_space<vmem>>, vector<1x16x128xbf16>
    %477 = vector.shape_cast %476 : vector<1x16x128xbf16> to vector<16x128xbf16>
    %478 = vector.extract_strided_slice %44 {offsets = [22, 0, 0], sizes = [1, 128, 128], strides = [1, 1, 1]} : vector<25x128x128xbf16> to vector<1x128x128xbf16>
    %479 = vector.shape_cast %478 : vector<1x128x128xbf16> to vector<128x128xbf16>
    %cst_281 = arith.constant dense<0.000000e+00> : vector<16x128xf32>
    %480 = tpu.matmul %477, %479, %cst_281 {dimension_numbers = #tpu.dot_dimension_numbers<[1], [0], [0], [1], [0, 0, 1, 1], [], []>} : vector<16x128xbf16>, vector<128x128xbf16>, vector<16x128xf32> -> vector<16x128xf32>
    %481 = arith.addf %475, %480 : vector<16x128xf32>
    %c0_282 = arith.constant 0 : index
    %c528 = arith.constant 528 : index
    %c0_283 = arith.constant 0 : index
    %482 = vector.load %arg7[%c0_282, %c528, %c0_283] : memref<1x576x128xbf16, #tpu.memory_space<vmem>>, vector<1x16x128xbf16>
    %483 = vector.shape_cast %482 : vector<1x16x128xbf16> to vector<16x128xbf16>
    %484 = vector.extract_strided_slice %44 {offsets = [23, 0, 0], sizes = [1, 128, 128], strides = [1, 1, 1]} : vector<25x128x128xbf16> to vector<1x128x128xbf16>
    %485 = vector.shape_cast %484 : vector<1x128x128xbf16> to vector<128x128xbf16>
    %cst_284 = arith.constant dense<0.000000e+00> : vector<16x128xf32>
    %486 = tpu.matmul %483, %485, %cst_284 {dimension_numbers = #tpu.dot_dimension_numbers<[1], [0], [0], [1], [0, 0, 1, 1], [], []>} : vector<16x128xbf16>, vector<128x128xbf16>, vector<16x128xf32> -> vector<16x128xf32>
    %487 = arith.addf %481, %486 : vector<16x128xf32>
    %c0_285 = arith.constant 0 : index
    %c544 = arith.constant 544 : index
    %c0_286 = arith.constant 0 : index
    %488 = vector.load %arg7[%c0_285, %c544, %c0_286] : memref<1x576x128xbf16, #tpu.memory_space<vmem>>, vector<1x16x128xbf16>
    %489 = vector.shape_cast %488 : vector<1x16x128xbf16> to vector<16x128xbf16>
    %490 = vector.extract_strided_slice %44 {offsets = [24, 0, 0], sizes = [1, 128, 128], strides = [1, 1, 1]} : vector<25x128x128xbf16> to vector<1x128x128xbf16>
    %491 = vector.shape_cast %490 : vector<1x128x128xbf16> to vector<128x128xbf16>
    %cst_287 = arith.constant dense<0.000000e+00> : vector<16x128xf32>
    %492 = tpu.matmul %489, %491, %cst_287 {dimension_numbers = #tpu.dot_dimension_numbers<[1], [0], [0], [1], [0, 0, 1, 1], [], []>} : vector<16x128xbf16>, vector<128x128xbf16>, vector<16x128xf32> -> vector<16x128xf32>
    %493 = arith.addf %487, %492 : vector<16x128xf32>
    %494 = arith.maximumf %344, %493 : vector<16x128xf32>
    %c0_288 = arith.constant 0 : index
    %c112_289 = arith.constant 112 : index
    %c0_290 = arith.constant 0 : index
    %495 = vector.load %arg7[%c0_288, %c112_289, %c0_290] : memref<1x576x128xbf16, #tpu.memory_space<vmem>>, vector<1x16x128xbf16>
    %496 = vector.shape_cast %495 : vector<1x16x128xbf16> to vector<16x128xbf16>
    %497 = vector.extract_strided_slice %44 {offsets = [0, 0, 0], sizes = [1, 128, 128], strides = [1, 1, 1]} : vector<25x128x128xbf16> to vector<1x128x128xbf16>
    %498 = vector.shape_cast %497 : vector<1x128x128xbf16> to vector<128x128xbf16>
    %cst_291 = arith.constant dense<0.000000e+00> : vector<16x128xf32>
    %499 = tpu.matmul %496, %498, %cst_291 {dimension_numbers = #tpu.dot_dimension_numbers<[1], [0], [0], [1], [0, 0, 1, 1], [], []>} : vector<16x128xbf16>, vector<128x128xbf16>, vector<16x128xf32> -> vector<16x128xf32>
    %c0_292 = arith.constant 0 : index
    %c128_293 = arith.constant 128 : index
    %c0_294 = arith.constant 0 : index
    %500 = vector.load %arg7[%c0_292, %c128_293, %c0_294] : memref<1x576x128xbf16, #tpu.memory_space<vmem>>, vector<1x16x128xbf16>
    %501 = vector.shape_cast %500 : vector<1x16x128xbf16> to vector<16x128xbf16>
    %502 = vector.extract_strided_slice %44 {offsets = [1, 0, 0], sizes = [1, 128, 128], strides = [1, 1, 1]} : vector<25x128x128xbf16> to vector<1x128x128xbf16>
    %503 = vector.shape_cast %502 : vector<1x128x128xbf16> to vector<128x128xbf16>
    %cst_295 = arith.constant dense<0.000000e+00> : vector<16x128xf32>
    %504 = tpu.matmul %501, %503, %cst_295 {dimension_numbers = #tpu.dot_dimension_numbers<[1], [0], [0], [1], [0, 0, 1, 1], [], []>} : vector<16x128xbf16>, vector<128x128xbf16>, vector<16x128xf32> -> vector<16x128xf32>
    %505 = arith.addf %499, %504 : vector<16x128xf32>
    %c0_296 = arith.constant 0 : index
    %c144_297 = arith.constant 144 : index
    %c0_298 = arith.constant 0 : index
    %506 = vector.load %arg7[%c0_296, %c144_297, %c0_298] : memref<1x576x128xbf16, #tpu.memory_space<vmem>>, vector<1x16x128xbf16>
    %507 = vector.shape_cast %506 : vector<1x16x128xbf16> to vector<16x128xbf16>
    %508 = vector.extract_strided_slice %44 {offsets = [2, 0, 0], sizes = [1, 128, 128], strides = [1, 1, 1]} : vector<25x128x128xbf16> to vector<1x128x128xbf16>
    %509 = vector.shape_cast %508 : vector<1x128x128xbf16> to vector<128x128xbf16>
    %cst_299 = arith.constant dense<0.000000e+00> : vector<16x128xf32>
    %510 = tpu.matmul %507, %509, %cst_299 {dimension_numbers = #tpu.dot_dimension_numbers<[1], [0], [0], [1], [0, 0, 1, 1], [], []>} : vector<16x128xbf16>, vector<128x128xbf16>, vector<16x128xf32> -> vector<16x128xf32>
    %511 = arith.addf %505, %510 : vector<16x128xf32>
    %c0_300 = arith.constant 0 : index
    %c160_301 = arith.constant 160 : index
    %c0_302 = arith.constant 0 : index
    %512 = vector.load %arg7[%c0_300, %c160_301, %c0_302] : memref<1x576x128xbf16, #tpu.memory_space<vmem>>, vector<1x16x128xbf16>
    %513 = vector.shape_cast %512 : vector<1x16x128xbf16> to vector<16x128xbf16>
    %514 = vector.extract_strided_slice %44 {offsets = [3, 0, 0], sizes = [1, 128, 128], strides = [1, 1, 1]} : vector<25x128x128xbf16> to vector<1x128x128xbf16>
    %515 = vector.shape_cast %514 : vector<1x128x128xbf16> to vector<128x128xbf16>
    %cst_303 = arith.constant dense<0.000000e+00> : vector<16x128xf32>
    %516 = tpu.matmul %513, %515, %cst_303 {dimension_numbers = #tpu.dot_dimension_numbers<[1], [0], [0], [1], [0, 0, 1, 1], [], []>} : vector<16x128xbf16>, vector<128x128xbf16>, vector<16x128xf32> -> vector<16x128xf32>
    %517 = arith.addf %511, %516 : vector<16x128xf32>
    %c0_304 = arith.constant 0 : index
    %c176_305 = arith.constant 176 : index
    %c0_306 = arith.constant 0 : index
    %518 = vector.load %arg7[%c0_304, %c176_305, %c0_306] : memref<1x576x128xbf16, #tpu.memory_space<vmem>>, vector<1x16x128xbf16>
    %519 = vector.shape_cast %518 : vector<1x16x128xbf16> to vector<16x128xbf16>
    %520 = vector.extract_strided_slice %44 {offsets = [4, 0, 0], sizes = [1, 128, 128], strides = [1, 1, 1]} : vector<25x128x128xbf16> to vector<1x128x128xbf16>
    %521 = vector.shape_cast %520 : vector<1x128x128xbf16> to vector<128x128xbf16>
    %cst_307 = arith.constant dense<0.000000e+00> : vector<16x128xf32>
    %522 = tpu.matmul %519, %521, %cst_307 {dimension_numbers = #tpu.dot_dimension_numbers<[1], [0], [0], [1], [0, 0, 1, 1], [], []>} : vector<16x128xbf16>, vector<128x128xbf16>, vector<16x128xf32> -> vector<16x128xf32>
    %523 = arith.addf %517, %522 : vector<16x128xf32>
    %c0_308 = arith.constant 0 : index
    %c208_309 = arith.constant 208 : index
    %c0_310 = arith.constant 0 : index
    %524 = vector.load %arg7[%c0_308, %c208_309, %c0_310] : memref<1x576x128xbf16, #tpu.memory_space<vmem>>, vector<1x16x128xbf16>
    %525 = vector.shape_cast %524 : vector<1x16x128xbf16> to vector<16x128xbf16>
    %526 = vector.extract_strided_slice %44 {offsets = [5, 0, 0], sizes = [1, 128, 128], strides = [1, 1, 1]} : vector<25x128x128xbf16> to vector<1x128x128xbf16>
    %527 = vector.shape_cast %526 : vector<1x128x128xbf16> to vector<128x128xbf16>
    %cst_311 = arith.constant dense<0.000000e+00> : vector<16x128xf32>
    %528 = tpu.matmul %525, %527, %cst_311 {dimension_numbers = #tpu.dot_dimension_numbers<[1], [0], [0], [1], [0, 0, 1, 1], [], []>} : vector<16x128xbf16>, vector<128x128xbf16>, vector<16x128xf32> -> vector<16x128xf32>
    %529 = arith.addf %523, %528 : vector<16x128xf32>
    %c0_312 = arith.constant 0 : index
    %c224_313 = arith.constant 224 : index
    %c0_314 = arith.constant 0 : index
    %530 = vector.load %arg7[%c0_312, %c224_313, %c0_314] : memref<1x576x128xbf16, #tpu.memory_space<vmem>>, vector<1x16x128xbf16>
    %531 = vector.shape_cast %530 : vector<1x16x128xbf16> to vector<16x128xbf16>
    %532 = vector.extract_strided_slice %44 {offsets = [6, 0, 0], sizes = [1, 128, 128], strides = [1, 1, 1]} : vector<25x128x128xbf16> to vector<1x128x128xbf16>
    %533 = vector.shape_cast %532 : vector<1x128x128xbf16> to vector<128x128xbf16>
    %cst_315 = arith.constant dense<0.000000e+00> : vector<16x128xf32>
    %534 = tpu.matmul %531, %533, %cst_315 {dimension_numbers = #tpu.dot_dimension_numbers<[1], [0], [0], [1], [0, 0, 1, 1], [], []>} : vector<16x128xbf16>, vector<128x128xbf16>, vector<16x128xf32> -> vector<16x128xf32>
    %535 = arith.addf %529, %534 : vector<16x128xf32>
    %c0_316 = arith.constant 0 : index
    %c240_317 = arith.constant 240 : index
    %c0_318 = arith.constant 0 : index
    %536 = vector.load %arg7[%c0_316, %c240_317, %c0_318] : memref<1x576x128xbf16, #tpu.memory_space<vmem>>, vector<1x16x128xbf16>
    %537 = vector.shape_cast %536 : vector<1x16x128xbf16> to vector<16x128xbf16>
    %538 = vector.extract_strided_slice %44 {offsets = [7, 0, 0], sizes = [1, 128, 128], strides = [1, 1, 1]} : vector<25x128x128xbf16> to vector<1x128x128xbf16>
    %539 = vector.shape_cast %538 : vector<1x128x128xbf16> to vector<128x128xbf16>
    %cst_319 = arith.constant dense<0.000000e+00> : vector<16x128xf32>
    %540 = tpu.matmul %537, %539, %cst_319 {dimension_numbers = #tpu.dot_dimension_numbers<[1], [0], [0], [1], [0, 0, 1, 1], [], []>} : vector<16x128xbf16>, vector<128x128xbf16>, vector<16x128xf32> -> vector<16x128xf32>
    %541 = arith.addf %535, %540 : vector<16x128xf32>
    %c0_320 = arith.constant 0 : index
    %c256_321 = arith.constant 256 : index
    %c0_322 = arith.constant 0 : index
    %542 = vector.load %arg7[%c0_320, %c256_321, %c0_322] : memref<1x576x128xbf16, #tpu.memory_space<vmem>>, vector<1x16x128xbf16>
    %543 = vector.shape_cast %542 : vector<1x16x128xbf16> to vector<16x128xbf16>
    %544 = vector.extract_strided_slice %44 {offsets = [8, 0, 0], sizes = [1, 128, 128], strides = [1, 1, 1]} : vector<25x128x128xbf16> to vector<1x128x128xbf16>
    %545 = vector.shape_cast %544 : vector<1x128x128xbf16> to vector<128x128xbf16>
    %cst_323 = arith.constant dense<0.000000e+00> : vector<16x128xf32>
    %546 = tpu.matmul %543, %545, %cst_323 {dimension_numbers = #tpu.dot_dimension_numbers<[1], [0], [0], [1], [0, 0, 1, 1], [], []>} : vector<16x128xbf16>, vector<128x128xbf16>, vector<16x128xf32> -> vector<16x128xf32>
    %547 = arith.addf %541, %546 : vector<16x128xf32>
    %c0_324 = arith.constant 0 : index
    %c272_325 = arith.constant 272 : index
    %c0_326 = arith.constant 0 : index
    %548 = vector.load %arg7[%c0_324, %c272_325, %c0_326] : memref<1x576x128xbf16, #tpu.memory_space<vmem>>, vector<1x16x128xbf16>
    %549 = vector.shape_cast %548 : vector<1x16x128xbf16> to vector<16x128xbf16>
    %550 = vector.extract_strided_slice %44 {offsets = [9, 0, 0], sizes = [1, 128, 128], strides = [1, 1, 1]} : vector<25x128x128xbf16> to vector<1x128x128xbf16>
    %551 = vector.shape_cast %550 : vector<1x128x128xbf16> to vector<128x128xbf16>
    %cst_327 = arith.constant dense<0.000000e+00> : vector<16x128xf32>
    %552 = tpu.matmul %549, %551, %cst_327 {dimension_numbers = #tpu.dot_dimension_numbers<[1], [0], [0], [1], [0, 0, 1, 1], [], []>} : vector<16x128xbf16>, vector<128x128xbf16>, vector<16x128xf32> -> vector<16x128xf32>
    %553 = arith.addf %547, %552 : vector<16x128xf32>
    %c0_328 = arith.constant 0 : index
    %c304_329 = arith.constant 304 : index
    %c0_330 = arith.constant 0 : index
    %554 = vector.load %arg7[%c0_328, %c304_329, %c0_330] : memref<1x576x128xbf16, #tpu.memory_space<vmem>>, vector<1x16x128xbf16>
    %555 = vector.shape_cast %554 : vector<1x16x128xbf16> to vector<16x128xbf16>
    %556 = vector.extract_strided_slice %44 {offsets = [10, 0, 0], sizes = [1, 128, 128], strides = [1, 1, 1]} : vector<25x128x128xbf16> to vector<1x128x128xbf16>
    %557 = vector.shape_cast %556 : vector<1x128x128xbf16> to vector<128x128xbf16>
    %cst_331 = arith.constant dense<0.000000e+00> : vector<16x128xf32>
    %558 = tpu.matmul %555, %557, %cst_331 {dimension_numbers = #tpu.dot_dimension_numbers<[1], [0], [0], [1], [0, 0, 1, 1], [], []>} : vector<16x128xbf16>, vector<128x128xbf16>, vector<16x128xf32> -> vector<16x128xf32>
    %559 = arith.addf %553, %558 : vector<16x128xf32>
    %c0_332 = arith.constant 0 : index
    %c320_333 = arith.constant 320 : index
    %c0_334 = arith.constant 0 : index
    %560 = vector.load %arg7[%c0_332, %c320_333, %c0_334] : memref<1x576x128xbf16, #tpu.memory_space<vmem>>, vector<1x16x128xbf16>
    %561 = vector.shape_cast %560 : vector<1x16x128xbf16> to vector<16x128xbf16>
    %562 = vector.extract_strided_slice %44 {offsets = [11, 0, 0], sizes = [1, 128, 128], strides = [1, 1, 1]} : vector<25x128x128xbf16> to vector<1x128x128xbf16>
    %563 = vector.shape_cast %562 : vector<1x128x128xbf16> to vector<128x128xbf16>
    %cst_335 = arith.constant dense<0.000000e+00> : vector<16x128xf32>
    %564 = tpu.matmul %561, %563, %cst_335 {dimension_numbers = #tpu.dot_dimension_numbers<[1], [0], [0], [1], [0, 0, 1, 1], [], []>} : vector<16x128xbf16>, vector<128x128xbf16>, vector<16x128xf32> -> vector<16x128xf32>
    %565 = arith.addf %559, %564 : vector<16x128xf32>
    %c0_336 = arith.constant 0 : index
    %c336_337 = arith.constant 336 : index
    %c0_338 = arith.constant 0 : index
    %566 = vector.load %arg7[%c0_336, %c336_337, %c0_338] : memref<1x576x128xbf16, #tpu.memory_space<vmem>>, vector<1x16x128xbf16>
    %567 = vector.shape_cast %566 : vector<1x16x128xbf16> to vector<16x128xbf16>
    %568 = vector.extract_strided_slice %44 {offsets = [12, 0, 0], sizes = [1, 128, 128], strides = [1, 1, 1]} : vector<25x128x128xbf16> to vector<1x128x128xbf16>
    %569 = vector.shape_cast %568 : vector<1x128x128xbf16> to vector<128x128xbf16>
    %cst_339 = arith.constant dense<0.000000e+00> : vector<16x128xf32>
    %570 = tpu.matmul %567, %569, %cst_339 {dimension_numbers = #tpu.dot_dimension_numbers<[1], [0], [0], [1], [0, 0, 1, 1], [], []>} : vector<16x128xbf16>, vector<128x128xbf16>, vector<16x128xf32> -> vector<16x128xf32>
    %571 = arith.addf %565, %570 : vector<16x128xf32>
    %c0_340 = arith.constant 0 : index
    %c352_341 = arith.constant 352 : index
    %c0_342 = arith.constant 0 : index
    %572 = vector.load %arg7[%c0_340, %c352_341, %c0_342] : memref<1x576x128xbf16, #tpu.memory_space<vmem>>, vector<1x16x128xbf16>
    %573 = vector.shape_cast %572 : vector<1x16x128xbf16> to vector<16x128xbf16>
    %574 = vector.extract_strided_slice %44 {offsets = [13, 0, 0], sizes = [1, 128, 128], strides = [1, 1, 1]} : vector<25x128x128xbf16> to vector<1x128x128xbf16>
    %575 = vector.shape_cast %574 : vector<1x128x128xbf16> to vector<128x128xbf16>
    %cst_343 = arith.constant dense<0.000000e+00> : vector<16x128xf32>
    %576 = tpu.matmul %573, %575, %cst_343 {dimension_numbers = #tpu.dot_dimension_numbers<[1], [0], [0], [1], [0, 0, 1, 1], [], []>} : vector<16x128xbf16>, vector<128x128xbf16>, vector<16x128xf32> -> vector<16x128xf32>
    %577 = arith.addf %571, %576 : vector<16x128xf32>
    %c0_344 = arith.constant 0 : index
    %c368_345 = arith.constant 368 : index
    %c0_346 = arith.constant 0 : index
    %578 = vector.load %arg7[%c0_344, %c368_345, %c0_346] : memref<1x576x128xbf16, #tpu.memory_space<vmem>>, vector<1x16x128xbf16>
    %579 = vector.shape_cast %578 : vector<1x16x128xbf16> to vector<16x128xbf16>
    %580 = vector.extract_strided_slice %44 {offsets = [14, 0, 0], sizes = [1, 128, 128], strides = [1, 1, 1]} : vector<25x128x128xbf16> to vector<1x128x128xbf16>
    %581 = vector.shape_cast %580 : vector<1x128x128xbf16> to vector<128x128xbf16>
    %cst_347 = arith.constant dense<0.000000e+00> : vector<16x128xf32>
    %582 = tpu.matmul %579, %581, %cst_347 {dimension_numbers = #tpu.dot_dimension_numbers<[1], [0], [0], [1], [0, 0, 1, 1], [], []>} : vector<16x128xbf16>, vector<128x128xbf16>, vector<16x128xf32> -> vector<16x128xf32>
    %583 = arith.addf %577, %582 : vector<16x128xf32>
    %c0_348 = arith.constant 0 : index
    %c400_349 = arith.constant 400 : index
    %c0_350 = arith.constant 0 : index
    %584 = vector.load %arg7[%c0_348, %c400_349, %c0_350] : memref<1x576x128xbf16, #tpu.memory_space<vmem>>, vector<1x16x128xbf16>
    %585 = vector.shape_cast %584 : vector<1x16x128xbf16> to vector<16x128xbf16>
    %586 = vector.extract_strided_slice %44 {offsets = [15, 0, 0], sizes = [1, 128, 128], strides = [1, 1, 1]} : vector<25x128x128xbf16> to vector<1x128x128xbf16>
    %587 = vector.shape_cast %586 : vector<1x128x128xbf16> to vector<128x128xbf16>
    %cst_351 = arith.constant dense<0.000000e+00> : vector<16x128xf32>
    %588 = tpu.matmul %585, %587, %cst_351 {dimension_numbers = #tpu.dot_dimension_numbers<[1], [0], [0], [1], [0, 0, 1, 1], [], []>} : vector<16x128xbf16>, vector<128x128xbf16>, vector<16x128xf32> -> vector<16x128xf32>
    %589 = arith.addf %583, %588 : vector<16x128xf32>
    %c0_352 = arith.constant 0 : index
    %c416_353 = arith.constant 416 : index
    %c0_354 = arith.constant 0 : index
    %590 = vector.load %arg7[%c0_352, %c416_353, %c0_354] : memref<1x576x128xbf16, #tpu.memory_space<vmem>>, vector<1x16x128xbf16>
    %591 = vector.shape_cast %590 : vector<1x16x128xbf16> to vector<16x128xbf16>
    %592 = vector.extract_strided_slice %44 {offsets = [16, 0, 0], sizes = [1, 128, 128], strides = [1, 1, 1]} : vector<25x128x128xbf16> to vector<1x128x128xbf16>
    %593 = vector.shape_cast %592 : vector<1x128x128xbf16> to vector<128x128xbf16>
    %cst_355 = arith.constant dense<0.000000e+00> : vector<16x128xf32>
    %594 = tpu.matmul %591, %593, %cst_355 {dimension_numbers = #tpu.dot_dimension_numbers<[1], [0], [0], [1], [0, 0, 1, 1], [], []>} : vector<16x128xbf16>, vector<128x128xbf16>, vector<16x128xf32> -> vector<16x128xf32>
    %595 = arith.addf %589, %594 : vector<16x128xf32>
    %c0_356 = arith.constant 0 : index
    %c432_357 = arith.constant 432 : index
    %c0_358 = arith.constant 0 : index
    %596 = vector.load %arg7[%c0_356, %c432_357, %c0_358] : memref<1x576x128xbf16, #tpu.memory_space<vmem>>, vector<1x16x128xbf16>
    %597 = vector.shape_cast %596 : vector<1x16x128xbf16> to vector<16x128xbf16>
    %598 = vector.extract_strided_slice %44 {offsets = [17, 0, 0], sizes = [1, 128, 128], strides = [1, 1, 1]} : vector<25x128x128xbf16> to vector<1x128x128xbf16>
    %599 = vector.shape_cast %598 : vector<1x128x128xbf16> to vector<128x128xbf16>
    %cst_359 = arith.constant dense<0.000000e+00> : vector<16x128xf32>
    %600 = tpu.matmul %597, %599, %cst_359 {dimension_numbers = #tpu.dot_dimension_numbers<[1], [0], [0], [1], [0, 0, 1, 1], [], []>} : vector<16x128xbf16>, vector<128x128xbf16>, vector<16x128xf32> -> vector<16x128xf32>
    %601 = arith.addf %595, %600 : vector<16x128xf32>
    %c0_360 = arith.constant 0 : index
    %c448_361 = arith.constant 448 : index
    %c0_362 = arith.constant 0 : index
    %602 = vector.load %arg7[%c0_360, %c448_361, %c0_362] : memref<1x576x128xbf16, #tpu.memory_space<vmem>>, vector<1x16x128xbf16>
    %603 = vector.shape_cast %602 : vector<1x16x128xbf16> to vector<16x128xbf16>
    %604 = vector.extract_strided_slice %44 {offsets = [18, 0, 0], sizes = [1, 128, 128], strides = [1, 1, 1]} : vector<25x128x128xbf16> to vector<1x128x128xbf16>
    %605 = vector.shape_cast %604 : vector<1x128x128xbf16> to vector<128x128xbf16>
    %cst_363 = arith.constant dense<0.000000e+00> : vector<16x128xf32>
    %606 = tpu.matmul %603, %605, %cst_363 {dimension_numbers = #tpu.dot_dimension_numbers<[1], [0], [0], [1], [0, 0, 1, 1], [], []>} : vector<16x128xbf16>, vector<128x128xbf16>, vector<16x128xf32> -> vector<16x128xf32>
    %607 = arith.addf %601, %606 : vector<16x128xf32>
    %c0_364 = arith.constant 0 : index
    %c464_365 = arith.constant 464 : index
    %c0_366 = arith.constant 0 : index
    %608 = vector.load %arg7[%c0_364, %c464_365, %c0_366] : memref<1x576x128xbf16, #tpu.memory_space<vmem>>, vector<1x16x128xbf16>
    %609 = vector.shape_cast %608 : vector<1x16x128xbf16> to vector<16x128xbf16>
    %610 = vector.extract_strided_slice %44 {offsets = [19, 0, 0], sizes = [1, 128, 128], strides = [1, 1, 1]} : vector<25x128x128xbf16> to vector<1x128x128xbf16>
    %611 = vector.shape_cast %610 : vector<1x128x128xbf16> to vector<128x128xbf16>
    %cst_367 = arith.constant dense<0.000000e+00> : vector<16x128xf32>
    %612 = tpu.matmul %609, %611, %cst_367 {dimension_numbers = #tpu.dot_dimension_numbers<[1], [0], [0], [1], [0, 0, 1, 1], [], []>} : vector<16x128xbf16>, vector<128x128xbf16>, vector<16x128xf32> -> vector<16x128xf32>
    %613 = arith.addf %607, %612 : vector<16x128xf32>
    %c0_368 = arith.constant 0 : index
    %c496_369 = arith.constant 496 : index
    %c0_370 = arith.constant 0 : index
    %614 = vector.load %arg7[%c0_368, %c496_369, %c0_370] : memref<1x576x128xbf16, #tpu.memory_space<vmem>>, vector<1x16x128xbf16>
    %615 = vector.shape_cast %614 : vector<1x16x128xbf16> to vector<16x128xbf16>
    %616 = vector.extract_strided_slice %44 {offsets = [20, 0, 0], sizes = [1, 128, 128], strides = [1, 1, 1]} : vector<25x128x128xbf16> to vector<1x128x128xbf16>
    %617 = vector.shape_cast %616 : vector<1x128x128xbf16> to vector<128x128xbf16>
    %cst_371 = arith.constant dense<0.000000e+00> : vector<16x128xf32>
    %618 = tpu.matmul %615, %617, %cst_371 {dimension_numbers = #tpu.dot_dimension_numbers<[1], [0], [0], [1], [0, 0, 1, 1], [], []>} : vector<16x128xbf16>, vector<128x128xbf16>, vector<16x128xf32> -> vector<16x128xf32>
    %619 = arith.addf %613, %618 : vector<16x128xf32>
    %c0_372 = arith.constant 0 : index
    %c512_373 = arith.constant 512 : index
    %c0_374 = arith.constant 0 : index
    %620 = vector.load %arg7[%c0_372, %c512_373, %c0_374] : memref<1x576x128xbf16, #tpu.memory_space<vmem>>, vector<1x16x128xbf16>
    %621 = vector.shape_cast %620 : vector<1x16x128xbf16> to vector<16x128xbf16>
    %622 = vector.extract_strided_slice %44 {offsets = [21, 0, 0], sizes = [1, 128, 128], strides = [1, 1, 1]} : vector<25x128x128xbf16> to vector<1x128x128xbf16>
    %623 = vector.shape_cast %622 : vector<1x128x128xbf16> to vector<128x128xbf16>
    %cst_375 = arith.constant dense<0.000000e+00> : vector<16x128xf32>
    %624 = tpu.matmul %621, %623, %cst_375 {dimension_numbers = #tpu.dot_dimension_numbers<[1], [0], [0], [1], [0, 0, 1, 1], [], []>} : vector<16x128xbf16>, vector<128x128xbf16>, vector<16x128xf32> -> vector<16x128xf32>
    %625 = arith.addf %619, %624 : vector<16x128xf32>
    %c0_376 = arith.constant 0 : index
    %c528_377 = arith.constant 528 : index
    %c0_378 = arith.constant 0 : index
    %626 = vector.load %arg7[%c0_376, %c528_377, %c0_378] : memref<1x576x128xbf16, #tpu.memory_space<vmem>>, vector<1x16x128xbf16>
    %627 = vector.shape_cast %626 : vector<1x16x128xbf16> to vector<16x128xbf16>
    %628 = vector.extract_strided_slice %44 {offsets = [22, 0, 0], sizes = [1, 128, 128], strides = [1, 1, 1]} : vector<25x128x128xbf16> to vector<1x128x128xbf16>
    %629 = vector.shape_cast %628 : vector<1x128x128xbf16> to vector<128x128xbf16>
    %cst_379 = arith.constant dense<0.000000e+00> : vector<16x128xf32>
    %630 = tpu.matmul %627, %629, %cst_379 {dimension_numbers = #tpu.dot_dimension_numbers<[1], [0], [0], [1], [0, 0, 1, 1], [], []>} : vector<16x128xbf16>, vector<128x128xbf16>, vector<16x128xf32> -> vector<16x128xf32>
    %631 = arith.addf %625, %630 : vector<16x128xf32>
    %c0_380 = arith.constant 0 : index
    %c544_381 = arith.constant 544 : index
    %c0_382 = arith.constant 0 : index
    %632 = vector.load %arg7[%c0_380, %c544_381, %c0_382] : memref<1x576x128xbf16, #tpu.memory_space<vmem>>, vector<1x16x128xbf16>
    %633 = vector.shape_cast %632 : vector<1x16x128xbf16> to vector<16x128xbf16>
    %634 = vector.extract_strided_slice %44 {offsets = [23, 0, 0], sizes = [1, 128, 128], strides = [1, 1, 1]} : vector<25x128x128xbf16> to vector<1x128x128xbf16>
    %635 = vector.shape_cast %634 : vector<1x128x128xbf16> to vector<128x128xbf16>
    %cst_383 = arith.constant dense<0.000000e+00> : vector<16x128xf32>
    %636 = tpu.matmul %633, %635, %cst_383 {dimension_numbers = #tpu.dot_dimension_numbers<[1], [0], [0], [1], [0, 0, 1, 1], [], []>} : vector<16x128xbf16>, vector<128x128xbf16>, vector<16x128xf32> -> vector<16x128xf32>
    %637 = arith.addf %631, %636 : vector<16x128xf32>
    %c0_384 = arith.constant 0 : index
    %c560 = arith.constant 560 : index
    %c0_385 = arith.constant 0 : index
    %638 = vector.load %arg7[%c0_384, %c560, %c0_385] : memref<1x576x128xbf16, #tpu.memory_space<vmem>>, vector<1x16x128xbf16>
    %639 = vector.shape_cast %638 : vector<1x16x128xbf16> to vector<16x128xbf16>
    %640 = vector.extract_strided_slice %44 {offsets = [24, 0, 0], sizes = [1, 128, 128], strides = [1, 1, 1]} : vector<25x128x128xbf16> to vector<1x128x128xbf16>
    %641 = vector.shape_cast %640 : vector<1x128x128xbf16> to vector<128x128xbf16>
    %cst_386 = arith.constant dense<0.000000e+00> : vector<16x128xf32>
    %642 = tpu.matmul %639, %641, %cst_386 {dimension_numbers = #tpu.dot_dimension_numbers<[1], [0], [0], [1], [0, 0, 1, 1], [], []>} : vector<16x128xbf16>, vector<128x128xbf16>, vector<16x128xf32> -> vector<16x128xf32>
    %643 = arith.addf %637, %642 : vector<16x128xf32>
    %644 = arith.maximumf %494, %643 : vector<16x128xf32>
    %645 = vector.broadcast %45 : vector<1x128xf32> to vector<16x128xf32>
    %646 = arith.addf %644, %645 : vector<16x128xf32>
    %cst_387 = arith.constant 0.000000e+00 : f32
    %647 = vector.broadcast %cst_387 : f32 to vector<16x128xf32>
    %648 = arith.maximumf %646, %647 : vector<16x128xf32>
    %649 = vector.shape_cast %648 : vector<16x128xf32> to vector<1x16x128xf32>
    %c0_388 = arith.constant 0 : index
    %c0_389 = arith.constant 0 : index
    %c0_390 = arith.constant 0 : index
    %650 = vector.load %arg6[%c0_388, %c0_389, %c0_390] : memref<1x16x128xf32, #tpu.memory_space<vmem>>, vector<1x16x128xf32>
    tpu.vector_store %arg6[%c0_388, %c0_389, %c0_390], %649 {strides = array<i32>} : memref<1x16x128xf32, #tpu.memory_space<vmem>>, vector<1x16x128xf32>,
    return
  }
  func.func @transform_0(%arg0: i32) -> (i32, i32, i32, i32) {
    %c0_i32 = arith.constant 0 : i32
    %c0_i32_0 = arith.constant 0 : i32
    %c0_i32_1 = arith.constant 0 : i32
    %c0_i32_2 = arith.constant 0 : i32
    return %arg0, %c0_i32, %c0_i32_0, %c0_i32_1 : i32, i32, i32, i32
  }
  func.func @transform_1(%arg0: i32) -> (i32, i32) {
    %c0_i32 = arith.constant 0 : i32
    %c0_i32_0 = arith.constant 0 : i32
    %c0_i32_1 = arith.constant 0 : i32
    return %c0_i32, %c0_i32_0 : i32, i32
  }
  func.func @transform_2(%arg0: i32) -> (i32, i32) {
    %c0_i32 = arith.constant 0 : i32
    %c0_i32_0 = arith.constant 0 : i32
    %c0_i32_1 = arith.constant 0 : i32
    return %c0_i32, %c0_i32_0 : i32, i32
  }
  func.func @transform_3(%arg0: i32) -> (i32, i32, i32) {
    %c0_i32 = arith.constant 0 : i32
    %c0_i32_0 = arith.constant 0 : i32
    %c0_i32_1 = arith.constant 0 : i32
    %c0_i32_2 = arith.constant 0 : i32
    return %c0_i32, %c0_i32_0, %c0_i32_1 : i32, i32, i32
  }
  func.func @transform_4(%arg0: i32) -> (i32, i32) {
    %c0_i32 = arith.constant 0 : i32
    %c0_i32_0 = arith.constant 0 : i32
    %c0_i32_1 = arith.constant 0 : i32
    return %c0_i32, %c0_i32_0 : i32, i32
  }
  func.func @transform_5(%arg0: i32) -> (i32, i32, i32) {
    %c0_i32 = arith.constant 0 : i32
    %c0_i32_0 = arith.constant 0 : i32
    %c0_i32_1 = arith.constant 0 : i32
    return %arg0, %c0_i32, %c0_i32_0 : i32, i32, i32
  }
}

</mosaic_0001>

<llo_original>
// kernel: sub_model_forward.1
$region0: #{sub_model_forward.1}
  #allocation0 [shape = 'u32[]', space=smem, size = 0x4, offset = 0x4, fixed_abs, tag = 'smem constant byte address 0x4 - core index']
  #allocation1 [shape = 'u32[72,128]{1,0:T(1,128)}', space=vmem, size = 0x9000, scoped, tag = 'internal scratch']
  #allocation2 [shape = 'bf16[1,576,128]{2,1,0:T(8,128)(2,1)}', space=vmem, size = 0x24000, scoped, tag = 'scratch operand']
  %s0 = inlined_call_operand.vmem [shape: bf16[2,4,576,32], index: 0, kind: input, shape index: {}]
  %s1 = inlined_call_operand.vmem [shape: bf16[32,128], index: 1, kind: input, shape index: {}]
  %s2 = inlined_call_operand.vmem [shape: f32[1,128], index: 2, kind: input, shape index: {}]
  %s3 = inlined_call_operand.vmem [shape: bf16[25,128,128], index: 3, kind: input, shape index: {}]
  %s4 = inlined_call_operand.vmem [shape: f32[1,128], index: 4, kind: input, shape index: {}]
  %s5 = inlined_call_operand.hbm [shape: f32[2,16,128], index: 5, kind: output, shape index: {}]
  %s6 = sld [smem:[#allocation0]]
  $region53: #{sub_model_forward.1} parent=0
    _
  %s8 = ssub.s32 1, %s6
  %s9 = scalar_select 0, %s8, %s6
  $region1: #{sub_model_forward.1} parent=0
    #allocation3 [shape = 'u8[16384]{0}', space=vmem, size = 0x4000, scoped, tag = 'output window, operand 0']
    #allocation4 [shape = 's32[2]{0}', space=sflag, size = 0x8, scoped, tag = 'scoped memory for sub_model_forward.1']
    %10 = vsyncpa [#allocation4], 0
    %s11 = scalar_lea.sflag [#allocation4], 1
    %12 = vsyncpa %s11, 0
    loop: start=0, step=1, limit=4
    $region2: #{sub_model_forward.1} parent=1 // loop_pre_header
      _
    $region3: #{sub_model_forward.1} parent=1 // loop_header
      %s14 = sphi 0, %s18
      %p15 = scmp.ge.s32.totalorder %s14, 4
      %s24 = sphi 0, %s26
      %s27 = sphi 0, %s24
      %s28 = sphi 0, %s27
      %s44 = sphi 0, %s28
      %s48 = sphi 0, %s48
      %s50 = sphi 0, %s48
      %s51 = sphi 0, %s50
      %s65 = sphi 0, %s51
      %s69 = sphi 0, %s69
      %s71 = sphi 0, %s69
      %s72 = sphi 0, %s71
      %s86 = sphi 0, %s72
      %s90 = sphi 0, %s90
      %s92 = sphi 0, %s90
      %s93 = sphi 0, %s92
      %s107 = sphi 0, %s93
      %s111 = sphi 0, %s111
      %s113 = sphi 0, %s111
      %s114 = sphi 0, %s113
      %s128 = sphi 0, %s114
      %s134 = sphi 0, %s136
      %s137 = sphi 0, %s134
      %s138 = sphi 0, %s137
      %s154 = sphi 0, %s138
    $region4: #{sub_model_forward.1} parent=1 // loop_header_branch
      %17 = sbr.rel (%p15) target = $region8
    $region5: #{sub_model_forward.1} parent=1 // loop_body
      %s19 = ssub.s32 %s14, 1
      %s20 = ssub.s32 %s14, 2
      %s21 = sadd.s32 %s14, 1
      %s22 = ssub.s32 %s14, %s21
      %p23 = scmp.eq.s32.totalorder %s22, 0
      %s25 = sadd.s32 %s24, 1
      %s26 = scalar_select %p23, %s24, %s25
      %p29 = pneg %p23
      %p30 = scmp.eq.s32.totalorder %s14, 1
      %p31 = por %p29, %p30
      %p32 = scmp.ne.s32.totalorder %s24, %s27
      %p33 = scmp.eq.s32.totalorder %s14, 0
      %p34 = por %p32, %p33
      %p35 = scmp.ne.s32.totalorder %s24, %s27
      %p36 = scmp.eq.s32.totalorder %s19, 1
      %p37 = por %p35, %p36
      %p38 = scmp.ne.s32.totalorder %s27, %s28
      %p39 = scmp.eq.s32.totalorder %s19, 0
      %p40 = por %p38, %p39
      %p41 = scmp.ne.s32.totalorder %s27, %s28
      %p42 = scmp.eq.s32.totalorder %s20, 1
      %p43 = por %p41, %p42
      %p45 = scmp.ne.s32.totalorder %s28, %s44
      %p46 = scmp.eq.s32.totalorder %s20, 0
      %p47 = por %p45, %p46
      %s49 = sadd.s32 %s48, 1
      %p52 = scmp.eq.s32.totalorder %s14, 1
      %p53 = scmp.ne.s32.totalorder %s48, %s50
      %p54 = scmp.eq.s32.totalorder %s14, 0
      %p55 = por %p53, %p54
      %p56 = scmp.ne.s32.totalorder %s48, %s50
      %p57 = scmp.eq.s32.totalorder %s19, 1
      %p58 = por %p56, %p57
      %p59 = scmp.ne.s32.totalorder %s50, %s51
      %p60 = scmp.eq.s32.totalorder %s19, 0
      %p61 = por %p59, %p60
      %p62 = scmp.ne.s32.totalorder %s50, %s51
      %p63 = scmp.eq.s32.totalorder %s20, 1
      %p64 = por %p62, %p63
      %p66 = scmp.ne.s32.totalorder %s51, %s65
      %p67 = scmp.eq.s32.totalorder %s20, 0
      %p68 = por %p66, %p67
      %s70 = sadd.s32 %s69, 1
      %p73 = scmp.eq.s32.totalorder %s14, 1
      %p74 = scmp.ne.s32.totalorder %s69, %s71
      %p75 = scmp.eq.s32.totalorder %s14, 0
      %p76 = por %p74, %p75
      %p77 = scmp.ne.s32.totalorder %s69, %s71
      %p78 = scmp.eq.s32.totalorder %s19, 1
      %p79 = por %p77, %p78
      %p80 = scmp.ne.s32.totalorder %s71, %s72
      %p81 = scmp.eq.s32.totalorder %s19, 0
      %p82 = por %p80, %p81
      %p83 = scmp.ne.s32.totalorder %s71, %s72
      %p84 = scmp.eq.s32.totalorder %s20, 1
      %p85 = por %p83, %p84
      %p87 = scmp.ne.s32.totalorder %s72, %s86
      %p88 = scmp.eq.s32.totalorder %s20, 0
      %p89 = por %p87, %p88
      %s91 = sadd.s32 %s90, 1
      %p94 = scmp.eq.s32.totalorder %s14, 1
      %p95 = scmp.ne.s32.totalorder %s90, %s92
      %p96 = scmp.eq.s32.totalorder %s14, 0
      %p97 = por %p95, %p96
      %p98 = scmp.ne.s32.totalorder %s90, %s92
      %p99 = scmp.eq.s32.totalorder %s19, 1
      %p100 = por %p98, %p99
      %p101 = scmp.ne.s32.totalorder %s92, %s93
      %p102 = scmp.eq.s32.totalorder %s19, 0
      %p103 = por %p101, %p102
      %p104 = scmp.ne.s32.totalorder %s92, %s93
      %p105 = scmp.eq.s32.totalorder %s20, 1
      %p106 = por %p104, %p105
      %p108 = scmp.ne.s32.totalorder %s93, %s107
      %p109 = scmp.eq.s32.totalorder %s20, 0
      %p110 = por %p108, %p109
      %s112 = sadd.s32 %s111, 1
      %p115 = scmp.eq.s32.totalorder %s14, 1
      %p116 = scmp.ne.s32.totalorder %s111, %s113
      %p117 = scmp.eq.s32.totalorder %s14, 0
      %p118 = por %p116, %p117
      %p119 = scmp.ne.s32.totalorder %s111, %s113
      %p120 = scmp.eq.s32.totalorder %s19, 1
      %p121 = por %p119, %p120
      %p122 = scmp.ne.s32.totalorder %s113, %s114
      %p123 = scmp.eq.s32.totalorder %s19, 0
      %p124 = por %p122, %p123
      %p125 = scmp.ne.s32.totalorder %s113, %s114
      %p126 = scmp.eq.s32.totalorder %s20, 1
      %p127 = por %p125, %p126
      %p129 = scmp.ne.s32.totalorder %s114, %s128
      %p130 = scmp.eq.s32.totalorder %s20, 0
      %p131 = por %p129, %p130
      %s132 = ssub.s32 %s14, %s21
      %p133 = scmp.eq.s32.totalorder %s132, 0
      %s135 = sadd.s32 %s134, 1
      %s136 = scalar_select %p133, %s134, %s135
      %p139 = pneg %p133
      %p140 = scmp.eq.s32.totalorder %s14, 1
      %p141 = por %p139, %p140
      %p142 = scmp.ne.s32.totalorder %s134, %s137
      %p143 = scmp.eq.s32.totalorder %s14, 0
      %p144 = por %p142, %p143
      %p145 = scmp.ne.s32.totalorder %s134, %s137
      %p146 = scmp.eq.s32.totalorder %s19, 1
      %p147 = por %p145, %p146
      %p148 = scmp.ne.s32.totalorder %s137, %s138
      %p149 = scmp.eq.s32.totalorder %s19, 0
      %p150 = por %p148, %p149
      %p151 = scmp.ne.s32.totalorder %s137, %s138
      %p152 = scmp.eq.s32.totalorder %s20, 1
      %p153 = por %p151, %p152
      %p155 = scmp.ne.s32.totalorder %s138, %s154
      %p156 = scmp.eq.s32.totalorder %s20, 0
      %p157 = por %p155, %p156
      %p158 = scmp.le.s32.totalorder 1, %s14
      %p159 = scmp.lt.s32.totalorder %s14, 3
      %p160 = pnand %p158, %p159
      %p161 = pneg %p160
      // Predicated region
      $region9: #{sub_model_forward.1} parent=5 // pred_check
        _
      $region10: #{sub_model_forward.1} parent=5 // pred_check_branch
        %163 = sbr.rel (%p160) target = $region12
      $region11: #{sub_model_forward.1} parent=5 // pred_region
        %s164 = ssub.s32 %s14, 1
        // Predicated region
        $region13: #{sub_model_forward.1} parent=11 // pred_check
          %p165 = pneg %p61
        $region14: #{sub_model_forward.1} parent=11 // pred_check_branch
          %167 = sbr.rel (%p165) target = $region16
        $region15: #{sub_model_forward.1} parent=11 // pred_region
          _
        $region16: #{sub_model_forward.1} parent=11 // pred_fallthru
          _
        // Predicated region
        $region17: #{sub_model_forward.1} parent=11 // pred_check
          %p168 = pneg %p82
        $region18: #{sub_model_forward.1} parent=11 // pred_check_branch
          %170 = sbr.rel (%p168) target = $region20
        $region19: #{sub_model_forward.1} parent=11 // pred_region
          _
        $region20: #{sub_model_forward.1} parent=11 // pred_fallthru
          _
        // Predicated region
        $region21: #{sub_model_forward.1} parent=11 // pred_check
          %p171 = pneg %p103
        $region22: #{sub_model_forward.1} parent=11 // pred_check_branch
          %173 = sbr.rel (%p171) target = $region24
        $region23: #{sub_model_forward.1} parent=11 // pred_region
          _
        $region24: #{sub_model_forward.1} parent=11 // pred_fallthru
          _
        // Predicated region
        $region25: #{sub_model_forward.1} parent=11 // pred_check
          %p174 = pneg %p124
        $region26: #{sub_model_forward.1} parent=11 // pred_check_branch
          %176 = sbr.rel (%p174) target = $region28
        $region27: #{sub_model_forward.1} parent=11 // pred_region
          _
        $region28: #{sub_model_forward.1} parent=11 // pred_fallthru
          _
      $region12: #{sub_model_forward.1} parent=5 // pred_fallthru
        _
      %p177 = scmp.lt.s32.totalorder %s14, 2
      // Predicated region
      $region29: #{sub_model_forward.1} parent=5 // pred_check
        %p178 = pneg %p177
      $region30: #{sub_model_forward.1} parent=5 // pred_check_branch
        %180 = sbr.rel (%p178) target = $region32
      $region31: #{sub_model_forward.1} parent=5 // pred_region
        // Predicated region
        $region33: #{sub_model_forward.1} parent=31 // pred_check
          %p181 = pneg %p34
        $region34: #{sub_model_forward.1} parent=31 // pred_check_branch
          %183 = sbr.rel (%p181) target = $region36
        $region35: #{sub_model_forward.1} parent=31 // pred_region
          %p184 = scmp.lt.s32.totalorder %s14, 1
          %s185 = scalar_select %p184, %s14, 1
          %s186 = smul.addr %s185, 288
          %s187 = smul.addr %s186, 4
          %s188 = scalar_lea.vmem %s0, %s187
        $region36: #{sub_model_forward.1} parent=31 // pred_fallthru
          _
      $region32: #{sub_model_forward.1} parent=5 // pred_fallthru
        _
      %p189 = scmp.le.s32.totalorder 1, %s14
      %p190 = scmp.lt.s32.totalorder %s14, 3
      %p191 = pnand %p189, %p190
      %p192 = pneg %p191
      // Predicated region
      $region37: #{sub_model_forward.1} parent=5 // pred_check
        _
      $region38: #{sub_model_forward.1} parent=5 // pred_check_branch
        %194 = sbr.rel (%p191) target = $region40
      $region39: #{sub_model_forward.1} parent=5 // pred_region
        %s195 = ssub.s32 %s14, 1
        %p196 = scmp.lt.s32.totalorder %s19, 1
        %s197 = scalar_select %p196, %s19, 1
        %s198 = smul.addr %s197, 288
        %s199 = smul.addr %s198, 4
        %s200 = scalar_lea.vmem %s0, %s199
        %p201 = pneg %p40
        %p202 = pneg %p37
        %p203 = pneg %p61
        %p204 = pneg %p58
        %p205 = pneg %p82
        %p206 = pneg %p79
        %p207 = pneg %p103
        %p208 = pneg %p100
        %p209 = pneg %p124
        %p210 = pneg %p121
        %p211 = pneg %p150
        %p212 = pneg %p147
        %s213 = sand.u32 %s137, 1
        %s214 = scalar_lea.sflag [#allocation4], %s213
        %s215 = sand.u32 %s137, 1
        %s216 = smul.addr %s215, 16
        %s217 = scalar_lea.vmem [#allocation3], %s216
        %p218 = scmp.lt.s32.totalorder %s19, 1
        %s219 = scalar_select %p218, %s19, 1
        %s220 = smul.addr %s219, 288
        %s221 = smul.addr %s220, 4
        %s222 = scalar_lea.vmem %s0, %s221
        %v224 = vld [vmem:[%s222] sm:$0xf]
        %v225 = vld [vmem:[%s222 + $0x4] sm:$0xf]
        %v226 = vld [vmem:[%s222 + $0x8] sm:$0xf]
        %v227 = vld [vmem:[%s222 + $0xc] sm:$0xf]
        %v228 = vld [vmem:[%s222 + $0x10] sm:$0xf]
        %v229 = vld [vmem:[%s222 + $0x14] sm:$0xf]
        %v230 = vld [vmem:[%s222 + $0x18] sm:$0xf]
        %v231 = vld [vmem:[%s222 + $0x1c] sm:$0xf]
        %v232 = vld [vmem:[%s222 + $0x20] sm:$0xf]
        %v233 = vld [vmem:[%s222 + $0x24] sm:$0xf]
        %v234 = vld [vmem:[%s222 + $0x28] sm:$0xf]
        %v235 = vld [vmem:[%s222 + $0x2c] sm:$0xf]
        %v236 = vld [vmem:[%s222 + $0x30] sm:$0xf]
        %v237 = vld [vmem:[%s222 + $0x34] sm:$0xf]
        %v238 = vld [vmem:[%s222 + $0x38] sm:$0xf]
        %v239 = vld [vmem:[%s222 + $0x3c] sm:$0xf]
        %v240 = vld [vmem:[%s222 + $0x40] sm:$0xf]
        %v241 = vld [vmem:[%s222 + $0x44] sm:$0xf]
        %v242 = vld [vmem:[%s222 + $0x48] sm:$0xf]
        %v243 = vld [vmem:[%s222 + $0x4c] sm:$0xf]
        %v244 = vld [vmem:[%s222 + $0x50] sm:$0xf]
        %v245 = vld [vmem:[%s222 + $0x54] sm:$0xf]
        %v246 = vld [vmem:[%s222 + $0x58] sm:$0xf]
        %v247 = vld [vmem:[%s222 + $0x5c] sm:$0xf]
        %v248 = vld [vmem:[%s222 + $0x60] sm:$0xf]
        %v249 = vld [vmem:[%s222 + $0x64] sm:$0xf]
        %v250 = vld [vmem:[%s222 + $0x68] sm:$0xf]
        %v251 = vld [vmem:[%s222 + $0x6c] sm:$0xf]
        %v252 = vld [vmem:[%s222 + $0x70] sm:$0xf]
        %v253 = vld [vmem:[%s222 + $0x74] sm:$0xf]
        %v254 = vld [vmem:[%s222 + $0x78] sm:$0xf]
        %v255 = vld [vmem:[%s222 + $0x7c] sm:$0xf]
        %v256 = vld [vmem:[%s222 + $0x80] sm:$0xf]
        %v257 = vld [vmem:[%s222 + $0x84] sm:$0xf]
        %v258 = vld [vmem:[%s222 + $0x88] sm:$0xf]
        %v259 = vld [vmem:[%s222 + $0x8c] sm:$0xf]
        %v260 = vld [vmem:[%s222 + $0x90] sm:$0xf]
        %v261 = vld [vmem:[%s222 + $0x94] sm:$0xf]
        %v262 = vld [vmem:[%s222 + $0x98] sm:$0xf]
        %v263 = vld [vmem:[%s222 + $0x9c] sm:$0xf]
        %v264 = vld [vmem:[%s222 + $0xa0] sm:$0xf]
        %v265 = vld [vmem:[%s222 + $0xa4] sm:$0xf]
        %v266 = vld [vmem:[%s222 + $0xa8] sm:$0xf]
        %v267 = vld [vmem:[%s222 + $0xac] sm:$0xf]
        %v268 = vld [vmem:[%s222 + $0xb0] sm:$0xf]
        %v269 = vld [vmem:[%s222 + $0xb4] sm:$0xf]
        %v270 = vld [vmem:[%s222 + $0xb8] sm:$0xf]
        %v271 = vld [vmem:[%s222 + $0xbc] sm:$0xf]
        %v272 = vld [vmem:[%s222 + $0xc0] sm:$0xf]
        %v273 = vld [vmem:[%s222 + $0xc4] sm:$0xf]
        %v274 = vld [vmem:[%s222 + $0xc8] sm:$0xf]
        %v275 = vld [vmem:[%s222 + $0xcc] sm:$0xf]
        %v276 = vld [vmem:[%s222 + $0xd0] sm:$0xf]
        %v277 = vld [vmem:[%s222 + $0xd4] sm:$0xf]
        %v278 = vld [vmem:[%s222 + $0xd8] sm:$0xf]
        %v279 = vld [vmem:[%s222 + $0xdc] sm:$0xf]
        %v280 = vld [vmem:[%s222 + $0xe0] sm:$0xf]
        %v281 = vld [vmem:[%s222 + $0xe4] sm:$0xf]
        %v282 = vld [vmem:[%s222 + $0xe8] sm:$0xf]
        %v283 = vld [vmem:[%s222 + $0xec] sm:$0xf]
        %v284 = vld [vmem:[%s222 + $0xf0] sm:$0xf]
        %v285 = vld [vmem:[%s222 + $0xf4] sm:$0xf]
        %v286 = vld [vmem:[%s222 + $0xf8] sm:$0xf]
        %v287 = vld [vmem:[%s222 + $0xfc] sm:$0xf]
        %v288 = vld [vmem:[%s222 + $0x100] sm:$0xf]
        %v289 = vld [vmem:[%s222 + $0x104] sm:$0xf]
        %v290 = vld [vmem:[%s222 + $0x108] sm:$0xf]
        %v291 = vld [vmem:[%s222 + $0x10c] sm:$0xf]
        %v292 = vld [vmem:[%s222 + $0x110] sm:$0xf]
        %v293 = vld [vmem:[%s222 + $0x114] sm:$0xf]
        %v294 = vld [vmem:[%s222 + $0x118] sm:$0xf]
        %v295 = vld [vmem:[%s222 + $0x11c] sm:$0xf]
        %v296 = vld [vmem:[%s222 + $0x120] sm:$0xf]
        %v297 = vld [vmem:[%s222 + $0x124] sm:$0xf]
        %v298 = vld [vmem:[%s222 + $0x128] sm:$0xf]
        %v299 = vld [vmem:[%s222 + $0x12c] sm:$0xf]
        %v300 = vld [vmem:[%s222 + $0x130] sm:$0xf]
        %v301 = vld [vmem:[%s222 + $0x134] sm:$0xf]
        %v302 = vld [vmem:[%s222 + $0x138] sm:$0xf]
        %v303 = vld [vmem:[%s222 + $0x13c] sm:$0xf]
        %v304 = vld [vmem:[%s222 + $0x140] sm:$0xf]
        %v305 = vld [vmem:[%s222 + $0x144] sm:$0xf]
        %v306 = vld [vmem:[%s222 + $0x148] sm:$0xf]
        %v307 = vld [vmem:[%s222 + $0x14c] sm:$0xf]
        %v308 = vld [vmem:[%s222 + $0x150] sm:$0xf]
        %v309 = vld [vmem:[%s222 + $0x154] sm:$0xf]
        %v310 = vld [vmem:[%s222 + $0x158] sm:$0xf]
        %v311 = vld [vmem:[%s222 + $0x15c] sm:$0xf]
        %v312 = vld [vmem:[%s222 + $0x160] sm:$0xf]
        %v313 = vld [vmem:[%s222 + $0x164] sm:$0xf]
        %v314 = vld [vmem:[%s222 + $0x168] sm:$0xf]
        %v315 = vld [vmem:[%s222 + $0x16c] sm:$0xf]
        %v316 = vld [vmem:[%s222 + $0x170] sm:$0xf]
        %v317 = vld [vmem:[%s222 + $0x174] sm:$0xf]
        %v318 = vld [vmem:[%s222 + $0x178] sm:$0xf]
        %v319 = vld [vmem:[%s222 + $0x17c] sm:$0xf]
        %v320 = vld [vmem:[%s222 + $0x180] sm:$0xf]
        %v321 = vld [vmem:[%s222 + $0x184] sm:$0xf]
        %v322 = vld [vmem:[%s222 + $0x188] sm:$0xf]
        %v323 = vld [vmem:[%s222 + $0x18c] sm:$0xf]
        %v324 = vld [vmem:[%s222 + $0x190] sm:$0xf]
        %v325 = vld [vmem:[%s222 + $0x194] sm:$0xf]
        %v326 = vld [vmem:[%s222 + $0x198] sm:$0xf]
        %v327 = vld [vmem:[%s222 + $0x19c] sm:$0xf]
        %v328 = vld [vmem:[%s222 + $0x1a0] sm:$0xf]
        %v329 = vld [vmem:[%s222 + $0x1a4] sm:$0xf]
        %v330 = vld [vmem:[%s222 + $0x1a8] sm:$0xf]
        %v331 = vld [vmem:[%s222 + $0x1ac] sm:$0xf]
        %v332 = vld [vmem:[%s222 + $0x1b0] sm:$0xf]
        %v333 = vld [vmem:[%s222 + $0x1b4] sm:$0xf]
        %v334 = vld [vmem:[%s222 + $0x1b8] sm:$0xf]
        %v335 = vld [vmem:[%s222 + $0x1bc] sm:$0xf]
        %v336 = vld [vmem:[%s222 + $0x1c0] sm:$0xf]
        %v337 = vld [vmem:[%s222 + $0x1c4] sm:$0xf]
        %v338 = vld [vmem:[%s222 + $0x1c8] sm:$0xf]
        %v339 = vld [vmem:[%s222 + $0x1cc] sm:$0xf]
        %v340 = vld [vmem:[%s222 + $0x1d0] sm:$0xf]
        %v341 = vld [vmem:[%s222 + $0x1d4] sm:$0xf]
        %v342 = vld [vmem:[%s222 + $0x1d8] sm:$0xf]
        %v343 = vld [vmem:[%s222 + $0x1dc] sm:$0xf]
        %v344 = vld [vmem:[%s222 + $0x1e0] sm:$0xf]
        %v345 = vld [vmem:[%s222 + $0x1e4] sm:$0xf]
        %v346 = vld [vmem:[%s222 + $0x1e8] sm:$0xf]
        %v347 = vld [vmem:[%s222 + $0x1ec] sm:$0xf]
        %v348 = vld [vmem:[%s222 + $0x1f0] sm:$0xf]
        %v349 = vld [vmem:[%s222 + $0x1f4] sm:$0xf]
        %v350 = vld [vmem:[%s222 + $0x1f8] sm:$0xf]
        %v351 = vld [vmem:[%s222 + $0x1fc] sm:$0xf]
        %v352 = vld [vmem:[%s222 + $0x200] sm:$0xf]
        %v353 = vld [vmem:[%s222 + $0x204] sm:$0xf]
        %v354 = vld [vmem:[%s222 + $0x208] sm:$0xf]
        %v355 = vld [vmem:[%s222 + $0x20c] sm:$0xf]
        %v356 = vld [vmem:[%s222 + $0x210] sm:$0xf]
        %v357 = vld [vmem:[%s222 + $0x214] sm:$0xf]
        %v358 = vld [vmem:[%s222 + $0x218] sm:$0xf]
        %v359 = vld [vmem:[%s222 + $0x21c] sm:$0xf]
        %v360 = vld [vmem:[%s222 + $0x220] sm:$0xf]
        %v361 = vld [vmem:[%s222 + $0x224] sm:$0xf]
        %v362 = vld [vmem:[%s222 + $0x228] sm:$0xf]
        %v363 = vld [vmem:[%s222 + $0x22c] sm:$0xf]
        %v364 = vld [vmem:[%s222 + $0x230] sm:$0xf]
        %v365 = vld [vmem:[%s222 + $0x234] sm:$0xf]
        %v366 = vld [vmem:[%s222 + $0x238] sm:$0xf]
        %v367 = vld [vmem:[%s222 + $0x23c] sm:$0xf]
        %v368 = vld [vmem:[%s222 + $0x240] sm:$0xf]
        %v369 = vld [vmem:[%s222 + $0x244] sm:$0xf]
        %v370 = vld [vmem:[%s222 + $0x248] sm:$0xf]
        %v371 = vld [vmem:[%s222 + $0x24c] sm:$0xf]
        %v372 = vld [vmem:[%s222 + $0x250] sm:$0xf]
        %v373 = vld [vmem:[%s222 + $0x254] sm:$0xf]
        %v374 = vld [vmem:[%s222 + $0x258] sm:$0xf]
        %v375 = vld [vmem:[%s222 + $0x25c] sm:$0xf]
        %v376 = vld [vmem:[%s222 + $0x260] sm:$0xf]
        %v377 = vld [vmem:[%s222 + $0x264] sm:$0xf]
        %v378 = vld [vmem:[%s222 + $0x268] sm:$0xf]
        %v379 = vld [vmem:[%s222 + $0x26c] sm:$0xf]
        %v380 = vld [vmem:[%s222 + $0x270] sm:$0xf]
        %v381 = vld [vmem:[%s222 + $0x274] sm:$0xf]
        %v382 = vld [vmem:[%s222 + $0x278] sm:$0xf]
        %v383 = vld [vmem:[%s222 + $0x27c] sm:$0xf]
        %v384 = vld [vmem:[%s222 + $0x280] sm:$0xf]
        %v385 = vld [vmem:[%s222 + $0x284] sm:$0xf]
        %v386 = vld [vmem:[%s222 + $0x288] sm:$0xf]
        %v387 = vld [vmem:[%s222 + $0x28c] sm:$0xf]
        %v388 = vld [vmem:[%s222 + $0x290] sm:$0xf]
        %v389 = vld [vmem:[%s222 + $0x294] sm:$0xf]
        %v390 = vld [vmem:[%s222 + $0x298] sm:$0xf]
        %v391 = vld [vmem:[%s222 + $0x29c] sm:$0xf]
        %v392 = vld [vmem:[%s222 + $0x2a0] sm:$0xf]
        %v393 = vld [vmem:[%s222 + $0x2a4] sm:$0xf]
        %v394 = vld [vmem:[%s222 + $0x2a8] sm:$0xf]
        %v395 = vld [vmem:[%s222 + $0x2ac] sm:$0xf]
        %v396 = vld [vmem:[%s222 + $0x2b0] sm:$0xf]
        %v397 = vld [vmem:[%s222 + $0x2b4] sm:$0xf]
        %v398 = vld [vmem:[%s222 + $0x2b8] sm:$0xf]
        %v399 = vld [vmem:[%s222 + $0x2bc] sm:$0xf]
        %v400 = vld [vmem:[%s222 + $0x2c0] sm:$0xf]
        %v401 = vld [vmem:[%s222 + $0x2c4] sm:$0xf]
        %v402 = vld [vmem:[%s222 + $0x2c8] sm:$0xf]
        %v403 = vld [vmem:[%s222 + $0x2cc] sm:$0xf]
        %v404 = vld [vmem:[%s222 + $0x2d0] sm:$0xf]
        %v405 = vld [vmem:[%s222 + $0x2d4] sm:$0xf]
        %v406 = vld [vmem:[%s222 + $0x2d8] sm:$0xf]
        %v407 = vld [vmem:[%s222 + $0x2dc] sm:$0xf]
        %v408 = vld [vmem:[%s222 + $0x2e0] sm:$0xf]
        %v409 = vld [vmem:[%s222 + $0x2e4] sm:$0xf]
        %v410 = vld [vmem:[%s222 + $0x2e8] sm:$0xf]
        %v411 = vld [vmem:[%s222 + $0x2ec] sm:$0xf]
        %v412 = vld [vmem:[%s222 + $0x2f0] sm:$0xf]
        %v413 = vld [vmem:[%s222 + $0x2f4] sm:$0xf]
        %v414 = vld [vmem:[%s222 + $0x2f8] sm:$0xf]
        %v415 = vld [vmem:[%s222 + $0x2fc] sm:$0xf]
        %v416 = vld [vmem:[%s222 + $0x300] sm:$0xf]
        %v417 = vld [vmem:[%s222 + $0x304] sm:$0xf]
        %v418 = vld [vmem:[%s222 + $0x308] sm:$0xf]
        %v419 = vld [vmem:[%s222 + $0x30c] sm:$0xf]
        %v420 = vld [vmem:[%s222 + $0x310] sm:$0xf]
        %v421 = vld [vmem:[%s222 + $0x314] sm:$0xf]
        %v422 = vld [vmem:[%s222 + $0x318] sm:$0xf]
        %v423 = vld [vmem:[%s222 + $0x31c] sm:$0xf]
        %v424 = vld [vmem:[%s222 + $0x320] sm:$0xf]
        %v425 = vld [vmem:[%s222 + $0x324] sm:$0xf]
        %v426 = vld [vmem:[%s222 + $0x328] sm:$0xf]
        %v427 = vld [vmem:[%s222 + $0x32c] sm:$0xf]
        %v428 = vld [vmem:[%s222 + $0x330] sm:$0xf]
        %v429 = vld [vmem:[%s222 + $0x334] sm:$0xf]
        %v430 = vld [vmem:[%s222 + $0x338] sm:$0xf]
        %v431 = vld [vmem:[%s222 + $0x33c] sm:$0xf]
        %v432 = vld [vmem:[%s222 + $0x340] sm:$0xf]
        %v433 = vld [vmem:[%s222 + $0x344] sm:$0xf]
        %v434 = vld [vmem:[%s222 + $0x348] sm:$0xf]
        %v435 = vld [vmem:[%s222 + $0x34c] sm:$0xf]
        %v436 = vld [vmem:[%s222 + $0x350] sm:$0xf]
        %v437 = vld [vmem:[%s222 + $0x354] sm:$0xf]
        %v438 = vld [vmem:[%s222 + $0x358] sm:$0xf]
        %v439 = vld [vmem:[%s222 + $0x35c] sm:$0xf]
        %v440 = vld [vmem:[%s222 + $0x360] sm:$0xf]
        %v441 = vld [vmem:[%s222 + $0x364] sm:$0xf]
        %v442 = vld [vmem:[%s222 + $0x368] sm:$0xf]
        %v443 = vld [vmem:[%s222 + $0x36c] sm:$0xf]
        %v444 = vld [vmem:[%s222 + $0x370] sm:$0xf]
        %v445 = vld [vmem:[%s222 + $0x374] sm:$0xf]
        %v446 = vld [vmem:[%s222 + $0x378] sm:$0xf]
        %v447 = vld [vmem:[%s222 + $0x37c] sm:$0xf]
        %v448 = vld [vmem:[%s222 + $0x380] sm:$0xf]
        %v449 = vld [vmem:[%s222 + $0x384] sm:$0xf]
        %v450 = vld [vmem:[%s222 + $0x388] sm:$0xf]
        %v451 = vld [vmem:[%s222 + $0x38c] sm:$0xf]
        %v452 = vld [vmem:[%s222 + $0x390] sm:$0xf]
        %v453 = vld [vmem:[%s222 + $0x394] sm:$0xf]
        %v454 = vld [vmem:[%s222 + $0x398] sm:$0xf]
        %v455 = vld [vmem:[%s222 + $0x39c] sm:$0xf]
        %v456 = vld [vmem:[%s222 + $0x3a0] sm:$0xf]
        %v457 = vld [vmem:[%s222 + $0x3a4] sm:$0xf]
        %v458 = vld [vmem:[%s222 + $0x3a8] sm:$0xf]
        %v459 = vld [vmem:[%s222 + $0x3ac] sm:$0xf]
        %v460 = vld [vmem:[%s222 + $0x3b0] sm:$0xf]
        %v461 = vld [vmem:[%s222 + $0x3b4] sm:$0xf]
        %v462 = vld [vmem:[%s222 + $0x3b8] sm:$0xf]
        %v463 = vld [vmem:[%s222 + $0x3bc] sm:$0xf]
        %v464 = vld [vmem:[%s222 + $0x3c0] sm:$0xf]
        %v465 = vld [vmem:[%s222 + $0x3c4] sm:$0xf]
        %v466 = vld [vmem:[%s222 + $0x3c8] sm:$0xf]
        %v467 = vld [vmem:[%s222 + $0x3cc] sm:$0xf]
        %v468 = vld [vmem:[%s222 + $0x3d0] sm:$0xf]
        %v469 = vld [vmem:[%s222 + $0x3d4] sm:$0xf]
        %v470 = vld [vmem:[%s222 + $0x3d8] sm:$0xf]
        %v471 = vld [vmem:[%s222 + $0x3dc] sm:$0xf]
        %v472 = vld [vmem:[%s222 + $0x3e0] sm:$0xf]
        %v473 = vld [vmem:[%s222 + $0x3e4] sm:$0xf]
        %v474 = vld [vmem:[%s222 + $0x3e8] sm:$0xf]
        %v475 = vld [vmem:[%s222 + $0x3ec] sm:$0xf]
        %v476 = vld [vmem:[%s222 + $0x3f0] sm:$0xf]
        %v477 = vld [vmem:[%s222 + $0x3f4] sm:$0xf]
        %v478 = vld [vmem:[%s222 + $0x3f8] sm:$0xf]
        %v479 = vld [vmem:[%s222 + $0x3fc] sm:$0xf]
        %v480 = vld [vmem:[%s222 + $0x400] sm:$0xf]
        %v481 = vld [vmem:[%s222 + $0x404] sm:$0xf]
        %v482 = vld [vmem:[%s222 + $0x408] sm:$0xf]
        %v483 = vld [vmem:[%s222 + $0x40c] sm:$0xf]
        %v484 = vld [vmem:[%s222 + $0x410] sm:$0xf]
        %v485 = vld [vmem:[%s222 + $0x414] sm:$0xf]
        %v486 = vld [vmem:[%s222 + $0x418] sm:$0xf]
        %v487 = vld [vmem:[%s222 + $0x41c] sm:$0xf]
        %v488 = vld [vmem:[%s222 + $0x420] sm:$0xf]
        %v489 = vld [vmem:[%s222 + $0x424] sm:$0xf]
        %v490 = vld [vmem:[%s222 + $0x428] sm:$0xf]
        %v491 = vld [vmem:[%s222 + $0x42c] sm:$0xf]
        %v492 = vld [vmem:[%s222 + $0x430] sm:$0xf]
        %v493 = vld [vmem:[%s222 + $0x434] sm:$0xf]
        %v494 = vld [vmem:[%s222 + $0x438] sm:$0xf]
        %v495 = vld [vmem:[%s222 + $0x43c] sm:$0xf]
        %v496 = vld [vmem:[%s222 + $0x440] sm:$0xf]
        %v497 = vld [vmem:[%s222 + $0x444] sm:$0xf]
        %v498 = vld [vmem:[%s222 + $0x448] sm:$0xf]
        %v499 = vld [vmem:[%s222 + $0x44c] sm:$0xf]
        %v500 = vld [vmem:[%s222 + $0x450] sm:$0xf]
        %v501 = vld [vmem:[%s222 + $0x454] sm:$0xf]
        %v502 = vld [vmem:[%s222 + $0x458] sm:$0xf]
        %v503 = vld [vmem:[%s222 + $0x45c] sm:$0xf]
        %v504 = vld [vmem:[%s222 + $0x460] sm:$0xf]
        %v505 = vld [vmem:[%s222 + $0x464] sm:$0xf]
        %v506 = vld [vmem:[%s222 + $0x468] sm:$0xf]
        %v507 = vld [vmem:[%s222 + $0x46c] sm:$0xf]
        %v508 = vld [vmem:[%s222 + $0x470] sm:$0xf]
        %v509 = vld [vmem:[%s222 + $0x474] sm:$0xf]
        %v510 = vld [vmem:[%s222 + $0x478] sm:$0xf]
        %v511 = vld [vmem:[%s222 + $0x47c] sm:$0xf]
        %v512 = vld [vmem:[%s1] sm:$0xf]
        %v513 = vld [vmem:[%s1 + $0x4] sm:$0xf]
        %v514 = vld [vmem:[%s1 + $0x8] sm:$0xf]
        %v515 = vld [vmem:[%s1 + $0xc] sm:$0xf]
        %v516 = vld [vmem:[%s2] sm:$0x1]
        %v518 = vperm.slane %v516, 0
        %v592 = vunpack.c.l.b16 %v224
        %v593 = vunpack.c.l.b16 %v225
        %v594 = vunpack.c.l.b16 %v226
        %v595 = vunpack.c.l.b16 %v227
        %v596 = vunpack.c.l.b16 %v228
        %v597 = vunpack.c.l.b16 %v229
        %v598 = vunpack.c.l.b16 %v230
        %v599 = vunpack.c.l.b16 %v231
        %v600 = vunpack.c.l.b16 %v232
        %v601 = vunpack.c.l.b16 %v233
        %v602 = vunpack.c.l.b16 %v234
        %v603 = vunpack.c.l.b16 %v235
        %v604 = vunpack.c.l.b16 %v236
        %v605 = vunpack.c.l.b16 %v237
        %v606 = vunpack.c.l.b16 %v238
        %v607 = vunpack.c.l.b16 %v239
        %v608 = vunpack.c.l.b16 %v240
        %v609 = vunpack.c.l.b16 %v241
        %v610 = vunpack.c.l.b16 %v242
        %v611 = vunpack.c.l.b16 %v243
        %v612 = vunpack.c.l.b16 %v244
        %v613 = vunpack.c.l.b16 %v245
        %v614 = vunpack.c.l.b16 %v246
        %v615 = vunpack.c.l.b16 %v247
        %v616 = vunpack.c.l.b16 %v248
        %v617 = vunpack.c.l.b16 %v249
        %v618 = vunpack.c.l.b16 %v250
        %v619 = vunpack.c.l.b16 %v251
        %v620 = vunpack.c.l.b16 %v252
        %v621 = vunpack.c.l.b16 %v253
        %v622 = vunpack.c.l.b16 %v254
        %v623 = vunpack.c.l.b16 %v255
        %v624 = vunpack.c.l.b16 %v256
        %v625 = vunpack.c.l.b16 %v257
        %v626 = vunpack.c.l.b16 %v258
        %v627 = vunpack.c.l.b16 %v259
        %v628 = vunpack.c.l.b16 %v260
        %v629 = vunpack.c.l.b16 %v261
        %v630 = vunpack.c.l.b16 %v262
        %v631 = vunpack.c.l.b16 %v263
        %v632 = vunpack.c.l.b16 %v264
        %v633 = vunpack.c.l.b16 %v265
        %v634 = vunpack.c.l.b16 %v266
        %v635 = vunpack.c.l.b16 %v267
        %v636 = vunpack.c.l.b16 %v268
        %v637 = vunpack.c.l.b16 %v269
        %v638 = vunpack.c.l.b16 %v270
        %v639 = vunpack.c.l.b16 %v271
        %v640 = vunpack.c.l.b16 %v272
        %v641 = vunpack.c.l.b16 %v273
        %v642 = vunpack.c.l.b16 %v274
        %v643 = vunpack.c.l.b16 %v275
        %v644 = vunpack.c.l.b16 %v276
        %v645 = vunpack.c.l.b16 %v277
        %v646 = vunpack.c.l.b16 %v278
        %v647 = vunpack.c.l.b16 %v279
        %v648 = vunpack.c.l.b16 %v280
        %v649 = vunpack.c.l.b16 %v281
        %v650 = vunpack.c.l.b16 %v282
        %v651 = vunpack.c.l.b16 %v283
        %v652 = vunpack.c.l.b16 %v284
        %v653 = vunpack.c.l.b16 %v285
        %v654 = vunpack.c.l.b16 %v286
        %v655 = vunpack.c.l.b16 %v287
        %v656 = vunpack.c.l.b16 %v288
        %v657 = vunpack.c.l.b16 %v289
        %v658 = vunpack.c.l.b16 %v290
        %v659 = vunpack.c.l.b16 %v291
        %v660 = vunpack.c.l.b16 %v292
        %v661 = vunpack.c.l.b16 %v293
        %v662 = vunpack.c.l.b16 %v294
        %v663 = vunpack.c.l.b16 %v295
        %v664 = vpack.c.b16 %v593, %v592
        %v665 = vpack.c.b16 %v595, %v594
        %v666 = vpack.c.b16 %v597, %v596
        %v667 = vpack.c.b16 %v599, %v598
        %v668 = vpack.c.b16 %v601, %v600
        %v669 = vpack.c.b16 %v603, %v602
        %v670 = vpack.c.b16 %v605, %v604
        %v671 = vpack.c.b16 %v607, %v606
        %v672 = vpack.c.b16 %v609, %v608
        %v673 = vpack.c.b16 %v611, %v610
        %v674 = vpack.c.b16 %v613, %v612
        %v675 = vpack.c.b16 %v615, %v614
        %v676 = vpack.c.b16 %v617, %v616
        %v677 = vpack.c.b16 %v619, %v618
        %v678 = vpack.c.b16 %v621, %v620
        %v679 = vpack.c.b16 %v623, %v622
        %v680 = vpack.c.b16 %v625, %v624
        %v681 = vpack.c.b16 %v627, %v626
        %v682 = vpack.c.b16 %v629, %v628
        %v683 = vpack.c.b16 %v631, %v630
        %v684 = vpack.c.b16 %v633, %v632
        %v685 = vpack.c.b16 %v635, %v634
        %v686 = vpack.c.b16 %v637, %v636
        %v687 = vpack.c.b16 %v639, %v638
        %v688 = vpack.c.b16 %v641, %v640
        %v689 = vpack.c.b16 %v643, %v642
        %v690 = vpack.c.b16 %v645, %v644
        %v691 = vpack.c.b16 %v647, %v646
        %v692 = vpack.c.b16 %v649, %v648
        %v693 = vpack.c.b16 %v651, %v650
        %v694 = vpack.c.b16 %v653, %v652
        %v695 = vpack.c.b16 %v655, %v654
        %v696 = vpack.c.b16 %v657, %v656
        %v697 = vpack.c.b16 %v659, %v658
        %v698 = vpack.c.b16 %v661, %v660
        %v699 = vpack.c.b16 %v663, %v662
        %v704 = vunpack.c.l.b16 %v512
        %v705 = vunpack.c.l.b16 %v513
        %v706 = vunpack.c.l.b16 %v514
        %v707 = vunpack.c.l.b16 %v515
        %v708 = vpack.c.b16 %v705, %v704
        %v709 = vpack.c.b16 %v707, %v706
        %vm712 = vcmask 261120
        %v714 = vsel %vm712, %v664, 0
        %v717 = vsel %vm712, %v665, 0
        %v720 = vsel %vm712, %v666, 0
        %v723 = vsel %vm712, %v667, 0
        %v726 = vsel %vm712, %v668, 0
        %v729 = vsel %vm712, %v669, 0
        %v732 = vsel %vm712, %v670, 0
        %v735 = vsel %vm712, %v671, 0
        %v738 = vsel %vm712, %v672, 0
        %v741 = vsel %vm712, %v673, 0
        %v744 = vsel %vm712, %v674, 0
        %v747 = vsel %vm712, %v675, 0
        %v750 = vsel %vm712, %v676, 0
        %v753 = vsel %vm712, %v677, 0
        %v756 = vsel %vm712, %v678, 0
        %v759 = vsel %vm712, %v679, 0
        %v762 = vsel %vm712, %v680, 0
        %v765 = vsel %vm712, %v681, 0
        %v768 = vsel %vm712, %v682, 0
        %v771 = vsel %vm712, %v683, 0
        %v774 = vsel %vm712, %v684, 0
        %v777 = vsel %vm712, %v685, 0
        %v780 = vsel %vm712, %v686, 0
        %v783 = vsel %vm712, %v687, 0
        %v786 = vsel %vm712, %v688, 0
        %v789 = vsel %vm712, %v689, 0
        %v792 = vsel %vm712, %v690, 0
        %v795 = vsel %vm712, %v691, 0
        %v798 = vsel %vm712, %v692, 0
        %v801 = vsel %vm712, %v693, 0
        %v804 = vsel %vm712, %v694, 0
        %v807 = vsel %vm712, %v695, 0
        %v810 = vsel %vm712, %v696, 0
        %v813 = vsel %vm712, %v697, 0
        %v816 = vsel %vm712, %v698, 0
        %v819 = vsel %vm712, %v699, 0
        %821 = vmatpush.bf16.msra.mxu0 0
        %822 = vmatpush.bf16.msra.mxu0 0
        %823 = vmatpush.bf16.msra.mxu0 0
        %824 = vmatpush.bf16.msra.mxu0 0
        %825 = vmatpush.bf16.msra.mxu0 0
        %826 = vmatpush.bf16.msra.mxu0 0
        %827 = vmatpush.bf16.msra.mxu0 %v709
        %828 = vmatpush.bf16.msra.mxu0 %v708
        %829 = vmatmul.bf16.gmra.mxu0 %v714
        %v830 = vpop.f32.mrf.mxu0
        %v831 = vadd.f32 %v518, %v830
        %v832 = vpop.f32.mrf.mxu0
        %v833 = vadd.f32 %v518, %v832
        %834 = vmatmul.bf16.gmra.mxu0 %v717
        %v835 = vpop.f32.mrf.mxu0
        %v836 = vadd.f32 %v518, %v835
        %v837 = vpop.f32.mrf.mxu0
        %v838 = vadd.f32 %v518, %v837
        %839 = vmatmul.bf16.gmra.mxu0 %v720
        %v840 = vpop.f32.mrf.mxu0
        %v841 = vadd.f32 %v518, %v840
        %v842 = vpop.f32.mrf.mxu0
        %v843 = vadd.f32 %v518, %v842
        %844 = vmatmul.bf16.gmra.mxu0 %v723
        %v845 = vpop.f32.mrf.mxu0
        %v846 = vadd.f32 %v518, %v845
        %v847 = vpop.f32.mrf.mxu0
        %v848 = vadd.f32 %v518, %v847
        %849 = vmatmul.bf16.gmra.mxu0 %v726
        %v850 = vpop.f32.mrf.mxu0
        %v851 = vadd.f32 %v518, %v850
        %v852 = vpop.f32.mrf.mxu0
        %v853 = vadd.f32 %v518, %v852
        %854 = vmatmul.bf16.gmra.mxu0 %v729
        %v855 = vpop.f32.mrf.mxu0
        %v856 = vadd.f32 %v518, %v855
        %v857 = vpop.f32.mrf.mxu0
        %v858 = vadd.f32 %v518, %v857
        %859 = vmatmul.bf16.gmra.mxu0 %v732
        %v860 = vpop.f32.mrf.mxu0
        %v861 = vadd.f32 %v518, %v860
        %v862 = vpop.f32.mrf.mxu0
        %v863 = vadd.f32 %v518, %v862
        %864 = vmatmul.bf16.gmra.mxu0 %v735
        %v865 = vpop.f32.mrf.mxu0
        %v866 = vadd.f32 %v518, %v865
        %v867 = vpop.f32.mrf.mxu0
        %v868 = vadd.f32 %v518, %v867
        %869 = vmatmul.bf16.gmra.mxu0 %v738
        %v870 = vpop.f32.mrf.mxu0
        %v871 = vadd.f32 %v518, %v870
        %v872 = vpop.f32.mrf.mxu0
        %v873 = vadd.f32 %v518, %v872
        %874 = vmatmul.bf16.gmra.mxu0 %v741
        %v875 = vpop.f32.mrf.mxu0
        %v876 = vadd.f32 %v518, %v875
        %v877 = vpop.f32.mrf.mxu0
        %v878 = vadd.f32 %v518, %v877
        %879 = vmatmul.bf16.gmra.mxu0 %v744
        %v880 = vpop.f32.mrf.mxu0
        %v881 = vadd.f32 %v518, %v880
        %v882 = vpop.f32.mrf.mxu0
        %v883 = vadd.f32 %v518, %v882
        %884 = vmatmul.bf16.gmra.mxu0 %v747
        %v885 = vpop.f32.mrf.mxu0
        %v886 = vadd.f32 %v518, %v885
        %v887 = vpop.f32.mrf.mxu0
        %v888 = vadd.f32 %v518, %v887
        %889 = vmatmul.bf16.gmra.mxu0 %v750
        %v890 = vpop.f32.mrf.mxu0
        %v891 = vadd.f32 %v518, %v890
        %v892 = vpop.f32.mrf.mxu0
        %v893 = vadd.f32 %v518, %v892
        %894 = vmatmul.bf16.gmra.mxu0 %v753
        %v895 = vpop.f32.mrf.mxu0
        %v896 = vadd.f32 %v518, %v895
        %v897 = vpop.f32.mrf.mxu0
        %v898 = vadd.f32 %v518, %v897
        %899 = vmatmul.bf16.gmra.mxu0 %v756
        %v900 = vpop.f32.mrf.mxu0
        %v901 = vadd.f32 %v518, %v900
        %v902 = vpop.f32.mrf.mxu0
        %v903 = vadd.f32 %v518, %v902
        %904 = vmatmul.bf16.gmra.mxu0 %v759
        %v905 = vpop.f32.mrf.mxu0
        %v906 = vadd.f32 %v518, %v905
        %v907 = vpop.f32.mrf.mxu0
        %v908 = vadd.f32 %v518, %v907
        %909 = vmatmul.bf16.gmra.mxu0 %v762
        %v910 = vpop.f32.mrf.mxu0
        %v911 = vadd.f32 %v518, %v910
        %v912 = vpop.f32.mrf.mxu0
        %v913 = vadd.f32 %v518, %v912
        %914 = vmatmul.bf16.gmra.mxu0 %v765
        %v915 = vpop.f32.mrf.mxu0
        %v916 = vadd.f32 %v518, %v915
        %v917 = vpop.f32.mrf.mxu0
        %v918 = vadd.f32 %v518, %v917
        %919 = vmatmul.bf16.gmra.mxu0 %v768
        %v920 = vpop.f32.mrf.mxu0
        %v921 = vadd.f32 %v518, %v920
        %v922 = vpop.f32.mrf.mxu0
        %v923 = vadd.f32 %v518, %v922
        %924 = vmatmul.bf16.gmra.mxu0 %v771
        %v925 = vpop.f32.mrf.mxu0
        %v926 = vadd.f32 %v518, %v925
        %v927 = vpop.f32.mrf.mxu0
        %v928 = vadd.f32 %v518, %v927
        %929 = vmatmul.bf16.gmra.mxu0 %v774
        %v930 = vpop.f32.mrf.mxu0
        %v931 = vadd.f32 %v518, %v930
        %v932 = vpop.f32.mrf.mxu0
        %v933 = vadd.f32 %v518, %v932
        %934 = vmatmul.bf16.gmra.mxu0 %v777
        %v935 = vpop.f32.mrf.mxu0
        %v936 = vadd.f32 %v518, %v935
        %v937 = vpop.f32.mrf.mxu0
        %v938 = vadd.f32 %v518, %v937
        %939 = vmatmul.bf16.gmra.mxu0 %v780
        %v940 = vpop.f32.mrf.mxu0
        %v941 = vadd.f32 %v518, %v940
        %v942 = vpop.f32.mrf.mxu0
        %v943 = vadd.f32 %v518, %v942
        %944 = vmatmul.bf16.gmra.mxu0 %v783
        %v945 = vpop.f32.mrf.mxu0
        %v946 = vadd.f32 %v518, %v945
        %v947 = vpop.f32.mrf.mxu0
        %v948 = vadd.f32 %v518, %v947
        %949 = vmatmul.bf16.gmra.mxu0 %v786
        %v950 = vpop.f32.mrf.mxu0
        %v951 = vadd.f32 %v518, %v950
        %v952 = vpop.f32.mrf.mxu0
        %v953 = vadd.f32 %v518, %v952
        %954 = vmatmul.bf16.gmra.mxu0 %v789
        %v955 = vpop.f32.mrf.mxu0
        %v956 = vadd.f32 %v518, %v955
        %v957 = vpop.f32.mrf.mxu0
        %v958 = vadd.f32 %v518, %v957
        %959 = vmatmul.bf16.gmra.mxu0 %v792
        %v960 = vpop.f32.mrf.mxu0
        %v961 = vadd.f32 %v518, %v960
        %v962 = vpop.f32.mrf.mxu0
        %v963 = vadd.f32 %v518, %v962
        %964 = vmatmul.bf16.gmra.mxu0 %v795
        %v965 = vpop.f32.mrf.mxu0
        %v966 = vadd.f32 %v518, %v965
        %v967 = vpop.f32.mrf.mxu0
        %v968 = vadd.f32 %v518, %v967
        %969 = vmatmul.bf16.gmra.mxu0 %v798
        %v970 = vpop.f32.mrf.mxu0
        %v971 = vadd.f32 %v518, %v970
        %v972 = vpop.f32.mrf.mxu0
        %v973 = vadd.f32 %v518, %v972
        %974 = vmatmul.bf16.gmra.mxu0 %v801
        %v975 = vpop.f32.mrf.mxu0
        %v976 = vadd.f32 %v518, %v975
        %v977 = vpop.f32.mrf.mxu0
        %v978 = vadd.f32 %v518, %v977
        %979 = vmatmul.bf16.gmra.mxu0 %v804
        %v980 = vpop.f32.mrf.mxu0
        %v981 = vadd.f32 %v518, %v980
        %v982 = vpop.f32.mrf.mxu0
        %v983 = vadd.f32 %v518, %v982
        %984 = vmatmul.bf16.gmra.mxu0 %v807
        %v985 = vpop.f32.mrf.mxu0
        %v986 = vadd.f32 %v518, %v985
        %v987 = vpop.f32.mrf.mxu0
        %v988 = vadd.f32 %v518, %v987
        %989 = vmatmul.bf16.gmra.mxu0 %v810
        %v990 = vpop.f32.mrf.mxu0
        %v991 = vadd.f32 %v518, %v990
        %v992 = vpop.f32.mrf.mxu0
        %v993 = vadd.f32 %v518, %v992
        %994 = vmatmul.bf16.gmra.mxu0 %v813
        %v995 = vpop.f32.mrf.mxu0
        %v996 = vadd.f32 %v518, %v995
        %v997 = vpop.f32.mrf.mxu0
        %v998 = vadd.f32 %v518, %v997
        %999 = vmatmul.bf16.gmra.mxu0 %v816
        %v1000 = vpop.f32.mrf.mxu0
        %v1001 = vadd.f32 %v518, %v1000
        %v1002 = vpop.f32.mrf.mxu0
        %v1003 = vadd.f32 %v518, %v1002
        %1004 = vmatmul.bf16.gmra.mxu0 %v819
        %v1005 = vpop.f32.mrf.mxu0
        %v1006 = vadd.f32 %v518, %v1005
        %v1007 = vpop.f32.mrf.mxu0
        %v1008 = vadd.f32 %v518, %v1007
        %1009 = vdwg.mxu0
        %v1010 = vmax.f32 %v831, 0.0
        %v1011 = vmax.f32 %v833, 0.0
        %v1012 = vmax.f32 %v836, 0.0
        %v1013 = vmax.f32 %v838, 0.0
        %v1014 = vmax.f32 %v841, 0.0
        %v1015 = vmax.f32 %v843, 0.0
        %v1016 = vmax.f32 %v846, 0.0
        %v1017 = vmax.f32 %v848, 0.0
        %v1018 = vmax.f32 %v851, 0.0
        %v1019 = vmax.f32 %v853, 0.0
        %v1020 = vmax.f32 %v856, 0.0
        %v1021 = vmax.f32 %v858, 0.0
        %v1022 = vmax.f32 %v861, 0.0
        %v1023 = vmax.f32 %v863, 0.0
        %v1024 = vmax.f32 %v866, 0.0
        %v1025 = vmax.f32 %v868, 0.0
        %v1026 = vmax.f32 %v871, 0.0
        %v1027 = vmax.f32 %v873, 0.0
        %v1028 = vmax.f32 %v876, 0.0
        %v1029 = vmax.f32 %v878, 0.0
        %v1030 = vmax.f32 %v881, 0.0
        %v1031 = vmax.f32 %v883, 0.0
        %v1032 = vmax.f32 %v886, 0.0
        %v1033 = vmax.f32 %v888, 0.0
        %v1034 = vmax.f32 %v891, 0.0
        %v1035 = vmax.f32 %v893, 0.0
        %v1036 = vmax.f32 %v896, 0.0
        %v1037 = vmax.f32 %v898, 0.0
        %v1038 = vmax.f32 %v901, 0.0
        %v1039 = vmax.f32 %v903, 0.0
        %v1040 = vmax.f32 %v906, 0.0
        %v1041 = vmax.f32 %v908, 0.0
        %v1042 = vmax.f32 %v911, 0.0
        %v1043 = vmax.f32 %v913, 0.0
        %v1044 = vmax.f32 %v916, 0.0
        %v1045 = vmax.f32 %v918, 0.0
        %v1046 = vmax.f32 %v921, 0.0
        %v1047 = vmax.f32 %v923, 0.0
        %v1048 = vmax.f32 %v926, 0.0
        %v1049 = vmax.f32 %v928, 0.0
        %v1050 = vmax.f32 %v931, 0.0
        %v1051 = vmax.f32 %v933, 0.0
        %v1052 = vmax.f32 %v936, 0.0
        %v1053 = vmax.f32 %v938, 0.0
        %v1054 = vmax.f32 %v941, 0.0
        %v1055 = vmax.f32 %v943, 0.0
        %v1056 = vmax.f32 %v946, 0.0
        %v1057 = vmax.f32 %v948, 0.0
        %v1058 = vmax.f32 %v951, 0.0
        %v1059 = vmax.f32 %v953, 0.0
        %v1060 = vmax.f32 %v956, 0.0
        %v1061 = vmax.f32 %v958, 0.0
        %v1062 = vmax.f32 %v961, 0.0
        %v1063 = vmax.f32 %v963, 0.0
        %v1064 = vmax.f32 %v966, 0.0
        %v1065 = vmax.f32 %v968, 0.0
        %v1066 = vmax.f32 %v971, 0.0
        %v1067 = vmax.f32 %v973, 0.0
        %v1068 = vmax.f32 %v976, 0.0
        %v1069 = vmax.f32 %v978, 0.0
        %v1070 = vmax.f32 %v981, 0.0
        %v1071 = vmax.f32 %v983, 0.0
        %v1072 = vmax.f32 %v986, 0.0
        %v1073 = vmax.f32 %v988, 0.0
        %v1074 = vmax.f32 %v991, 0.0
        %v1075 = vmax.f32 %v993, 0.0
        %v1076 = vmax.f32 %v996, 0.0
        %v1077 = vmax.f32 %v998, 0.0
        %v1078 = vmax.f32 %v1001, 0.0
        %v1079 = vmax.f32 %v1003, 0.0
        %v1080 = vmax.f32 %v1006, 0.0
        %v1081 = vmax.f32 %v1008, 0.0
        %v1082 = vpack.c.bf16 %v1010, %v1010
        %v1083 = vpack.c.bf16 %v1011, %v1011
        %v1084 = vpack.c.bf16 %v1012, %v1012
        %v1085 = vpack.c.bf16 %v1013, %v1013
        %v1086 = vpack.c.bf16 %v1014, %v1014
        %v1087 = vpack.c.bf16 %v1015, %v1015
        %v1088 = vpack.c.bf16 %v1016, %v1016
        %v1089 = vpack.c.bf16 %v1017, %v1017
        %v1090 = vpack.c.bf16 %v1018, %v1018
        %v1091 = vpack.c.bf16 %v1019, %v1019
        %v1092 = vpack.c.bf16 %v1020, %v1020
        %v1093 = vpack.c.bf16 %v1021, %v1021
        %v1094 = vpack.c.bf16 %v1022, %v1022
        %v1095 = vpack.c.bf16 %v1023, %v1023
        %v1096 = vpack.c.bf16 %v1024, %v1024
        %v1097 = vpack.c.bf16 %v1025, %v1025
        %v1098 = vpack.c.bf16 %v1026, %v1026
        %v1099 = vpack.c.bf16 %v1027, %v1027
        %v1100 = vpack.c.bf16 %v1028, %v1028
        %v1101 = vpack.c.bf16 %v1029, %v1029
        %v1102 = vpack.c.bf16 %v1030, %v1030
        %v1103 = vpack.c.bf16 %v1031, %v1031
        %v1104 = vpack.c.bf16 %v1032, %v1032
        %v1105 = vpack.c.bf16 %v1033, %v1033
        %v1106 = vpack.c.bf16 %v1034, %v1034
        %v1107 = vpack.c.bf16 %v1035, %v1035
        %v1108 = vpack.c.bf16 %v1036, %v1036
        %v1109 = vpack.c.bf16 %v1037, %v1037
        %v1110 = vpack.c.bf16 %v1038, %v1038
        %v1111 = vpack.c.bf16 %v1039, %v1039
        %v1112 = vpack.c.bf16 %v1040, %v1040
        %v1113 = vpack.c.bf16 %v1041, %v1041
        %v1114 = vpack.c.bf16 %v1042, %v1042
        %v1115 = vpack.c.bf16 %v1043, %v1043
        %v1116 = vpack.c.bf16 %v1044, %v1044
        %v1117 = vpack.c.bf16 %v1045, %v1045
        %v1118 = vpack.c.bf16 %v1046, %v1046
        %v1119 = vpack.c.bf16 %v1047, %v1047
        %v1120 = vpack.c.bf16 %v1048, %v1048
        %v1121 = vpack.c.bf16 %v1049, %v1049
        %v1122 = vpack.c.bf16 %v1050, %v1050
        %v1123 = vpack.c.bf16 %v1051, %v1051
        %v1124 = vpack.c.bf16 %v1052, %v1052
        %v1125 = vpack.c.bf16 %v1053, %v1053
        %v1126 = vpack.c.bf16 %v1054, %v1054
        %v1127 = vpack.c.bf16 %v1055, %v1055
        %v1128 = vpack.c.bf16 %v1056, %v1056
        %v1129 = vpack.c.bf16 %v1057, %v1057
        %v1130 = vpack.c.bf16 %v1058, %v1058
        %v1131 = vpack.c.bf16 %v1059, %v1059
        %v1132 = vpack.c.bf16 %v1060, %v1060
        %v1133 = vpack.c.bf16 %v1061, %v1061
        %v1134 = vpack.c.bf16 %v1062, %v1062
        %v1135 = vpack.c.bf16 %v1063, %v1063
        %v1136 = vpack.c.bf16 %v1064, %v1064
        %v1137 = vpack.c.bf16 %v1065, %v1065
        %v1138 = vpack.c.bf16 %v1066, %v1066
        %v1139 = vpack.c.bf16 %v1067, %v1067
        %v1140 = vpack.c.bf16 %v1068, %v1068
        %v1141 = vpack.c.bf16 %v1069, %v1069
        %v1142 = vpack.c.bf16 %v1070, %v1070
        %v1143 = vpack.c.bf16 %v1071, %v1071
        %v1144 = vpack.c.bf16 %v1072, %v1072
        %v1145 = vpack.c.bf16 %v1073, %v1073
        %v1146 = vpack.c.bf16 %v1074, %v1074
        %v1147 = vpack.c.bf16 %v1075, %v1075
        %v1148 = vpack.c.bf16 %v1076, %v1076
        %v1149 = vpack.c.bf16 %v1077, %v1077
        %v1150 = vpack.c.bf16 %v1078, %v1078
        %v1151 = vpack.c.bf16 %v1079, %v1079
        %v1152 = vpack.c.bf16 %v1080, %v1080
        %v1153 = vpack.c.bf16 %v1081, %v1081
        %v1226 = vunpack.c.l.b16 %v296
        %v1227 = vunpack.c.l.b16 %v297
        %v1228 = vunpack.c.l.b16 %v298
        %v1229 = vunpack.c.l.b16 %v299
        %v1230 = vunpack.c.l.b16 %v300
        %v1231 = vunpack.c.l.b16 %v301
        %v1232 = vunpack.c.l.b16 %v302
        %v1233 = vunpack.c.l.b16 %v303
        %v1234 = vunpack.c.l.b16 %v304
        %v1235 = vunpack.c.l.b16 %v305
        %v1236 = vunpack.c.l.b16 %v306
        %v1237 = vunpack.c.l.b16 %v307
        %v1238 = vunpack.c.l.b16 %v308
        %v1239 = vunpack.c.l.b16 %v309
        %v1240 = vunpack.c.l.b16 %v310
        %v1241 = vunpack.c.l.b16 %v311
        %v1242 = vunpack.c.l.b16 %v312
        %v1243 = vunpack.c.l.b16 %v313
        %v1244 = vunpack.c.l.b16 %v314
        %v1245 = vunpack.c.l.b16 %v315
        %v1246 = vunpack.c.l.b16 %v316
        %v1247 = vunpack.c.l.b16 %v317
        %v1248 = vunpack.c.l.b16 %v318
        %v1249 = vunpack.c.l.b16 %v319
        %v1250 = vunpack.c.l.b16 %v320
        %v1251 = vunpack.c.l.b16 %v321
        %v1252 = vunpack.c.l.b16 %v322
        %v1253 = vunpack.c.l.b16 %v323
        %v1254 = vunpack.c.l.b16 %v324
        %v1255 = vunpack.c.l.b16 %v325
        %v1256 = vunpack.c.l.b16 %v326
        %v1257 = vunpack.c.l.b16 %v327
        %v1258 = vunpack.c.l.b16 %v328
        %v1259 = vunpack.c.l.b16 %v329
        %v1260 = vunpack.c.l.b16 %v330
        %v1261 = vunpack.c.l.b16 %v331
        %v1262 = vunpack.c.l.b16 %v332
        %v1263 = vunpack.c.l.b16 %v333
        %v1264 = vunpack.c.l.b16 %v334
        %v1265 = vunpack.c.l.b16 %v335
        %v1266 = vunpack.c.l.b16 %v336
        %v1267 = vunpack.c.l.b16 %v337
        %v1268 = vunpack.c.l.b16 %v338
        %v1269 = vunpack.c.l.b16 %v339
        %v1270 = vunpack.c.l.b16 %v340
        %v1271 = vunpack.c.l.b16 %v341
        %v1272 = vunpack.c.l.b16 %v342
        %v1273 = vunpack.c.l.b16 %v343
        %v1274 = vunpack.c.l.b16 %v344
        %v1275 = vunpack.c.l.b16 %v345
        %v1276 = vunpack.c.l.b16 %v346
        %v1277 = vunpack.c.l.b16 %v347
        %v1278 = vunpack.c.l.b16 %v348
        %v1279 = vunpack.c.l.b16 %v349
        %v1280 = vunpack.c.l.b16 %v350
        %v1281 = vunpack.c.l.b16 %v351
        %v1282 = vunpack.c.l.b16 %v352
        %v1283 = vunpack.c.l.b16 %v353
        %v1284 = vunpack.c.l.b16 %v354
        %v1285 = vunpack.c.l.b16 %v355
        %v1286 = vunpack.c.l.b16 %v356
        %v1287 = vunpack.c.l.b16 %v357
        %v1288 = vunpack.c.l.b16 %v358
        %v1289 = vunpack.c.l.b16 %v359
        %v1290 = vunpack.c.l.b16 %v360
        %v1291 = vunpack.c.l.b16 %v361
        %v1292 = vunpack.c.l.b16 %v362
        %v1293 = vunpack.c.l.b16 %v363
        %v1294 = vunpack.c.l.b16 %v364
        %v1295 = vunpack.c.l.b16 %v365
        %v1296 = vunpack.c.l.b16 %v366
        %v1297 = vunpack.c.l.b16 %v367
        %v1298 = vpack.c.b16 %v1227, %v1226
        %v1299 = vpack.c.b16 %v1229, %v1228
        %v1300 = vpack.c.b16 %v1231, %v1230
        %v1301 = vpack.c.b16 %v1233, %v1232
        %v1302 = vpack.c.b16 %v1235, %v1234
        %v1303 = vpack.c.b16 %v1237, %v1236
        %v1304 = vpack.c.b16 %v1239, %v1238
        %v1305 = vpack.c.b16 %v1241, %v1240
        %v1306 = vpack.c.b16 %v1243, %v1242
        %v1307 = vpack.c.b16 %v1245, %v1244
        %v1308 = vpack.c.b16 %v1247, %v1246
        %v1309 = vpack.c.b16 %v1249, %v1248
        %v1310 = vpack.c.b16 %v1251, %v1250
        %v1311 = vpack.c.b16 %v1253, %v1252
        %v1312 = vpack.c.b16 %v1255, %v1254
        %v1313 = vpack.c.b16 %v1257, %v1256
        %v1314 = vpack.c.b16 %v1259, %v1258
        %v1315 = vpack.c.b16 %v1261, %v1260
        %v1316 = vpack.c.b16 %v1263, %v1262
        %v1317 = vpack.c.b16 %v1265, %v1264
        %v1318 = vpack.c.b16 %v1267, %v1266
        %v1319 = vpack.c.b16 %v1269, %v1268
        %v1320 = vpack.c.b16 %v1271, %v1270
        %v1321 = vpack.c.b16 %v1273, %v1272
        %v1322 = vpack.c.b16 %v1275, %v1274
        %v1323 = vpack.c.b16 %v1277, %v1276
        %v1324 = vpack.c.b16 %v1279, %v1278
        %v1325 = vpack.c.b16 %v1281, %v1280
        %v1326 = vpack.c.b16 %v1283, %v1282
        %v1327 = vpack.c.b16 %v1285, %v1284
        %v1328 = vpack.c.b16 %v1287, %v1286
        %v1329 = vpack.c.b16 %v1289, %v1288
        %v1330 = vpack.c.b16 %v1291, %v1290
        %v1331 = vpack.c.b16 %v1293, %v1292
        %v1332 = vpack.c.b16 %v1295, %v1294
        %v1333 = vpack.c.b16 %v1297, %v1296
        %v1335 = vsel %vm712, %v1298, 0
        %v1338 = vsel %vm712, %v1299, 0
        %v1341 = vsel %vm712, %v1300, 0
        %v1344 = vsel %vm712, %v1301, 0
        %v1347 = vsel %vm712, %v1302, 0
        %v1350 = vsel %vm712, %v1303, 0
        %v1353 = vsel %vm712, %v1304, 0
        %v1356 = vsel %vm712, %v1305, 0
        %v1359 = vsel %vm712, %v1306, 0
        %v1362 = vsel %vm712, %v1307, 0
        %v1365 = vsel %vm712, %v1308, 0
        %v1368 = vsel %vm712, %v1309, 0
        %v1371 = vsel %vm712, %v1310, 0
        %v1374 = vsel %vm712, %v1311, 0
        %v1377 = vsel %vm712, %v1312, 0
        %v1380 = vsel %vm712, %v1313, 0
        %v1383 = vsel %vm712, %v1314, 0
        %v1386 = vsel %vm712, %v1315, 0
        %v1389 = vsel %vm712, %v1316, 0
        %v1392 = vsel %vm712, %v1317, 0
        %v1395 = vsel %vm712, %v1318, 0
        %v1398 = vsel %vm712, %v1319, 0
        %v1401 = vsel %vm712, %v1320, 0
        %v1404 = vsel %vm712, %v1321, 0
        %v1407 = vsel %vm712, %v1322, 0
        %v1410 = vsel %vm712, %v1323, 0
        %v1413 = vsel %vm712, %v1324, 0
        %v1416 = vsel %vm712, %v1325, 0
        %v1419 = vsel %vm712, %v1326, 0
        %v1422 = vsel %vm712, %v1327, 0
        %v1425 = vsel %vm712, %v1328, 0
        %v1428 = vsel %vm712, %v1329, 0
        %v1431 = vsel %vm712, %v1330, 0
        %v1434 = vsel %vm712, %v1331, 0
        %v1437 = vsel %vm712, %v1332, 0
        %v1440 = vsel %vm712, %v1333, 0
        %1442 = vmatpush.bf16.msra.mxu0 0
        %1443 = vmatpush.bf16.msra.mxu0 0
        %1444 = vmatpush.bf16.msra.mxu0 0
        %1445 = vmatpush.bf16.msra.mxu0 0
        %1446 = vmatpush.bf16.msra.mxu0 0
        %1447 = vmatpush.bf16.msra.mxu0 0
        %1448 = vmatpush.bf16.msra.mxu0 %v709
        %1449 = vmatpush.bf16.msra.mxu0 %v708
        %1450 = vmatmul.bf16.gmra.mxu0 %v1335
        %v1451 = vpop.f32.mrf.mxu0
        %v1452 = vadd.f32 %v518, %v1451
        %v1453 = vpop.f32.mrf.mxu0
        %v1454 = vadd.f32 %v518, %v1453
        %1455 = vmatmul.bf16.gmra.mxu0 %v1338
        %v1456 = vpop.f32.mrf.mxu0
        %v1457 = vadd.f32 %v518, %v1456
        %v1458 = vpop.f32.mrf.mxu0
        %v1459 = vadd.f32 %v518, %v1458
        %1460 = vmatmul.bf16.gmra.mxu0 %v1341
        %v1461 = vpop.f32.mrf.mxu0
        %v1462 = vadd.f32 %v518, %v1461
        %v1463 = vpop.f32.mrf.mxu0
        %v1464 = vadd.f32 %v518, %v1463
        %1465 = vmatmul.bf16.gmra.mxu0 %v1344
        %v1466 = vpop.f32.mrf.mxu0
        %v1467 = vadd.f32 %v518, %v1466
        %v1468 = vpop.f32.mrf.mxu0
        %v1469 = vadd.f32 %v518, %v1468
        %1470 = vmatmul.bf16.gmra.mxu0 %v1347
        %v1471 = vpop.f32.mrf.mxu0
        %v1472 = vadd.f32 %v518, %v1471
        %v1473 = vpop.f32.mrf.mxu0
        %v1474 = vadd.f32 %v518, %v1473
        %1475 = vmatmul.bf16.gmra.mxu0 %v1350
        %v1476 = vpop.f32.mrf.mxu0
        %v1477 = vadd.f32 %v518, %v1476
        %v1478 = vpop.f32.mrf.mxu0
        %v1479 = vadd.f32 %v518, %v1478
        %1480 = vmatmul.bf16.gmra.mxu0 %v1353
        %v1481 = vpop.f32.mrf.mxu0
        %v1482 = vadd.f32 %v518, %v1481
        %v1483 = vpop.f32.mrf.mxu0
        %v1484 = vadd.f32 %v518, %v1483
        %1485 = vmatmul.bf16.gmra.mxu0 %v1356
        %v1486 = vpop.f32.mrf.mxu0
        %v1487 = vadd.f32 %v518, %v1486
        %v1488 = vpop.f32.mrf.mxu0
        %v1489 = vadd.f32 %v518, %v1488
        %1490 = vmatmul.bf16.gmra.mxu0 %v1359
        %v1491 = vpop.f32.mrf.mxu0
        %v1492 = vadd.f32 %v518, %v1491
        %v1493 = vpop.f32.mrf.mxu0
        %v1494 = vadd.f32 %v518, %v1493
        %1495 = vmatmul.bf16.gmra.mxu0 %v1362
        %v1496 = vpop.f32.mrf.mxu0
        %v1497 = vadd.f32 %v518, %v1496
        %v1498 = vpop.f32.mrf.mxu0
        %v1499 = vadd.f32 %v518, %v1498
        %1500 = vmatmul.bf16.gmra.mxu0 %v1365
        %v1501 = vpop.f32.mrf.mxu0
        %v1502 = vadd.f32 %v518, %v1501
        %v1503 = vpop.f32.mrf.mxu0
        %v1504 = vadd.f32 %v518, %v1503
        %1505 = vmatmul.bf16.gmra.mxu0 %v1368
        %v1506 = vpop.f32.mrf.mxu0
        %v1507 = vadd.f32 %v518, %v1506
        %v1508 = vpop.f32.mrf.mxu0
        %v1509 = vadd.f32 %v518, %v1508
        %1510 = vmatmul.bf16.gmra.mxu0 %v1371
        %v1511 = vpop.f32.mrf.mxu0
        %v1512 = vadd.f32 %v518, %v1511
        %v1513 = vpop.f32.mrf.mxu0
        %v1514 = vadd.f32 %v518, %v1513
        %1515 = vmatmul.bf16.gmra.mxu0 %v1374
        %v1516 = vpop.f32.mrf.mxu0
        %v1517 = vadd.f32 %v518, %v1516
        %v1518 = vpop.f32.mrf.mxu0
        %v1519 = vadd.f32 %v518, %v1518
        %1520 = vmatmul.bf16.gmra.mxu0 %v1377
        %v1521 = vpop.f32.mrf.mxu0
        %v1522 = vadd.f32 %v518, %v1521
        %v1523 = vpop.f32.mrf.mxu0
        %v1524 = vadd.f32 %v518, %v1523
        %1525 = vmatmul.bf16.gmra.mxu0 %v1380
        %v1526 = vpop.f32.mrf.mxu0
        %v1527 = vadd.f32 %v518, %v1526
        %v1528 = vpop.f32.mrf.mxu0
        %v1529 = vadd.f32 %v518, %v1528
        %1530 = vmatmul.bf16.gmra.mxu0 %v1383
        %v1531 = vpop.f32.mrf.mxu0
        %v1532 = vadd.f32 %v518, %v1531
        %v1533 = vpop.f32.mrf.mxu0
        %v1534 = vadd.f32 %v518, %v1533
        %1535 = vmatmul.bf16.gmra.mxu0 %v1386
        %v1536 = vpop.f32.mrf.mxu0
        %v1537 = vadd.f32 %v518, %v1536
        %v1538 = vpop.f32.mrf.mxu0
        %v1539 = vadd.f32 %v518, %v1538
        %1540 = vmatmul.bf16.gmra.mxu0 %v1389
        %v1541 = vpop.f32.mrf.mxu0
        %v1542 = vadd.f32 %v518, %v1541
        %v1543 = vpop.f32.mrf.mxu0
        %v1544 = vadd.f32 %v518, %v1543
        %1545 = vmatmul.bf16.gmra.mxu0 %v1392
        %v1546 = vpop.f32.mrf.mxu0
        %v1547 = vadd.f32 %v518, %v1546
        %v1548 = vpop.f32.mrf.mxu0
        %v1549 = vadd.f32 %v518, %v1548
        %1550 = vmatmul.bf16.gmra.mxu0 %v1395
        %v1551 = vpop.f32.mrf.mxu0
        %v1552 = vadd.f32 %v518, %v1551
        %v1553 = vpop.f32.mrf.mxu0
        %v1554 = vadd.f32 %v518, %v1553
        %1555 = vmatmul.bf16.gmra.mxu0 %v1398
        %v1556 = vpop.f32.mrf.mxu0
        %v1557 = vadd.f32 %v518, %v1556
        %v1558 = vpop.f32.mrf.mxu0
        %v1559 = vadd.f32 %v518, %v1558
        %1560 = vmatmul.bf16.gmra.mxu0 %v1401
        %v1561 = vpop.f32.mrf.mxu0
        %v1562 = vadd.f32 %v518, %v1561
        %v1563 = vpop.f32.mrf.mxu0
        %v1564 = vadd.f32 %v518, %v1563
        %1565 = vmatmul.bf16.gmra.mxu0 %v1404
        %v1566 = vpop.f32.mrf.mxu0
        %v1567 = vadd.f32 %v518, %v1566
        %v1568 = vpop.f32.mrf.mxu0
        %v1569 = vadd.f32 %v518, %v1568
        %1570 = vmatmul.bf16.gmra.mxu0 %v1407
        %v1571 = vpop.f32.mrf.mxu0
        %v1572 = vadd.f32 %v518, %v1571
        %v1573 = vpop.f32.mrf.mxu0
        %v1574 = vadd.f32 %v518, %v1573
        %1575 = vmatmul.bf16.gmra.mxu0 %v1410
        %v1576 = vpop.f32.mrf.mxu0
        %v1577 = vadd.f32 %v518, %v1576
        %v1578 = vpop.f32.mrf.mxu0
        %v1579 = vadd.f32 %v518, %v1578
        %1580 = vmatmul.bf16.gmra.mxu0 %v1413
        %v1581 = vpop.f32.mrf.mxu0
        %v1582 = vadd.f32 %v518, %v1581
        %v1583 = vpop.f32.mrf.mxu0
        %v1584 = vadd.f32 %v518, %v1583
        %1585 = vmatmul.bf16.gmra.mxu0 %v1416
        %v1586 = vpop.f32.mrf.mxu0
        %v1587 = vadd.f32 %v518, %v1586
        %v1588 = vpop.f32.mrf.mxu0
        %v1589 = vadd.f32 %v518, %v1588
        %1590 = vmatmul.bf16.gmra.mxu0 %v1419
        %v1591 = vpop.f32.mrf.mxu0
        %v1592 = vadd.f32 %v518, %v1591
        %v1593 = vpop.f32.mrf.mxu0
        %v1594 = vadd.f32 %v518, %v1593
        %1595 = vmatmul.bf16.gmra.mxu0 %v1422
        %v1596 = vpop.f32.mrf.mxu0
        %v1597 = vadd.f32 %v518, %v1596
        %v1598 = vpop.f32.mrf.mxu0
        %v1599 = vadd.f32 %v518, %v1598
        %1600 = vmatmul.bf16.gmra.mxu0 %v1425
        %v1601 = vpop.f32.mrf.mxu0
        %v1602 = vadd.f32 %v518, %v1601
        %v1603 = vpop.f32.mrf.mxu0
        %v1604 = vadd.f32 %v518, %v1603
        %1605 = vmatmul.bf16.gmra.mxu0 %v1428
        %v1606 = vpop.f32.mrf.mxu0
        %v1607 = vadd.f32 %v518, %v1606
        %v1608 = vpop.f32.mrf.mxu0
        %v1609 = vadd.f32 %v518, %v1608
        %1610 = vmatmul.bf16.gmra.mxu0 %v1431
        %v1611 = vpop.f32.mrf.mxu0
        %v1612 = vadd.f32 %v518, %v1611
        %v1613 = vpop.f32.mrf.mxu0
        %v1614 = vadd.f32 %v518, %v1613
        %1615 = vmatmul.bf16.gmra.mxu0 %v1434
        %v1616 = vpop.f32.mrf.mxu0
        %v1617 = vadd.f32 %v518, %v1616
        %v1618 = vpop.f32.mrf.mxu0
        %v1619 = vadd.f32 %v518, %v1618
        %1620 = vmatmul.bf16.gmra.mxu0 %v1437
        %v1621 = vpop.f32.mrf.mxu0
        %v1622 = vadd.f32 %v518, %v1621
        %v1623 = vpop.f32.mrf.mxu0
        %v1624 = vadd.f32 %v518, %v1623
        %1625 = vmatmul.bf16.gmra.mxu0 %v1440
        %v1626 = vpop.f32.mrf.mxu0
        %v1627 = vadd.f32 %v518, %v1626
        %v1628 = vpop.f32.mrf.mxu0
        %v1629 = vadd.f32 %v518, %v1628
        %1630 = vdwg.mxu0
        %v1631 = vmax.f32 %v1452, 0.0
        %v1632 = vmax.f32 %v1454, 0.0
        %v1633 = vmax.f32 %v1457, 0.0
        %v1634 = vmax.f32 %v1459, 0.0
        %v1635 = vmax.f32 %v1462, 0.0
        %v1636 = vmax.f32 %v1464, 0.0
        %v1637 = vmax.f32 %v1467, 0.0
        %v1638 = vmax.f32 %v1469, 0.0
        %v1639 = vmax.f32 %v1472, 0.0
        %v1640 = vmax.f32 %v1474, 0.0
        %v1641 = vmax.f32 %v1477, 0.0
        %v1642 = vmax.f32 %v1479, 0.0
        %v1643 = vmax.f32 %v1482, 0.0
        %v1644 = vmax.f32 %v1484, 0.0
        %v1645 = vmax.f32 %v1487, 0.0
        %v1646 = vmax.f32 %v1489, 0.0
        %v1647 = vmax.f32 %v1492, 0.0
        %v1648 = vmax.f32 %v1494, 0.0
        %v1649 = vmax.f32 %v1497, 0.0
        %v1650 = vmax.f32 %v1499, 0.0
        %v1651 = vmax.f32 %v1502, 0.0
        %v1652 = vmax.f32 %v1504, 0.0
        %v1653 = vmax.f32 %v1507, 0.0
        %v1654 = vmax.f32 %v1509, 0.0
        %v1655 = vmax.f32 %v1512, 0.0
        %v1656 = vmax.f32 %v1514, 0.0
        %v1657 = vmax.f32 %v1517, 0.0
        %v1658 = vmax.f32 %v1519, 0.0
        %v1659 = vmax.f32 %v1522, 0.0
        %v1660 = vmax.f32 %v1524, 0.0
        %v1661 = vmax.f32 %v1527, 0.0
        %v1662 = vmax.f32 %v1529, 0.0
        %v1663 = vmax.f32 %v1532, 0.0
        %v1664 = vmax.f32 %v1534, 0.0
        %v1665 = vmax.f32 %v1537, 0.0
        %v1666 = vmax.f32 %v1539, 0.0
        %v1667 = vmax.f32 %v1542, 0.0
        %v1668 = vmax.f32 %v1544, 0.0
        %v1669 = vmax.f32 %v1547, 0.0
        %v1670 = vmax.f32 %v1549, 0.0
        %v1671 = vmax.f32 %v1552, 0.0
        %v1672 = vmax.f32 %v1554, 0.0
        %v1673 = vmax.f32 %v1557, 0.0
        %v1674 = vmax.f32 %v1559, 0.0
        %v1675 = vmax.f32 %v1562, 0.0
        %v1676 = vmax.f32 %v1564, 0.0
        %v1677 = vmax.f32 %v1567, 0.0
        %v1678 = vmax.f32 %v1569, 0.0
        %v1679 = vmax.f32 %v1572, 0.0
        %v1680 = vmax.f32 %v1574, 0.0
        %v1681 = vmax.f32 %v1577, 0.0
        %v1682 = vmax.f32 %v1579, 0.0
        %v1683 = vmax.f32 %v1582, 0.0
        %v1684 = vmax.f32 %v1584, 0.0
        %v1685 = vmax.f32 %v1587, 0.0
        %v1686 = vmax.f32 %v1589, 0.0
        %v1687 = vmax.f32 %v1592, 0.0
        %v1688 = vmax.f32 %v1594, 0.0
        %v1689 = vmax.f32 %v1597, 0.0
        %v1690 = vmax.f32 %v1599, 0.0
        %v1691 = vmax.f32 %v1602, 0.0
        %v1692 = vmax.f32 %v1604, 0.0
        %v1693 = vmax.f32 %v1607, 0.0
        %v1694 = vmax.f32 %v1609, 0.0
        %v1695 = vmax.f32 %v1612, 0.0
        %v1696 = vmax.f32 %v1614, 0.0
        %v1697 = vmax.f32 %v1617, 0.0
        %v1698 = vmax.f32 %v1619, 0.0
        %v1699 = vmax.f32 %v1622, 0.0
        %v1700 = vmax.f32 %v1624, 0.0
        %v1701 = vmax.f32 %v1627, 0.0
        %v1702 = vmax.f32 %v1629, 0.0
        %v1703 = vpack.c.bf16 %v1631, %v1631
        %v1704 = vpack.c.bf16 %v1632, %v1632
        %v1705 = vpack.c.bf16 %v1633, %v1633
        %v1706 = vpack.c.bf16 %v1634, %v1634
        %v1707 = vpack.c.bf16 %v1635, %v1635
        %v1708 = vpack.c.bf16 %v1636, %v1636
        %v1709 = vpack.c.bf16 %v1637, %v1637
        %v1710 = vpack.c.bf16 %v1638, %v1638
        %v1711 = vpack.c.bf16 %v1639, %v1639
        %v1712 = vpack.c.bf16 %v1640, %v1640
        %v1713 = vpack.c.bf16 %v1641, %v1641
        %v1714 = vpack.c.bf16 %v1642, %v1642
        %v1715 = vpack.c.bf16 %v1643, %v1643
        %v1716 = vpack.c.bf16 %v1644, %v1644
        %v1717 = vpack.c.bf16 %v1645, %v1645
        %v1718 = vpack.c.bf16 %v1646, %v1646
        %v1719 = vpack.c.bf16 %v1647, %v1647
        %v1720 = vpack.c.bf16 %v1648, %v1648
        %v1721 = vpack.c.bf16 %v1649, %v1649
        %v1722 = vpack.c.bf16 %v1650, %v1650
        %v1723 = vpack.c.bf16 %v1651, %v1651
        %v1724 = vpack.c.bf16 %v1652, %v1652
        %v1725 = vpack.c.bf16 %v1653, %v1653
        %v1726 = vpack.c.bf16 %v1654, %v1654
        %v1727 = vpack.c.bf16 %v1655, %v1655
        %v1728 = vpack.c.bf16 %v1656, %v1656
        %v1729 = vpack.c.bf16 %v1657, %v1657
        %v1730 = vpack.c.bf16 %v1658, %v1658
        %v1731 = vpack.c.bf16 %v1659, %v1659
        %v1732 = vpack.c.bf16 %v1660, %v1660
        %v1733 = vpack.c.bf16 %v1661, %v1661
        %v1734 = vpack.c.bf16 %v1662, %v1662
        %v1735 = vpack.c.bf16 %v1663, %v1663
        %v1736 = vpack.c.bf16 %v1664, %v1664
        %v1737 = vpack.c.bf16 %v1665, %v1665
        %v1738 = vpack.c.bf16 %v1666, %v1666
        %v1739 = vpack.c.bf16 %v1667, %v1667
        %v1740 = vpack.c.bf16 %v1668, %v1668
        %v1741 = vpack.c.bf16 %v1669, %v1669
        %v1742 = vpack.c.bf16 %v1670, %v1670
        %v1743 = vpack.c.bf16 %v1671, %v1671
        %v1744 = vpack.c.bf16 %v1672, %v1672
        %v1745 = vpack.c.bf16 %v1673, %v1673
        %v1746 = vpack.c.bf16 %v1674, %v1674
        %v1747 = vpack.c.bf16 %v1675, %v1675
        %v1748 = vpack.c.bf16 %v1676, %v1676
        %v1749 = vpack.c.bf16 %v1677, %v1677
        %v1750 = vpack.c.bf16 %v1678, %v1678
        %v1751 = vpack.c.bf16 %v1679, %v1679
        %v1752 = vpack.c.bf16 %v1680, %v1680
        %v1753 = vpack.c.bf16 %v1681, %v1681
        %v1754 = vpack.c.bf16 %v1682, %v1682
        %v1755 = vpack.c.bf16 %v1683, %v1683
        %v1756 = vpack.c.bf16 %v1684, %v1684
        %v1757 = vpack.c.bf16 %v1685, %v1685
        %v1758 = vpack.c.bf16 %v1686, %v1686
        %v1759 = vpack.c.bf16 %v1687, %v1687
        %v1760 = vpack.c.bf16 %v1688, %v1688
        %v1761 = vpack.c.bf16 %v1689, %v1689
        %v1762 = vpack.c.bf16 %v1690, %v1690
        %v1763 = vpack.c.bf16 %v1691, %v1691
        %v1764 = vpack.c.bf16 %v1692, %v1692
        %v1765 = vpack.c.bf16 %v1693, %v1693
        %v1766 = vpack.c.bf16 %v1694, %v1694
        %v1767 = vpack.c.bf16 %v1695, %v1695
        %v1768 = vpack.c.bf16 %v1696, %v1696
        %v1769 = vpack.c.bf16 %v1697, %v1697
        %v1770 = vpack.c.bf16 %v1698, %v1698
        %v1771 = vpack.c.bf16 %v1699, %v1699
        %v1772 = vpack.c.bf16 %v1700, %v1700
        %v1773 = vpack.c.bf16 %v1701, %v1701
        %v1774 = vpack.c.bf16 %v1702, %v1702
        %v1775 = vunpack.c.l.bf16 %v1082
        %v1776 = vunpack.c.l.bf16 %v1083
        %v1777 = vunpack.c.l.bf16 %v1084
        %v1778 = vunpack.c.l.bf16 %v1085
        %v1779 = vunpack.c.l.bf16 %v1086
        %v1780 = vunpack.c.l.bf16 %v1087
        %v1781 = vunpack.c.l.bf16 %v1088
        %v1782 = vunpack.c.l.bf16 %v1089
        %v1783 = vunpack.c.l.bf16 %v1090
        %v1784 = vunpack.c.l.bf16 %v1091
        %v1785 = vunpack.c.l.bf16 %v1092
        %v1786 = vunpack.c.l.bf16 %v1093
        %v1787 = vunpack.c.l.bf16 %v1094
        %v1788 = vunpack.c.l.bf16 %v1095
        %v1789 = vunpack.c.l.bf16 %v1096
        %v1790 = vunpack.c.l.bf16 %v1097
        %v1791 = vunpack.c.l.bf16 %v1098
        %v1792 = vunpack.c.l.bf16 %v1099
        %v1793 = vunpack.c.l.bf16 %v1100
        %v1794 = vunpack.c.l.bf16 %v1101
        %v1795 = vunpack.c.l.bf16 %v1102
        %v1796 = vunpack.c.l.bf16 %v1103
        %v1797 = vunpack.c.l.bf16 %v1104
        %v1798 = vunpack.c.l.bf16 %v1105
        %v1799 = vunpack.c.l.bf16 %v1106
        %v1800 = vunpack.c.l.bf16 %v1107
        %v1801 = vunpack.c.l.bf16 %v1108
        %v1802 = vunpack.c.l.bf16 %v1109
        %v1803 = vunpack.c.l.bf16 %v1110
        %v1804 = vunpack.c.l.bf16 %v1111
        %v1805 = vunpack.c.l.bf16 %v1112
        %v1806 = vunpack.c.l.bf16 %v1113
        %v1807 = vunpack.c.l.bf16 %v1114
        %v1808 = vunpack.c.l.bf16 %v1115
        %v1809 = vunpack.c.l.bf16 %v1116
        %v1810 = vunpack.c.l.bf16 %v1117
        %v1811 = vunpack.c.l.bf16 %v1118
        %v1812 = vunpack.c.l.bf16 %v1119
        %v1813 = vunpack.c.l.bf16 %v1120
        %v1814 = vunpack.c.l.bf16 %v1121
        %v1815 = vunpack.c.l.bf16 %v1122
        %v1816 = vunpack.c.l.bf16 %v1123
        %v1817 = vunpack.c.l.bf16 %v1124
        %v1818 = vunpack.c.l.bf16 %v1125
        %v1819 = vunpack.c.l.bf16 %v1126
        %v1820 = vunpack.c.l.bf16 %v1127
        %v1821 = vunpack.c.l.bf16 %v1128
        %v1822 = vunpack.c.l.bf16 %v1129
        %v1823 = vunpack.c.l.bf16 %v1130
        %v1824 = vunpack.c.l.bf16 %v1131
        %v1825 = vunpack.c.l.bf16 %v1132
        %v1826 = vunpack.c.l.bf16 %v1133
        %v1827 = vunpack.c.l.bf16 %v1134
        %v1828 = vunpack.c.l.bf16 %v1135
        %v1829 = vunpack.c.l.bf16 %v1136
        %v1830 = vunpack.c.l.bf16 %v1137
        %v1831 = vunpack.c.l.bf16 %v1138
        %v1832 = vunpack.c.l.bf16 %v1139
        %v1833 = vunpack.c.l.bf16 %v1140
        %v1834 = vunpack.c.l.bf16 %v1141
        %v1835 = vunpack.c.l.bf16 %v1142
        %v1836 = vunpack.c.l.bf16 %v1143
        %v1837 = vunpack.c.l.bf16 %v1144
        %v1838 = vunpack.c.l.bf16 %v1145
        %v1839 = vunpack.c.l.bf16 %v1146
        %v1840 = vunpack.c.l.bf16 %v1147
        %v1841 = vunpack.c.l.bf16 %v1148
        %v1842 = vunpack.c.l.bf16 %v1149
        %v1843 = vunpack.c.l.bf16 %v1150
        %v1844 = vunpack.c.l.bf16 %v1151
        %v1845 = vunpack.c.l.bf16 %v1152
        %v1846 = vunpack.c.l.bf16 %v1153
        %v1847 = vunpack.c.l.bf16 %v1703
        %v1848 = vunpack.c.l.bf16 %v1704
        %v1849 = vunpack.c.l.bf16 %v1705
        %v1850 = vunpack.c.l.bf16 %v1706
        %v1851 = vunpack.c.l.bf16 %v1707
        %v1852 = vunpack.c.l.bf16 %v1708
        %v1853 = vunpack.c.l.bf16 %v1709
        %v1854 = vunpack.c.l.bf16 %v1710
        %v1855 = vunpack.c.l.bf16 %v1711
        %v1856 = vunpack.c.l.bf16 %v1712
        %v1857 = vunpack.c.l.bf16 %v1713
        %v1858 = vunpack.c.l.bf16 %v1714
        %v1859 = vunpack.c.l.bf16 %v1715
        %v1860 = vunpack.c.l.bf16 %v1716
        %v1861 = vunpack.c.l.bf16 %v1717
        %v1862 = vunpack.c.l.bf16 %v1718
        %v1863 = vunpack.c.l.bf16 %v1719
        %v1864 = vunpack.c.l.bf16 %v1720
        %v1865 = vunpack.c.l.bf16 %v1721
        %v1866 = vunpack.c.l.bf16 %v1722
        %v1867 = vunpack.c.l.bf16 %v1723
        %v1868 = vunpack.c.l.bf16 %v1724
        %v1869 = vunpack.c.l.bf16 %v1725
        %v1870 = vunpack.c.l.bf16 %v1726
        %v1871 = vunpack.c.l.bf16 %v1727
        %v1872 = vunpack.c.l.bf16 %v1728
        %v1873 = vunpack.c.l.bf16 %v1729
        %v1874 = vunpack.c.l.bf16 %v1730
        %v1875 = vunpack.c.l.bf16 %v1731
        %v1876 = vunpack.c.l.bf16 %v1732
        %v1877 = vunpack.c.l.bf16 %v1733
        %v1878 = vunpack.c.l.bf16 %v1734
        %v1879 = vunpack.c.l.bf16 %v1735
        %v1880 = vunpack.c.l.bf16 %v1736
        %v1881 = vunpack.c.l.bf16 %v1737
        %v1882 = vunpack.c.l.bf16 %v1738
        %v1883 = vunpack.c.l.bf16 %v1739
        %v1884 = vunpack.c.l.bf16 %v1740
        %v1885 = vunpack.c.l.bf16 %v1741
        %v1886 = vunpack.c.l.bf16 %v1742
        %v1887 = vunpack.c.l.bf16 %v1743
        %v1888 = vunpack.c.l.bf16 %v1744
        %v1889 = vunpack.c.l.bf16 %v1745
        %v1890 = vunpack.c.l.bf16 %v1746
        %v1891 = vunpack.c.l.bf16 %v1747
        %v1892 = vunpack.c.l.bf16 %v1748
        %v1893 = vunpack.c.l.bf16 %v1749
        %v1894 = vunpack.c.l.bf16 %v1750
        %v1895 = vunpack.c.l.bf16 %v1751
        %v1896 = vunpack.c.l.bf16 %v1752
        %v1897 = vunpack.c.l.bf16 %v1753
        %v1898 = vunpack.c.l.bf16 %v1754
        %v1899 = vunpack.c.l.bf16 %v1755
        %v1900 = vunpack.c.l.bf16 %v1756
        %v1901 = vunpack.c.l.bf16 %v1757
        %v1902 = vunpack.c.l.bf16 %v1758
        %v1903 = vunpack.c.l.bf16 %v1759
        %v1904 = vunpack.c.l.bf16 %v1760
        %v1905 = vunpack.c.l.bf16 %v1761
        %v1906 = vunpack.c.l.bf16 %v1762
        %v1907 = vunpack.c.l.bf16 %v1763
        %v1908 = vunpack.c.l.bf16 %v1764
        %v1909 = vunpack.c.l.bf16 %v1765
        %v1910 = vunpack.c.l.bf16 %v1766
        %v1911 = vunpack.c.l.bf16 %v1767
        %v1912 = vunpack.c.l.bf16 %v1768
        %v1913 = vunpack.c.l.bf16 %v1769
        %v1914 = vunpack.c.l.bf16 %v1770
        %v1915 = vunpack.c.l.bf16 %v1771
        %v1916 = vunpack.c.l.bf16 %v1772
        %v1917 = vunpack.c.l.bf16 %v1773
        %v1918 = vunpack.c.l.bf16 %v1774
        %v1919 = vmax.f32 %v1775, %v1847
        %v1920 = vmax.f32 %v1776, %v1848
        %v1921 = vmax.f32 %v1777, %v1849
        %v1922 = vmax.f32 %v1778, %v1850
        %v1923 = vmax.f32 %v1779, %v1851
        %v1924 = vmax.f32 %v1780, %v1852
        %v1925 = vmax.f32 %v1781, %v1853
        %v1926 = vmax.f32 %v1782, %v1854
        %v1927 = vmax.f32 %v1783, %v1855
        %v1928 = vmax.f32 %v1784, %v1856
        %v1929 = vmax.f32 %v1785, %v1857
        %v1930 = vmax.f32 %v1786, %v1858
        %v1931 = vmax.f32 %v1787, %v1859
        %v1932 = vmax.f32 %v1788, %v1860
        %v1933 = vmax.f32 %v1789, %v1861
        %v1934 = vmax.f32 %v1790, %v1862
        %v1935 = vmax.f32 %v1791, %v1863
        %v1936 = vmax.f32 %v1792, %v1864
        %v1937 = vmax.f32 %v1793, %v1865
        %v1938 = vmax.f32 %v1794, %v1866
        %v1939 = vmax.f32 %v1795, %v1867
        %v1940 = vmax.f32 %v1796, %v1868
        %v1941 = vmax.f32 %v1797, %v1869
        %v1942 = vmax.f32 %v1798, %v1870
        %v1943 = vmax.f32 %v1799, %v1871
        %v1944 = vmax.f32 %v1800, %v1872
        %v1945 = vmax.f32 %v1801, %v1873
        %v1946 = vmax.f32 %v1802, %v1874
        %v1947 = vmax.f32 %v1803, %v1875
        %v1948 = vmax.f32 %v1804, %v1876
        %v1949 = vmax.f32 %v1805, %v1877
        %v1950 = vmax.f32 %v1806, %v1878
        %v1951 = vmax.f32 %v1807, %v1879
        %v1952 = vmax.f32 %v1808, %v1880
        %v1953 = vmax.f32 %v1809, %v1881
        %v1954 = vmax.f32 %v1810, %v1882
        %v1955 = vmax.f32 %v1811, %v1883
        %v1956 = vmax.f32 %v1812, %v1884
        %v1957 = vmax.f32 %v1813, %v1885
        %v1958 = vmax.f32 %v1814, %v1886
        %v1959 = vmax.f32 %v1815, %v1887
        %v1960 = vmax.f32 %v1816, %v1888
        %v1961 = vmax.f32 %v1817, %v1889
        %v1962 = vmax.f32 %v1818, %v1890
        %v1963 = vmax.f32 %v1819, %v1891
        %v1964 = vmax.f32 %v1820, %v1892
        %v1965 = vmax.f32 %v1821, %v1893
        %v1966 = vmax.f32 %v1822, %v1894
        %v1967 = vmax.f32 %v1823, %v1895
        %v1968 = vmax.f32 %v1824, %v1896
        %v1969 = vmax.f32 %v1825, %v1897
        %v1970 = vmax.f32 %v1826, %v1898
        %v1971 = vmax.f32 %v1827, %v1899
        %v1972 = vmax.f32 %v1828, %v1900
        %v1973 = vmax.f32 %v1829, %v1901
        %v1974 = vmax.f32 %v1830, %v1902
        %v1975 = vmax.f32 %v1831, %v1903
        %v1976 = vmax.f32 %v1832, %v1904
        %v1977 = vmax.f32 %v1833, %v1905
        %v1978 = vmax.f32 %v1834, %v1906
        %v1979 = vmax.f32 %v1835, %v1907
        %v1980 = vmax.f32 %v1836, %v1908
        %v1981 = vmax.f32 %v1837, %v1909
        %v1982 = vmax.f32 %v1838, %v1910
        %v1983 = vmax.f32 %v1839, %v1911
        %v1984 = vmax.f32 %v1840, %v1912
        %v1985 = vmax.f32 %v1841, %v1913
        %v1986 = vmax.f32 %v1842, %v1914
        %v1987 = vmax.f32 %v1843, %v1915
        %v1988 = vmax.f32 %v1844, %v1916
        %v1989 = vmax.f32 %v1845, %v1917
        %v1990 = vmax.f32 %v1846, %v1918
        %v1991 = vpack.c.bf16 %v1919, %v1919
        %v1992 = vpack.c.bf16 %v1920, %v1920
        %v1993 = vpack.c.bf16 %v1921, %v1921
        %v1994 = vpack.c.bf16 %v1922, %v1922
        %v1995 = vpack.c.bf16 %v1923, %v1923
        %v1996 = vpack.c.bf16 %v1924, %v1924
        %v1997 = vpack.c.bf16 %v1925, %v1925
        %v1998 = vpack.c.bf16 %v1926, %v1926
        %v1999 = vpack.c.bf16 %v1927, %v1927
        %v2000 = vpack.c.bf16 %v1928, %v1928
        %v2001 = vpack.c.bf16 %v1929, %v1929
        %v2002 = vpack.c.bf16 %v1930, %v1930
        %v2003 = vpack.c.bf16 %v1931, %v1931
        %v2004 = vpack.c.bf16 %v1932, %v1932
        %v2005 = vpack.c.bf16 %v1933, %v1933
        %v2006 = vpack.c.bf16 %v1934, %v1934
        %v2007 = vpack.c.bf16 %v1935, %v1935
        %v2008 = vpack.c.bf16 %v1936, %v1936
        %v2009 = vpack.c.bf16 %v1937, %v1937
        %v2010 = vpack.c.bf16 %v1938, %v1938
        %v2011 = vpack.c.bf16 %v1939, %v1939
        %v2012 = vpack.c.bf16 %v1940, %v1940
        %v2013 = vpack.c.bf16 %v1941, %v1941
        %v2014 = vpack.c.bf16 %v1942, %v1942
        %v2015 = vpack.c.bf16 %v1943, %v1943
        %v2016 = vpack.c.bf16 %v1944, %v1944
        %v2017 = vpack.c.bf16 %v1945, %v1945
        %v2018 = vpack.c.bf16 %v1946, %v1946
        %v2019 = vpack.c.bf16 %v1947, %v1947
        %v2020 = vpack.c.bf16 %v1948, %v1948
        %v2021 = vpack.c.bf16 %v1949, %v1949
        %v2022 = vpack.c.bf16 %v1950, %v1950
        %v2023 = vpack.c.bf16 %v1951, %v1951
        %v2024 = vpack.c.bf16 %v1952, %v1952
        %v2025 = vpack.c.bf16 %v1953, %v1953
        %v2026 = vpack.c.bf16 %v1954, %v1954
        %v2027 = vpack.c.bf16 %v1955, %v1955
        %v2028 = vpack.c.bf16 %v1956, %v1956
        %v2029 = vpack.c.bf16 %v1957, %v1957
        %v2030 = vpack.c.bf16 %v1958, %v1958
        %v2031 = vpack.c.bf16 %v1959, %v1959
        %v2032 = vpack.c.bf16 %v1960, %v1960
        %v2033 = vpack.c.bf16 %v1961, %v1961
        %v2034 = vpack.c.bf16 %v1962, %v1962
        %v2035 = vpack.c.bf16 %v1963, %v1963
        %v2036 = vpack.c.bf16 %v1964, %v1964
        %v2037 = vpack.c.bf16 %v1965, %v1965
        %v2038 = vpack.c.bf16 %v1966, %v1966
        %v2039 = vpack.c.bf16 %v1967, %v1967
        %v2040 = vpack.c.bf16 %v1968, %v1968
        %v2041 = vpack.c.bf16 %v1969, %v1969
        %v2042 = vpack.c.bf16 %v1970, %v1970
        %v2043 = vpack.c.bf16 %v1971, %v1971
        %v2044 = vpack.c.bf16 %v1972, %v1972
        %v2045 = vpack.c.bf16 %v1973, %v1973
        %v2046 = vpack.c.bf16 %v1974, %v1974
        %v2047 = vpack.c.bf16 %v1975, %v1975
        %v2048 = vpack.c.bf16 %v1976, %v1976
        %v2049 = vpack.c.bf16 %v1977, %v1977
        %v2050 = vpack.c.bf16 %v1978, %v1978
        %v2051 = vpack.c.bf16 %v1979, %v1979
        %v2052 = vpack.c.bf16 %v1980, %v1980
        %v2053 = vpack.c.bf16 %v1981, %v1981
        %v2054 = vpack.c.bf16 %v1982, %v1982
        %v2055 = vpack.c.bf16 %v1983, %v1983
        %v2056 = vpack.c.bf16 %v1984, %v1984
        %v2057 = vpack.c.bf16 %v1985, %v1985
        %v2058 = vpack.c.bf16 %v1986, %v1986
        %v2059 = vpack.c.bf16 %v1987, %v1987
        %v2060 = vpack.c.bf16 %v1988, %v1988
        %v2061 = vpack.c.bf16 %v1989, %v1989
        %v2062 = vpack.c.bf16 %v1990, %v1990
        %v2135 = vunpack.c.l.b16 %v368
        %v2136 = vunpack.c.l.b16 %v369
        %v2137 = vunpack.c.l.b16 %v370
        %v2138 = vunpack.c.l.b16 %v371
        %v2139 = vunpack.c.l.b16 %v372
        %v2140 = vunpack.c.l.b16 %v373
        %v2141 = vunpack.c.l.b16 %v374
        %v2142 = vunpack.c.l.b16 %v375
        %v2143 = vunpack.c.l.b16 %v376
        %v2144 = vunpack.c.l.b16 %v377
        %v2145 = vunpack.c.l.b16 %v378
        %v2146 = vunpack.c.l.b16 %v379
        %v2147 = vunpack.c.l.b16 %v380
        %v2148 = vunpack.c.l.b16 %v381
        %v2149 = vunpack.c.l.b16 %v382
        %v2150 = vunpack.c.l.b16 %v383
        %v2151 = vunpack.c.l.b16 %v384
        %v2152 = vunpack.c.l.b16 %v385
        %v2153 = vunpack.c.l.b16 %v386
        %v2154 = vunpack.c.l.b16 %v387
        %v2155 = vunpack.c.l.b16 %v388
        %v2156 = vunpack.c.l.b16 %v389
        %v2157 = vunpack.c.l.b16 %v390
        %v2158 = vunpack.c.l.b16 %v391
        %v2159 = vunpack.c.l.b16 %v392
        %v2160 = vunpack.c.l.b16 %v393
        %v2161 = vunpack.c.l.b16 %v394
        %v2162 = vunpack.c.l.b16 %v395
        %v2163 = vunpack.c.l.b16 %v396
        %v2164 = vunpack.c.l.b16 %v397
        %v2165 = vunpack.c.l.b16 %v398
        %v2166 = vunpack.c.l.b16 %v399
        %v2167 = vunpack.c.l.b16 %v400
        %v2168 = vunpack.c.l.b16 %v401
        %v2169 = vunpack.c.l.b16 %v402
        %v2170 = vunpack.c.l.b16 %v403
        %v2171 = vunpack.c.l.b16 %v404
        %v2172 = vunpack.c.l.b16 %v405
        %v2173 = vunpack.c.l.b16 %v406
        %v2174 = vunpack.c.l.b16 %v407
        %v2175 = vunpack.c.l.b16 %v408
        %v2176 = vunpack.c.l.b16 %v409
        %v2177 = vunpack.c.l.b16 %v410
        %v2178 = vunpack.c.l.b16 %v411
        %v2179 = vunpack.c.l.b16 %v412
        %v2180 = vunpack.c.l.b16 %v413
        %v2181 = vunpack.c.l.b16 %v414
        %v2182 = vunpack.c.l.b16 %v415
        %v2183 = vunpack.c.l.b16 %v416
        %v2184 = vunpack.c.l.b16 %v417
        %v2185 = vunpack.c.l.b16 %v418
        %v2186 = vunpack.c.l.b16 %v419
        %v2187 = vunpack.c.l.b16 %v420
        %v2188 = vunpack.c.l.b16 %v421
        %v2189 = vunpack.c.l.b16 %v422
        %v2190 = vunpack.c.l.b16 %v423
        %v2191 = vunpack.c.l.b16 %v424
        %v2192 = vunpack.c.l.b16 %v425
        %v2193 = vunpack.c.l.b16 %v426
        %v2194 = vunpack.c.l.b16 %v427
        %v2195 = vunpack.c.l.b16 %v428
        %v2196 = vunpack.c.l.b16 %v429
        %v2197 = vunpack.c.l.b16 %v430
        %v2198 = vunpack.c.l.b16 %v431
        %v2199 = vunpack.c.l.b16 %v432
        %v2200 = vunpack.c.l.b16 %v433
        %v2201 = vunpack.c.l.b16 %v434
        %v2202 = vunpack.c.l.b16 %v435
        %v2203 = vunpack.c.l.b16 %v436
        %v2204 = vunpack.c.l.b16 %v437
        %v2205 = vunpack.c.l.b16 %v438
        %v2206 = vunpack.c.l.b16 %v439
        %v2207 = vpack.c.b16 %v2136, %v2135
        %v2208 = vpack.c.b16 %v2138, %v2137
        %v2209 = vpack.c.b16 %v2140, %v2139
        %v2210 = vpack.c.b16 %v2142, %v2141
        %v2211 = vpack.c.b16 %v2144, %v2143
        %v2212 = vpack.c.b16 %v2146, %v2145
        %v2213 = vpack.c.b16 %v2148, %v2147
        %v2214 = vpack.c.b16 %v2150, %v2149
        %v2215 = vpack.c.b16 %v2152, %v2151
        %v2216 = vpack.c.b16 %v2154, %v2153
        %v2217 = vpack.c.b16 %v2156, %v2155
        %v2218 = vpack.c.b16 %v2158, %v2157
        %v2219 = vpack.c.b16 %v2160, %v2159
        %v2220 = vpack.c.b16 %v2162, %v2161
        %v2221 = vpack.c.b16 %v2164, %v2163
        %v2222 = vpack.c.b16 %v2166, %v2165
        %v2223 = vpack.c.b16 %v2168, %v2167
        %v2224 = vpack.c.b16 %v2170, %v2169
        %v2225 = vpack.c.b16 %v2172, %v2171
        %v2226 = vpack.c.b16 %v2174, %v2173
        %v2227 = vpack.c.b16 %v2176, %v2175
        %v2228 = vpack.c.b16 %v2178, %v2177
        %v2229 = vpack.c.b16 %v2180, %v2179
        %v2230 = vpack.c.b16 %v2182, %v2181
        %v2231 = vpack.c.b16 %v2184, %v2183
        %v2232 = vpack.c.b16 %v2186, %v2185
        %v2233 = vpack.c.b16 %v2188, %v2187
        %v2234 = vpack.c.b16 %v2190, %v2189
        %v2235 = vpack.c.b16 %v2192, %v2191
        %v2236 = vpack.c.b16 %v2194, %v2193
        %v2237 = vpack.c.b16 %v2196, %v2195
        %v2238 = vpack.c.b16 %v2198, %v2197
        %v2239 = vpack.c.b16 %v2200, %v2199
        %v2240 = vpack.c.b16 %v2202, %v2201
        %v2241 = vpack.c.b16 %v2204, %v2203
        %v2242 = vpack.c.b16 %v2206, %v2205
        %v2244 = vsel %vm712, %v2207, 0
        %v2247 = vsel %vm712, %v2208, 0
        %v2250 = vsel %vm712, %v2209, 0
        %v2253 = vsel %vm712, %v2210, 0
        %v2256 = vsel %vm712, %v2211, 0
        %v2259 = vsel %vm712, %v2212, 0
        %v2262 = vsel %vm712, %v2213, 0
        %v2265 = vsel %vm712, %v2214, 0
        %v2268 = vsel %vm712, %v2215, 0
        %v2271 = vsel %vm712, %v2216, 0
        %v2274 = vsel %vm712, %v2217, 0
        %v2277 = vsel %vm712, %v2218, 0
        %v2280 = vsel %vm712, %v2219, 0
        %v2283 = vsel %vm712, %v2220, 0
        %v2286 = vsel %vm712, %v2221, 0
        %v2289 = vsel %vm712, %v2222, 0
        %v2292 = vsel %vm712, %v2223, 0
        %v2295 = vsel %vm712, %v2224, 0
        %v2298 = vsel %vm712, %v2225, 0
        %v2301 = vsel %vm712, %v2226, 0
        %v2304 = vsel %vm712, %v2227, 0
        %v2307 = vsel %vm712, %v2228, 0
        %v2310 = vsel %vm712, %v2229, 0
        %v2313 = vsel %vm712, %v2230, 0
        %v2316 = vsel %vm712, %v2231, 0
        %v2319 = vsel %vm712, %v2232, 0
        %v2322 = vsel %vm712, %v2233, 0
        %v2325 = vsel %vm712, %v2234, 0
        %v2328 = vsel %vm712, %v2235, 0
        %v2331 = vsel %vm712, %v2236, 0
        %v2334 = vsel %vm712, %v2237, 0
        %v2337 = vsel %vm712, %v2238, 0
        %v2340 = vsel %vm712, %v2239, 0
        %v2343 = vsel %vm712, %v2240, 0
        %v2346 = vsel %vm712, %v2241, 0
        %v2349 = vsel %vm712, %v2242, 0
        %2351 = vmatpush.bf16.msra.mxu0 0
        %2352 = vmatpush.bf16.msra.mxu0 0
        %2353 = vmatpush.bf16.msra.mxu0 0
        %2354 = vmatpush.bf16.msra.mxu0 0
        %2355 = vmatpush.bf16.msra.mxu0 0
        %2356 = vmatpush.bf16.msra.mxu0 0
        %2357 = vmatpush.bf16.msra.mxu0 %v709
        %2358 = vmatpush.bf16.msra.mxu0 %v708
        %2359 = vmatmul.bf16.gmra.mxu0 %v2244
        %v2360 = vpop.f32.mrf.mxu0
        %v2361 = vadd.f32 %v518, %v2360
        %v2362 = vpop.f32.mrf.mxu0
        %v2363 = vadd.f32 %v518, %v2362
        %2364 = vmatmul.bf16.gmra.mxu0 %v2247
        %v2365 = vpop.f32.mrf.mxu0
        %v2366 = vadd.f32 %v518, %v2365
        %v2367 = vpop.f32.mrf.mxu0
        %v2368 = vadd.f32 %v518, %v2367
        %2369 = vmatmul.bf16.gmra.mxu0 %v2250
        %v2370 = vpop.f32.mrf.mxu0
        %v2371 = vadd.f32 %v518, %v2370
        %v2372 = vpop.f32.mrf.mxu0
        %v2373 = vadd.f32 %v518, %v2372
        %2374 = vmatmul.bf16.gmra.mxu0 %v2253
        %v2375 = vpop.f32.mrf.mxu0
        %v2376 = vadd.f32 %v518, %v2375
        %v2377 = vpop.f32.mrf.mxu0
        %v2378 = vadd.f32 %v518, %v2377
        %2379 = vmatmul.bf16.gmra.mxu0 %v2256
        %v2380 = vpop.f32.mrf.mxu0
        %v2381 = vadd.f32 %v518, %v2380
        %v2382 = vpop.f32.mrf.mxu0
        %v2383 = vadd.f32 %v518, %v2382
        %2384 = vmatmul.bf16.gmra.mxu0 %v2259
        %v2385 = vpop.f32.mrf.mxu0
        %v2386 = vadd.f32 %v518, %v2385
        %v2387 = vpop.f32.mrf.mxu0
        %v2388 = vadd.f32 %v518, %v2387
        %2389 = vmatmul.bf16.gmra.mxu0 %v2262
        %v2390 = vpop.f32.mrf.mxu0
        %v2391 = vadd.f32 %v518, %v2390
        %v2392 = vpop.f32.mrf.mxu0
        %v2393 = vadd.f32 %v518, %v2392
        %2394 = vmatmul.bf16.gmra.mxu0 %v2265
        %v2395 = vpop.f32.mrf.mxu0
        %v2396 = vadd.f32 %v518, %v2395
        %v2397 = vpop.f32.mrf.mxu0
        %v2398 = vadd.f32 %v518, %v2397
        %2399 = vmatmul.bf16.gmra.mxu0 %v2268
        %v2400 = vpop.f32.mrf.mxu0
        %v2401 = vadd.f32 %v518, %v2400
        %v2402 = vpop.f32.mrf.mxu0
        %v2403 = vadd.f32 %v518, %v2402
        %2404 = vmatmul.bf16.gmra.mxu0 %v2271
        %v2405 = vpop.f32.mrf.mxu0
        %v2406 = vadd.f32 %v518, %v2405
        %v2407 = vpop.f32.mrf.mxu0
        %v2408 = vadd.f32 %v518, %v2407
        %2409 = vmatmul.bf16.gmra.mxu0 %v2274
        %v2410 = vpop.f32.mrf.mxu0
        %v2411 = vadd.f32 %v518, %v2410
        %v2412 = vpop.f32.mrf.mxu0
        %v2413 = vadd.f32 %v518, %v2412
        %2414 = vmatmul.bf16.gmra.mxu0 %v2277
        %v2415 = vpop.f32.mrf.mxu0
        %v2416 = vadd.f32 %v518, %v2415
        %v2417 = vpop.f32.mrf.mxu0
        %v2418 = vadd.f32 %v518, %v2417
        %2419 = vmatmul.bf16.gmra.mxu0 %v2280
        %v2420 = vpop.f32.mrf.mxu0
        %v2421 = vadd.f32 %v518, %v2420
        %v2422 = vpop.f32.mrf.mxu0
        %v2423 = vadd.f32 %v518, %v2422
        %2424 = vmatmul.bf16.gmra.mxu0 %v2283
        %v2425 = vpop.f32.mrf.mxu0
        %v2426 = vadd.f32 %v518, %v2425
        %v2427 = vpop.f32.mrf.mxu0
        %v2428 = vadd.f32 %v518, %v2427
        %2429 = vmatmul.bf16.gmra.mxu0 %v2286
        %v2430 = vpop.f32.mrf.mxu0
        %v2431 = vadd.f32 %v518, %v2430
        %v2432 = vpop.f32.mrf.mxu0
        %v2433 = vadd.f32 %v518, %v2432
        %2434 = vmatmul.bf16.gmra.mxu0 %v2289
        %v2435 = vpop.f32.mrf.mxu0
        %v2436 = vadd.f32 %v518, %v2435
        %v2437 = vpop.f32.mrf.mxu0
        %v2438 = vadd.f32 %v518, %v2437
        %2439 = vmatmul.bf16.gmra.mxu0 %v2292
        %v2440 = vpop.f32.mrf.mxu0
        %v2441 = vadd.f32 %v518, %v2440
        %v2442 = vpop.f32.mrf.mxu0
        %v2443 = vadd.f32 %v518, %v2442
        %2444 = vmatmul.bf16.gmra.mxu0 %v2295
        %v2445 = vpop.f32.mrf.mxu0
        %v2446 = vadd.f32 %v518, %v2445
        %v2447 = vpop.f32.mrf.mxu0
        %v2448 = vadd.f32 %v518, %v2447
        %2449 = vmatmul.bf16.gmra.mxu0 %v2298
        %v2450 = vpop.f32.mrf.mxu0
        %v2451 = vadd.f32 %v518, %v2450
        %v2452 = vpop.f32.mrf.mxu0
        %v2453 = vadd.f32 %v518, %v2452
        %2454 = vmatmul.bf16.gmra.mxu0 %v2301
        %v2455 = vpop.f32.mrf.mxu0
        %v2456 = vadd.f32 %v518, %v2455
        %v2457 = vpop.f32.mrf.mxu0
        %v2458 = vadd.f32 %v518, %v2457
        %2459 = vmatmul.bf16.gmra.mxu0 %v2304
        %v2460 = vpop.f32.mrf.mxu0
        %v2461 = vadd.f32 %v518, %v2460
        %v2462 = vpop.f32.mrf.mxu0
        %v2463 = vadd.f32 %v518, %v2462
        %2464 = vmatmul.bf16.gmra.mxu0 %v2307
        %v2465 = vpop.f32.mrf.mxu0
        %v2466 = vadd.f32 %v518, %v2465
        %v2467 = vpop.f32.mrf.mxu0
        %v2468 = vadd.f32 %v518, %v2467
        %2469 = vmatmul.bf16.gmra.mxu0 %v2310
        %v2470 = vpop.f32.mrf.mxu0
        %v2471 = vadd.f32 %v518, %v2470
        %v2472 = vpop.f32.mrf.mxu0
        %v2473 = vadd.f32 %v518, %v2472
        %2474 = vmatmul.bf16.gmra.mxu0 %v2313
        %v2475 = vpop.f32.mrf.mxu0
        %v2476 = vadd.f32 %v518, %v2475
        %v2477 = vpop.f32.mrf.mxu0
        %v2478 = vadd.f32 %v518, %v2477
        %2479 = vmatmul.bf16.gmra.mxu0 %v2316
        %v2480 = vpop.f32.mrf.mxu0
        %v2481 = vadd.f32 %v518, %v2480
        %v2482 = vpop.f32.mrf.mxu0
        %v2483 = vadd.f32 %v518, %v2482
        %2484 = vmatmul.bf16.gmra.mxu0 %v2319
        %v2485 = vpop.f32.mrf.mxu0
        %v2486 = vadd.f32 %v518, %v2485
        %v2487 = vpop.f32.mrf.mxu0
        %v2488 = vadd.f32 %v518, %v2487
        %2489 = vmatmul.bf16.gmra.mxu0 %v2322
        %v2490 = vpop.f32.mrf.mxu0
        %v2491 = vadd.f32 %v518, %v2490
        %v2492 = vpop.f32.mrf.mxu0
        %v2493 = vadd.f32 %v518, %v2492
        %2494 = vmatmul.bf16.gmra.mxu0 %v2325
        %v2495 = vpop.f32.mrf.mxu0
        %v2496 = vadd.f32 %v518, %v2495
        %v2497 = vpop.f32.mrf.mxu0
        %v2498 = vadd.f32 %v518, %v2497
        %2499 = vmatmul.bf16.gmra.mxu0 %v2328
        %v2500 = vpop.f32.mrf.mxu0
        %v2501 = vadd.f32 %v518, %v2500
        %v2502 = vpop.f32.mrf.mxu0
        %v2503 = vadd.f32 %v518, %v2502
        %2504 = vmatmul.bf16.gmra.mxu0 %v2331
        %v2505 = vpop.f32.mrf.mxu0
        %v2506 = vadd.f32 %v518, %v2505
        %v2507 = vpop.f32.mrf.mxu0
        %v2508 = vadd.f32 %v518, %v2507
        %2509 = vmatmul.bf16.gmra.mxu0 %v2334
        %v2510 = vpop.f32.mrf.mxu0
        %v2511 = vadd.f32 %v518, %v2510
        %v2512 = vpop.f32.mrf.mxu0
        %v2513 = vadd.f32 %v518, %v2512
        %2514 = vmatmul.bf16.gmra.mxu0 %v2337
        %v2515 = vpop.f32.mrf.mxu0
        %v2516 = vadd.f32 %v518, %v2515
        %v2517 = vpop.f32.mrf.mxu0
        %v2518 = vadd.f32 %v518, %v2517
        %2519 = vmatmul.bf16.gmra.mxu0 %v2340
        %v2520 = vpop.f32.mrf.mxu0
        %v2521 = vadd.f32 %v518, %v2520
        %v2522 = vpop.f32.mrf.mxu0
        %v2523 = vadd.f32 %v518, %v2522
        %2524 = vmatmul.bf16.gmra.mxu0 %v2343
        %v2525 = vpop.f32.mrf.mxu0
        %v2526 = vadd.f32 %v518, %v2525
        %v2527 = vpop.f32.mrf.mxu0
        %v2528 = vadd.f32 %v518, %v2527
        %2529 = vmatmul.bf16.gmra.mxu0 %v2346
        %v2530 = vpop.f32.mrf.mxu0
        %v2531 = vadd.f32 %v518, %v2530
        %v2532 = vpop.f32.mrf.mxu0
        %v2533 = vadd.f32 %v518, %v2532
        %2534 = vmatmul.bf16.gmra.mxu0 %v2349
        %v2535 = vpop.f32.mrf.mxu0
        %v2536 = vadd.f32 %v518, %v2535
        %v2537 = vpop.f32.mrf.mxu0
        %v2538 = vadd.f32 %v518, %v2537
        %2539 = vdwg.mxu0
        %v2540 = vmax.f32 %v2361, 0.0
        %v2541 = vmax.f32 %v2363, 0.0
        %v2542 = vmax.f32 %v2366, 0.0
        %v2543 = vmax.f32 %v2368, 0.0
        %v2544 = vmax.f32 %v2371, 0.0
        %v2545 = vmax.f32 %v2373, 0.0
        %v2546 = vmax.f32 %v2376, 0.0
        %v2547 = vmax.f32 %v2378, 0.0
        %v2548 = vmax.f32 %v2381, 0.0
        %v2549 = vmax.f32 %v2383, 0.0
        %v2550 = vmax.f32 %v2386, 0.0
        %v2551 = vmax.f32 %v2388, 0.0
        %v2552 = vmax.f32 %v2391, 0.0
        %v2553 = vmax.f32 %v2393, 0.0
        %v2554 = vmax.f32 %v2396, 0.0
        %v2555 = vmax.f32 %v2398, 0.0
        %v2556 = vmax.f32 %v2401, 0.0
        %v2557 = vmax.f32 %v2403, 0.0
        %v2558 = vmax.f32 %v2406, 0.0
        %v2559 = vmax.f32 %v2408, 0.0
        %v2560 = vmax.f32 %v2411, 0.0
        %v2561 = vmax.f32 %v2413, 0.0
        %v2562 = vmax.f32 %v2416, 0.0
        %v2563 = vmax.f32 %v2418, 0.0
        %v2564 = vmax.f32 %v2421, 0.0
        %v2565 = vmax.f32 %v2423, 0.0
        %v2566 = vmax.f32 %v2426, 0.0
        %v2567 = vmax.f32 %v2428, 0.0
        %v2568 = vmax.f32 %v2431, 0.0
        %v2569 = vmax.f32 %v2433, 0.0
        %v2570 = vmax.f32 %v2436, 0.0
        %v2571 = vmax.f32 %v2438, 0.0
        %v2572 = vmax.f32 %v2441, 0.0
        %v2573 = vmax.f32 %v2443, 0.0
        %v2574 = vmax.f32 %v2446, 0.0
        %v2575 = vmax.f32 %v2448, 0.0
        %v2576 = vmax.f32 %v2451, 0.0
        %v2577 = vmax.f32 %v2453, 0.0
        %v2578 = vmax.f32 %v2456, 0.0
        %v2579 = vmax.f32 %v2458, 0.0
        %v2580 = vmax.f32 %v2461, 0.0
        %v2581 = vmax.f32 %v2463, 0.0
        %v2582 = vmax.f32 %v2466, 0.0
        %v2583 = vmax.f32 %v2468, 0.0
        %v2584 = vmax.f32 %v2471, 0.0
        %v2585 = vmax.f32 %v2473, 0.0
        %v2586 = vmax.f32 %v2476, 0.0
        %v2587 = vmax.f32 %v2478, 0.0
        %v2588 = vmax.f32 %v2481, 0.0
        %v2589 = vmax.f32 %v2483, 0.0
        %v2590 = vmax.f32 %v2486, 0.0
        %v2591 = vmax.f32 %v2488, 0.0
        %v2592 = vmax.f32 %v2491, 0.0
        %v2593 = vmax.f32 %v2493, 0.0
        %v2594 = vmax.f32 %v2496, 0.0
        %v2595 = vmax.f32 %v2498, 0.0
        %v2596 = vmax.f32 %v2501, 0.0
        %v2597 = vmax.f32 %v2503, 0.0
        %v2598 = vmax.f32 %v2506, 0.0
        %v2599 = vmax.f32 %v2508, 0.0
        %v2600 = vmax.f32 %v2511, 0.0
        %v2601 = vmax.f32 %v2513, 0.0
        %v2602 = vmax.f32 %v2516, 0.0
        %v2603 = vmax.f32 %v2518, 0.0
        %v2604 = vmax.f32 %v2521, 0.0
        %v2605 = vmax.f32 %v2523, 0.0
        %v2606 = vmax.f32 %v2526, 0.0
        %v2607 = vmax.f32 %v2528, 0.0
        %v2608 = vmax.f32 %v2531, 0.0
        %v2609 = vmax.f32 %v2533, 0.0
        %v2610 = vmax.f32 %v2536, 0.0
        %v2611 = vmax.f32 %v2538, 0.0
        %v2612 = vpack.c.bf16 %v2540, %v2540
        %v2613 = vpack.c.bf16 %v2541, %v2541
        %v2614 = vpack.c.bf16 %v2542, %v2542
        %v2615 = vpack.c.bf16 %v2543, %v2543
        %v2616 = vpack.c.bf16 %v2544, %v2544
        %v2617 = vpack.c.bf16 %v2545, %v2545
        %v2618 = vpack.c.bf16 %v2546, %v2546
        %v2619 = vpack.c.bf16 %v2547, %v2547
        %v2620 = vpack.c.bf16 %v2548, %v2548
        %v2621 = vpack.c.bf16 %v2549, %v2549
        %v2622 = vpack.c.bf16 %v2550, %v2550
        %v2623 = vpack.c.bf16 %v2551, %v2551
        %v2624 = vpack.c.bf16 %v2552, %v2552
        %v2625 = vpack.c.bf16 %v2553, %v2553
        %v2626 = vpack.c.bf16 %v2554, %v2554
        %v2627 = vpack.c.bf16 %v2555, %v2555
        %v2628 = vpack.c.bf16 %v2556, %v2556
        %v2629 = vpack.c.bf16 %v2557, %v2557
        %v2630 = vpack.c.bf16 %v2558, %v2558
        %v2631 = vpack.c.bf16 %v2559, %v2559
        %v2632 = vpack.c.bf16 %v2560, %v2560
        %v2633 = vpack.c.bf16 %v2561, %v2561
        %v2634 = vpack.c.bf16 %v2562, %v2562
        %v2635 = vpack.c.bf16 %v2563, %v2563
        %v2636 = vpack.c.bf16 %v2564, %v2564
        %v2637 = vpack.c.bf16 %v2565, %v2565
        %v2638 = vpack.c.bf16 %v2566, %v2566
        %v2639 = vpack.c.bf16 %v2567, %v2567
        %v2640 = vpack.c.bf16 %v2568, %v2568
        %v2641 = vpack.c.bf16 %v2569, %v2569
        %v2642 = vpack.c.bf16 %v2570, %v2570
        %v2643 = vpack.c.bf16 %v2571, %v2571
        %v2644 = vpack.c.bf16 %v2572, %v2572
        %v2645 = vpack.c.bf16 %v2573, %v2573
        %v2646 = vpack.c.bf16 %v2574, %v2574
        %v2647 = vpack.c.bf16 %v2575, %v2575
        %v2648 = vpack.c.bf16 %v2576, %v2576
        %v2649 = vpack.c.bf16 %v2577, %v2577
        %v2650 = vpack.c.bf16 %v2578, %v2578
        %v2651 = vpack.c.bf16 %v2579, %v2579
        %v2652 = vpack.c.bf16 %v2580, %v2580
        %v2653 = vpack.c.bf16 %v2581, %v2581
        %v2654 = vpack.c.bf16 %v2582, %v2582
        %v2655 = vpack.c.bf16 %v2583, %v2583
        %v2656 = vpack.c.bf16 %v2584, %v2584
        %v2657 = vpack.c.bf16 %v2585, %v2585
        %v2658 = vpack.c.bf16 %v2586, %v2586
        %v2659 = vpack.c.bf16 %v2587, %v2587
        %v2660 = vpack.c.bf16 %v2588, %v2588
        %v2661 = vpack.c.bf16 %v2589, %v2589
        %v2662 = vpack.c.bf16 %v2590, %v2590
        %v2663 = vpack.c.bf16 %v2591, %v2591
        %v2664 = vpack.c.bf16 %v2592, %v2592
        %v2665 = vpack.c.bf16 %v2593, %v2593
        %v2666 = vpack.c.bf16 %v2594, %v2594
        %v2667 = vpack.c.bf16 %v2595, %v2595
        %v2668 = vpack.c.bf16 %v2596, %v2596
        %v2669 = vpack.c.bf16 %v2597, %v2597
        %v2670 = vpack.c.bf16 %v2598, %v2598
        %v2671 = vpack.c.bf16 %v2599, %v2599
        %v2672 = vpack.c.bf16 %v2600, %v2600
        %v2673 = vpack.c.bf16 %v2601, %v2601
        %v2674 = vpack.c.bf16 %v2602, %v2602
        %v2675 = vpack.c.bf16 %v2603, %v2603
        %v2676 = vpack.c.bf16 %v2604, %v2604
        %v2677 = vpack.c.bf16 %v2605, %v2605
        %v2678 = vpack.c.bf16 %v2606, %v2606
        %v2679 = vpack.c.bf16 %v2607, %v2607
        %v2680 = vpack.c.bf16 %v2608, %v2608
        %v2681 = vpack.c.bf16 %v2609, %v2609
        %v2682 = vpack.c.bf16 %v2610, %v2610
        %v2683 = vpack.c.bf16 %v2611, %v2611
        %v2684 = vunpack.c.l.bf16 %v1991
        %v2685 = vunpack.c.l.bf16 %v1992
        %v2686 = vunpack.c.l.bf16 %v1993
        %v2687 = vunpack.c.l.bf16 %v1994
        %v2688 = vunpack.c.l.bf16 %v1995
        %v2689 = vunpack.c.l.bf16 %v1996
        %v2690 = vunpack.c.l.bf16 %v1997
        %v2691 = vunpack.c.l.bf16 %v1998
        %v2692 = vunpack.c.l.bf16 %v1999
        %v2693 = vunpack.c.l.bf16 %v2000
        %v2694 = vunpack.c.l.bf16 %v2001
        %v2695 = vunpack.c.l.bf16 %v2002
        %v2696 = vunpack.c.l.bf16 %v2003
        %v2697 = vunpack.c.l.bf16 %v2004
        %v2698 = vunpack.c.l.bf16 %v2005
        %v2699 = vunpack.c.l.bf16 %v2006
        %v2700 = vunpack.c.l.bf16 %v2007
        %v2701 = vunpack.c.l.bf16 %v2008
        %v2702 = vunpack.c.l.bf16 %v2009
        %v2703 = vunpack.c.l.bf16 %v2010
        %v2704 = vunpack.c.l.bf16 %v2011
        %v2705 = vunpack.c.l.bf16 %v2012
        %v2706 = vunpack.c.l.bf16 %v2013
        %v2707 = vunpack.c.l.bf16 %v2014
        %v2708 = vunpack.c.l.bf16 %v2015
        %v2709 = vunpack.c.l.bf16 %v2016
        %v2710 = vunpack.c.l.bf16 %v2017
        %v2711 = vunpack.c.l.bf16 %v2018
        %v2712 = vunpack.c.l.bf16 %v2019
        %v2713 = vunpack.c.l.bf16 %v2020
        %v2714 = vunpack.c.l.bf16 %v2021
        %v2715 = vunpack.c.l.bf16 %v2022
        %v2716 = vunpack.c.l.bf16 %v2023
        %v2717 = vunpack.c.l.bf16 %v2024
        %v2718 = vunpack.c.l.bf16 %v2025
        %v2719 = vunpack.c.l.bf16 %v2026
        %v2720 = vunpack.c.l.bf16 %v2027
        %v2721 = vunpack.c.l.bf16 %v2028
        %v2722 = vunpack.c.l.bf16 %v2029
        %v2723 = vunpack.c.l.bf16 %v2030
        %v2724 = vunpack.c.l.bf16 %v2031
        %v2725 = vunpack.c.l.bf16 %v2032
        %v2726 = vunpack.c.l.bf16 %v2033
        %v2727 = vunpack.c.l.bf16 %v2034
        %v2728 = vunpack.c.l.bf16 %v2035
        %v2729 = vunpack.c.l.bf16 %v2036
        %v2730 = vunpack.c.l.bf16 %v2037
        %v2731 = vunpack.c.l.bf16 %v2038
        %v2732 = vunpack.c.l.bf16 %v2039
        %v2733 = vunpack.c.l.bf16 %v2040
        %v2734 = vunpack.c.l.bf16 %v2041
        %v2735 = vunpack.c.l.bf16 %v2042
        %v2736 = vunpack.c.l.bf16 %v2043
        %v2737 = vunpack.c.l.bf16 %v2044
        %v2738 = vunpack.c.l.bf16 %v2045
        %v2739 = vunpack.c.l.bf16 %v2046
        %v2740 = vunpack.c.l.bf16 %v2047
        %v2741 = vunpack.c.l.bf16 %v2048
        %v2742 = vunpack.c.l.bf16 %v2049
        %v2743 = vunpack.c.l.bf16 %v2050
        %v2744 = vunpack.c.l.bf16 %v2051
        %v2745 = vunpack.c.l.bf16 %v2052
        %v2746 = vunpack.c.l.bf16 %v2053
        %v2747 = vunpack.c.l.bf16 %v2054
        %v2748 = vunpack.c.l.bf16 %v2055
        %v2749 = vunpack.c.l.bf16 %v2056
        %v2750 = vunpack.c.l.bf16 %v2057
        %v2751 = vunpack.c.l.bf16 %v2058
        %v2752 = vunpack.c.l.bf16 %v2059
        %v2753 = vunpack.c.l.bf16 %v2060
        %v2754 = vunpack.c.l.bf16 %v2061
        %v2755 = vunpack.c.l.bf16 %v2062
        %v2756 = vunpack.c.l.bf16 %v2612
        %v2757 = vunpack.c.l.bf16 %v2613
        %v2758 = vunpack.c.l.bf16 %v2614
        %v2759 = vunpack.c.l.bf16 %v2615
        %v2760 = vunpack.c.l.bf16 %v2616
        %v2761 = vunpack.c.l.bf16 %v2617
        %v2762 = vunpack.c.l.bf16 %v2618
        %v2763 = vunpack.c.l.bf16 %v2619
        %v2764 = vunpack.c.l.bf16 %v2620
        %v2765 = vunpack.c.l.bf16 %v2621
        %v2766 = vunpack.c.l.bf16 %v2622
        %v2767 = vunpack.c.l.bf16 %v2623
        %v2768 = vunpack.c.l.bf16 %v2624
        %v2769 = vunpack.c.l.bf16 %v2625
        %v2770 = vunpack.c.l.bf16 %v2626
        %v2771 = vunpack.c.l.bf16 %v2627
        %v2772 = vunpack.c.l.bf16 %v2628
        %v2773 = vunpack.c.l.bf16 %v2629
        %v2774 = vunpack.c.l.bf16 %v2630
        %v2775 = vunpack.c.l.bf16 %v2631
        %v2776 = vunpack.c.l.bf16 %v2632
        %v2777 = vunpack.c.l.bf16 %v2633
        %v2778 = vunpack.c.l.bf16 %v2634
        %v2779 = vunpack.c.l.bf16 %v2635
        %v2780 = vunpack.c.l.bf16 %v2636
        %v2781 = vunpack.c.l.bf16 %v2637
        %v2782 = vunpack.c.l.bf16 %v2638
        %v2783 = vunpack.c.l.bf16 %v2639
        %v2784 = vunpack.c.l.bf16 %v2640
        %v2785 = vunpack.c.l.bf16 %v2641
        %v2786 = vunpack.c.l.bf16 %v2642
        %v2787 = vunpack.c.l.bf16 %v2643
        %v2788 = vunpack.c.l.bf16 %v2644
        %v2789 = vunpack.c.l.bf16 %v2645
        %v2790 = vunpack.c.l.bf16 %v2646
        %v2791 = vunpack.c.l.bf16 %v2647
        %v2792 = vunpack.c.l.bf16 %v2648
        %v2793 = vunpack.c.l.bf16 %v2649
        %v2794 = vunpack.c.l.bf16 %v2650
        %v2795 = vunpack.c.l.bf16 %v2651
        %v2796 = vunpack.c.l.bf16 %v2652
        %v2797 = vunpack.c.l.bf16 %v2653
        %v2798 = vunpack.c.l.bf16 %v2654
        %v2799 = vunpack.c.l.bf16 %v2655
        %v2800 = vunpack.c.l.bf16 %v2656
        %v2801 = vunpack.c.l.bf16 %v2657
        %v2802 = vunpack.c.l.bf16 %v2658
        %v2803 = vunpack.c.l.bf16 %v2659
        %v2804 = vunpack.c.l.bf16 %v2660
        %v2805 = vunpack.c.l.bf16 %v2661
        %v2806 = vunpack.c.l.bf16 %v2662
        %v2807 = vunpack.c.l.bf16 %v2663
        %v2808 = vunpack.c.l.bf16 %v2664
        %v2809 = vunpack.c.l.bf16 %v2665
        %v2810 = vunpack.c.l.bf16 %v2666
        %v2811 = vunpack.c.l.bf16 %v2667
        %v2812 = vunpack.c.l.bf16 %v2668
        %v2813 = vunpack.c.l.bf16 %v2669
        %v2814 = vunpack.c.l.bf16 %v2670
        %v2815 = vunpack.c.l.bf16 %v2671
        %v2816 = vunpack.c.l.bf16 %v2672
        %v2817 = vunpack.c.l.bf16 %v2673
        %v2818 = vunpack.c.l.bf16 %v2674
        %v2819 = vunpack.c.l.bf16 %v2675
        %v2820 = vunpack.c.l.bf16 %v2676
        %v2821 = vunpack.c.l.bf16 %v2677
        %v2822 = vunpack.c.l.bf16 %v2678
        %v2823 = vunpack.c.l.bf16 %v2679
        %v2824 = vunpack.c.l.bf16 %v2680
        %v2825 = vunpack.c.l.bf16 %v2681
        %v2826 = vunpack.c.l.bf16 %v2682
        %v2827 = vunpack.c.l.bf16 %v2683
        %v2828 = vmax.f32 %v2684, %v2756
        %v2829 = vmax.f32 %v2685, %v2757
        %v2830 = vmax.f32 %v2686, %v2758
        %v2831 = vmax.f32 %v2687, %v2759
        %v2832 = vmax.f32 %v2688, %v2760
        %v2833 = vmax.f32 %v2689, %v2761
        %v2834 = vmax.f32 %v2690, %v2762
        %v2835 = vmax.f32 %v2691, %v2763
        %v2836 = vmax.f32 %v2692, %v2764
        %v2837 = vmax.f32 %v2693, %v2765
        %v2838 = vmax.f32 %v2694, %v2766
        %v2839 = vmax.f32 %v2695, %v2767
        %v2840 = vmax.f32 %v2696, %v2768
        %v2841 = vmax.f32 %v2697, %v2769
        %v2842 = vmax.f32 %v2698, %v2770
        %v2843 = vmax.f32 %v2699, %v2771
        %v2844 = vmax.f32 %v2700, %v2772
        %v2845 = vmax.f32 %v2701, %v2773
        %v2846 = vmax.f32 %v2702, %v2774
        %v2847 = vmax.f32 %v2703, %v2775
        %v2848 = vmax.f32 %v2704, %v2776
        %v2849 = vmax.f32 %v2705, %v2777
        %v2850 = vmax.f32 %v2706, %v2778
        %v2851 = vmax.f32 %v2707, %v2779
        %v2852 = vmax.f32 %v2708, %v2780
        %v2853 = vmax.f32 %v2709, %v2781
        %v2854 = vmax.f32 %v2710, %v2782
        %v2855 = vmax.f32 %v2711, %v2783
        %v2856 = vmax.f32 %v2712, %v2784
        %v2857 = vmax.f32 %v2713, %v2785
        %v2858 = vmax.f32 %v2714, %v2786
        %v2859 = vmax.f32 %v2715, %v2787
        %v2860 = vmax.f32 %v2716, %v2788
        %v2861 = vmax.f32 %v2717, %v2789
        %v2862 = vmax.f32 %v2718, %v2790
        %v2863 = vmax.f32 %v2719, %v2791
        %v2864 = vmax.f32 %v2720, %v2792
        %v2865 = vmax.f32 %v2721, %v2793
        %v2866 = vmax.f32 %v2722, %v2794
        %v2867 = vmax.f32 %v2723, %v2795
        %v2868 = vmax.f32 %v2724, %v2796
        %v2869 = vmax.f32 %v2725, %v2797
        %v2870 = vmax.f32 %v2726, %v2798
        %v2871 = vmax.f32 %v2727, %v2799
        %v2872 = vmax.f32 %v2728, %v2800
        %v2873 = vmax.f32 %v2729, %v2801
        %v2874 = vmax.f32 %v2730, %v2802
        %v2875 = vmax.f32 %v2731, %v2803
        %v2876 = vmax.f32 %v2732, %v2804
        %v2877 = vmax.f32 %v2733, %v2805
        %v2878 = vmax.f32 %v2734, %v2806
        %v2879 = vmax.f32 %v2735, %v2807
        %v2880 = vmax.f32 %v2736, %v2808
        %v2881 = vmax.f32 %v2737, %v2809
        %v2882 = vmax.f32 %v2738, %v2810
        %v2883 = vmax.f32 %v2739, %v2811
        %v2884 = vmax.f32 %v2740, %v2812
        %v2885 = vmax.f32 %v2741, %v2813
        %v2886 = vmax.f32 %v2742, %v2814
        %v2887 = vmax.f32 %v2743, %v2815
        %v2888 = vmax.f32 %v2744, %v2816
        %v2889 = vmax.f32 %v2745, %v2817
        %v2890 = vmax.f32 %v2746, %v2818
        %v2891 = vmax.f32 %v2747, %v2819
        %v2892 = vmax.f32 %v2748, %v2820
        %v2893 = vmax.f32 %v2749, %v2821
        %v2894 = vmax.f32 %v2750, %v2822
        %v2895 = vmax.f32 %v2751, %v2823
        %v2896 = vmax.f32 %v2752, %v2824
        %v2897 = vmax.f32 %v2753, %v2825
        %v2898 = vmax.f32 %v2754, %v2826
        %v2899 = vmax.f32 %v2755, %v2827
        %v2900 = vpack.c.bf16 %v2828, %v2828
        %v2901 = vpack.c.bf16 %v2829, %v2829
        %v2902 = vpack.c.bf16 %v2830, %v2830
        %v2903 = vpack.c.bf16 %v2831, %v2831
        %v2904 = vpack.c.bf16 %v2832, %v2832
        %v2905 = vpack.c.bf16 %v2833, %v2833
        %v2906 = vpack.c.bf16 %v2834, %v2834
        %v2907 = vpack.c.bf16 %v2835, %v2835
        %v2908 = vpack.c.bf16 %v2836, %v2836
        %v2909 = vpack.c.bf16 %v2837, %v2837
        %v2910 = vpack.c.bf16 %v2838, %v2838
        %v2911 = vpack.c.bf16 %v2839, %v2839
        %v2912 = vpack.c.bf16 %v2840, %v2840
        %v2913 = vpack.c.bf16 %v2841, %v2841
        %v2914 = vpack.c.bf16 %v2842, %v2842
        %v2915 = vpack.c.bf16 %v2843, %v2843
        %v2916 = vpack.c.bf16 %v2844, %v2844
        %v2917 = vpack.c.bf16 %v2845, %v2845
        %v2918 = vpack.c.bf16 %v2846, %v2846
        %v2919 = vpack.c.bf16 %v2847, %v2847
        %v2920 = vpack.c.bf16 %v2848, %v2848
        %v2921 = vpack.c.bf16 %v2849, %v2849
        %v2922 = vpack.c.bf16 %v2850, %v2850
        %v2923 = vpack.c.bf16 %v2851, %v2851
        %v2924 = vpack.c.bf16 %v2852, %v2852
        %v2925 = vpack.c.bf16 %v2853, %v2853
        %v2926 = vpack.c.bf16 %v2854, %v2854
        %v2927 = vpack.c.bf16 %v2855, %v2855
        %v2928 = vpack.c.bf16 %v2856, %v2856
        %v2929 = vpack.c.bf16 %v2857, %v2857
        %v2930 = vpack.c.bf16 %v2858, %v2858
        %v2931 = vpack.c.bf16 %v2859, %v2859
        %v2932 = vpack.c.bf16 %v2860, %v2860
        %v2933 = vpack.c.bf16 %v2861, %v2861
        %v2934 = vpack.c.bf16 %v2862, %v2862
        %v2935 = vpack.c.bf16 %v2863, %v2863
        %v2936 = vpack.c.bf16 %v2864, %v2864
        %v2937 = vpack.c.bf16 %v2865, %v2865
        %v2938 = vpack.c.bf16 %v2866, %v2866
        %v2939 = vpack.c.bf16 %v2867, %v2867
        %v2940 = vpack.c.bf16 %v2868, %v2868
        %v2941 = vpack.c.bf16 %v2869, %v2869
        %v2942 = vpack.c.bf16 %v2870, %v2870
        %v2943 = vpack.c.bf16 %v2871, %v2871
        %v2944 = vpack.c.bf16 %v2872, %v2872
        %v2945 = vpack.c.bf16 %v2873, %v2873
        %v2946 = vpack.c.bf16 %v2874, %v2874
        %v2947 = vpack.c.bf16 %v2875, %v2875
        %v2948 = vpack.c.bf16 %v2876, %v2876
        %v2949 = vpack.c.bf16 %v2877, %v2877
        %v2950 = vpack.c.bf16 %v2878, %v2878
        %v2951 = vpack.c.bf16 %v2879, %v2879
        %v2952 = vpack.c.bf16 %v2880, %v2880
        %v2953 = vpack.c.bf16 %v2881, %v2881
        %v2954 = vpack.c.bf16 %v2882, %v2882
        %v2955 = vpack.c.bf16 %v2883, %v2883
        %v2956 = vpack.c.bf16 %v2884, %v2884
        %v2957 = vpack.c.bf16 %v2885, %v2885
        %v2958 = vpack.c.bf16 %v2886, %v2886
        %v2959 = vpack.c.bf16 %v2887, %v2887
        %v2960 = vpack.c.bf16 %v2888, %v2888
        %v2961 = vpack.c.bf16 %v2889, %v2889
        %v2962 = vpack.c.bf16 %v2890, %v2890
        %v2963 = vpack.c.bf16 %v2891, %v2891
        %v2964 = vpack.c.bf16 %v2892, %v2892
        %v2965 = vpack.c.bf16 %v2893, %v2893
        %v2966 = vpack.c.bf16 %v2894, %v2894
        %v2967 = vpack.c.bf16 %v2895, %v2895
        %v2968 = vpack.c.bf16 %v2896, %v2896
        %v2969 = vpack.c.bf16 %v2897, %v2897
        %v2970 = vpack.c.bf16 %v2898, %v2898
        %v2971 = vpack.c.bf16 %v2899, %v2899
        %v3044 = vunpack.c.l.b16 %v440
        %v3045 = vunpack.c.l.b16 %v441
        %v3046 = vunpack.c.l.b16 %v442
        %v3047 = vunpack.c.l.b16 %v443
        %v3048 = vunpack.c.l.b16 %v444
        %v3049 = vunpack.c.l.b16 %v445
        %v3050 = vunpack.c.l.b16 %v446
        %v3051 = vunpack.c.l.b16 %v447
        %v3052 = vunpack.c.l.b16 %v448
        %v3053 = vunpack.c.l.b16 %v449
        %v3054 = vunpack.c.l.b16 %v450
        %v3055 = vunpack.c.l.b16 %v451
        %v3056 = vunpack.c.l.b16 %v452
        %v3057 = vunpack.c.l.b16 %v453
        %v3058 = vunpack.c.l.b16 %v454
        %v3059 = vunpack.c.l.b16 %v455
        %v3060 = vunpack.c.l.b16 %v456
        %v3061 = vunpack.c.l.b16 %v457
        %v3062 = vunpack.c.l.b16 %v458
        %v3063 = vunpack.c.l.b16 %v459
        %v3064 = vunpack.c.l.b16 %v460
        %v3065 = vunpack.c.l.b16 %v461
        %v3066 = vunpack.c.l.b16 %v462
        %v3067 = vunpack.c.l.b16 %v463
        %v3068 = vunpack.c.l.b16 %v464
        %v3069 = vunpack.c.l.b16 %v465
        %v3070 = vunpack.c.l.b16 %v466
        %v3071 = vunpack.c.l.b16 %v467
        %v3072 = vunpack.c.l.b16 %v468
        %v3073 = vunpack.c.l.b16 %v469
        %v3074 = vunpack.c.l.b16 %v470
        %v3075 = vunpack.c.l.b16 %v471
        %v3076 = vunpack.c.l.b16 %v472
        %v3077 = vunpack.c.l.b16 %v473
        %v3078 = vunpack.c.l.b16 %v474
        %v3079 = vunpack.c.l.b16 %v475
        %v3080 = vunpack.c.l.b16 %v476
        %v3081 = vunpack.c.l.b16 %v477
        %v3082 = vunpack.c.l.b16 %v478
        %v3083 = vunpack.c.l.b16 %v479
        %v3084 = vunpack.c.l.b16 %v480
        %v3085 = vunpack.c.l.b16 %v481
        %v3086 = vunpack.c.l.b16 %v482
        %v3087 = vunpack.c.l.b16 %v483
        %v3088 = vunpack.c.l.b16 %v484
        %v3089 = vunpack.c.l.b16 %v485
        %v3090 = vunpack.c.l.b16 %v486
        %v3091 = vunpack.c.l.b16 %v487
        %v3092 = vunpack.c.l.b16 %v488
        %v3093 = vunpack.c.l.b16 %v489
        %v3094 = vunpack.c.l.b16 %v490
        %v3095 = vunpack.c.l.b16 %v491
        %v3096 = vunpack.c.l.b16 %v492
        %v3097 = vunpack.c.l.b16 %v493
        %v3098 = vunpack.c.l.b16 %v494
        %v3099 = vunpack.c.l.b16 %v495
        %v3100 = vunpack.c.l.b16 %v496
        %v3101 = vunpack.c.l.b16 %v497
        %v3102 = vunpack.c.l.b16 %v498
        %v3103 = vunpack.c.l.b16 %v499
        %v3104 = vunpack.c.l.b16 %v500
        %v3105 = vunpack.c.l.b16 %v501
        %v3106 = vunpack.c.l.b16 %v502
        %v3107 = vunpack.c.l.b16 %v503
        %v3108 = vunpack.c.l.b16 %v504
        %v3109 = vunpack.c.l.b16 %v505
        %v3110 = vunpack.c.l.b16 %v506
        %v3111 = vunpack.c.l.b16 %v507
        %v3112 = vunpack.c.l.b16 %v508
        %v3113 = vunpack.c.l.b16 %v509
        %v3114 = vunpack.c.l.b16 %v510
        %v3115 = vunpack.c.l.b16 %v511
        %v3116 = vpack.c.b16 %v3045, %v3044
        %v3117 = vpack.c.b16 %v3047, %v3046
        %v3118 = vpack.c.b16 %v3049, %v3048
        %v3119 = vpack.c.b16 %v3051, %v3050
        %v3120 = vpack.c.b16 %v3053, %v3052
        %v3121 = vpack.c.b16 %v3055, %v3054
        %v3122 = vpack.c.b16 %v3057, %v3056
        %v3123 = vpack.c.b16 %v3059, %v3058
        %v3124 = vpack.c.b16 %v3061, %v3060
        %v3125 = vpack.c.b16 %v3063, %v3062
        %v3126 = vpack.c.b16 %v3065, %v3064
        %v3127 = vpack.c.b16 %v3067, %v3066
        %v3128 = vpack.c.b16 %v3069, %v3068
        %v3129 = vpack.c.b16 %v3071, %v3070
        %v3130 = vpack.c.b16 %v3073, %v3072
        %v3131 = vpack.c.b16 %v3075, %v3074
        %v3132 = vpack.c.b16 %v3077, %v3076
        %v3133 = vpack.c.b16 %v3079, %v3078
        %v3134 = vpack.c.b16 %v3081, %v3080
        %v3135 = vpack.c.b16 %v3083, %v3082
        %v3136 = vpack.c.b16 %v3085, %v3084
        %v3137 = vpack.c.b16 %v3087, %v3086
        %v3138 = vpack.c.b16 %v3089, %v3088
        %v3139 = vpack.c.b16 %v3091, %v3090
        %v3140 = vpack.c.b16 %v3093, %v3092
        %v3141 = vpack.c.b16 %v3095, %v3094
        %v3142 = vpack.c.b16 %v3097, %v3096
        %v3143 = vpack.c.b16 %v3099, %v3098
        %v3144 = vpack.c.b16 %v3101, %v3100
        %v3145 = vpack.c.b16 %v3103, %v3102
        %v3146 = vpack.c.b16 %v3105, %v3104
        %v3147 = vpack.c.b16 %v3107, %v3106
        %v3148 = vpack.c.b16 %v3109, %v3108
        %v3149 = vpack.c.b16 %v3111, %v3110
        %v3150 = vpack.c.b16 %v3113, %v3112
        %v3151 = vpack.c.b16 %v3115, %v3114
        %v3153 = vsel %vm712, %v3116, 0
        %v3156 = vsel %vm712, %v3117, 0
        %v3159 = vsel %vm712, %v3118, 0
        %v3162 = vsel %vm712, %v3119, 0
        %v3165 = vsel %vm712, %v3120, 0
        %v3168 = vsel %vm712, %v3121, 0
        %v3171 = vsel %vm712, %v3122, 0
        %v3174 = vsel %vm712, %v3123, 0
        %v3177 = vsel %vm712, %v3124, 0
        %v3180 = vsel %vm712, %v3125, 0
        %v3183 = vsel %vm712, %v3126, 0
        %v3186 = vsel %vm712, %v3127, 0
        %v3189 = vsel %vm712, %v3128, 0
        %v3192 = vsel %vm712, %v3129, 0
        %v3195 = vsel %vm712, %v3130, 0
        %v3198 = vsel %vm712, %v3131, 0
        %v3201 = vsel %vm712, %v3132, 0
        %v3204 = vsel %vm712, %v3133, 0
        %v3207 = vsel %vm712, %v3134, 0
        %v3210 = vsel %vm712, %v3135, 0
        %v3213 = vsel %vm712, %v3136, 0
        %v3216 = vsel %vm712, %v3137, 0
        %v3219 = vsel %vm712, %v3138, 0
        %v3222 = vsel %vm712, %v3139, 0
        %v3225 = vsel %vm712, %v3140, 0
        %v3228 = vsel %vm712, %v3141, 0
        %v3231 = vsel %vm712, %v3142, 0
        %v3234 = vsel %vm712, %v3143, 0
        %v3237 = vsel %vm712, %v3144, 0
        %v3240 = vsel %vm712, %v3145, 0
        %v3243 = vsel %vm712, %v3146, 0
        %v3246 = vsel %vm712, %v3147, 0
        %v3249 = vsel %vm712, %v3148, 0
        %v3252 = vsel %vm712, %v3149, 0
        %v3255 = vsel %vm712, %v3150, 0
        %v3258 = vsel %vm712, %v3151, 0
        %3260 = vmatpush.bf16.msra.mxu0 0
        %3261 = vmatpush.bf16.msra.mxu0 0
        %3262 = vmatpush.bf16.msra.mxu0 0
        %3263 = vmatpush.bf16.msra.mxu0 0
        %3264 = vmatpush.bf16.msra.mxu0 0
        %3265 = vmatpush.bf16.msra.mxu0 0
        %3266 = vmatpush.bf16.msra.mxu0 %v709
        %3267 = vmatpush.bf16.msra.mxu0 %v708
        %3268 = vmatmul.bf16.gmra.mxu0 %v3153
        %v3269 = vpop.f32.mrf.mxu0
        %v3270 = vadd.f32 %v518, %v3269
        %v3271 = vpop.f32.mrf.mxu0
        %v3272 = vadd.f32 %v518, %v3271
        %3273 = vmatmul.bf16.gmra.mxu0 %v3156
        %v3274 = vpop.f32.mrf.mxu0
        %v3275 = vadd.f32 %v518, %v3274
        %v3276 = vpop.f32.mrf.mxu0
        %v3277 = vadd.f32 %v518, %v3276
        %3278 = vmatmul.bf16.gmra.mxu0 %v3159
        %v3279 = vpop.f32.mrf.mxu0
        %v3280 = vadd.f32 %v518, %v3279
        %v3281 = vpop.f32.mrf.mxu0
        %v3282 = vadd.f32 %v518, %v3281
        %3283 = vmatmul.bf16.gmra.mxu0 %v3162
        %v3284 = vpop.f32.mrf.mxu0
        %v3285 = vadd.f32 %v518, %v3284
        %v3286 = vpop.f32.mrf.mxu0
        %v3287 = vadd.f32 %v518, %v3286
        %3288 = vmatmul.bf16.gmra.mxu0 %v3165
        %v3289 = vpop.f32.mrf.mxu0
        %v3290 = vadd.f32 %v518, %v3289
        %v3291 = vpop.f32.mrf.mxu0
        %v3292 = vadd.f32 %v518, %v3291
        %3293 = vmatmul.bf16.gmra.mxu0 %v3168
        %v3294 = vpop.f32.mrf.mxu0
        %v3295 = vadd.f32 %v518, %v3294
        %v3296 = vpop.f32.mrf.mxu0
        %v3297 = vadd.f32 %v518, %v3296
        %3298 = vmatmul.bf16.gmra.mxu0 %v3171
        %v3299 = vpop.f32.mrf.mxu0
        %v3300 = vadd.f32 %v518, %v3299
        %v3301 = vpop.f32.mrf.mxu0
        %v3302 = vadd.f32 %v518, %v3301
        %3303 = vmatmul.bf16.gmra.mxu0 %v3174
        %v3304 = vpop.f32.mrf.mxu0
        %v3305 = vadd.f32 %v518, %v3304
        %v3306 = vpop.f32.mrf.mxu0
        %v3307 = vadd.f32 %v518, %v3306
        %3308 = vmatmul.bf16.gmra.mxu0 %v3177
        %v3309 = vpop.f32.mrf.mxu0
        %v3310 = vadd.f32 %v518, %v3309
        %v3311 = vpop.f32.mrf.mxu0
        %v3312 = vadd.f32 %v518, %v3311
        %3313 = vmatmul.bf16.gmra.mxu0 %v3180
        %v3314 = vpop.f32.mrf.mxu0
        %v3315 = vadd.f32 %v518, %v3314
        %v3316 = vpop.f32.mrf.mxu0
        %v3317 = vadd.f32 %v518, %v3316
        %3318 = vmatmul.bf16.gmra.mxu0 %v3183
        %v3319 = vpop.f32.mrf.mxu0
        %v3320 = vadd.f32 %v518, %v3319
        %v3321 = vpop.f32.mrf.mxu0
        %v3322 = vadd.f32 %v518, %v3321
        %3323 = vmatmul.bf16.gmra.mxu0 %v3186
        %v3324 = vpop.f32.mrf.mxu0
        %v3325 = vadd.f32 %v518, %v3324
        %v3326 = vpop.f32.mrf.mxu0
        %v3327 = vadd.f32 %v518, %v3326
        %3328 = vmatmul.bf16.gmra.mxu0 %v3189
        %v3329 = vpop.f32.mrf.mxu0
        %v3330 = vadd.f32 %v518, %v3329
        %v3331 = vpop.f32.mrf.mxu0
        %v3332 = vadd.f32 %v518, %v3331
        %3333 = vmatmul.bf16.gmra.mxu0 %v3192
        %v3334 = vpop.f32.mrf.mxu0
        %v3335 = vadd.f32 %v518, %v3334
        %v3336 = vpop.f32.mrf.mxu0
        %v3337 = vadd.f32 %v518, %v3336
        %3338 = vmatmul.bf16.gmra.mxu0 %v3195
        %v3339 = vpop.f32.mrf.mxu0
        %v3340 = vadd.f32 %v518, %v3339
        %v3341 = vpop.f32.mrf.mxu0
        %v3342 = vadd.f32 %v518, %v3341
        %3343 = vmatmul.bf16.gmra.mxu0 %v3198
        %v3344 = vpop.f32.mrf.mxu0
        %v3345 = vadd.f32 %v518, %v3344
        %v3346 = vpop.f32.mrf.mxu0
        %v3347 = vadd.f32 %v518, %v3346
        %3348 = vmatmul.bf16.gmra.mxu0 %v3201
        %v3349 = vpop.f32.mrf.mxu0
        %v3350 = vadd.f32 %v518, %v3349
        %v3351 = vpop.f32.mrf.mxu0
        %v3352 = vadd.f32 %v518, %v3351
        %3353 = vmatmul.bf16.gmra.mxu0 %v3204
        %v3354 = vpop.f32.mrf.mxu0
        %v3355 = vadd.f32 %v518, %v3354
        %v3356 = vpop.f32.mrf.mxu0
        %v3357 = vadd.f32 %v518, %v3356
        %3358 = vmatmul.bf16.gmra.mxu0 %v3207
        %v3359 = vpop.f32.mrf.mxu0
        %v3360 = vadd.f32 %v518, %v3359
        %v3361 = vpop.f32.mrf.mxu0
        %v3362 = vadd.f32 %v518, %v3361
        %3363 = vmatmul.bf16.gmra.mxu0 %v3210
        %v3364 = vpop.f32.mrf.mxu0
        %v3365 = vadd.f32 %v518, %v3364
        %v3366 = vpop.f32.mrf.mxu0
        %v3367 = vadd.f32 %v518, %v3366
        %3368 = vmatmul.bf16.gmra.mxu0 %v3213
        %v3369 = vpop.f32.mrf.mxu0
        %v3370 = vadd.f32 %v518, %v3369
        %v3371 = vpop.f32.mrf.mxu0
        %v3372 = vadd.f32 %v518, %v3371
        %3373 = vmatmul.bf16.gmra.mxu0 %v3216
        %v3374 = vpop.f32.mrf.mxu0
        %v3375 = vadd.f32 %v518, %v3374
        %v3376 = vpop.f32.mrf.mxu0
        %v3377 = vadd.f32 %v518, %v3376
        %3378 = vmatmul.bf16.gmra.mxu0 %v3219
        %v3379 = vpop.f32.mrf.mxu0
        %v3380 = vadd.f32 %v518, %v3379
        %v3381 = vpop.f32.mrf.mxu0
        %v3382 = vadd.f32 %v518, %v3381
        %3383 = vmatmul.bf16.gmra.mxu0 %v3222
        %v3384 = vpop.f32.mrf.mxu0
        %v3385 = vadd.f32 %v518, %v3384
        %v3386 = vpop.f32.mrf.mxu0
        %v3387 = vadd.f32 %v518, %v3386
        %3388 = vmatmul.bf16.gmra.mxu0 %v3225
        %v3389 = vpop.f32.mrf.mxu0
        %v3390 = vadd.f32 %v518, %v3389
        %v3391 = vpop.f32.mrf.mxu0
        %v3392 = vadd.f32 %v518, %v3391
        %3393 = vmatmul.bf16.gmra.mxu0 %v3228
        %v3394 = vpop.f32.mrf.mxu0
        %v3395 = vadd.f32 %v518, %v3394
        %v3396 = vpop.f32.mrf.mxu0
        %v3397 = vadd.f32 %v518, %v3396
        %3398 = vmatmul.bf16.gmra.mxu0 %v3231
        %v3399 = vpop.f32.mrf.mxu0
        %v3400 = vadd.f32 %v518, %v3399
        %v3401 = vpop.f32.mrf.mxu0
        %v3402 = vadd.f32 %v518, %v3401
        %3403 = vmatmul.bf16.gmra.mxu0 %v3234
        %v3404 = vpop.f32.mrf.mxu0
        %v3405 = vadd.f32 %v518, %v3404
        %v3406 = vpop.f32.mrf.mxu0
        %v3407 = vadd.f32 %v518, %v3406
        %3408 = vmatmul.bf16.gmra.mxu0 %v3237
        %v3409 = vpop.f32.mrf.mxu0
        %v3410 = vadd.f32 %v518, %v3409
        %v3411 = vpop.f32.mrf.mxu0
        %v3412 = vadd.f32 %v518, %v3411
        %3413 = vmatmul.bf16.gmra.mxu0 %v3240
        %v3414 = vpop.f32.mrf.mxu0
        %v3415 = vadd.f32 %v518, %v3414
        %v3416 = vpop.f32.mrf.mxu0
        %v3417 = vadd.f32 %v518, %v3416
        %3418 = vmatmul.bf16.gmra.mxu0 %v3243
        %v3419 = vpop.f32.mrf.mxu0
        %v3420 = vadd.f32 %v518, %v3419
        %v3421 = vpop.f32.mrf.mxu0
        %v3422 = vadd.f32 %v518, %v3421
        %3423 = vmatmul.bf16.gmra.mxu0 %v3246
        %v3424 = vpop.f32.mrf.mxu0
        %v3425 = vadd.f32 %v518, %v3424
        %v3426 = vpop.f32.mrf.mxu0
        %v3427 = vadd.f32 %v518, %v3426
        %3428 = vmatmul.bf16.gmra.mxu0 %v3249
        %v3429 = vpop.f32.mrf.mxu0
        %v3430 = vadd.f32 %v518, %v3429
        %v3431 = vpop.f32.mrf.mxu0
        %v3432 = vadd.f32 %v518, %v3431
        %3433 = vmatmul.bf16.gmra.mxu0 %v3252
        %v3434 = vpop.f32.mrf.mxu0
        %v3435 = vadd.f32 %v518, %v3434
        %v3436 = vpop.f32.mrf.mxu0
        %v3437 = vadd.f32 %v518, %v3436
        %3438 = vmatmul.bf16.gmra.mxu0 %v3255
        %v3439 = vpop.f32.mrf.mxu0
        %v3440 = vadd.f32 %v518, %v3439
        %v3441 = vpop.f32.mrf.mxu0
        %v3442 = vadd.f32 %v518, %v3441
        %3443 = vmatmul.bf16.gmra.mxu0 %v3258
        %v3444 = vpop.f32.mrf.mxu0
        %v3445 = vadd.f32 %v518, %v3444
        %v3446 = vpop.f32.mrf.mxu0
        %v3447 = vadd.f32 %v518, %v3446
        %3448 = vdwg.mxu0
        %v3449 = vmax.f32 %v3270, 0.0
        %v3450 = vmax.f32 %v3272, 0.0
        %v3451 = vmax.f32 %v3275, 0.0
        %v3452 = vmax.f32 %v3277, 0.0
        %v3453 = vmax.f32 %v3280, 0.0
        %v3454 = vmax.f32 %v3282, 0.0
        %v3455 = vmax.f32 %v3285, 0.0
        %v3456 = vmax.f32 %v3287, 0.0
        %v3457 = vmax.f32 %v3290, 0.0
        %v3458 = vmax.f32 %v3292, 0.0
        %v3459 = vmax.f32 %v3295, 0.0
        %v3460 = vmax.f32 %v3297, 0.0
        %v3461 = vmax.f32 %v3300, 0.0
        %v3462 = vmax.f32 %v3302, 0.0
        %v3463 = vmax.f32 %v3305, 0.0
        %v3464 = vmax.f32 %v3307, 0.0
        %v3465 = vmax.f32 %v3310, 0.0
        %v3466 = vmax.f32 %v3312, 0.0
        %v3467 = vmax.f32 %v3315, 0.0
        %v3468 = vmax.f32 %v3317, 0.0
        %v3469 = vmax.f32 %v3320, 0.0
        %v3470 = vmax.f32 %v3322, 0.0
        %v3471 = vmax.f32 %v3325, 0.0
        %v3472 = vmax.f32 %v3327, 0.0
        %v3473 = vmax.f32 %v3330, 0.0
        %v3474 = vmax.f32 %v3332, 0.0
        %v3475 = vmax.f32 %v3335, 0.0
        %v3476 = vmax.f32 %v3337, 0.0
        %v3477 = vmax.f32 %v3340, 0.0
        %v3478 = vmax.f32 %v3342, 0.0
        %v3479 = vmax.f32 %v3345, 0.0
        %v3480 = vmax.f32 %v3347, 0.0
        %v3481 = vmax.f32 %v3350, 0.0
        %v3482 = vmax.f32 %v3352, 0.0
        %v3483 = vmax.f32 %v3355, 0.0
        %v3484 = vmax.f32 %v3357, 0.0
        %v3485 = vmax.f32 %v3360, 0.0
        %v3486 = vmax.f32 %v3362, 0.0
        %v3487 = vmax.f32 %v3365, 0.0
        %v3488 = vmax.f32 %v3367, 0.0
        %v3489 = vmax.f32 %v3370, 0.0
        %v3490 = vmax.f32 %v3372, 0.0
        %v3491 = vmax.f32 %v3375, 0.0
        %v3492 = vmax.f32 %v3377, 0.0
        %v3493 = vmax.f32 %v3380, 0.0
        %v3494 = vmax.f32 %v3382, 0.0
        %v3495 = vmax.f32 %v3385, 0.0
        %v3496 = vmax.f32 %v3387, 0.0
        %v3497 = vmax.f32 %v3390, 0.0
        %v3498 = vmax.f32 %v3392, 0.0
        %v3499 = vmax.f32 %v3395, 0.0
        %v3500 = vmax.f32 %v3397, 0.0
        %v3501 = vmax.f32 %v3400, 0.0
        %v3502 = vmax.f32 %v3402, 0.0
        %v3503 = vmax.f32 %v3405, 0.0
        %v3504 = vmax.f32 %v3407, 0.0
        %v3505 = vmax.f32 %v3410, 0.0
        %v3506 = vmax.f32 %v3412, 0.0
        %v3507 = vmax.f32 %v3415, 0.0
        %v3508 = vmax.f32 %v3417, 0.0
        %v3509 = vmax.f32 %v3420, 0.0
        %v3510 = vmax.f32 %v3422, 0.0
        %v3511 = vmax.f32 %v3425, 0.0
        %v3512 = vmax.f32 %v3427, 0.0
        %v3513 = vmax.f32 %v3430, 0.0
        %v3514 = vmax.f32 %v3432, 0.0
        %v3515 = vmax.f32 %v3435, 0.0
        %v3516 = vmax.f32 %v3437, 0.0
        %v3517 = vmax.f32 %v3440, 0.0
        %v3518 = vmax.f32 %v3442, 0.0
        %v3519 = vmax.f32 %v3445, 0.0
        %v3520 = vmax.f32 %v3447, 0.0
        %v3521 = vpack.c.bf16 %v3449, %v3449
        %v3522 = vpack.c.bf16 %v3450, %v3450
        %v3523 = vpack.c.bf16 %v3451, %v3451
        %v3524 = vpack.c.bf16 %v3452, %v3452
        %v3525 = vpack.c.bf16 %v3453, %v3453
        %v3526 = vpack.c.bf16 %v3454, %v3454
        %v3527 = vpack.c.bf16 %v3455, %v3455
        %v3528 = vpack.c.bf16 %v3456, %v3456
        %v3529 = vpack.c.bf16 %v3457, %v3457
        %v3530 = vpack.c.bf16 %v3458, %v3458
        %v3531 = vpack.c.bf16 %v3459, %v3459
        %v3532 = vpack.c.bf16 %v3460, %v3460
        %v3533 = vpack.c.bf16 %v3461, %v3461
        %v3534 = vpack.c.bf16 %v3462, %v3462
        %v3535 = vpack.c.bf16 %v3463, %v3463
        %v3536 = vpack.c.bf16 %v3464, %v3464
        %v3537 = vpack.c.bf16 %v3465, %v3465
        %v3538 = vpack.c.bf16 %v3466, %v3466
        %v3539 = vpack.c.bf16 %v3467, %v3467
        %v3540 = vpack.c.bf16 %v3468, %v3468
        %v3541 = vpack.c.bf16 %v3469, %v3469
        %v3542 = vpack.c.bf16 %v3470, %v3470
        %v3543 = vpack.c.bf16 %v3471, %v3471
        %v3544 = vpack.c.bf16 %v3472, %v3472
        %v3545 = vpack.c.bf16 %v3473, %v3473
        %v3546 = vpack.c.bf16 %v3474, %v3474
        %v3547 = vpack.c.bf16 %v3475, %v3475
        %v3548 = vpack.c.bf16 %v3476, %v3476
        %v3549 = vpack.c.bf16 %v3477, %v3477
        %v3550 = vpack.c.bf16 %v3478, %v3478
        %v3551 = vpack.c.bf16 %v3479, %v3479
        %v3552 = vpack.c.bf16 %v3480, %v3480
        %v3553 = vpack.c.bf16 %v3481, %v3481
        %v3554 = vpack.c.bf16 %v3482, %v3482
        %v3555 = vpack.c.bf16 %v3483, %v3483
        %v3556 = vpack.c.bf16 %v3484, %v3484
        %v3557 = vpack.c.bf16 %v3485, %v3485
        %v3558 = vpack.c.bf16 %v3486, %v3486
        %v3559 = vpack.c.bf16 %v3487, %v3487
        %v3560 = vpack.c.bf16 %v3488, %v3488
        %v3561 = vpack.c.bf16 %v3489, %v3489
        %v3562 = vpack.c.bf16 %v3490, %v3490
        %v3563 = vpack.c.bf16 %v3491, %v3491
        %v3564 = vpack.c.bf16 %v3492, %v3492
        %v3565 = vpack.c.bf16 %v3493, %v3493
        %v3566 = vpack.c.bf16 %v3494, %v3494
        %v3567 = vpack.c.bf16 %v3495, %v3495
        %v3568 = vpack.c.bf16 %v3496, %v3496
        %v3569 = vpack.c.bf16 %v3497, %v3497
        %v3570 = vpack.c.bf16 %v3498, %v3498
        %v3571 = vpack.c.bf16 %v3499, %v3499
        %v3572 = vpack.c.bf16 %v3500, %v3500
        %v3573 = vpack.c.bf16 %v3501, %v3501
        %v3574 = vpack.c.bf16 %v3502, %v3502
        %v3575 = vpack.c.bf16 %v3503, %v3503
        %v3576 = vpack.c.bf16 %v3504, %v3504
        %v3577 = vpack.c.bf16 %v3505, %v3505
        %v3578 = vpack.c.bf16 %v3506, %v3506
        %v3579 = vpack.c.bf16 %v3507, %v3507
        %v3580 = vpack.c.bf16 %v3508, %v3508
        %v3581 = vpack.c.bf16 %v3509, %v3509
        %v3582 = vpack.c.bf16 %v3510, %v3510
        %v3583 = vpack.c.bf16 %v3511, %v3511
        %v3584 = vpack.c.bf16 %v3512, %v3512
        %v3585 = vpack.c.bf16 %v3513, %v3513
        %v3586 = vpack.c.bf16 %v3514, %v3514
        %v3587 = vpack.c.bf16 %v3515, %v3515
        %v3588 = vpack.c.bf16 %v3516, %v3516
        %v3589 = vpack.c.bf16 %v3517, %v3517
        %v3590 = vpack.c.bf16 %v3518, %v3518
        %v3591 = vpack.c.bf16 %v3519, %v3519
        %v3592 = vpack.c.bf16 %v3520, %v3520
        %v3593 = vunpack.c.l.bf16 %v2900
        %v3594 = vunpack.c.l.bf16 %v2901
        %v3595 = vunpack.c.l.bf16 %v2902
        %v3596 = vunpack.c.l.bf16 %v2903
        %v3597 = vunpack.c.l.bf16 %v2904
        %v3598 = vunpack.c.l.bf16 %v2905
        %v3599 = vunpack.c.l.bf16 %v2906
        %v3600 = vunpack.c.l.bf16 %v2907
        %v3601 = vunpack.c.l.bf16 %v2908
        %v3602 = vunpack.c.l.bf16 %v2909
        %v3603 = vunpack.c.l.bf16 %v2910
        %v3604 = vunpack.c.l.bf16 %v2911
        %v3605 = vunpack.c.l.bf16 %v2912
        %v3606 = vunpack.c.l.bf16 %v2913
        %v3607 = vunpack.c.l.bf16 %v2914
        %v3608 = vunpack.c.l.bf16 %v2915
        %v3609 = vunpack.c.l.bf16 %v2916
        %v3610 = vunpack.c.l.bf16 %v2917
        %v3611 = vunpack.c.l.bf16 %v2918
        %v3612 = vunpack.c.l.bf16 %v2919
        %v3613 = vunpack.c.l.bf16 %v2920
        %v3614 = vunpack.c.l.bf16 %v2921
        %v3615 = vunpack.c.l.bf16 %v2922
        %v3616 = vunpack.c.l.bf16 %v2923
        %v3617 = vunpack.c.l.bf16 %v2924
        %v3618 = vunpack.c.l.bf16 %v2925
        %v3619 = vunpack.c.l.bf16 %v2926
        %v3620 = vunpack.c.l.bf16 %v2927
        %v3621 = vunpack.c.l.bf16 %v2928
        %v3622 = vunpack.c.l.bf16 %v2929
        %v3623 = vunpack.c.l.bf16 %v2930
        %v3624 = vunpack.c.l.bf16 %v2931
        %v3625 = vunpack.c.l.bf16 %v2932
        %v3626 = vunpack.c.l.bf16 %v2933
        %v3627 = vunpack.c.l.bf16 %v2934
        %v3628 = vunpack.c.l.bf16 %v2935
        %v3629 = vunpack.c.l.bf16 %v2936
        %v3630 = vunpack.c.l.bf16 %v2937
        %v3631 = vunpack.c.l.bf16 %v2938
        %v3632 = vunpack.c.l.bf16 %v2939
        %v3633 = vunpack.c.l.bf16 %v2940
        %v3634 = vunpack.c.l.bf16 %v2941
        %v3635 = vunpack.c.l.bf16 %v2942
        %v3636 = vunpack.c.l.bf16 %v2943
        %v3637 = vunpack.c.l.bf16 %v2944
        %v3638 = vunpack.c.l.bf16 %v2945
        %v3639 = vunpack.c.l.bf16 %v2946
        %v3640 = vunpack.c.l.bf16 %v2947
        %v3641 = vunpack.c.l.bf16 %v2948
        %v3642 = vunpack.c.l.bf16 %v2949
        %v3643 = vunpack.c.l.bf16 %v2950
        %v3644 = vunpack.c.l.bf16 %v2951
        %v3645 = vunpack.c.l.bf16 %v2952
        %v3646 = vunpack.c.l.bf16 %v2953
        %v3647 = vunpack.c.l.bf16 %v2954
        %v3648 = vunpack.c.l.bf16 %v2955
        %v3649 = vunpack.c.l.bf16 %v2956
        %v3650 = vunpack.c.l.bf16 %v2957
        %v3651 = vunpack.c.l.bf16 %v2958
        %v3652 = vunpack.c.l.bf16 %v2959
        %v3653 = vunpack.c.l.bf16 %v2960
        %v3654 = vunpack.c.l.bf16 %v2961
        %v3655 = vunpack.c.l.bf16 %v2962
        %v3656 = vunpack.c.l.bf16 %v2963
        %v3657 = vunpack.c.l.bf16 %v2964
        %v3658 = vunpack.c.l.bf16 %v2965
        %v3659 = vunpack.c.l.bf16 %v2966
        %v3660 = vunpack.c.l.bf16 %v2967
        %v3661 = vunpack.c.l.bf16 %v2968
        %v3662 = vunpack.c.l.bf16 %v2969
        %v3663 = vunpack.c.l.bf16 %v2970
        %v3664 = vunpack.c.l.bf16 %v2971
        %v3665 = vunpack.c.l.bf16 %v3521
        %v3666 = vunpack.c.l.bf16 %v3522
        %v3667 = vunpack.c.l.bf16 %v3523
        %v3668 = vunpack.c.l.bf16 %v3524
        %v3669 = vunpack.c.l.bf16 %v3525
        %v3670 = vunpack.c.l.bf16 %v3526
        %v3671 = vunpack.c.l.bf16 %v3527
        %v3672 = vunpack.c.l.bf16 %v3528
        %v3673 = vunpack.c.l.bf16 %v3529
        %v3674 = vunpack.c.l.bf16 %v3530
        %v3675 = vunpack.c.l.bf16 %v3531
        %v3676 = vunpack.c.l.bf16 %v3532
        %v3677 = vunpack.c.l.bf16 %v3533
        %v3678 = vunpack.c.l.bf16 %v3534
        %v3679 = vunpack.c.l.bf16 %v3535
        %v3680 = vunpack.c.l.bf16 %v3536
        %v3681 = vunpack.c.l.bf16 %v3537
        %v3682 = vunpack.c.l.bf16 %v3538
        %v3683 = vunpack.c.l.bf16 %v3539
        %v3684 = vunpack.c.l.bf16 %v3540
        %v3685 = vunpack.c.l.bf16 %v3541
        %v3686 = vunpack.c.l.bf16 %v3542
        %v3687 = vunpack.c.l.bf16 %v3543
        %v3688 = vunpack.c.l.bf16 %v3544
        %v3689 = vunpack.c.l.bf16 %v3545
        %v3690 = vunpack.c.l.bf16 %v3546
        %v3691 = vunpack.c.l.bf16 %v3547
        %v3692 = vunpack.c.l.bf16 %v3548
        %v3693 = vunpack.c.l.bf16 %v3549
        %v3694 = vunpack.c.l.bf16 %v3550
        %v3695 = vunpack.c.l.bf16 %v3551
        %v3696 = vunpack.c.l.bf16 %v3552
        %v3697 = vunpack.c.l.bf16 %v3553
        %v3698 = vunpack.c.l.bf16 %v3554
        %v3699 = vunpack.c.l.bf16 %v3555
        %v3700 = vunpack.c.l.bf16 %v3556
        %v3701 = vunpack.c.l.bf16 %v3557
        %v3702 = vunpack.c.l.bf16 %v3558
        %v3703 = vunpack.c.l.bf16 %v3559
        %v3704 = vunpack.c.l.bf16 %v3560
        %v3705 = vunpack.c.l.bf16 %v3561
        %v3706 = vunpack.c.l.bf16 %v3562
        %v3707 = vunpack.c.l.bf16 %v3563
        %v3708 = vunpack.c.l.bf16 %v3564
        %v3709 = vunpack.c.l.bf16 %v3565
        %v3710 = vunpack.c.l.bf16 %v3566
        %v3711 = vunpack.c.l.bf16 %v3567
        %v3712 = vunpack.c.l.bf16 %v3568
        %v3713 = vunpack.c.l.bf16 %v3569
        %v3714 = vunpack.c.l.bf16 %v3570
        %v3715 = vunpack.c.l.bf16 %v3571
        %v3716 = vunpack.c.l.bf16 %v3572
        %v3717 = vunpack.c.l.bf16 %v3573
        %v3718 = vunpack.c.l.bf16 %v3574
        %v3719 = vunpack.c.l.bf16 %v3575
        %v3720 = vunpack.c.l.bf16 %v3576
        %v3721 = vunpack.c.l.bf16 %v3577
        %v3722 = vunpack.c.l.bf16 %v3578
        %v3723 = vunpack.c.l.bf16 %v3579
        %v3724 = vunpack.c.l.bf16 %v3580
        %v3725 = vunpack.c.l.bf16 %v3581
        %v3726 = vunpack.c.l.bf16 %v3582
        %v3727 = vunpack.c.l.bf16 %v3583
        %v3728 = vunpack.c.l.bf16 %v3584
        %v3729 = vunpack.c.l.bf16 %v3585
        %v3730 = vunpack.c.l.bf16 %v3586
        %v3731 = vunpack.c.l.bf16 %v3587
        %v3732 = vunpack.c.l.bf16 %v3588
        %v3733 = vunpack.c.l.bf16 %v3589
        %v3734 = vunpack.c.l.bf16 %v3590
        %v3735 = vunpack.c.l.bf16 %v3591
        %v3736 = vunpack.c.l.bf16 %v3592
        %v3737 = vmax.f32 %v3593, %v3665
        %v3738 = vmax.f32 %v3594, %v3666
        %v3739 = vmax.f32 %v3595, %v3667
        %v3740 = vmax.f32 %v3596, %v3668
        %v3741 = vmax.f32 %v3597, %v3669
        %v3742 = vmax.f32 %v3598, %v3670
        %v3743 = vmax.f32 %v3599, %v3671
        %v3744 = vmax.f32 %v3600, %v3672
        %v3745 = vmax.f32 %v3601, %v3673
        %v3746 = vmax.f32 %v3602, %v3674
        %v3747 = vmax.f32 %v3603, %v3675
        %v3748 = vmax.f32 %v3604, %v3676
        %v3749 = vmax.f32 %v3605, %v3677
        %v3750 = vmax.f32 %v3606, %v3678
        %v3751 = vmax.f32 %v3607, %v3679
        %v3752 = vmax.f32 %v3608, %v3680
        %v3753 = vmax.f32 %v3609, %v3681
        %v3754 = vmax.f32 %v3610, %v3682
        %v3755 = vmax.f32 %v3611, %v3683
        %v3756 = vmax.f32 %v3612, %v3684
        %v3757 = vmax.f32 %v3613, %v3685
        %v3758 = vmax.f32 %v3614, %v3686
        %v3759 = vmax.f32 %v3615, %v3687
        %v3760 = vmax.f32 %v3616, %v3688
        %v3761 = vmax.f32 %v3617, %v3689
        %v3762 = vmax.f32 %v3618, %v3690
        %v3763 = vmax.f32 %v3619, %v3691
        %v3764 = vmax.f32 %v3620, %v3692
        %v3765 = vmax.f32 %v3621, %v3693
        %v3766 = vmax.f32 %v3622, %v3694
        %v3767 = vmax.f32 %v3623, %v3695
        %v3768 = vmax.f32 %v3624, %v3696
        %v3769 = vmax.f32 %v3625, %v3697
        %v3770 = vmax.f32 %v3626, %v3698
        %v3771 = vmax.f32 %v3627, %v3699
        %v3772 = vmax.f32 %v3628, %v3700
        %v3773 = vmax.f32 %v3629, %v3701
        %v3774 = vmax.f32 %v3630, %v3702
        %v3775 = vmax.f32 %v3631, %v3703
        %v3776 = vmax.f32 %v3632, %v3704
        %v3777 = vmax.f32 %v3633, %v3705
        %v3778 = vmax.f32 %v3634, %v3706
        %v3779 = vmax.f32 %v3635, %v3707
        %v3780 = vmax.f32 %v3636, %v3708
        %v3781 = vmax.f32 %v3637, %v3709
        %v3782 = vmax.f32 %v3638, %v3710
        %v3783 = vmax.f32 %v3639, %v3711
        %v3784 = vmax.f32 %v3640, %v3712
        %v3785 = vmax.f32 %v3641, %v3713
        %v3786 = vmax.f32 %v3642, %v3714
        %v3787 = vmax.f32 %v3643, %v3715
        %v3788 = vmax.f32 %v3644, %v3716
        %v3789 = vmax.f32 %v3645, %v3717
        %v3790 = vmax.f32 %v3646, %v3718
        %v3791 = vmax.f32 %v3647, %v3719
        %v3792 = vmax.f32 %v3648, %v3720
        %v3793 = vmax.f32 %v3649, %v3721
        %v3794 = vmax.f32 %v3650, %v3722
        %v3795 = vmax.f32 %v3651, %v3723
        %v3796 = vmax.f32 %v3652, %v3724
        %v3797 = vmax.f32 %v3653, %v3725
        %v3798 = vmax.f32 %v3654, %v3726
        %v3799 = vmax.f32 %v3655, %v3727
        %v3800 = vmax.f32 %v3656, %v3728
        %v3801 = vmax.f32 %v3657, %v3729
        %v3802 = vmax.f32 %v3658, %v3730
        %v3803 = vmax.f32 %v3659, %v3731
        %v3804 = vmax.f32 %v3660, %v3732
        %v3805 = vmax.f32 %v3661, %v3733
        %v3806 = vmax.f32 %v3662, %v3734
        %v3807 = vmax.f32 %v3663, %v3735
        %v3808 = vmax.f32 %v3664, %v3736
        %v3809 = vpack.c.bf16 %v3737, %v3737
        %v3810 = vpack.c.bf16 %v3738, %v3738
        %v3811 = vpack.c.bf16 %v3739, %v3739
        %v3812 = vpack.c.bf16 %v3740, %v3740
        %v3813 = vpack.c.bf16 %v3741, %v3741
        %v3814 = vpack.c.bf16 %v3742, %v3742
        %v3815 = vpack.c.bf16 %v3743, %v3743
        %v3816 = vpack.c.bf16 %v3744, %v3744
        %v3817 = vpack.c.bf16 %v3745, %v3745
        %v3818 = vpack.c.bf16 %v3746, %v3746
        %v3819 = vpack.c.bf16 %v3747, %v3747
        %v3820 = vpack.c.bf16 %v3748, %v3748
        %v3821 = vpack.c.bf16 %v3749, %v3749
        %v3822 = vpack.c.bf16 %v3750, %v3750
        %v3823 = vpack.c.bf16 %v3751, %v3751
        %v3824 = vpack.c.bf16 %v3752, %v3752
        %v3825 = vpack.c.bf16 %v3753, %v3753
        %v3826 = vpack.c.bf16 %v3754, %v3754
        %v3827 = vpack.c.bf16 %v3755, %v3755
        %v3828 = vpack.c.bf16 %v3756, %v3756
        %v3829 = vpack.c.bf16 %v3757, %v3757
        %v3830 = vpack.c.bf16 %v3758, %v3758
        %v3831 = vpack.c.bf16 %v3759, %v3759
        %v3832 = vpack.c.bf16 %v3760, %v3760
        %v3833 = vpack.c.bf16 %v3761, %v3761
        %v3834 = vpack.c.bf16 %v3762, %v3762
        %v3835 = vpack.c.bf16 %v3763, %v3763
        %v3836 = vpack.c.bf16 %v3764, %v3764
        %v3837 = vpack.c.bf16 %v3765, %v3765
        %v3838 = vpack.c.bf16 %v3766, %v3766
        %v3839 = vpack.c.bf16 %v3767, %v3767
        %v3840 = vpack.c.bf16 %v3768, %v3768
        %v3841 = vpack.c.bf16 %v3769, %v3769
        %v3842 = vpack.c.bf16 %v3770, %v3770
        %v3843 = vpack.c.bf16 %v3771, %v3771
        %v3844 = vpack.c.bf16 %v3772, %v3772
        %v3845 = vpack.c.bf16 %v3773, %v3773
        %v3846 = vpack.c.bf16 %v3774, %v3774
        %v3847 = vpack.c.bf16 %v3775, %v3775
        %v3848 = vpack.c.bf16 %v3776, %v3776
        %v3849 = vpack.c.bf16 %v3777, %v3777
        %v3850 = vpack.c.bf16 %v3778, %v3778
        %v3851 = vpack.c.bf16 %v3779, %v3779
        %v3852 = vpack.c.bf16 %v3780, %v3780
        %v3853 = vpack.c.bf16 %v3781, %v3781
        %v3854 = vpack.c.bf16 %v3782, %v3782
        %v3855 = vpack.c.bf16 %v3783, %v3783
        %v3856 = vpack.c.bf16 %v3784, %v3784
        %v3857 = vpack.c.bf16 %v3785, %v3785
        %v3858 = vpack.c.bf16 %v3786, %v3786
        %v3859 = vpack.c.bf16 %v3787, %v3787
        %v3860 = vpack.c.bf16 %v3788, %v3788
        %v3861 = vpack.c.bf16 %v3789, %v3789
        %v3862 = vpack.c.bf16 %v3790, %v3790
        %v3863 = vpack.c.bf16 %v3791, %v3791
        %v3864 = vpack.c.bf16 %v3792, %v3792
        %v3865 = vpack.c.bf16 %v3793, %v3793
        %v3866 = vpack.c.bf16 %v3794, %v3794
        %v3867 = vpack.c.bf16 %v3795, %v3795
        %v3868 = vpack.c.bf16 %v3796, %v3796
        %v3869 = vpack.c.bf16 %v3797, %v3797
        %v3870 = vpack.c.bf16 %v3798, %v3798
        %v3871 = vpack.c.bf16 %v3799, %v3799
        %v3872 = vpack.c.bf16 %v3800, %v3800
        %v3873 = vpack.c.bf16 %v3801, %v3801
        %v3874 = vpack.c.bf16 %v3802, %v3802
        %v3875 = vpack.c.bf16 %v3803, %v3803
        %v3876 = vpack.c.bf16 %v3804, %v3804
        %v3877 = vpack.c.bf16 %v3805, %v3805
        %v3878 = vpack.c.bf16 %v3806, %v3806
        %v3879 = vpack.c.bf16 %v3807, %v3807
        %v3880 = vpack.c.bf16 %v3808, %v3808
        %3881 = vst [vmem:[#allocation2] sm:$0xf] %v3809
        %3882 = vst [vmem:[#allocation2 + $0x4] sm:$0xf] %v3810
        %3883 = vst [vmem:[#allocation2 + $0x8] sm:$0xf] %v3811
        %3884 = vst [vmem:[#allocation2 + $0xc] sm:$0xf] %v3812
        %3885 = vst [vmem:[#allocation2 + $0x10] sm:$0xf] %v3813
        %3886 = vst [vmem:[#allocation2 + $0x14] sm:$0xf] %v3814
        %3887 = vst [vmem:[#allocation2 + $0x18] sm:$0xf] %v3815
        %3888 = vst [vmem:[#allocation2 + $0x1c] sm:$0xf] %v3816
        %3889 = vst [vmem:[#allocation2 + $0x20] sm:$0xf] %v3817
        %3890 = vst [vmem:[#allocation2 + $0x24] sm:$0xf] %v3818
        %3891 = vst [vmem:[#allocation2 + $0x28] sm:$0xf] %v3819
        %3892 = vst [vmem:[#allocation2 + $0x2c] sm:$0xf] %v3820
        %3893 = vst [vmem:[#allocation2 + $0x30] sm:$0xf] %v3821
        %3894 = vst [vmem:[#allocation2 + $0x34] sm:$0xf] %v3822
        %3895 = vst [vmem:[#allocation2 + $0x38] sm:$0xf] %v3823
        %3896 = vst [vmem:[#allocation2 + $0x3c] sm:$0xf] %v3824
        %3897 = vst [vmem:[#allocation2 + $0x40] sm:$0xf] %v3825
        %3898 = vst [vmem:[#allocation2 + $0x44] sm:$0xf] %v3826
        %3899 = vst [vmem:[#allocation2 + $0x48] sm:$0xf] %v3827
        %3900 = vst [vmem:[#allocation2 + $0x4c] sm:$0xf] %v3828
        %3901 = vst [vmem:[#allocation2 + $0x50] sm:$0xf] %v3829
        %3902 = vst [vmem:[#allocation2 + $0x54] sm:$0xf] %v3830
        %3903 = vst [vmem:[#allocation2 + $0x58] sm:$0xf] %v3831
        %3904 = vst [vmem:[#allocation2 + $0x5c] sm:$0xf] %v3832
        %3905 = vst [vmem:[#allocation2 + $0x60] sm:$0xf] %v3833
        %3906 = vst [vmem:[#allocation2 + $0x64] sm:$0xf] %v3834
        %3907 = vst [vmem:[#allocation2 + $0x68] sm:$0xf] %v3835
        %3908 = vst [vmem:[#allocation2 + $0x6c] sm:$0xf] %v3836
        %3909 = vst [vmem:[#allocation2 + $0x70] sm:$0xf] %v3837
        %3910 = vst [vmem:[#allocation2 + $0x74] sm:$0xf] %v3838
        %3911 = vst [vmem:[#allocation2 + $0x78] sm:$0xf] %v3839
        %3912 = vst [vmem:[#allocation2 + $0x7c] sm:$0xf] %v3840
        %3913 = vst [vmem:[#allocation2 + $0x80] sm:$0xf] %v3841
        %3914 = vst [vmem:[#allocation2 + $0x84] sm:$0xf] %v3842
        %3915 = vst [vmem:[#allocation2 + $0x88] sm:$0xf] %v3843
        %3916 = vst [vmem:[#allocation2 + $0x8c] sm:$0xf] %v3844
        %3917 = vst [vmem:[#allocation2 + $0x90] sm:$0xf] %v3845
        %3918 = vst [vmem:[#allocation2 + $0x94] sm:$0xf] %v3846
        %3919 = vst [vmem:[#allocation2 + $0x98] sm:$0xf] %v3847
        %3920 = vst [vmem:[#allocation2 + $0x9c] sm:$0xf] %v3848
        %3921 = vst [vmem:[#allocation2 + $0xa0] sm:$0xf] %v3849
        %3922 = vst [vmem:[#allocation2 + $0xa4] sm:$0xf] %v3850
        %3923 = vst [vmem:[#allocation2 + $0xa8] sm:$0xf] %v3851
        %3924 = vst [vmem:[#allocation2 + $0xac] sm:$0xf] %v3852
        %3925 = vst [vmem:[#allocation2 + $0xb0] sm:$0xf] %v3853
        %3926 = vst [vmem:[#allocation2 + $0xb4] sm:$0xf] %v3854
        %3927 = vst [vmem:[#allocation2 + $0xb8] sm:$0xf] %v3855
        %3928 = vst [vmem:[#allocation2 + $0xbc] sm:$0xf] %v3856
        %3929 = vst [vmem:[#allocation2 + $0xc0] sm:$0xf] %v3857
        %3930 = vst [vmem:[#allocation2 + $0xc4] sm:$0xf] %v3858
        %3931 = vst [vmem:[#allocation2 + $0xc8] sm:$0xf] %v3859
        %3932 = vst [vmem:[#allocation2 + $0xcc] sm:$0xf] %v3860
        %3933 = vst [vmem:[#allocation2 + $0xd0] sm:$0xf] %v3861
        %3934 = vst [vmem:[#allocation2 + $0xd4] sm:$0xf] %v3862
        %3935 = vst [vmem:[#allocation2 + $0xd8] sm:$0xf] %v3863
        %3936 = vst [vmem:[#allocation2 + $0xdc] sm:$0xf] %v3864
        %3937 = vst [vmem:[#allocation2 + $0xe0] sm:$0xf] %v3865
        %3938 = vst [vmem:[#allocation2 + $0xe4] sm:$0xf] %v3866
        %3939 = vst [vmem:[#allocation2 + $0xe8] sm:$0xf] %v3867
        %3940 = vst [vmem:[#allocation2 + $0xec] sm:$0xf] %v3868
        %3941 = vst [vmem:[#allocation2 + $0xf0] sm:$0xf] %v3869
        %3942 = vst [vmem:[#allocation2 + $0xf4] sm:$0xf] %v3870
        %3943 = vst [vmem:[#allocation2 + $0xf8] sm:$0xf] %v3871
        %3944 = vst [vmem:[#allocation2 + $0xfc] sm:$0xf] %v3872
        %3945 = vst [vmem:[#allocation2 + $0x100] sm:$0xf] %v3873
        %3946 = vst [vmem:[#allocation2 + $0x104] sm:$0xf] %v3874
        %3947 = vst [vmem:[#allocation2 + $0x108] sm:$0xf] %v3875
        %3948 = vst [vmem:[#allocation2 + $0x10c] sm:$0xf] %v3876
        %3949 = vst [vmem:[#allocation2 + $0x110] sm:$0xf] %v3877
        %3950 = vst [vmem:[#allocation2 + $0x114] sm:$0xf] %v3878
        %3951 = vst [vmem:[#allocation2 + $0x118] sm:$0xf] %v3879
        %3952 = vst [vmem:[#allocation2 + $0x11c] sm:$0xf] %v3880
        %v3953 = vld [vmem:[%s3] sm:$0xf]
        %v3954 = vld [vmem:[%s3 + $0x4] sm:$0xf]
        %v3955 = vld [vmem:[%s3 + $0x8] sm:$0xf]
        %v3956 = vld [vmem:[%s3 + $0xc] sm:$0xf]
        %v3957 = vld [vmem:[%s3 + $0x10] sm:$0xf]
        %v3958 = vld [vmem:[%s3 + $0x14] sm:$0xf]
        %v3959 = vld [vmem:[%s3 + $0x18] sm:$0xf]
        %v3960 = vld [vmem:[%s3 + $0x1c] sm:$0xf]
        %v3961 = vld [vmem:[%s3 + $0x20] sm:$0xf]
        %v3962 = vld [vmem:[%s3 + $0x24] sm:$0xf]
        %v3963 = vld [vmem:[%s3 + $0x28] sm:$0xf]
        %v3964 = vld [vmem:[%s3 + $0x2c] sm:$0xf]
        %v3965 = vld [vmem:[%s3 + $0x30] sm:$0xf]
        %v3966 = vld [vmem:[%s3 + $0x34] sm:$0xf]
        %v3967 = vld [vmem:[%s3 + $0x38] sm:$0xf]
        %v3968 = vld [vmem:[%s3 + $0x3c] sm:$0xf]
        %v3969 = vld [vmem:[%s3 + $0x40] sm:$0xf]
        %v3970 = vld [vmem:[%s3 + $0x44] sm:$0xf]
        %v3971 = vld [vmem:[%s3 + $0x48] sm:$0xf]
        %v3972 = vld [vmem:[%s3 + $0x4c] sm:$0xf]
        %v3973 = vld [vmem:[%s3 + $0x50] sm:$0xf]
        %v3974 = vld [vmem:[%s3 + $0x54] sm:$0xf]
        %v3975 = vld [vmem:[%s3 + $0x58] sm:$0xf]
        %v3976 = vld [vmem:[%s3 + $0x5c] sm:$0xf]
        %v3977 = vld [vmem:[%s3 + $0x60] sm:$0xf]
        %v3978 = vld [vmem:[%s3 + $0x64] sm:$0xf]
        %v3979 = vld [vmem:[%s3 + $0x68] sm:$0xf]
        %v3980 = vld [vmem:[%s3 + $0x6c] sm:$0xf]
        %v3981 = vld [vmem:[%s3 + $0x70] sm:$0xf]
        %v3982 = vld [vmem:[%s3 + $0x74] sm:$0xf]
        %v3983 = vld [vmem:[%s3 + $0x78] sm:$0xf]
        %v3984 = vld [vmem:[%s3 + $0x7c] sm:$0xf]
        %v3985 = vld [vmem:[%s3 + $0x80] sm:$0xf]
        %v3986 = vld [vmem:[%s3 + $0x84] sm:$0xf]
        %v3987 = vld [vmem:[%s3 + $0x88] sm:$0xf]
        %v3988 = vld [vmem:[%s3 + $0x8c] sm:$0xf]
        %v3989 = vld [vmem:[%s3 + $0x90] sm:$0xf]
        %v3990 = vld [vmem:[%s3 + $0x94] sm:$0xf]
        %v3991 = vld [vmem:[%s3 + $0x98] sm:$0xf]
        %v3992 = vld [vmem:[%s3 + $0x9c] sm:$0xf]
        %v3993 = vld [vmem:[%s3 + $0xa0] sm:$0xf]
        %v3994 = vld [vmem:[%s3 + $0xa4] sm:$0xf]
        %v3995 = vld [vmem:[%s3 + $0xa8] sm:$0xf]
        %v3996 = vld [vmem:[%s3 + $0xac] sm:$0xf]
        %v3997 = vld [vmem:[%s3 + $0xb0] sm:$0xf]
        %v3998 = vld [vmem:[%s3 + $0xb4] sm:$0xf]
        %v3999 = vld [vmem:[%s3 + $0xb8] sm:$0xf]
        %v4000 = vld [vmem:[%s3 + $0xbc] sm:$0xf]
        %v4001 = vld [vmem:[%s3 + $0xc0] sm:$0xf]
        %v4002 = vld [vmem:[%s3 + $0xc4] sm:$0xf]
        %v4003 = vld [vmem:[%s3 + $0xc8] sm:$0xf]
        %v4004 = vld [vmem:[%s3 + $0xcc] sm:$0xf]
        %v4005 = vld [vmem:[%s3 + $0xd0] sm:$0xf]
        %v4006 = vld [vmem:[%s3 + $0xd4] sm:$0xf]
        %v4007 = vld [vmem:[%s3 + $0xd8] sm:$0xf]
        %v4008 = vld [vmem:[%s3 + $0xdc] sm:$0xf]
        %v4009 = vld [vmem:[%s3 + $0xe0] sm:$0xf]
        %v4010 = vld [vmem:[%s3 + $0xe4] sm:$0xf]
        %v4011 = vld [vmem:[%s3 + $0xe8] sm:$0xf]
        %v4012 = vld [vmem:[%s3 + $0xec] sm:$0xf]
        %v4013 = vld [vmem:[%s3 + $0xf0] sm:$0xf]
        %v4014 = vld [vmem:[%s3 + $0xf4] sm:$0xf]
        %v4015 = vld [vmem:[%s3 + $0xf8] sm:$0xf]
        %v4016 = vld [vmem:[%s3 + $0xfc] sm:$0xf]
        %v4017 = vld [vmem:[%s3 + $0x100] sm:$0xf]
        %v4018 = vld [vmem:[%s3 + $0x104] sm:$0xf]
        %v4019 = vld [vmem:[%s3 + $0x108] sm:$0xf]
        %v4020 = vld [vmem:[%s3 + $0x10c] sm:$0xf]
        %v4021 = vld [vmem:[%s3 + $0x110] sm:$0xf]
        %v4022 = vld [vmem:[%s3 + $0x114] sm:$0xf]
        %v4023 = vld [vmem:[%s3 + $0x118] sm:$0xf]
        %v4024 = vld [vmem:[%s3 + $0x11c] sm:$0xf]
        %v4025 = vld [vmem:[%s3 + $0x120] sm:$0xf]
        %v4026 = vld [vmem:[%s3 + $0x124] sm:$0xf]
        %v4027 = vld [vmem:[%s3 + $0x128] sm:$0xf]
        %v4028 = vld [vmem:[%s3 + $0x12c] sm:$0xf]
        %v4029 = vld [vmem:[%s3 + $0x130] sm:$0xf]
        %v4030 = vld [vmem:[%s3 + $0x134] sm:$0xf]
        %v4031 = vld [vmem:[%s3 + $0x138] sm:$0xf]
        %v4032 = vld [vmem:[%s3 + $0x13c] sm:$0xf]
        %v4033 = vld [vmem:[%s3 + $0x140] sm:$0xf]
        %v4034 = vld [vmem:[%s3 + $0x144] sm:$0xf]
        %v4035 = vld [vmem:[%s3 + $0x148] sm:$0xf]
        %v4036 = vld [vmem:[%s3 + $0x14c] sm:$0xf]
        %v4037 = vld [vmem:[%s3 + $0x150] sm:$0xf]
        %v4038 = vld [vmem:[%s3 + $0x154] sm:$0xf]
        %v4039 = vld [vmem:[%s3 + $0x158] sm:$0xf]
        %v4040 = vld [vmem:[%s3 + $0x15c] sm:$0xf]
        %v4041 = vld [vmem:[%s3 + $0x160] sm:$0xf]
        %v4042 = vld [vmem:[%s3 + $0x164] sm:$0xf]
        %v4043 = vld [vmem:[%s3 + $0x168] sm:$0xf]
        %v4044 = vld [vmem:[%s3 + $0x16c] sm:$0xf]
        %v4045 = vld [vmem:[%s3 + $0x170] sm:$0xf]
        %v4046 = vld [vmem:[%s3 + $0x174] sm:$0xf]
        %v4047 = vld [vmem:[%s3 + $0x178] sm:$0xf]
        %v4048 = vld [vmem:[%s3 + $0x17c] sm:$0xf]
        %v4049 = vld [vmem:[%s3 + $0x180] sm:$0xf]
        %v4050 = vld [vmem:[%s3 + $0x184] sm:$0xf]
        %v4051 = vld [vmem:[%s3 + $0x188] sm:$0xf]
        %v4052 = vld [vmem:[%s3 + $0x18c] sm:$0xf]
        %v4053 = vld [vmem:[%s3 + $0x190] sm:$0xf]
        %v4054 = vld [vmem:[%s3 + $0x194] sm:$0xf]
        %v4055 = vld [vmem:[%s3 + $0x198] sm:$0xf]
        %v4056 = vld [vmem:[%s3 + $0x19c] sm:$0xf]
        %v4057 = vld [vmem:[%s3 + $0x1a0] sm:$0xf]
        %v4058 = vld [vmem:[%s3 + $0x1a4] sm:$0xf]
        %v4059 = vld [vmem:[%s3 + $0x1a8] sm:$0xf]
        %v4060 = vld [vmem:[%s3 + $0x1ac] sm:$0xf]
        %v4061 = vld [vmem:[%s3 + $0x1b0] sm:$0xf]
        %v4062 = vld [vmem:[%s3 + $0x1b4] sm:$0xf]
        %v4063 = vld [vmem:[%s3 + $0x1b8] sm:$0xf]
        %v4064 = vld [vmem:[%s3 + $0x1bc] sm:$0xf]
        %v4065 = vld [vmem:[%s3 + $0x1c0] sm:$0xf]
        %v4066 = vld [vmem:[%s3 + $0x1c4] sm:$0xf]
        %v4067 = vld [vmem:[%s3 + $0x1c8] sm:$0xf]
        %v4068 = vld [vmem:[%s3 + $0x1cc] sm:$0xf]
        %v4069 = vld [vmem:[%s3 + $0x1d0] sm:$0xf]
        %v4070 = vld [vmem:[%s3 + $0x1d4] sm:$0xf]
        %v4071 = vld [vmem:[%s3 + $0x1d8] sm:$0xf]
        %v4072 = vld [vmem:[%s3 + $0x1dc] sm:$0xf]
        %v4073 = vld [vmem:[%s3 + $0x1e0] sm:$0xf]
        %v4074 = vld [vmem:[%s3 + $0x1e4] sm:$0xf]
        %v4075 = vld [vmem:[%s3 + $0x1e8] sm:$0xf]
        %v4076 = vld [vmem:[%s3 + $0x1ec] sm:$0xf]
        %v4077 = vld [vmem:[%s3 + $0x1f0] sm:$0xf]
        %v4078 = vld [vmem:[%s3 + $0x1f4] sm:$0xf]
        %v4079 = vld [vmem:[%s3 + $0x1f8] sm:$0xf]
        %v4080 = vld [vmem:[%s3 + $0x1fc] sm:$0xf]
        %v4081 = vld [vmem:[%s3 + $0x200] sm:$0xf]
        %v4082 = vld [vmem:[%s3 + $0x204] sm:$0xf]
        %v4083 = vld [vmem:[%s3 + $0x208] sm:$0xf]
        %v4084 = vld [vmem:[%s3 + $0x20c] sm:$0xf]
        %v4085 = vld [vmem:[%s3 + $0x210] sm:$0xf]
        %v4086 = vld [vmem:[%s3 + $0x214] sm:$0xf]
        %v4087 = vld [vmem:[%s3 + $0x218] sm:$0xf]
        %v4088 = vld [vmem:[%s3 + $0x21c] sm:$0xf]
        %v4089 = vld [vmem:[%s3 + $0x220] sm:$0xf]
        %v4090 = vld [vmem:[%s3 + $0x224] sm:$0xf]
        %v4091 = vld [vmem:[%s3 + $0x228] sm:$0xf]
        %v4092 = vld [vmem:[%s3 + $0x22c] sm:$0xf]
        %v4093 = vld [vmem:[%s3 + $0x230] sm:$0xf]
        %v4094 = vld [vmem:[%s3 + $0x234] sm:$0xf]
        %v4095 = vld [vmem:[%s3 + $0x238] sm:$0xf]
        %v4096 = vld [vmem:[%s3 + $0x23c] sm:$0xf]
        %v4097 = vld [vmem:[%s3 + $0x240] sm:$0xf]
        %v4098 = vld [vmem:[%s3 + $0x244] sm:$0xf]
        %v4099 = vld [vmem:[%s3 + $0x248] sm:$0xf]
        %v4100 = vld [vmem:[%s3 + $0x24c] sm:$0xf]
        %v4101 = vld [vmem:[%s3 + $0x250] sm:$0xf]
        %v4102 = vld [vmem:[%s3 + $0x254] sm:$0xf]
        %v4103 = vld [vmem:[%s3 + $0x258] sm:$0xf]
        %v4104 = vld [vmem:[%s3 + $0x25c] sm:$0xf]
        %v4105 = vld [vmem:[%s3 + $0x260] sm:$0xf]
        %v4106 = vld [vmem:[%s3 + $0x264] sm:$0xf]
        %v4107 = vld [vmem:[%s3 + $0x268] sm:$0xf]
        %v4108 = vld [vmem:[%s3 + $0x26c] sm:$0xf]
        %v4109 = vld [vmem:[%s3 + $0x270] sm:$0xf]
        %v4110 = vld [vmem:[%s3 + $0x274] sm:$0xf]
        %v4111 = vld [vmem:[%s3 + $0x278] sm:$0xf]
        %v4112 = vld [vmem:[%s3 + $0x27c] sm:$0xf]
        %v4113 = vld [vmem:[%s3 + $0x280] sm:$0xf]
        %v4114 = vld [vmem:[%s3 + $0x284] sm:$0xf]
        %v4115 = vld [vmem:[%s3 + $0x288] sm:$0xf]
        %v4116 = vld [vmem:[%s3 + $0x28c] sm:$0xf]
        %v4117 = vld [vmem:[%s3 + $0x290] sm:$0xf]
        %v4118 = vld [vmem:[%s3 + $0x294] sm:$0xf]
        %v4119 = vld [vmem:[%s3 + $0x298] sm:$0xf]
        %v4120 = vld [vmem:[%s3 + $0x29c] sm:$0xf]
        %v4121 = vld [vmem:[%s3 + $0x2a0] sm:$0xf]
        %v4122 = vld [vmem:[%s3 + $0x2a4] sm:$0xf]
        %v4123 = vld [vmem:[%s3 + $0x2a8] sm:$0xf]
        %v4124 = vld [vmem:[%s3 + $0x2ac] sm:$0xf]
        %v4125 = vld [vmem:[%s3 + $0x2b0] sm:$0xf]
        %v4126 = vld [vmem:[%s3 + $0x2b4] sm:$0xf]
        %v4127 = vld [vmem:[%s3 + $0x2b8] sm:$0xf]
        %v4128 = vld [vmem:[%s3 + $0x2bc] sm:$0xf]
        %v4129 = vld [vmem:[%s3 + $0x2c0] sm:$0xf]
        %v4130 = vld [vmem:[%s3 + $0x2c4] sm:$0xf]
        %v4131 = vld [vmem:[%s3 + $0x2c8] sm:$0xf]
        %v4132 = vld [vmem:[%s3 + $0x2cc] sm:$0xf]
        %v4133 = vld [vmem:[%s3 + $0x2d0] sm:$0xf]
        %v4134 = vld [vmem:[%s3 + $0x2d4] sm:$0xf]
        %v4135 = vld [vmem:[%s3 + $0x2d8] sm:$0xf]
        %v4136 = vld [vmem:[%s3 + $0x2dc] sm:$0xf]
        %v4137 = vld [vmem:[%s3 + $0x2e0] sm:$0xf]
        %v4138 = vld [vmem:[%s3 + $0x2e4] sm:$0xf]
        %v4139 = vld [vmem:[%s3 + $0x2e8] sm:$0xf]
        %v4140 = vld [vmem:[%s3 + $0x2ec] sm:$0xf]
        %v4141 = vld [vmem:[%s3 + $0x2f0] sm:$0xf]
        %v4142 = vld [vmem:[%s3 + $0x2f4] sm:$0xf]
        %v4143 = vld [vmem:[%s3 + $0x2f8] sm:$0xf]
        %v4144 = vld [vmem:[%s3 + $0x2fc] sm:$0xf]
        %v4145 = vld [vmem:[%s3 + $0x300] sm:$0xf]
        %v4146 = vld [vmem:[%s3 + $0x304] sm:$0xf]
        %v4147 = vld [vmem:[%s3 + $0x308] sm:$0xf]
        %v4148 = vld [vmem:[%s3 + $0x30c] sm:$0xf]
        %v4149 = vld [vmem:[%s3 + $0x310] sm:$0xf]
        %v4150 = vld [vmem:[%s3 + $0x314] sm:$0xf]
        %v4151 = vld [vmem:[%s3 + $0x318] sm:$0xf]
        %v4152 = vld [vmem:[%s3 + $0x31c] sm:$0xf]
        %v4153 = vld [vmem:[%s3 + $0x320] sm:$0xf]
        %v4154 = vld [vmem:[%s3 + $0x324] sm:$0xf]
        %v4155 = vld [vmem:[%s3 + $0x328] sm:$0xf]
        %v4156 = vld [vmem:[%s3 + $0x32c] sm:$0xf]
        %v4157 = vld [vmem:[%s3 + $0x330] sm:$0xf]
        %v4158 = vld [vmem:[%s3 + $0x334] sm:$0xf]
        %v4159 = vld [vmem:[%s3 + $0x338] sm:$0xf]
        %v4160 = vld [vmem:[%s3 + $0x33c] sm:$0xf]
        %v4161 = vld [vmem:[%s3 + $0x340] sm:$0xf]
        %v4162 = vld [vmem:[%s3 + $0x344] sm:$0xf]
        %v4163 = vld [vmem:[%s3 + $0x348] sm:$0xf]
        %v4164 = vld [vmem:[%s3 + $0x34c] sm:$0xf]
        %v4165 = vld [vmem:[%s3 + $0x350] sm:$0xf]
        %v4166 = vld [vmem:[%s3 + $0x354] sm:$0xf]
        %v4167 = vld [vmem:[%s3 + $0x358] sm:$0xf]
        %v4168 = vld [vmem:[%s3 + $0x35c] sm:$0xf]
        %v4169 = vld [vmem:[%s3 + $0x360] sm:$0xf]
        %v4170 = vld [vmem:[%s3 + $0x364] sm:$0xf]
        %v4171 = vld [vmem:[%s3 + $0x368] sm:$0xf]
        %v4172 = vld [vmem:[%s3 + $0x36c] sm:$0xf]
        %v4173 = vld [vmem:[%s3 + $0x370] sm:$0xf]
        %v4174 = vld [vmem:[%s3 + $0x374] sm:$0xf]
        %v4175 = vld [vmem:[%s3 + $0x378] sm:$0xf]
        %v4176 = vld [vmem:[%s3 + $0x37c] sm:$0xf]
        %v4177 = vld [vmem:[%s3 + $0x380] sm:$0xf]
        %v4178 = vld [vmem:[%s3 + $0x384] sm:$0xf]
        %v4179 = vld [vmem:[%s3 + $0x388] sm:$0xf]
        %v4180 = vld [vmem:[%s3 + $0x38c] sm:$0xf]
        %v4181 = vld [vmem:[%s3 + $0x390] sm:$0xf]
        %v4182 = vld [vmem:[%s3 + $0x394] sm:$0xf]
        %v4183 = vld [vmem:[%s3 + $0x398] sm:$0xf]
        %v4184 = vld [vmem:[%s3 + $0x39c] sm:$0xf]
        %v4185 = vld [vmem:[%s3 + $0x3a0] sm:$0xf]
        %v4186 = vld [vmem:[%s3 + $0x3a4] sm:$0xf]
        %v4187 = vld [vmem:[%s3 + $0x3a8] sm:$0xf]
        %v4188 = vld [vmem:[%s3 + $0x3ac] sm:$0xf]
        %v4189 = vld [vmem:[%s3 + $0x3b0] sm:$0xf]
        %v4190 = vld [vmem:[%s3 + $0x3b4] sm:$0xf]
        %v4191 = vld [vmem:[%s3 + $0x3b8] sm:$0xf]
        %v4192 = vld [vmem:[%s3 + $0x3bc] sm:$0xf]
        %v4193 = vld [vmem:[%s3 + $0x3c0] sm:$0xf]
        %v4194 = vld [vmem:[%s3 + $0x3c4] sm:$0xf]
        %v4195 = vld [vmem:[%s3 + $0x3c8] sm:$0xf]
        %v4196 = vld [vmem:[%s3 + $0x3cc] sm:$0xf]
        %v4197 = vld [vmem:[%s3 + $0x3d0] sm:$0xf]
        %v4198 = vld [vmem:[%s3 + $0x3d4] sm:$0xf]
        %v4199 = vld [vmem:[%s3 + $0x3d8] sm:$0xf]
        %v4200 = vld [vmem:[%s3 + $0x3dc] sm:$0xf]
        %v4201 = vld [vmem:[%s3 + $0x3e0] sm:$0xf]
        %v4202 = vld [vmem:[%s3 + $0x3e4] sm:$0xf]
        %v4203 = vld [vmem:[%s3 + $0x3e8] sm:$0xf]
        %v4204 = vld [vmem:[%s3 + $0x3ec] sm:$0xf]
        %v4205 = vld [vmem:[%s3 + $0x3f0] sm:$0xf]
        %v4206 = vld [vmem:[%s3 + $0x3f4] sm:$0xf]
        %v4207 = vld [vmem:[%s3 + $0x3f8] sm:$0xf]
        %v4208 = vld [vmem:[%s3 + $0x3fc] sm:$0xf]
        %v4209 = vld [vmem:[%s3 + $0x400] sm:$0xf]
        %v4210 = vld [vmem:[%s3 + $0x404] sm:$0xf]
        %v4211 = vld [vmem:[%s3 + $0x408] sm:$0xf]
        %v4212 = vld [vmem:[%s3 + $0x40c] sm:$0xf]
        %v4213 = vld [vmem:[%s3 + $0x410] sm:$0xf]
        %v4214 = vld [vmem:[%s3 + $0x414] sm:$0xf]
        %v4215 = vld [vmem:[%s3 + $0x418] sm:$0xf]
        %v4216 = vld [vmem:[%s3 + $0x41c] sm:$0xf]
        %v4217 = vld [vmem:[%s3 + $0x420] sm:$0xf]
        %v4218 = vld [vmem:[%s3 + $0x424] sm:$0xf]
        %v4219 = vld [vmem:[%s3 + $0x428] sm:$0xf]
        %v4220 = vld [vmem:[%s3 + $0x42c] sm:$0xf]
        %v4221 = vld [vmem:[%s3 + $0x430] sm:$0xf]
        %v4222 = vld [vmem:[%s3 + $0x434] sm:$0xf]
        %v4223 = vld [vmem:[%s3 + $0x438] sm:$0xf]
        %v4224 = vld [vmem:[%s3 + $0x43c] sm:$0xf]
        %v4225 = vld [vmem:[%s3 + $0x440] sm:$0xf]
        %v4226 = vld [vmem:[%s3 + $0x444] sm:$0xf]
        %v4227 = vld [vmem:[%s3 + $0x448] sm:$0xf]
        %v4228 = vld [vmem:[%s3 + $0x44c] sm:$0xf]
        %v4229 = vld [vmem:[%s3 + $0x450] sm:$0xf]
        %v4230 = vld [vmem:[%s3 + $0x454] sm:$0xf]
        %v4231 = vld [vmem:[%s3 + $0x458] sm:$0xf]
        %v4232 = vld [vmem:[%s3 + $0x45c] sm:$0xf]
        %v4233 = vld [vmem:[%s3 + $0x460] sm:$0xf]
        %v4234 = vld [vmem:[%s3 + $0x464] sm:$0xf]
        %v4235 = vld [vmem:[%s3 + $0x468] sm:$0xf]
        %v4236 = vld [vmem:[%s3 + $0x46c] sm:$0xf]
        %v4237 = vld [vmem:[%s3 + $0x470] sm:$0xf]
        %v4238 = vld [vmem:[%s3 + $0x474] sm:$0xf]
        %v4239 = vld [vmem:[%s3 + $0x478] sm:$0xf]
        %v4240 = vld [vmem:[%s3 + $0x47c] sm:$0xf]
        %v4241 = vld [vmem:[%s3 + $0x480] sm:$0xf]
        %v4242 = vld [vmem:[%s3 + $0x484] sm:$0xf]
        %v4243 = vld [vmem:[%s3 + $0x488] sm:$0xf]
        %v4244 = vld [vmem:[%s3 + $0x48c] sm:$0xf]
        %v4245 = vld [vmem:[%s3 + $0x490] sm:$0xf]
        %v4246 = vld [vmem:[%s3 + $0x494] sm:$0xf]
        %v4247 = vld [vmem:[%s3 + $0x498] sm:$0xf]
        %v4248 = vld [vmem:[%s3 + $0x49c] sm:$0xf]
        %v4249 = vld [vmem:[%s3 + $0x4a0] sm:$0xf]
        %v4250 = vld [vmem:[%s3 + $0x4a4] sm:$0xf]
        %v4251 = vld [vmem:[%s3 + $0x4a8] sm:$0xf]
        %v4252 = vld [vmem:[%s3 + $0x4ac] sm:$0xf]
        %v4253 = vld [vmem:[%s3 + $0x4b0] sm:$0xf]
        %v4254 = vld [vmem:[%s3 + $0x4b4] sm:$0xf]
        %v4255 = vld [vmem:[%s3 + $0x4b8] sm:$0xf]
        %v4256 = vld [vmem:[%s3 + $0x4bc] sm:$0xf]
        %v4257 = vld [vmem:[%s3 + $0x4c0] sm:$0xf]
        %v4258 = vld [vmem:[%s3 + $0x4c4] sm:$0xf]
        %v4259 = vld [vmem:[%s3 + $0x4c8] sm:$0xf]
        %v4260 = vld [vmem:[%s3 + $0x4cc] sm:$0xf]
        %v4261 = vld [vmem:[%s3 + $0x4d0] sm:$0xf]
        %v4262 = vld [vmem:[%s3 + $0x4d4] sm:$0xf]
        %v4263 = vld [vmem:[%s3 + $0x4d8] sm:$0xf]
        %v4264 = vld [vmem:[%s3 + $0x4dc] sm:$0xf]
        %v4265 = vld [vmem:[%s3 + $0x4e0] sm:$0xf]
        %v4266 = vld [vmem:[%s3 + $0x4e4] sm:$0xf]
        %v4267 = vld [vmem:[%s3 + $0x4e8] sm:$0xf]
        %v4268 = vld [vmem:[%s3 + $0x4ec] sm:$0xf]
        %v4269 = vld [vmem:[%s3 + $0x4f0] sm:$0xf]
        %v4270 = vld [vmem:[%s3 + $0x4f4] sm:$0xf]
        %v4271 = vld [vmem:[%s3 + $0x4f8] sm:$0xf]
        %v4272 = vld [vmem:[%s3 + $0x4fc] sm:$0xf]
        %v4273 = vld [vmem:[%s3 + $0x500] sm:$0xf]
        %v4274 = vld [vmem:[%s3 + $0x504] sm:$0xf]
        %v4275 = vld [vmem:[%s3 + $0x508] sm:$0xf]
        %v4276 = vld [vmem:[%s3 + $0x50c] sm:$0xf]
        %v4277 = vld [vmem:[%s3 + $0x510] sm:$0xf]
        %v4278 = vld [vmem:[%s3 + $0x514] sm:$0xf]
        %v4279 = vld [vmem:[%s3 + $0x518] sm:$0xf]
        %v4280 = vld [vmem:[%s3 + $0x51c] sm:$0xf]
        %v4281 = vld [vmem:[%s3 + $0x520] sm:$0xf]
        %v4282 = vld [vmem:[%s3 + $0x524] sm:$0xf]
        %v4283 = vld [vmem:[%s3 + $0x528] sm:$0xf]
        %v4284 = vld [vmem:[%s3 + $0x52c] sm:$0xf]
        %v4285 = vld [vmem:[%s3 + $0x530] sm:$0xf]
        %v4286 = vld [vmem:[%s3 + $0x534] sm:$0xf]
        %v4287 = vld [vmem:[%s3 + $0x538] sm:$0xf]
        %v4288 = vld [vmem:[%s3 + $0x53c] sm:$0xf]
        %v4289 = vld [vmem:[%s3 + $0x540] sm:$0xf]
        %v4290 = vld [vmem:[%s3 + $0x544] sm:$0xf]
        %v4291 = vld [vmem:[%s3 + $0x548] sm:$0xf]
        %v4292 = vld [vmem:[%s3 + $0x54c] sm:$0xf]
        %v4293 = vld [vmem:[%s3 + $0x550] sm:$0xf]
        %v4294 = vld [vmem:[%s3 + $0x554] sm:$0xf]
        %v4295 = vld [vmem:[%s3 + $0x558] sm:$0xf]
        %v4296 = vld [vmem:[%s3 + $0x55c] sm:$0xf]
        %v4297 = vld [vmem:[%s3 + $0x560] sm:$0xf]
        %v4298 = vld [vmem:[%s3 + $0x564] sm:$0xf]
        %v4299 = vld [vmem:[%s3 + $0x568] sm:$0xf]
        %v4300 = vld [vmem:[%s3 + $0x56c] sm:$0xf]
        %v4301 = vld [vmem:[%s3 + $0x570] sm:$0xf]
        %v4302 = vld [vmem:[%s3 + $0x574] sm:$0xf]
        %v4303 = vld [vmem:[%s3 + $0x578] sm:$0xf]
        %v4304 = vld [vmem:[%s3 + $0x57c] sm:$0xf]
        %v4305 = vld [vmem:[%s3 + $0x580] sm:$0xf]
        %v4306 = vld [vmem:[%s3 + $0x584] sm:$0xf]
        %v4307 = vld [vmem:[%s3 + $0x588] sm:$0xf]
        %v4308 = vld [vmem:[%s3 + $0x58c] sm:$0xf]
        %v4309 = vld [vmem:[%s3 + $0x590] sm:$0xf]
        %v4310 = vld [vmem:[%s3 + $0x594] sm:$0xf]
        %v4311 = vld [vmem:[%s3 + $0x598] sm:$0xf]
        %v4312 = vld [vmem:[%s3 + $0x59c] sm:$0xf]
        %v4313 = vld [vmem:[%s3 + $0x5a0] sm:$0xf]
        %v4314 = vld [vmem:[%s3 + $0x5a4] sm:$0xf]
        %v4315 = vld [vmem:[%s3 + $0x5a8] sm:$0xf]
        %v4316 = vld [vmem:[%s3 + $0x5ac] sm:$0xf]
        %v4317 = vld [vmem:[%s3 + $0x5b0] sm:$0xf]
        %v4318 = vld [vmem:[%s3 + $0x5b4] sm:$0xf]
        %v4319 = vld [vmem:[%s3 + $0x5b8] sm:$0xf]
        %v4320 = vld [vmem:[%s3 + $0x5bc] sm:$0xf]
        %v4321 = vld [vmem:[%s3 + $0x5c0] sm:$0xf]
        %v4322 = vld [vmem:[%s3 + $0x5c4] sm:$0xf]
        %v4323 = vld [vmem:[%s3 + $0x5c8] sm:$0xf]
        %v4324 = vld [vmem:[%s3 + $0x5cc] sm:$0xf]
        %v4325 = vld [vmem:[%s3 + $0x5d0] sm:$0xf]
        %v4326 = vld [vmem:[%s3 + $0x5d4] sm:$0xf]
        %v4327 = vld [vmem:[%s3 + $0x5d8] sm:$0xf]
        %v4328 = vld [vmem:[%s3 + $0x5dc] sm:$0xf]
        %v4329 = vld [vmem:[%s3 + $0x5e0] sm:$0xf]
        %v4330 = vld [vmem:[%s3 + $0x5e4] sm:$0xf]
        %v4331 = vld [vmem:[%s3 + $0x5e8] sm:$0xf]
        %v4332 = vld [vmem:[%s3 + $0x5ec] sm:$0xf]
        %v4333 = vld [vmem:[%s3 + $0x5f0] sm:$0xf]
        %v4334 = vld [vmem:[%s3 + $0x5f4] sm:$0xf]
        %v4335 = vld [vmem:[%s3 + $0x5f8] sm:$0xf]
        %v4336 = vld [vmem:[%s3 + $0x5fc] sm:$0xf]
        %v4337 = vld [vmem:[%s3 + $0x600] sm:$0xf]
        %v4338 = vld [vmem:[%s3 + $0x604] sm:$0xf]
        %v4339 = vld [vmem:[%s3 + $0x608] sm:$0xf]
        %v4340 = vld [vmem:[%s3 + $0x60c] sm:$0xf]
        %v4341 = vld [vmem:[%s3 + $0x610] sm:$0xf]
        %v4342 = vld [vmem:[%s3 + $0x614] sm:$0xf]
        %v4343 = vld [vmem:[%s3 + $0x618] sm:$0xf]
        %v4344 = vld [vmem:[%s3 + $0x61c] sm:$0xf]
        %v4345 = vld [vmem:[%s3 + $0x620] sm:$0xf]
        %v4346 = vld [vmem:[%s3 + $0x624] sm:$0xf]
        %v4347 = vld [vmem:[%s3 + $0x628] sm:$0xf]
        %v4348 = vld [vmem:[%s3 + $0x62c] sm:$0xf]
        %v4349 = vld [vmem:[%s3 + $0x630] sm:$0xf]
        %v4350 = vld [vmem:[%s3 + $0x634] sm:$0xf]
        %v4351 = vld [vmem:[%s3 + $0x638] sm:$0xf]
        %v4352 = vld [vmem:[%s3 + $0x63c] sm:$0xf]
        %v4353 = vld [vmem:[%s4] sm:$0x1]
        %v4354 = vld [vmem:[#allocation2] sm:$0xf]
        %v4355 = vld [vmem:[#allocation2 + $0x4] sm:$0xf]
        %v4356 = vld [vmem:[#allocation2 + $0x8] sm:$0xf]
        %v4357 = vld [vmem:[#allocation2 + $0xc] sm:$0xf]
        %v4360 = vunpack.c.l.b16 %v4356
        %v4361 = vunpack.c.l.b16 %v4357
        %v4362 = vpack.c.b16 %v4361, %v4360
        %v4380 = vunpack.c.l.b16 %v3969
        %v4381 = vunpack.c.l.b16 %v3970
        %v4382 = vunpack.c.l.b16 %v3971
        %v4383 = vunpack.c.l.b16 %v3972
        %v4384 = vunpack.c.l.b16 %v3973
        %v4385 = vunpack.c.l.b16 %v3974
        %v4386 = vunpack.c.l.b16 %v3975
        %v4387 = vunpack.c.l.b16 %v3976
        %v4388 = vunpack.c.l.b16 %v3977
        %v4389 = vunpack.c.l.b16 %v3978
        %v4390 = vunpack.c.l.b16 %v3979
        %v4391 = vunpack.c.l.b16 %v3980
        %v4392 = vunpack.c.l.b16 %v3981
        %v4393 = vunpack.c.l.b16 %v3982
        %v4394 = vunpack.c.l.b16 %v3983
        %v4395 = vunpack.c.l.b16 %v3984
        %v4396 = vpack.c.b16 %v4381, %v4380
        %v4397 = vpack.c.b16 %v4383, %v4382
        %v4398 = vpack.c.b16 %v4385, %v4384
        %v4399 = vpack.c.b16 %v4387, %v4386
        %v4400 = vpack.c.b16 %v4389, %v4388
        %v4401 = vpack.c.b16 %v4391, %v4390
        %v4402 = vpack.c.b16 %v4393, %v4392
        %v4403 = vpack.c.b16 %v4395, %v4394
        %4412 = vmatpush.bf16.msra.mxu0 %v4403
        %4413 = vmatpush.bf16.msra.mxu0 %v4402
        %4414 = vmatpush.bf16.msra.mxu0 %v4401
        %4415 = vmatpush.bf16.msra.mxu0 %v4400
        %4416 = vmatpush.bf16.msra.mxu0 %v4399
        %4417 = vmatpush.bf16.msra.mxu0 %v4398
        %4418 = vmatpush.bf16.msra.mxu0 %v4397
        %4419 = vmatpush.bf16.msra.mxu0 %v4396
        %4420 = vmatmul.bf16.gmra.mxu0 %v4362
        %v4421 = vpop.f32.mrf.mxu0
        %v4422 = vadd.f32 0.0, %v4421
        %v4423 = vpop.f32.mrf.mxu0
        %v4424 = vadd.f32 0.0, %v4423
        %4425 = vdwg.mxu0
        %v4428 = vunpack.c.l.b16 %v4354
        %v4429 = vunpack.c.l.b16 %v4355
        %v4430 = vpack.c.b16 %v4429, %v4428
        %v4448 = vunpack.c.l.b16 %v3953
        %v4449 = vunpack.c.l.b16 %v3954
        %v4450 = vunpack.c.l.b16 %v3955
        %v4451 = vunpack.c.l.b16 %v3956
        %v4452 = vunpack.c.l.b16 %v3957
        %v4453 = vunpack.c.l.b16 %v3958
        %v4454 = vunpack.c.l.b16 %v3959
        %v4455 = vunpack.c.l.b16 %v3960
        %v4456 = vunpack.c.l.b16 %v3961
        %v4457 = vunpack.c.l.b16 %v3962
        %v4458 = vunpack.c.l.b16 %v3963
        %v4459 = vunpack.c.l.b16 %v3964
        %v4460 = vunpack.c.l.b16 %v3965
        %v4461 = vunpack.c.l.b16 %v3966
        %v4462 = vunpack.c.l.b16 %v3967
        %v4463 = vunpack.c.l.b16 %v3968
        %v4464 = vpack.c.b16 %v4449, %v4448
        %v4465 = vpack.c.b16 %v4451, %v4450
        %v4466 = vpack.c.b16 %v4453, %v4452
        %v4467 = vpack.c.b16 %v4455, %v4454
        %v4468 = vpack.c.b16 %v4457, %v4456
        %v4469 = vpack.c.b16 %v4459, %v4458
        %v4470 = vpack.c.b16 %v4461, %v4460
        %v4471 = vpack.c.b16 %v4463, %v4462
        %4480 = vmatpush.bf16.msra.mxu0 %v4471
        %4481 = vmatpush.bf16.msra.mxu0 %v4470
        %4482 = vmatpush.bf16.msra.mxu0 %v4469
        %4483 = vmatpush.bf16.msra.mxu0 %v4468
        %4484 = vmatpush.bf16.msra.mxu0 %v4467
        %4485 = vmatpush.bf16.msra.mxu0 %v4466
        %4486 = vmatpush.bf16.msra.mxu0 %v4465
        %4487 = vmatpush.bf16.msra.mxu0 %v4464
        %4488 = vmatmul.bf16.gmra.mxu0 %v4430
        %v4489 = vpop.f32.mrf.mxu0
        %v4490 = vadd.f32 %v4422, %v4489
        %v4491 = vpop.f32.mrf.mxu0
        %v4492 = vadd.f32 %v4424, %v4491
        %4493 = vdwg.mxu0
        %v4494 = vld [vmem:[#allocation2 + $0x10] sm:$0xf]
        %v4495 = vld [vmem:[#allocation2 + $0x14] sm:$0xf]
        %v4498 = vunpack.c.l.b16 %v4494
        %v4499 = vunpack.c.l.b16 %v4495
        %v4500 = vpack.c.b16 %v4499, %v4498
        %v4518 = vunpack.c.l.b16 %v3985
        %v4519 = vunpack.c.l.b16 %v3986
        %v4520 = vunpack.c.l.b16 %v3987
        %v4521 = vunpack.c.l.b16 %v3988
        %v4522 = vunpack.c.l.b16 %v3989
        %v4523 = vunpack.c.l.b16 %v3990
        %v4524 = vunpack.c.l.b16 %v3991
        %v4525 = vunpack.c.l.b16 %v3992
        %v4526 = vunpack.c.l.b16 %v3993
        %v4527 = vunpack.c.l.b16 %v3994
        %v4528 = vunpack.c.l.b16 %v3995
        %v4529 = vunpack.c.l.b16 %v3996
        %v4530 = vunpack.c.l.b16 %v3997
        %v4531 = vunpack.c.l.b16 %v3998
        %v4532 = vunpack.c.l.b16 %v3999
        %v4533 = vunpack.c.l.b16 %v4000
        %v4534 = vpack.c.b16 %v4519, %v4518
        %v4535 = vpack.c.b16 %v4521, %v4520
        %v4536 = vpack.c.b16 %v4523, %v4522
        %v4537 = vpack.c.b16 %v4525, %v4524
        %v4538 = vpack.c.b16 %v4527, %v4526
        %v4539 = vpack.c.b16 %v4529, %v4528
        %v4540 = vpack.c.b16 %v4531, %v4530
        %v4541 = vpack.c.b16 %v4533, %v4532
        %4550 = vmatpush.bf16.msra.mxu0 %v4541
        %4551 = vmatpush.bf16.msra.mxu0 %v4540
        %4552 = vmatpush.bf16.msra.mxu0 %v4539
        %4553 = vmatpush.bf16.msra.mxu0 %v4538
        %4554 = vmatpush.bf16.msra.mxu0 %v4537
        %4555 = vmatpush.bf16.msra.mxu0 %v4536
        %4556 = vmatpush.bf16.msra.mxu0 %v4535
        %4557 = vmatpush.bf16.msra.mxu0 %v4534
        %4558 = vmatmul.bf16.gmra.mxu0 %v4500
        %v4559 = vpop.f32.mrf.mxu0
        %v4560 = vadd.f32 0.0, %v4559
        %v4561 = vpop.f32.mrf.mxu0
        %v4562 = vadd.f32 0.0, %v4561
        %4563 = vdwg.mxu0
        %v4564 = vadd.f32 %v4490, %v4560
        %v4565 = vadd.f32 %v4492, %v4562
        %v4566 = vld [vmem:[#allocation2 + $0x18] sm:$0xf]
        %v4567 = vld [vmem:[#allocation2 + $0x1c] sm:$0xf]
        %v4570 = vunpack.c.l.b16 %v4566
        %v4571 = vunpack.c.l.b16 %v4567
        %v4572 = vpack.c.b16 %v4571, %v4570
        %v4590 = vunpack.c.l.b16 %v4001
        %v4591 = vunpack.c.l.b16 %v4002
        %v4592 = vunpack.c.l.b16 %v4003
        %v4593 = vunpack.c.l.b16 %v4004
        %v4594 = vunpack.c.l.b16 %v4005
        %v4595 = vunpack.c.l.b16 %v4006
        %v4596 = vunpack.c.l.b16 %v4007
        %v4597 = vunpack.c.l.b16 %v4008
        %v4598 = vunpack.c.l.b16 %v4009
        %v4599 = vunpack.c.l.b16 %v4010
        %v4600 = vunpack.c.l.b16 %v4011
        %v4601 = vunpack.c.l.b16 %v4012
        %v4602 = vunpack.c.l.b16 %v4013
        %v4603 = vunpack.c.l.b16 %v4014
        %v4604 = vunpack.c.l.b16 %v4015
        %v4605 = vunpack.c.l.b16 %v4016
        %v4606 = vpack.c.b16 %v4591, %v4590
        %v4607 = vpack.c.b16 %v4593, %v4592
        %v4608 = vpack.c.b16 %v4595, %v4594
        %v4609 = vpack.c.b16 %v4597, %v4596
        %v4610 = vpack.c.b16 %v4599, %v4598
        %v4611 = vpack.c.b16 %v4601, %v4600
        %v4612 = vpack.c.b16 %v4603, %v4602
        %v4613 = vpack.c.b16 %v4605, %v4604
        %4622 = vmatpush.bf16.msra.mxu0 %v4613
        %4623 = vmatpush.bf16.msra.mxu0 %v4612
        %4624 = vmatpush.bf16.msra.mxu0 %v4611
        %4625 = vmatpush.bf16.msra.mxu0 %v4610
        %4626 = vmatpush.bf16.msra.mxu0 %v4609
        %4627 = vmatpush.bf16.msra.mxu0 %v4608
        %4628 = vmatpush.bf16.msra.mxu0 %v4607
        %4629 = vmatpush.bf16.msra.mxu0 %v4606
        %4630 = vmatmul.bf16.gmra.mxu0 %v4572
        %v4631 = vpop.f32.mrf.mxu0
        %v4632 = vadd.f32 0.0, %v4631
        %v4633 = vpop.f32.mrf.mxu0
        %v4634 = vadd.f32 0.0, %v4633
        %4635 = vdwg.mxu0
        %v4636 = vadd.f32 %v4564, %v4632
        %v4637 = vadd.f32 %v4565, %v4634
        %v4638 = vld [vmem:[#allocation2 + $0x20] sm:$0xf]
        %v4639 = vld [vmem:[#allocation2 + $0x24] sm:$0xf]
        %v4642 = vunpack.c.l.b16 %v4638
        %v4643 = vunpack.c.l.b16 %v4639
        %v4644 = vpack.c.b16 %v4643, %v4642
        %v4662 = vunpack.c.l.b16 %v4017
        %v4663 = vunpack.c.l.b16 %v4018
        %v4664 = vunpack.c.l.b16 %v4019
        %v4665 = vunpack.c.l.b16 %v4020
        %v4666 = vunpack.c.l.b16 %v4021
        %v4667 = vunpack.c.l.b16 %v4022
        %v4668 = vunpack.c.l.b16 %v4023
        %v4669 = vunpack.c.l.b16 %v4024
        %v4670 = vunpack.c.l.b16 %v4025
        %v4671 = vunpack.c.l.b16 %v4026
        %v4672 = vunpack.c.l.b16 %v4027
        %v4673 = vunpack.c.l.b16 %v4028
        %v4674 = vunpack.c.l.b16 %v4029
        %v4675 = vunpack.c.l.b16 %v4030
        %v4676 = vunpack.c.l.b16 %v4031
        %v4677 = vunpack.c.l.b16 %v4032
        %v4678 = vpack.c.b16 %v4663, %v4662
        %v4679 = vpack.c.b16 %v4665, %v4664
        %v4680 = vpack.c.b16 %v4667, %v4666
        %v4681 = vpack.c.b16 %v4669, %v4668
        %v4682 = vpack.c.b16 %v4671, %v4670
        %v4683 = vpack.c.b16 %v4673, %v4672
        %v4684 = vpack.c.b16 %v4675, %v4674
        %v4685 = vpack.c.b16 %v4677, %v4676
        %4694 = vmatpush.bf16.msra.mxu0 %v4685
        %4695 = vmatpush.bf16.msra.mxu0 %v4684
        %4696 = vmatpush.bf16.msra.mxu0 %v4683
        %4697 = vmatpush.bf16.msra.mxu0 %v4682
        %4698 = vmatpush.bf16.msra.mxu0 %v4681
        %4699 = vmatpush.bf16.msra.mxu0 %v4680
        %4700 = vmatpush.bf16.msra.mxu0 %v4679
        %4701 = vmatpush.bf16.msra.mxu0 %v4678
        %4702 = vmatmul.bf16.gmra.mxu0 %v4644
        %v4703 = vpop.f32.mrf.mxu0
        %v4704 = vadd.f32 0.0, %v4703
        %v4705 = vpop.f32.mrf.mxu0
        %v4706 = vadd.f32 0.0, %v4705
        %4707 = vdwg.mxu0
        %v4708 = vadd.f32 %v4636, %v4704
        %v4709 = vadd.f32 %v4637, %v4706
        %v4710 = vld [vmem:[#allocation2 + $0x30] sm:$0xf]
        %v4711 = vld [vmem:[#allocation2 + $0x34] sm:$0xf]
        %v4714 = vunpack.c.l.b16 %v4710
        %v4715 = vunpack.c.l.b16 %v4711
        %v4716 = vpack.c.b16 %v4715, %v4714
        %v4734 = vunpack.c.l.b16 %v4033
        %v4735 = vunpack.c.l.b16 %v4034
        %v4736 = vunpack.c.l.b16 %v4035
        %v4737 = vunpack.c.l.b16 %v4036
        %v4738 = vunpack.c.l.b16 %v4037
        %v4739 = vunpack.c.l.b16 %v4038
        %v4740 = vunpack.c.l.b16 %v4039
        %v4741 = vunpack.c.l.b16 %v4040
        %v4742 = vunpack.c.l.b16 %v4041
        %v4743 = vunpack.c.l.b16 %v4042
        %v4744 = vunpack.c.l.b16 %v4043
        %v4745 = vunpack.c.l.b16 %v4044
        %v4746 = vunpack.c.l.b16 %v4045
        %v4747 = vunpack.c.l.b16 %v4046
        %v4748 = vunpack.c.l.b16 %v4047
        %v4749 = vunpack.c.l.b16 %v4048
        %v4750 = vpack.c.b16 %v4735, %v4734
        %v4751 = vpack.c.b16 %v4737, %v4736
        %v4752 = vpack.c.b16 %v4739, %v4738
        %v4753 = vpack.c.b16 %v4741, %v4740
        %v4754 = vpack.c.b16 %v4743, %v4742
        %v4755 = vpack.c.b16 %v4745, %v4744
        %v4756 = vpack.c.b16 %v4747, %v4746
        %v4757 = vpack.c.b16 %v4749, %v4748
        %4766 = vmatpush.bf16.msra.mxu0 %v4757
        %4767 = vmatpush.bf16.msra.mxu0 %v4756
        %4768 = vmatpush.bf16.msra.mxu0 %v4755
        %4769 = vmatpush.bf16.msra.mxu0 %v4754
        %4770 = vmatpush.bf16.msra.mxu0 %v4753
        %4771 = vmatpush.bf16.msra.mxu0 %v4752
        %4772 = vmatpush.bf16.msra.mxu0 %v4751
        %4773 = vmatpush.bf16.msra.mxu0 %v4750
        %4774 = vmatmul.bf16.gmra.mxu0 %v4716
        %v4775 = vpop.f32.mrf.mxu0
        %v4776 = vadd.f32 0.0, %v4775
        %v4777 = vpop.f32.mrf.mxu0
        %v4778 = vadd.f32 0.0, %v4777
        %4779 = vdwg.mxu0
        %v4780 = vadd.f32 %v4708, %v4776
        %v4781 = vadd.f32 %v4709, %v4778
        %v4782 = vld [vmem:[#allocation2 + $0x38] sm:$0xf]
        %v4783 = vld [vmem:[#allocation2 + $0x3c] sm:$0xf]
        %v4786 = vunpack.c.l.b16 %v4782
        %v4787 = vunpack.c.l.b16 %v4783
        %v4788 = vpack.c.b16 %v4787, %v4786
        %v4806 = vunpack.c.l.b16 %v4049
        %v4807 = vunpack.c.l.b16 %v4050
        %v4808 = vunpack.c.l.b16 %v4051
        %v4809 = vunpack.c.l.b16 %v4052
        %v4810 = vunpack.c.l.b16 %v4053
        %v4811 = vunpack.c.l.b16 %v4054
        %v4812 = vunpack.c.l.b16 %v4055
        %v4813 = vunpack.c.l.b16 %v4056
        %v4814 = vunpack.c.l.b16 %v4057
        %v4815 = vunpack.c.l.b16 %v4058
        %v4816 = vunpack.c.l.b16 %v4059
        %v4817 = vunpack.c.l.b16 %v4060
        %v4818 = vunpack.c.l.b16 %v4061
        %v4819 = vunpack.c.l.b16 %v4062
        %v4820 = vunpack.c.l.b16 %v4063
        %v4821 = vunpack.c.l.b16 %v4064
        %v4822 = vpack.c.b16 %v4807, %v4806
        %v4823 = vpack.c.b16 %v4809, %v4808
        %v4824 = vpack.c.b16 %v4811, %v4810
        %v4825 = vpack.c.b16 %v4813, %v4812
        %v4826 = vpack.c.b16 %v4815, %v4814
        %v4827 = vpack.c.b16 %v4817, %v4816
        %v4828 = vpack.c.b16 %v4819, %v4818
        %v4829 = vpack.c.b16 %v4821, %v4820
        %4838 = vmatpush.bf16.msra.mxu0 %v4829
        %4839 = vmatpush.bf16.msra.mxu0 %v4828
        %4840 = vmatpush.bf16.msra.mxu0 %v4827
        %4841 = vmatpush.bf16.msra.mxu0 %v4826
        %4842 = vmatpush.bf16.msra.mxu0 %v4825
        %4843 = vmatpush.bf16.msra.mxu0 %v4824
        %4844 = vmatpush.bf16.msra.mxu0 %v4823
        %4845 = vmatpush.bf16.msra.mxu0 %v4822
        %4846 = vmatmul.bf16.gmra.mxu0 %v4788
        %v4847 = vpop.f32.mrf.mxu0
        %v4848 = vadd.f32 0.0, %v4847
        %v4849 = vpop.f32.mrf.mxu0
        %v4850 = vadd.f32 0.0, %v4849
        %4851 = vdwg.mxu0
        %v4852 = vadd.f32 %v4780, %v4848
        %v4853 = vadd.f32 %v4781, %v4850
        %v4854 = vld [vmem:[#allocation2 + $0x40] sm:$0xf]
        %v4855 = vld [vmem:[#allocation2 + $0x44] sm:$0xf]
        %v4858 = vunpack.c.l.b16 %v4854
        %v4859 = vunpack.c.l.b16 %v4855
        %v4860 = vpack.c.b16 %v4859, %v4858
        %v4878 = vunpack.c.l.b16 %v4065
        %v4879 = vunpack.c.l.b16 %v4066
        %v4880 = vunpack.c.l.b16 %v4067
        %v4881 = vunpack.c.l.b16 %v4068
        %v4882 = vunpack.c.l.b16 %v4069
        %v4883 = vunpack.c.l.b16 %v4070
        %v4884 = vunpack.c.l.b16 %v4071
        %v4885 = vunpack.c.l.b16 %v4072
        %v4886 = vunpack.c.l.b16 %v4073
        %v4887 = vunpack.c.l.b16 %v4074
        %v4888 = vunpack.c.l.b16 %v4075
        %v4889 = vunpack.c.l.b16 %v4076
        %v4890 = vunpack.c.l.b16 %v4077
        %v4891 = vunpack.c.l.b16 %v4078
        %v4892 = vunpack.c.l.b16 %v4079
        %v4893 = vunpack.c.l.b16 %v4080
        %v4894 = vpack.c.b16 %v4879, %v4878
        %v4895 = vpack.c.b16 %v4881, %v4880
        %v4896 = vpack.c.b16 %v4883, %v4882
        %v4897 = vpack.c.b16 %v4885, %v4884
        %v4898 = vpack.c.b16 %v4887, %v4886
        %v4899 = vpack.c.b16 %v4889, %v4888
        %v4900 = vpack.c.b16 %v4891, %v4890
        %v4901 = vpack.c.b16 %v4893, %v4892
        %4910 = vmatpush.bf16.msra.mxu0 %v4901
        %4911 = vmatpush.bf16.msra.mxu0 %v4900
        %4912 = vmatpush.bf16.msra.mxu0 %v4899
        %4913 = vmatpush.bf16.msra.mxu0 %v4898
        %4914 = vmatpush.bf16.msra.mxu0 %v4897
        %4915 = vmatpush.bf16.msra.mxu0 %v4896
        %4916 = vmatpush.bf16.msra.mxu0 %v4895
        %4917 = vmatpush.bf16.msra.mxu0 %v4894
        %4918 = vmatmul.bf16.gmra.mxu0 %v4860
        %v4919 = vpop.f32.mrf.mxu0
        %v4920 = vadd.f32 0.0, %v4919
        %v4921 = vpop.f32.mrf.mxu0
        %v4922 = vadd.f32 0.0, %v4921
        %4923 = vdwg.mxu0
        %v4924 = vadd.f32 %v4852, %v4920
        %v4925 = vadd.f32 %v4853, %v4922
        %v4926 = vld [vmem:[#allocation2 + $0x48] sm:$0xf]
        %v4927 = vld [vmem:[#allocation2 + $0x4c] sm:$0xf]
        %v4930 = vunpack.c.l.b16 %v4926
        %v4931 = vunpack.c.l.b16 %v4927
        %v4932 = vpack.c.b16 %v4931, %v4930
        %v4950 = vunpack.c.l.b16 %v4081
        %v4951 = vunpack.c.l.b16 %v4082
        %v4952 = vunpack.c.l.b16 %v4083
        %v4953 = vunpack.c.l.b16 %v4084
        %v4954 = vunpack.c.l.b16 %v4085
        %v4955 = vunpack.c.l.b16 %v4086
        %v4956 = vunpack.c.l.b16 %v4087
        %v4957 = vunpack.c.l.b16 %v4088
        %v4958 = vunpack.c.l.b16 %v4089
        %v4959 = vunpack.c.l.b16 %v4090
        %v4960 = vunpack.c.l.b16 %v4091
        %v4961 = vunpack.c.l.b16 %v4092
        %v4962 = vunpack.c.l.b16 %v4093
        %v4963 = vunpack.c.l.b16 %v4094
        %v4964 = vunpack.c.l.b16 %v4095
        %v4965 = vunpack.c.l.b16 %v4096
        %v4966 = vpack.c.b16 %v4951, %v4950
        %v4967 = vpack.c.b16 %v4953, %v4952
        %v4968 = vpack.c.b16 %v4955, %v4954
        %v4969 = vpack.c.b16 %v4957, %v4956
        %v4970 = vpack.c.b16 %v4959, %v4958
        %v4971 = vpack.c.b16 %v4961, %v4960
        %v4972 = vpack.c.b16 %v4963, %v4962
        %v4973 = vpack.c.b16 %v4965, %v4964
        %4982 = vmatpush.bf16.msra.mxu0 %v4973
        %4983 = vmatpush.bf16.msra.mxu0 %v4972
        %4984 = vmatpush.bf16.msra.mxu0 %v4971
        %4985 = vmatpush.bf16.msra.mxu0 %v4970
        %4986 = vmatpush.bf16.msra.mxu0 %v4969
        %4987 = vmatpush.bf16.msra.mxu0 %v4968
        %4988 = vmatpush.bf16.msra.mxu0 %v4967
        %4989 = vmatpush.bf16.msra.mxu0 %v4966
        %4990 = vmatmul.bf16.gmra.mxu0 %v4932
        %v4991 = vpop.f32.mrf.mxu0
        %v4992 = vadd.f32 0.0, %v4991
        %v4993 = vpop.f32.mrf.mxu0
        %v4994 = vadd.f32 0.0, %v4993
        %4995 = vdwg.mxu0
        %v4996 = vadd.f32 %v4924, %v4992
        %v4997 = vadd.f32 %v4925, %v4994
        %v4998 = vld [vmem:[#allocation2 + $0x50] sm:$0xf]
        %v4999 = vld [vmem:[#allocation2 + $0x54] sm:$0xf]
        %v5002 = vunpack.c.l.b16 %v4998
        %v5003 = vunpack.c.l.b16 %v4999
        %v5004 = vpack.c.b16 %v5003, %v5002
        %v5022 = vunpack.c.l.b16 %v4097
        %v5023 = vunpack.c.l.b16 %v4098
        %v5024 = vunpack.c.l.b16 %v4099
        %v5025 = vunpack.c.l.b16 %v4100
        %v5026 = vunpack.c.l.b16 %v4101
        %v5027 = vunpack.c.l.b16 %v4102
        %v5028 = vunpack.c.l.b16 %v4103
        %v5029 = vunpack.c.l.b16 %v4104
        %v5030 = vunpack.c.l.b16 %v4105
        %v5031 = vunpack.c.l.b16 %v4106
        %v5032 = vunpack.c.l.b16 %v4107
        %v5033 = vunpack.c.l.b16 %v4108
        %v5034 = vunpack.c.l.b16 %v4109
        %v5035 = vunpack.c.l.b16 %v4110
        %v5036 = vunpack.c.l.b16 %v4111
        %v5037 = vunpack.c.l.b16 %v4112
        %v5038 = vpack.c.b16 %v5023, %v5022
        %v5039 = vpack.c.b16 %v5025, %v5024
        %v5040 = vpack.c.b16 %v5027, %v5026
        %v5041 = vpack.c.b16 %v5029, %v5028
        %v5042 = vpack.c.b16 %v5031, %v5030
        %v5043 = vpack.c.b16 %v5033, %v5032
        %v5044 = vpack.c.b16 %v5035, %v5034
        %v5045 = vpack.c.b16 %v5037, %v5036
        %5054 = vmatpush.bf16.msra.mxu0 %v5045
        %5055 = vmatpush.bf16.msra.mxu0 %v5044
        %5056 = vmatpush.bf16.msra.mxu0 %v5043
        %5057 = vmatpush.bf16.msra.mxu0 %v5042
        %5058 = vmatpush.bf16.msra.mxu0 %v5041
        %5059 = vmatpush.bf16.msra.mxu0 %v5040
        %5060 = vmatpush.bf16.msra.mxu0 %v5039
        %5061 = vmatpush.bf16.msra.mxu0 %v5038
        %5062 = vmatmul.bf16.gmra.mxu0 %v5004
        %v5063 = vpop.f32.mrf.mxu0
        %v5064 = vadd.f32 0.0, %v5063
        %v5065 = vpop.f32.mrf.mxu0
        %v5066 = vadd.f32 0.0, %v5065
        %5067 = vdwg.mxu0
        %v5068 = vadd.f32 %v4996, %v5064
        %v5069 = vadd.f32 %v4997, %v5066
        %v5070 = vld [vmem:[#allocation2 + $0x60] sm:$0xf]
        %v5071 = vld [vmem:[#allocation2 + $0x64] sm:$0xf]
        %v5074 = vunpack.c.l.b16 %v5070
        %v5075 = vunpack.c.l.b16 %v5071
        %v5076 = vpack.c.b16 %v5075, %v5074
        %v5094 = vunpack.c.l.b16 %v4113
        %v5095 = vunpack.c.l.b16 %v4114
        %v5096 = vunpack.c.l.b16 %v4115
        %v5097 = vunpack.c.l.b16 %v4116
        %v5098 = vunpack.c.l.b16 %v4117
        %v5099 = vunpack.c.l.b16 %v4118
        %v5100 = vunpack.c.l.b16 %v4119
        %v5101 = vunpack.c.l.b16 %v4120
        %v5102 = vunpack.c.l.b16 %v4121
        %v5103 = vunpack.c.l.b16 %v4122
        %v5104 = vunpack.c.l.b16 %v4123
        %v5105 = vunpack.c.l.b16 %v4124
        %v5106 = vunpack.c.l.b16 %v4125
        %v5107 = vunpack.c.l.b16 %v4126
        %v5108 = vunpack.c.l.b16 %v4127
        %v5109 = vunpack.c.l.b16 %v4128
        %v5110 = vpack.c.b16 %v5095, %v5094
        %v5111 = vpack.c.b16 %v5097, %v5096
        %v5112 = vpack.c.b16 %v5099, %v5098
        %v5113 = vpack.c.b16 %v5101, %v5100
        %v5114 = vpack.c.b16 %v5103, %v5102
        %v5115 = vpack.c.b16 %v5105, %v5104
        %v5116 = vpack.c.b16 %v5107, %v5106
        %v5117 = vpack.c.b16 %v5109, %v5108
        %5126 = vmatpush.bf16.msra.mxu0 %v5117
        %5127 = vmatpush.bf16.msra.mxu0 %v5116
        %5128 = vmatpush.bf16.msra.mxu0 %v5115
        %5129 = vmatpush.bf16.msra.mxu0 %v5114
        %5130 = vmatpush.bf16.msra.mxu0 %v5113
        %5131 = vmatpush.bf16.msra.mxu0 %v5112
        %5132 = vmatpush.bf16.msra.mxu0 %v5111
        %5133 = vmatpush.bf16.msra.mxu0 %v5110
        %5134 = vmatmul.bf16.gmra.mxu0 %v5076
        %v5135 = vpop.f32.mrf.mxu0
        %v5136 = vadd.f32 0.0, %v5135
        %v5137 = vpop.f32.mrf.mxu0
        %v5138 = vadd.f32 0.0, %v5137
        %5139 = vdwg.mxu0
        %v5140 = vadd.f32 %v5068, %v5136
        %v5141 = vadd.f32 %v5069, %v5138
        %v5142 = vld [vmem:[#allocation2 + $0x68] sm:$0xf]
        %v5143 = vld [vmem:[#allocation2 + $0x6c] sm:$0xf]
        %v5146 = vunpack.c.l.b16 %v5142
        %v5147 = vunpack.c.l.b16 %v5143
        %v5148 = vpack.c.b16 %v5147, %v5146
        %v5166 = vunpack.c.l.b16 %v4129
        %v5167 = vunpack.c.l.b16 %v4130
        %v5168 = vunpack.c.l.b16 %v4131
        %v5169 = vunpack.c.l.b16 %v4132
        %v5170 = vunpack.c.l.b16 %v4133
        %v5171 = vunpack.c.l.b16 %v4134
        %v5172 = vunpack.c.l.b16 %v4135
        %v5173 = vunpack.c.l.b16 %v4136
        %v5174 = vunpack.c.l.b16 %v4137
        %v5175 = vunpack.c.l.b16 %v4138
        %v5176 = vunpack.c.l.b16 %v4139
        %v5177 = vunpack.c.l.b16 %v4140
        %v5178 = vunpack.c.l.b16 %v4141
        %v5179 = vunpack.c.l.b16 %v4142
        %v5180 = vunpack.c.l.b16 %v4143
        %v5181 = vunpack.c.l.b16 %v4144
        %v5182 = vpack.c.b16 %v5167, %v5166
        %v5183 = vpack.c.b16 %v5169, %v5168
        %v5184 = vpack.c.b16 %v5171, %v5170
        %v5185 = vpack.c.b16 %v5173, %v5172
        %v5186 = vpack.c.b16 %v5175, %v5174
        %v5187 = vpack.c.b16 %v5177, %v5176
        %v5188 = vpack.c.b16 %v5179, %v5178
        %v5189 = vpack.c.b16 %v5181, %v5180
        %5198 = vmatpush.bf16.msra.mxu0 %v5189
        %5199 = vmatpush.bf16.msra.mxu0 %v5188
        %5200 = vmatpush.bf16.msra.mxu0 %v5187
        %5201 = vmatpush.bf16.msra.mxu0 %v5186
        %5202 = vmatpush.bf16.msra.mxu0 %v5185
        %5203 = vmatpush.bf16.msra.mxu0 %v5184
        %5204 = vmatpush.bf16.msra.mxu0 %v5183
        %5205 = vmatpush.bf16.msra.mxu0 %v5182
        %5206 = vmatmul.bf16.gmra.mxu0 %v5148
        %v5207 = vpop.f32.mrf.mxu0
        %v5208 = vadd.f32 0.0, %v5207
        %v5209 = vpop.f32.mrf.mxu0
        %v5210 = vadd.f32 0.0, %v5209
        %5211 = vdwg.mxu0
        %v5212 = vadd.f32 %v5140, %v5208
        %v5213 = vadd.f32 %v5141, %v5210
        %v5214 = vld [vmem:[#allocation2 + $0x70] sm:$0xf]
        %v5215 = vld [vmem:[#allocation2 + $0x74] sm:$0xf]
        %v5218 = vunpack.c.l.b16 %v5214
        %v5219 = vunpack.c.l.b16 %v5215
        %v5220 = vpack.c.b16 %v5219, %v5218
        %v5238 = vunpack.c.l.b16 %v4145
        %v5239 = vunpack.c.l.b16 %v4146
        %v5240 = vunpack.c.l.b16 %v4147
        %v5241 = vunpack.c.l.b16 %v4148
        %v5242 = vunpack.c.l.b16 %v4149
        %v5243 = vunpack.c.l.b16 %v4150
        %v5244 = vunpack.c.l.b16 %v4151
        %v5245 = vunpack.c.l.b16 %v4152
        %v5246 = vunpack.c.l.b16 %v4153
        %v5247 = vunpack.c.l.b16 %v4154
        %v5248 = vunpack.c.l.b16 %v4155
        %v5249 = vunpack.c.l.b16 %v4156
        %v5250 = vunpack.c.l.b16 %v4157
        %v5251 = vunpack.c.l.b16 %v4158
        %v5252 = vunpack.c.l.b16 %v4159
        %v5253 = vunpack.c.l.b16 %v4160
        %v5254 = vpack.c.b16 %v5239, %v5238
        %v5255 = vpack.c.b16 %v5241, %v5240
        %v5256 = vpack.c.b16 %v5243, %v5242
        %v5257 = vpack.c.b16 %v5245, %v5244
        %v5258 = vpack.c.b16 %v5247, %v5246
        %v5259 = vpack.c.b16 %v5249, %v5248
        %v5260 = vpack.c.b16 %v5251, %v5250
        %v5261 = vpack.c.b16 %v5253, %v5252
        %5270 = vmatpush.bf16.msra.mxu0 %v5261
        %5271 = vmatpush.bf16.msra.mxu0 %v5260
        %5272 = vmatpush.bf16.msra.mxu0 %v5259
        %5273 = vmatpush.bf16.msra.mxu0 %v5258
        %5274 = vmatpush.bf16.msra.mxu0 %v5257
        %5275 = vmatpush.bf16.msra.mxu0 %v5256
        %5276 = vmatpush.bf16.msra.mxu0 %v5255
        %5277 = vmatpush.bf16.msra.mxu0 %v5254
        %5278 = vmatmul.bf16.gmra.mxu0 %v5220
        %v5279 = vpop.f32.mrf.mxu0
        %v5280 = vadd.f32 0.0, %v5279
        %v5281 = vpop.f32.mrf.mxu0
        %v5282 = vadd.f32 0.0, %v5281
        %5283 = vdwg.mxu0
        %v5284 = vadd.f32 %v5212, %v5280
        %v5285 = vadd.f32 %v5213, %v5282
        %v5286 = vld [vmem:[#allocation2 + $0x78] sm:$0xf]
        %v5287 = vld [vmem:[#allocation2 + $0x7c] sm:$0xf]
        %v5290 = vunpack.c.l.b16 %v5286
        %v5291 = vunpack.c.l.b16 %v5287
        %v5292 = vpack.c.b16 %v5291, %v5290
        %v5310 = vunpack.c.l.b16 %v4161
        %v5311 = vunpack.c.l.b16 %v4162
        %v5312 = vunpack.c.l.b16 %v4163
        %v5313 = vunpack.c.l.b16 %v4164
        %v5314 = vunpack.c.l.b16 %v4165
        %v5315 = vunpack.c.l.b16 %v4166
        %v5316 = vunpack.c.l.b16 %v4167
        %v5317 = vunpack.c.l.b16 %v4168
        %v5318 = vunpack.c.l.b16 %v4169
        %v5319 = vunpack.c.l.b16 %v4170
        %v5320 = vunpack.c.l.b16 %v4171
        %v5321 = vunpack.c.l.b16 %v4172
        %v5322 = vunpack.c.l.b16 %v4173
        %v5323 = vunpack.c.l.b16 %v4174
        %v5324 = vunpack.c.l.b16 %v4175
        %v5325 = vunpack.c.l.b16 %v4176
        %v5326 = vpack.c.b16 %v5311, %v5310
        %v5327 = vpack.c.b16 %v5313, %v5312
        %v5328 = vpack.c.b16 %v5315, %v5314
        %v5329 = vpack.c.b16 %v5317, %v5316
        %v5330 = vpack.c.b16 %v5319, %v5318
        %v5331 = vpack.c.b16 %v5321, %v5320
        %v5332 = vpack.c.b16 %v5323, %v5322
        %v5333 = vpack.c.b16 %v5325, %v5324
        %5342 = vmatpush.bf16.msra.mxu0 %v5333
        %5343 = vmatpush.bf16.msra.mxu0 %v5332
        %5344 = vmatpush.bf16.msra.mxu0 %v5331
        %5345 = vmatpush.bf16.msra.mxu0 %v5330
        %5346 = vmatpush.bf16.msra.mxu0 %v5329
        %5347 = vmatpush.bf16.msra.mxu0 %v5328
        %5348 = vmatpush.bf16.msra.mxu0 %v5327
        %5349 = vmatpush.bf16.msra.mxu0 %v5326
        %5350 = vmatmul.bf16.gmra.mxu0 %v5292
        %v5351 = vpop.f32.mrf.mxu0
        %v5352 = vadd.f32 0.0, %v5351
        %v5353 = vpop.f32.mrf.mxu0
        %v5354 = vadd.f32 0.0, %v5353
        %5355 = vdwg.mxu0
        %v5356 = vadd.f32 %v5284, %v5352
        %v5357 = vadd.f32 %v5285, %v5354
        %v5358 = vld [vmem:[#allocation2 + $0x80] sm:$0xf]
        %v5359 = vld [vmem:[#allocation2 + $0x84] sm:$0xf]
        %v5362 = vunpack.c.l.b16 %v5358
        %v5363 = vunpack.c.l.b16 %v5359
        %v5364 = vpack.c.b16 %v5363, %v5362
        %v5382 = vunpack.c.l.b16 %v4177
        %v5383 = vunpack.c.l.b16 %v4178
        %v5384 = vunpack.c.l.b16 %v4179
        %v5385 = vunpack.c.l.b16 %v4180
        %v5386 = vunpack.c.l.b16 %v4181
        %v5387 = vunpack.c.l.b16 %v4182
        %v5388 = vunpack.c.l.b16 %v4183
        %v5389 = vunpack.c.l.b16 %v4184
        %v5390 = vunpack.c.l.b16 %v4185
        %v5391 = vunpack.c.l.b16 %v4186
        %v5392 = vunpack.c.l.b16 %v4187
        %v5393 = vunpack.c.l.b16 %v4188
        %v5394 = vunpack.c.l.b16 %v4189
        %v5395 = vunpack.c.l.b16 %v4190
        %v5396 = vunpack.c.l.b16 %v4191
        %v5397 = vunpack.c.l.b16 %v4192
        %v5398 = vpack.c.b16 %v5383, %v5382
        %v5399 = vpack.c.b16 %v5385, %v5384
        %v5400 = vpack.c.b16 %v5387, %v5386
        %v5401 = vpack.c.b16 %v5389, %v5388
        %v5402 = vpack.c.b16 %v5391, %v5390
        %v5403 = vpack.c.b16 %v5393, %v5392
        %v5404 = vpack.c.b16 %v5395, %v5394
        %v5405 = vpack.c.b16 %v5397, %v5396
        %5414 = vmatpush.bf16.msra.mxu0 %v5405
        %5415 = vmatpush.bf16.msra.mxu0 %v5404
        %5416 = vmatpush.bf16.msra.mxu0 %v5403
        %5417 = vmatpush.bf16.msra.mxu0 %v5402
        %5418 = vmatpush.bf16.msra.mxu0 %v5401
        %5419 = vmatpush.bf16.msra.mxu0 %v5400
        %5420 = vmatpush.bf16.msra.mxu0 %v5399
        %5421 = vmatpush.bf16.msra.mxu0 %v5398
        %5422 = vmatmul.bf16.gmra.mxu0 %v5364
        %v5423 = vpop.f32.mrf.mxu0
        %v5424 = vadd.f32 0.0, %v5423
        %v5425 = vpop.f32.mrf.mxu0
        %v5426 = vadd.f32 0.0, %v5425
        %5427 = vdwg.mxu0
        %v5428 = vadd.f32 %v5356, %v5424
        %v5429 = vadd.f32 %v5357, %v5426
        %v5430 = vld [vmem:[#allocation2 + $0x90] sm:$0xf]
        %v5431 = vld [vmem:[#allocation2 + $0x94] sm:$0xf]
        %v5434 = vunpack.c.l.b16 %v5430
        %v5435 = vunpack.c.l.b16 %v5431
        %v5436 = vpack.c.b16 %v5435, %v5434
        %v5454 = vunpack.c.l.b16 %v4193
        %v5455 = vunpack.c.l.b16 %v4194
        %v5456 = vunpack.c.l.b16 %v4195
        %v5457 = vunpack.c.l.b16 %v4196
        %v5458 = vunpack.c.l.b16 %v4197
        %v5459 = vunpack.c.l.b16 %v4198
        %v5460 = vunpack.c.l.b16 %v4199
        %v5461 = vunpack.c.l.b16 %v4200
        %v5462 = vunpack.c.l.b16 %v4201
        %v5463 = vunpack.c.l.b16 %v4202
        %v5464 = vunpack.c.l.b16 %v4203
        %v5465 = vunpack.c.l.b16 %v4204
        %v5466 = vunpack.c.l.b16 %v4205
        %v5467 = vunpack.c.l.b16 %v4206
        %v5468 = vunpack.c.l.b16 %v4207
        %v5469 = vunpack.c.l.b16 %v4208
        %v5470 = vpack.c.b16 %v5455, %v5454
        %v5471 = vpack.c.b16 %v5457, %v5456
        %v5472 = vpack.c.b16 %v5459, %v5458
        %v5473 = vpack.c.b16 %v5461, %v5460
        %v5474 = vpack.c.b16 %v5463, %v5462
        %v5475 = vpack.c.b16 %v5465, %v5464
        %v5476 = vpack.c.b16 %v5467, %v5466
        %v5477 = vpack.c.b16 %v5469, %v5468
        %5486 = vmatpush.bf16.msra.mxu0 %v5477
        %5487 = vmatpush.bf16.msra.mxu0 %v5476
        %5488 = vmatpush.bf16.msra.mxu0 %v5475
        %5489 = vmatpush.bf16.msra.mxu0 %v5474
        %5490 = vmatpush.bf16.msra.mxu0 %v5473
        %5491 = vmatpush.bf16.msra.mxu0 %v5472
        %5492 = vmatpush.bf16.msra.mxu0 %v5471
        %5493 = vmatpush.bf16.msra.mxu0 %v5470
        %5494 = vmatmul.bf16.gmra.mxu0 %v5436
        %v5495 = vpop.f32.mrf.mxu0
        %v5496 = vadd.f32 0.0, %v5495
        %v5497 = vpop.f32.mrf.mxu0
        %v5498 = vadd.f32 0.0, %v5497
        %5499 = vdwg.mxu0
        %v5500 = vadd.f32 %v5428, %v5496
        %v5501 = vadd.f32 %v5429, %v5498
        %v5502 = vld [vmem:[#allocation2 + $0x98] sm:$0xf]
        %v5503 = vld [vmem:[#allocation2 + $0x9c] sm:$0xf]
        %v5506 = vunpack.c.l.b16 %v5502
        %v5507 = vunpack.c.l.b16 %v5503
        %v5508 = vpack.c.b16 %v5507, %v5506
        %v5526 = vunpack.c.l.b16 %v4209
        %v5527 = vunpack.c.l.b16 %v4210
        %v5528 = vunpack.c.l.b16 %v4211
        %v5529 = vunpack.c.l.b16 %v4212
        %v5530 = vunpack.c.l.b16 %v4213
        %v5531 = vunpack.c.l.b16 %v4214
        %v5532 = vunpack.c.l.b16 %v4215
        %v5533 = vunpack.c.l.b16 %v4216
        %v5534 = vunpack.c.l.b16 %v4217
        %v5535 = vunpack.c.l.b16 %v4218
        %v5536 = vunpack.c.l.b16 %v4219
        %v5537 = vunpack.c.l.b16 %v4220
        %v5538 = vunpack.c.l.b16 %v4221
        %v5539 = vunpack.c.l.b16 %v4222
        %v5540 = vunpack.c.l.b16 %v4223
        %v5541 = vunpack.c.l.b16 %v4224
        %v5542 = vpack.c.b16 %v5527, %v5526
        %v5543 = vpack.c.b16 %v5529, %v5528
        %v5544 = vpack.c.b16 %v5531, %v5530
        %v5545 = vpack.c.b16 %v5533, %v5532
        %v5546 = vpack.c.b16 %v5535, %v5534
        %v5547 = vpack.c.b16 %v5537, %v5536
        %v5548 = vpack.c.b16 %v5539, %v5538
        %v5549 = vpack.c.b16 %v5541, %v5540
        %5558 = vmatpush.bf16.msra.mxu0 %v5549
        %5559 = vmatpush.bf16.msra.mxu0 %v5548
        %5560 = vmatpush.bf16.msra.mxu0 %v5547
        %5561 = vmatpush.bf16.msra.mxu0 %v5546
        %5562 = vmatpush.bf16.msra.mxu0 %v5545
        %5563 = vmatpush.bf16.msra.mxu0 %v5544
        %5564 = vmatpush.bf16.msra.mxu0 %v5543
        %5565 = vmatpush.bf16.msra.mxu0 %v5542
        %5566 = vmatmul.bf16.gmra.mxu0 %v5508
        %v5567 = vpop.f32.mrf.mxu0
        %v5568 = vadd.f32 0.0, %v5567
        %v5569 = vpop.f32.mrf.mxu0
        %v5570 = vadd.f32 0.0, %v5569
        %5571 = vdwg.mxu0
        %v5572 = vadd.f32 %v5500, %v5568
        %v5573 = vadd.f32 %v5501, %v5570
        %v5574 = vld [vmem:[#allocation2 + $0xa0] sm:$0xf]
        %v5575 = vld [vmem:[#allocation2 + $0xa4] sm:$0xf]
        %v5578 = vunpack.c.l.b16 %v5574
        %v5579 = vunpack.c.l.b16 %v5575
        %v5580 = vpack.c.b16 %v5579, %v5578
        %v5598 = vunpack.c.l.b16 %v4225
        %v5599 = vunpack.c.l.b16 %v4226
        %v5600 = vunpack.c.l.b16 %v4227
        %v5601 = vunpack.c.l.b16 %v4228
        %v5602 = vunpack.c.l.b16 %v4229
        %v5603 = vunpack.c.l.b16 %v4230
        %v5604 = vunpack.c.l.b16 %v4231
        %v5605 = vunpack.c.l.b16 %v4232
        %v5606 = vunpack.c.l.b16 %v4233
        %v5607 = vunpack.c.l.b16 %v4234
        %v5608 = vunpack.c.l.b16 %v4235
        %v5609 = vunpack.c.l.b16 %v4236
        %v5610 = vunpack.c.l.b16 %v4237
        %v5611 = vunpack.c.l.b16 %v4238
        %v5612 = vunpack.c.l.b16 %v4239
        %v5613 = vunpack.c.l.b16 %v4240
        %v5614 = vpack.c.b16 %v5599, %v5598
        %v5615 = vpack.c.b16 %v5601, %v5600
        %v5616 = vpack.c.b16 %v5603, %v5602
        %v5617 = vpack.c.b16 %v5605, %v5604
        %v5618 = vpack.c.b16 %v5607, %v5606
        %v5619 = vpack.c.b16 %v5609, %v5608
        %v5620 = vpack.c.b16 %v5611, %v5610
        %v5621 = vpack.c.b16 %v5613, %v5612
        %5630 = vmatpush.bf16.msra.mxu0 %v5621
        %5631 = vmatpush.bf16.msra.mxu0 %v5620
        %5632 = vmatpush.bf16.msra.mxu0 %v5619
        %5633 = vmatpush.bf16.msra.mxu0 %v5618
        %5634 = vmatpush.bf16.msra.mxu0 %v5617
        %5635 = vmatpush.bf16.msra.mxu0 %v5616
        %5636 = vmatpush.bf16.msra.mxu0 %v5615
        %5637 = vmatpush.bf16.msra.mxu0 %v5614
        %5638 = vmatmul.bf16.gmra.mxu0 %v5580
        %v5639 = vpop.f32.mrf.mxu0
        %v5640 = vadd.f32 0.0, %v5639
        %v5641 = vpop.f32.mrf.mxu0
        %v5642 = vadd.f32 0.0, %v5641
        %5643 = vdwg.mxu0
        %v5644 = vadd.f32 %v5572, %v5640
        %v5645 = vadd.f32 %v5573, %v5642
        %v5646 = vld [vmem:[#allocation2 + $0xa8] sm:$0xf]
        %v5647 = vld [vmem:[#allocation2 + $0xac] sm:$0xf]
        %v5650 = vunpack.c.l.b16 %v5646
        %v5651 = vunpack.c.l.b16 %v5647
        %v5652 = vpack.c.b16 %v5651, %v5650
        %v5670 = vunpack.c.l.b16 %v4241
        %v5671 = vunpack.c.l.b16 %v4242
        %v5672 = vunpack.c.l.b16 %v4243
        %v5673 = vunpack.c.l.b16 %v4244
        %v5674 = vunpack.c.l.b16 %v4245
        %v5675 = vunpack.c.l.b16 %v4246
        %v5676 = vunpack.c.l.b16 %v4247
        %v5677 = vunpack.c.l.b16 %v4248
        %v5678 = vunpack.c.l.b16 %v4249
        %v5679 = vunpack.c.l.b16 %v4250
        %v5680 = vunpack.c.l.b16 %v4251
        %v5681 = vunpack.c.l.b16 %v4252
        %v5682 = vunpack.c.l.b16 %v4253
        %v5683 = vunpack.c.l.b16 %v4254
        %v5684 = vunpack.c.l.b16 %v4255
        %v5685 = vunpack.c.l.b16 %v4256
        %v5686 = vpack.c.b16 %v5671, %v5670
        %v5687 = vpack.c.b16 %v5673, %v5672
        %v5688 = vpack.c.b16 %v5675, %v5674
        %v5689 = vpack.c.b16 %v5677, %v5676
        %v5690 = vpack.c.b16 %v5679, %v5678
        %v5691 = vpack.c.b16 %v5681, %v5680
        %v5692 = vpack.c.b16 %v5683, %v5682
        %v5693 = vpack.c.b16 %v5685, %v5684
        %5702 = vmatpush.bf16.msra.mxu0 %v5693
        %5703 = vmatpush.bf16.msra.mxu0 %v5692
        %5704 = vmatpush.bf16.msra.mxu0 %v5691
        %5705 = vmatpush.bf16.msra.mxu0 %v5690
        %5706 = vmatpush.bf16.msra.mxu0 %v5689
        %5707 = vmatpush.bf16.msra.mxu0 %v5688
        %5708 = vmatpush.bf16.msra.mxu0 %v5687
        %5709 = vmatpush.bf16.msra.mxu0 %v5686
        %5710 = vmatmul.bf16.gmra.mxu0 %v5652
        %v5711 = vpop.f32.mrf.mxu0
        %v5712 = vadd.f32 0.0, %v5711
        %v5713 = vpop.f32.mrf.mxu0
        %v5714 = vadd.f32 0.0, %v5713
        %5715 = vdwg.mxu0
        %v5716 = vadd.f32 %v5644, %v5712
        %v5717 = vadd.f32 %v5645, %v5714
        %v5718 = vld [vmem:[#allocation2 + $0xb0] sm:$0xf]
        %v5719 = vld [vmem:[#allocation2 + $0xb4] sm:$0xf]
        %v5722 = vunpack.c.l.b16 %v5718
        %v5723 = vunpack.c.l.b16 %v5719
        %v5724 = vpack.c.b16 %v5723, %v5722
        %v5742 = vunpack.c.l.b16 %v4257
        %v5743 = vunpack.c.l.b16 %v4258
        %v5744 = vunpack.c.l.b16 %v4259
        %v5745 = vunpack.c.l.b16 %v4260
        %v5746 = vunpack.c.l.b16 %v4261
        %v5747 = vunpack.c.l.b16 %v4262
        %v5748 = vunpack.c.l.b16 %v4263
        %v5749 = vunpack.c.l.b16 %v4264
        %v5750 = vunpack.c.l.b16 %v4265
        %v5751 = vunpack.c.l.b16 %v4266
        %v5752 = vunpack.c.l.b16 %v4267
        %v5753 = vunpack.c.l.b16 %v4268
        %v5754 = vunpack.c.l.b16 %v4269
        %v5755 = vunpack.c.l.b16 %v4270
        %v5756 = vunpack.c.l.b16 %v4271
        %v5757 = vunpack.c.l.b16 %v4272
        %v5758 = vpack.c.b16 %v5743, %v5742
        %v5759 = vpack.c.b16 %v5745, %v5744
        %v5760 = vpack.c.b16 %v5747, %v5746
        %v5761 = vpack.c.b16 %v5749, %v5748
        %v5762 = vpack.c.b16 %v5751, %v5750
        %v5763 = vpack.c.b16 %v5753, %v5752
        %v5764 = vpack.c.b16 %v5755, %v5754
        %v5765 = vpack.c.b16 %v5757, %v5756
        %5774 = vmatpush.bf16.msra.mxu0 %v5765
        %5775 = vmatpush.bf16.msra.mxu0 %v5764
        %5776 = vmatpush.bf16.msra.mxu0 %v5763
        %5777 = vmatpush.bf16.msra.mxu0 %v5762
        %5778 = vmatpush.bf16.msra.mxu0 %v5761
        %5779 = vmatpush.bf16.msra.mxu0 %v5760
        %5780 = vmatpush.bf16.msra.mxu0 %v5759
        %5781 = vmatpush.bf16.msra.mxu0 %v5758
        %5782 = vmatmul.bf16.gmra.mxu0 %v5724
        %v5783 = vpop.f32.mrf.mxu0
        %v5784 = vadd.f32 0.0, %v5783
        %v5785 = vpop.f32.mrf.mxu0
        %v5786 = vadd.f32 0.0, %v5785
        %5787 = vdwg.mxu0
        %v5788 = vadd.f32 %v5716, %v5784
        %v5789 = vadd.f32 %v5717, %v5786
        %v5790 = vld [vmem:[#allocation2 + $0xc0] sm:$0xf]
        %v5791 = vld [vmem:[#allocation2 + $0xc4] sm:$0xf]
        %v5794 = vunpack.c.l.b16 %v5790
        %v5795 = vunpack.c.l.b16 %v5791
        %v5796 = vpack.c.b16 %v5795, %v5794
        %v5814 = vunpack.c.l.b16 %v4273
        %v5815 = vunpack.c.l.b16 %v4274
        %v5816 = vunpack.c.l.b16 %v4275
        %v5817 = vunpack.c.l.b16 %v4276
        %v5818 = vunpack.c.l.b16 %v4277
        %v5819 = vunpack.c.l.b16 %v4278
        %v5820 = vunpack.c.l.b16 %v4279
        %v5821 = vunpack.c.l.b16 %v4280
        %v5822 = vunpack.c.l.b16 %v4281
        %v5823 = vunpack.c.l.b16 %v4282
        %v5824 = vunpack.c.l.b16 %v4283
        %v5825 = vunpack.c.l.b16 %v4284
        %v5826 = vunpack.c.l.b16 %v4285
        %v5827 = vunpack.c.l.b16 %v4286
        %v5828 = vunpack.c.l.b16 %v4287
        %v5829 = vunpack.c.l.b16 %v4288
        %v5830 = vpack.c.b16 %v5815, %v5814
        %v5831 = vpack.c.b16 %v5817, %v5816
        %v5832 = vpack.c.b16 %v5819, %v5818
        %v5833 = vpack.c.b16 %v5821, %v5820
        %v5834 = vpack.c.b16 %v5823, %v5822
        %v5835 = vpack.c.b16 %v5825, %v5824
        %v5836 = vpack.c.b16 %v5827, %v5826
        %v5837 = vpack.c.b16 %v5829, %v5828
        %5846 = vmatpush.bf16.msra.mxu0 %v5837
        %5847 = vmatpush.bf16.msra.mxu0 %v5836
        %5848 = vmatpush.bf16.msra.mxu0 %v5835
        %5849 = vmatpush.bf16.msra.mxu0 %v5834
        %5850 = vmatpush.bf16.msra.mxu0 %v5833
        %5851 = vmatpush.bf16.msra.mxu0 %v5832
        %5852 = vmatpush.bf16.msra.mxu0 %v5831
        %5853 = vmatpush.bf16.msra.mxu0 %v5830
        %5854 = vmatmul.bf16.gmra.mxu0 %v5796
        %v5855 = vpop.f32.mrf.mxu0
        %v5856 = vadd.f32 0.0, %v5855
        %v5857 = vpop.f32.mrf.mxu0
        %v5858 = vadd.f32 0.0, %v5857
        %5859 = vdwg.mxu0
        %v5860 = vadd.f32 %v5788, %v5856
        %v5861 = vadd.f32 %v5789, %v5858
        %v5862 = vld [vmem:[#allocation2 + $0xc8] sm:$0xf]
        %v5863 = vld [vmem:[#allocation2 + $0xcc] sm:$0xf]
        %v5866 = vunpack.c.l.b16 %v5862
        %v5867 = vunpack.c.l.b16 %v5863
        %v5868 = vpack.c.b16 %v5867, %v5866
        %v5886 = vunpack.c.l.b16 %v4289
        %v5887 = vunpack.c.l.b16 %v4290
        %v5888 = vunpack.c.l.b16 %v4291
        %v5889 = vunpack.c.l.b16 %v4292
        %v5890 = vunpack.c.l.b16 %v4293
        %v5891 = vunpack.c.l.b16 %v4294
        %v5892 = vunpack.c.l.b16 %v4295
        %v5893 = vunpack.c.l.b16 %v4296
        %v5894 = vunpack.c.l.b16 %v4297
        %v5895 = vunpack.c.l.b16 %v4298
        %v5896 = vunpack.c.l.b16 %v4299
        %v5897 = vunpack.c.l.b16 %v4300
        %v5898 = vunpack.c.l.b16 %v4301
        %v5899 = vunpack.c.l.b16 %v4302
        %v5900 = vunpack.c.l.b16 %v4303
        %v5901 = vunpack.c.l.b16 %v4304
        %v5902 = vpack.c.b16 %v5887, %v5886
        %v5903 = vpack.c.b16 %v5889, %v5888
        %v5904 = vpack.c.b16 %v5891, %v5890
        %v5905 = vpack.c.b16 %v5893, %v5892
        %v5906 = vpack.c.b16 %v5895, %v5894
        %v5907 = vpack.c.b16 %v5897, %v5896
        %v5908 = vpack.c.b16 %v5899, %v5898
        %v5909 = vpack.c.b16 %v5901, %v5900
        %5918 = vmatpush.bf16.msra.mxu0 %v5909
        %5919 = vmatpush.bf16.msra.mxu0 %v5908
        %5920 = vmatpush.bf16.msra.mxu0 %v5907
        %5921 = vmatpush.bf16.msra.mxu0 %v5906
        %5922 = vmatpush.bf16.msra.mxu0 %v5905
        %5923 = vmatpush.bf16.msra.mxu0 %v5904
        %5924 = vmatpush.bf16.msra.mxu0 %v5903
        %5925 = vmatpush.bf16.msra.mxu0 %v5902
        %5926 = vmatmul.bf16.gmra.mxu0 %v5868
        %v5927 = vpop.f32.mrf.mxu0
        %v5928 = vadd.f32 0.0, %v5927
        %v5929 = vpop.f32.mrf.mxu0
        %v5930 = vadd.f32 0.0, %v5929
        %5931 = vdwg.mxu0
        %v5932 = vadd.f32 %v5860, %v5928
        %v5933 = vadd.f32 %v5861, %v5930
        %v5934 = vld [vmem:[#allocation2 + $0xd0] sm:$0xf]
        %v5935 = vld [vmem:[#allocation2 + $0xd4] sm:$0xf]
        %v5938 = vunpack.c.l.b16 %v5934
        %v5939 = vunpack.c.l.b16 %v5935
        %v5940 = vpack.c.b16 %v5939, %v5938
        %v5958 = vunpack.c.l.b16 %v4305
        %v5959 = vunpack.c.l.b16 %v4306
        %v5960 = vunpack.c.l.b16 %v4307
        %v5961 = vunpack.c.l.b16 %v4308
        %v5962 = vunpack.c.l.b16 %v4309
        %v5963 = vunpack.c.l.b16 %v4310
        %v5964 = vunpack.c.l.b16 %v4311
        %v5965 = vunpack.c.l.b16 %v4312
        %v5966 = vunpack.c.l.b16 %v4313
        %v5967 = vunpack.c.l.b16 %v4314
        %v5968 = vunpack.c.l.b16 %v4315
        %v5969 = vunpack.c.l.b16 %v4316
        %v5970 = vunpack.c.l.b16 %v4317
        %v5971 = vunpack.c.l.b16 %v4318
        %v5972 = vunpack.c.l.b16 %v4319
        %v5973 = vunpack.c.l.b16 %v4320
        %v5974 = vpack.c.b16 %v5959, %v5958
        %v5975 = vpack.c.b16 %v5961, %v5960
        %v5976 = vpack.c.b16 %v5963, %v5962
        %v5977 = vpack.c.b16 %v5965, %v5964
        %v5978 = vpack.c.b16 %v5967, %v5966
        %v5979 = vpack.c.b16 %v5969, %v5968
        %v5980 = vpack.c.b16 %v5971, %v5970
        %v5981 = vpack.c.b16 %v5973, %v5972
        %5990 = vmatpush.bf16.msra.mxu0 %v5981
        %5991 = vmatpush.bf16.msra.mxu0 %v5980
        %5992 = vmatpush.bf16.msra.mxu0 %v5979
        %5993 = vmatpush.bf16.msra.mxu0 %v5978
        %5994 = vmatpush.bf16.msra.mxu0 %v5977
        %5995 = vmatpush.bf16.msra.mxu0 %v5976
        %5996 = vmatpush.bf16.msra.mxu0 %v5975
        %5997 = vmatpush.bf16.msra.mxu0 %v5974
        %5998 = vmatmul.bf16.gmra.mxu0 %v5940
        %v5999 = vpop.f32.mrf.mxu0
        %v6000 = vadd.f32 0.0, %v5999
        %v6001 = vpop.f32.mrf.mxu0
        %v6002 = vadd.f32 0.0, %v6001
        %6003 = vdwg.mxu0
        %v6004 = vadd.f32 %v5932, %v6000
        %v6005 = vadd.f32 %v5933, %v6002
        %v6006 = vld [vmem:[#allocation2 + $0xd8] sm:$0xf]
        %v6007 = vld [vmem:[#allocation2 + $0xdc] sm:$0xf]
        %v6010 = vunpack.c.l.b16 %v6006
        %v6011 = vunpack.c.l.b16 %v6007
        %v6012 = vpack.c.b16 %v6011, %v6010
        %v6030 = vunpack.c.l.b16 %v4321
        %v6031 = vunpack.c.l.b16 %v4322
        %v6032 = vunpack.c.l.b16 %v4323
        %v6033 = vunpack.c.l.b16 %v4324
        %v6034 = vunpack.c.l.b16 %v4325
        %v6035 = vunpack.c.l.b16 %v4326
        %v6036 = vunpack.c.l.b16 %v4327
        %v6037 = vunpack.c.l.b16 %v4328
        %v6038 = vunpack.c.l.b16 %v4329
        %v6039 = vunpack.c.l.b16 %v4330
        %v6040 = vunpack.c.l.b16 %v4331
        %v6041 = vunpack.c.l.b16 %v4332
        %v6042 = vunpack.c.l.b16 %v4333
        %v6043 = vunpack.c.l.b16 %v4334
        %v6044 = vunpack.c.l.b16 %v4335
        %v6045 = vunpack.c.l.b16 %v4336
        %v6046 = vpack.c.b16 %v6031, %v6030
        %v6047 = vpack.c.b16 %v6033, %v6032
        %v6048 = vpack.c.b16 %v6035, %v6034
        %v6049 = vpack.c.b16 %v6037, %v6036
        %v6050 = vpack.c.b16 %v6039, %v6038
        %v6051 = vpack.c.b16 %v6041, %v6040
        %v6052 = vpack.c.b16 %v6043, %v6042
        %v6053 = vpack.c.b16 %v6045, %v6044
        %6062 = vmatpush.bf16.msra.mxu0 %v6053
        %6063 = vmatpush.bf16.msra.mxu0 %v6052
        %6064 = vmatpush.bf16.msra.mxu0 %v6051
        %6065 = vmatpush.bf16.msra.mxu0 %v6050
        %6066 = vmatpush.bf16.msra.mxu0 %v6049
        %6067 = vmatpush.bf16.msra.mxu0 %v6048
        %6068 = vmatpush.bf16.msra.mxu0 %v6047
        %6069 = vmatpush.bf16.msra.mxu0 %v6046
        %6070 = vmatmul.bf16.gmra.mxu0 %v6012
        %v6071 = vpop.f32.mrf.mxu0
        %v6072 = vadd.f32 0.0, %v6071
        %v6073 = vpop.f32.mrf.mxu0
        %v6074 = vadd.f32 0.0, %v6073
        %6075 = vdwg.mxu0
        %v6076 = vadd.f32 %v6004, %v6072
        %v6077 = vadd.f32 %v6005, %v6074
        %v6078 = vld [vmem:[#allocation2 + $0xe0] sm:$0xf]
        %v6079 = vld [vmem:[#allocation2 + $0xe4] sm:$0xf]
        %v6082 = vunpack.c.l.b16 %v6078
        %v6083 = vunpack.c.l.b16 %v6079
        %v6084 = vpack.c.b16 %v6083, %v6082
        %v6102 = vunpack.c.l.b16 %v4337
        %v6103 = vunpack.c.l.b16 %v4338
        %v6104 = vunpack.c.l.b16 %v4339
        %v6105 = vunpack.c.l.b16 %v4340
        %v6106 = vunpack.c.l.b16 %v4341
        %v6107 = vunpack.c.l.b16 %v4342
        %v6108 = vunpack.c.l.b16 %v4343
        %v6109 = vunpack.c.l.b16 %v4344
        %v6110 = vunpack.c.l.b16 %v4345
        %v6111 = vunpack.c.l.b16 %v4346
        %v6112 = vunpack.c.l.b16 %v4347
        %v6113 = vunpack.c.l.b16 %v4348
        %v6114 = vunpack.c.l.b16 %v4349
        %v6115 = vunpack.c.l.b16 %v4350
        %v6116 = vunpack.c.l.b16 %v4351
        %v6117 = vunpack.c.l.b16 %v4352
        %v6118 = vpack.c.b16 %v6103, %v6102
        %v6119 = vpack.c.b16 %v6105, %v6104
        %v6120 = vpack.c.b16 %v6107, %v6106
        %v6121 = vpack.c.b16 %v6109, %v6108
        %v6122 = vpack.c.b16 %v6111, %v6110
        %v6123 = vpack.c.b16 %v6113, %v6112
        %v6124 = vpack.c.b16 %v6115, %v6114
        %v6125 = vpack.c.b16 %v6117, %v6116
        %6134 = vmatpush.bf16.msra.mxu0 %v6125
        %6135 = vmatpush.bf16.msra.mxu0 %v6124
        %6136 = vmatpush.bf16.msra.mxu0 %v6123
        %6137 = vmatpush.bf16.msra.mxu0 %v6122
        %6138 = vmatpush.bf16.msra.mxu0 %v6121
        %6139 = vmatpush.bf16.msra.mxu0 %v6120
        %6140 = vmatpush.bf16.msra.mxu0 %v6119
        %6141 = vmatpush.bf16.msra.mxu0 %v6118
        %6142 = vmatmul.bf16.gmra.mxu0 %v6084
        %v6143 = vpop.f32.mrf.mxu0
        %v6144 = vadd.f32 0.0, %v6143
        %v6145 = vpop.f32.mrf.mxu0
        %v6146 = vadd.f32 0.0, %v6145
        %6147 = vdwg.mxu0
        %v6148 = vadd.f32 %v6076, %v6144
        %v6149 = vadd.f32 %v6077, %v6146
        %6150 = vmatpush.bf16.msra.mxu0 %v4403
        %6151 = vmatpush.bf16.msra.mxu0 %v4402
        %6152 = vmatpush.bf16.msra.mxu0 %v4401
        %6153 = vmatpush.bf16.msra.mxu0 %v4400
        %6154 = vmatpush.bf16.msra.mxu0 %v4399
        %6155 = vmatpush.bf16.msra.mxu0 %v4398
        %6156 = vmatpush.bf16.msra.mxu0 %v4397
        %6157 = vmatpush.bf16.msra.mxu0 %v4396
        %6158 = vmatmul.bf16.gmra.mxu0 %v4500
        %v6159 = vpop.f32.mrf.mxu0
        %v6160 = vadd.f32 0.0, %v6159
        %v6161 = vpop.f32.mrf.mxu0
        %v6162 = vadd.f32 0.0, %v6161
        %6163 = vdwg.mxu0
        %6164 = vmatpush.bf16.msra.mxu0 %v4471
        %6165 = vmatpush.bf16.msra.mxu0 %v4470
        %6166 = vmatpush.bf16.msra.mxu0 %v4469
        %6167 = vmatpush.bf16.msra.mxu0 %v4468
        %6168 = vmatpush.bf16.msra.mxu0 %v4467
        %6169 = vmatpush.bf16.msra.mxu0 %v4466
        %6170 = vmatpush.bf16.msra.mxu0 %v4465
        %6171 = vmatpush.bf16.msra.mxu0 %v4464
        %6172 = vmatmul.bf16.gmra.mxu0 %v4362
        %v6173 = vpop.f32.mrf.mxu0
        %v6174 = vadd.f32 %v6160, %v6173
        %v6175 = vpop.f32.mrf.mxu0
        %v6176 = vadd.f32 %v6162, %v6175
        %6177 = vdwg.mxu0
        %6178 = vmatpush.bf16.msra.mxu0 %v4541
        %6179 = vmatpush.bf16.msra.mxu0 %v4540
        %6180 = vmatpush.bf16.msra.mxu0 %v4539
        %6181 = vmatpush.bf16.msra.mxu0 %v4538
        %6182 = vmatpush.bf16.msra.mxu0 %v4537
        %6183 = vmatpush.bf16.msra.mxu0 %v4536
        %6184 = vmatpush.bf16.msra.mxu0 %v4535
        %6185 = vmatpush.bf16.msra.mxu0 %v4534
        %6186 = vmatmul.bf16.gmra.mxu0 %v4572
        %v6187 = vpop.f32.mrf.mxu0
        %v6188 = vadd.f32 0.0, %v6187
        %v6189 = vpop.f32.mrf.mxu0
        %v6190 = vadd.f32 0.0, %v6189
        %6191 = vdwg.mxu0
        %v6192 = vadd.f32 %v6174, %v6188
        %v6193 = vadd.f32 %v6176, %v6190
        %6194 = vmatpush.bf16.msra.mxu0 %v4613
        %6195 = vmatpush.bf16.msra.mxu0 %v4612
        %6196 = vmatpush.bf16.msra.mxu0 %v4611
        %6197 = vmatpush.bf16.msra.mxu0 %v4610
        %6198 = vmatpush.bf16.msra.mxu0 %v4609
        %6199 = vmatpush.bf16.msra.mxu0 %v4608
        %6200 = vmatpush.bf16.msra.mxu0 %v4607
        %6201 = vmatpush.bf16.msra.mxu0 %v4606
        %6202 = vmatmul.bf16.gmra.mxu0 %v4644
        %v6203 = vpop.f32.mrf.mxu0
        %v6204 = vadd.f32 0.0, %v6203
        %v6205 = vpop.f32.mrf.mxu0
        %v6206 = vadd.f32 0.0, %v6205
        %6207 = vdwg.mxu0
        %v6208 = vadd.f32 %v6192, %v6204
        %v6209 = vadd.f32 %v6193, %v6206
        %v6210 = vld [vmem:[#allocation2 + $0x28] sm:$0xf]
        %v6211 = vld [vmem:[#allocation2 + $0x2c] sm:$0xf]
        %v6214 = vunpack.c.l.b16 %v6210
        %v6215 = vunpack.c.l.b16 %v6211
        %v6216 = vpack.c.b16 %v6215, %v6214
        %6218 = vmatpush.bf16.msra.mxu0 %v4685
        %6219 = vmatpush.bf16.msra.mxu0 %v4684
        %6220 = vmatpush.bf16.msra.mxu0 %v4683
        %6221 = vmatpush.bf16.msra.mxu0 %v4682
        %6222 = vmatpush.bf16.msra.mxu0 %v4681
        %6223 = vmatpush.bf16.msra.mxu0 %v4680
        %6224 = vmatpush.bf16.msra.mxu0 %v4679
        %6225 = vmatpush.bf16.msra.mxu0 %v4678
        %6226 = vmatmul.bf16.gmra.mxu0 %v6216
        %v6227 = vpop.f32.mrf.mxu0
        %v6228 = vadd.f32 0.0, %v6227
        %v6229 = vpop.f32.mrf.mxu0
        %v6230 = vadd.f32 0.0, %v6229
        %6231 = vdwg.mxu0
        %v6232 = vadd.f32 %v6208, %v6228
        %v6233 = vadd.f32 %v6209, %v6230
        %6234 = vmatpush.bf16.msra.mxu0 %v4757
        %6235 = vmatpush.bf16.msra.mxu0 %v4756
        %6236 = vmatpush.bf16.msra.mxu0 %v4755
        %6237 = vmatpush.bf16.msra.mxu0 %v4754
        %6238 = vmatpush.bf16.msra.mxu0 %v4753
        %6239 = vmatpush.bf16.msra.mxu0 %v4752
        %6240 = vmatpush.bf16.msra.mxu0 %v4751
        %6241 = vmatpush.bf16.msra.mxu0 %v4750
        %6242 = vmatmul.bf16.gmra.mxu0 %v4788
        %v6243 = vpop.f32.mrf.mxu0
        %v6244 = vadd.f32 0.0, %v6243
        %v6245 = vpop.f32.mrf.mxu0
        %v6246 = vadd.f32 0.0, %v6245
        %6247 = vdwg.mxu0
        %v6248 = vadd.f32 %v6232, %v6244
        %v6249 = vadd.f32 %v6233, %v6246
        %6250 = vmatpush.bf16.msra.mxu0 %v4829
        %6251 = vmatpush.bf16.msra.mxu0 %v4828
        %6252 = vmatpush.bf16.msra.mxu0 %v4827
        %6253 = vmatpush.bf16.msra.mxu0 %v4826
        %6254 = vmatpush.bf16.msra.mxu0 %v4825
        %6255 = vmatpush.bf16.msra.mxu0 %v4824
        %6256 = vmatpush.bf16.msra.mxu0 %v4823
        %6257 = vmatpush.bf16.msra.mxu0 %v4822
        %6258 = vmatmul.bf16.gmra.mxu0 %v4860
        %v6259 = vpop.f32.mrf.mxu0
        %v6260 = vadd.f32 0.0, %v6259
        %v6261 = vpop.f32.mrf.mxu0
        %v6262 = vadd.f32 0.0, %v6261
        %6263 = vdwg.mxu0
        %v6264 = vadd.f32 %v6248, %v6260
        %v6265 = vadd.f32 %v6249, %v6262
        %6266 = vmatpush.bf16.msra.mxu0 %v4901
        %6267 = vmatpush.bf16.msra.mxu0 %v4900
        %6268 = vmatpush.bf16.msra.mxu0 %v4899
        %6269 = vmatpush.bf16.msra.mxu0 %v4898
        %6270 = vmatpush.bf16.msra.mxu0 %v4897
        %6271 = vmatpush.bf16.msra.mxu0 %v4896
        %6272 = vmatpush.bf16.msra.mxu0 %v4895
        %6273 = vmatpush.bf16.msra.mxu0 %v4894
        %6274 = vmatmul.bf16.gmra.mxu0 %v4932
        %v6275 = vpop.f32.mrf.mxu0
        %v6276 = vadd.f32 0.0, %v6275
        %v6277 = vpop.f32.mrf.mxu0
        %v6278 = vadd.f32 0.0, %v6277
        %6279 = vdwg.mxu0
        %v6280 = vadd.f32 %v6264, %v6276
        %v6281 = vadd.f32 %v6265, %v6278
        %6282 = vmatpush.bf16.msra.mxu0 %v4973
        %6283 = vmatpush.bf16.msra.mxu0 %v4972
        %6284 = vmatpush.bf16.msra.mxu0 %v4971
        %6285 = vmatpush.bf16.msra.mxu0 %v4970
        %6286 = vmatpush.bf16.msra.mxu0 %v4969
        %6287 = vmatpush.bf16.msra.mxu0 %v4968
        %6288 = vmatpush.bf16.msra.mxu0 %v4967
        %6289 = vmatpush.bf16.msra.mxu0 %v4966
        %6290 = vmatmul.bf16.gmra.mxu0 %v5004
        %v6291 = vpop.f32.mrf.mxu0
        %v6292 = vadd.f32 0.0, %v6291
        %v6293 = vpop.f32.mrf.mxu0
        %v6294 = vadd.f32 0.0, %v6293
        %6295 = vdwg.mxu0
        %v6296 = vadd.f32 %v6280, %v6292
        %v6297 = vadd.f32 %v6281, %v6294
        %v6298 = vld [vmem:[#allocation2 + $0x58] sm:$0xf]
        %v6299 = vld [vmem:[#allocation2 + $0x5c] sm:$0xf]
        %v6302 = vunpack.c.l.b16 %v6298
        %v6303 = vunpack.c.l.b16 %v6299
        %v6304 = vpack.c.b16 %v6303, %v6302
        %6306 = vmatpush.bf16.msra.mxu0 %v5045
        %6307 = vmatpush.bf16.msra.mxu0 %v5044
        %6308 = vmatpush.bf16.msra.mxu0 %v5043
        %6309 = vmatpush.bf16.msra.mxu0 %v5042
        %6310 = vmatpush.bf16.msra.mxu0 %v5041
        %6311 = vmatpush.bf16.msra.mxu0 %v5040
        %6312 = vmatpush.bf16.msra.mxu0 %v5039
        %6313 = vmatpush.bf16.msra.mxu0 %v5038
        %6314 = vmatmul.bf16.gmra.mxu0 %v6304
        %v6315 = vpop.f32.mrf.mxu0
        %v6316 = vadd.f32 0.0, %v6315
        %v6317 = vpop.f32.mrf.mxu0
        %v6318 = vadd.f32 0.0, %v6317
        %6319 = vdwg.mxu0
        %v6320 = vadd.f32 %v6296, %v6316
        %v6321 = vadd.f32 %v6297, %v6318
        %6322 = vmatpush.bf16.msra.mxu0 %v5117
        %6323 = vmatpush.bf16.msra.mxu0 %v5116
        %6324 = vmatpush.bf16.msra.mxu0 %v5115
        %6325 = vmatpush.bf16.msra.mxu0 %v5114
        %6326 = vmatpush.bf16.msra.mxu0 %v5113
        %6327 = vmatpush.bf16.msra.mxu0 %v5112
        %6328 = vmatpush.bf16.msra.mxu0 %v5111
        %6329 = vmatpush.bf16.msra.mxu0 %v5110
        %6330 = vmatmul.bf16.gmra.mxu0 %v5148
        %v6331 = vpop.f32.mrf.mxu0
        %v6332 = vadd.f32 0.0, %v6331
        %v6333 = vpop.f32.mrf.mxu0
        %v6334 = vadd.f32 0.0, %v6333
        %6335 = vdwg.mxu0
        %v6336 = vadd.f32 %v6320, %v6332
        %v6337 = vadd.f32 %v6321, %v6334
        %6338 = vmatpush.bf16.msra.mxu0 %v5189
        %6339 = vmatpush.bf16.msra.mxu0 %v5188
        %6340 = vmatpush.bf16.msra.mxu0 %v5187
        %6341 = vmatpush.bf16.msra.mxu0 %v5186
        %6342 = vmatpush.bf16.msra.mxu0 %v5185
        %6343 = vmatpush.bf16.msra.mxu0 %v5184
        %6344 = vmatpush.bf16.msra.mxu0 %v5183
        %6345 = vmatpush.bf16.msra.mxu0 %v5182
        %6346 = vmatmul.bf16.gmra.mxu0 %v5220
        %v6347 = vpop.f32.mrf.mxu0
        %v6348 = vadd.f32 0.0, %v6347
        %v6349 = vpop.f32.mrf.mxu0
        %v6350 = vadd.f32 0.0, %v6349
        %6351 = vdwg.mxu0
        %v6352 = vadd.f32 %v6336, %v6348
        %v6353 = vadd.f32 %v6337, %v6350
        %6354 = vmatpush.bf16.msra.mxu0 %v5261
        %6355 = vmatpush.bf16.msra.mxu0 %v5260
        %6356 = vmatpush.bf16.msra.mxu0 %v5259
        %6357 = vmatpush.bf16.msra.mxu0 %v5258
        %6358 = vmatpush.bf16.msra.mxu0 %v5257
        %6359 = vmatpush.bf16.msra.mxu0 %v5256
        %6360 = vmatpush.bf16.msra.mxu0 %v5255
        %6361 = vmatpush.bf16.msra.mxu0 %v5254
        %6362 = vmatmul.bf16.gmra.mxu0 %v5292
        %v6363 = vpop.f32.mrf.mxu0
        %v6364 = vadd.f32 0.0, %v6363
        %v6365 = vpop.f32.mrf.mxu0
        %v6366 = vadd.f32 0.0, %v6365
        %6367 = vdwg.mxu0
        %v6368 = vadd.f32 %v6352, %v6364
        %v6369 = vadd.f32 %v6353, %v6366
        %6370 = vmatpush.bf16.msra.mxu0 %v5333
        %6371 = vmatpush.bf16.msra.mxu0 %v5332
        %6372 = vmatpush.bf16.msra.mxu0 %v5331
        %6373 = vmatpush.bf16.msra.mxu0 %v5330
        %6374 = vmatpush.bf16.msra.mxu0 %v5329
        %6375 = vmatpush.bf16.msra.mxu0 %v5328
        %6376 = vmatpush.bf16.msra.mxu0 %v5327
        %6377 = vmatpush.bf16.msra.mxu0 %v5326
        %6378 = vmatmul.bf16.gmra.mxu0 %v5364
        %v6379 = vpop.f32.mrf.mxu0
        %v6380 = vadd.f32 0.0, %v6379
        %v6381 = vpop.f32.mrf.mxu0
        %v6382 = vadd.f32 0.0, %v6381
        %6383 = vdwg.mxu0
        %v6384 = vadd.f32 %v6368, %v6380
        %v6385 = vadd.f32 %v6369, %v6382
        %v6386 = vld [vmem:[#allocation2 + $0x88] sm:$0xf]
        %v6387 = vld [vmem:[#allocation2 + $0x8c] sm:$0xf]
        %v6390 = vunpack.c.l.b16 %v6386
        %v6391 = vunpack.c.l.b16 %v6387
        %v6392 = vpack.c.b16 %v6391, %v6390
        %6394 = vmatpush.bf16.msra.mxu0 %v5405
        %6395 = vmatpush.bf16.msra.mxu0 %v5404
        %6396 = vmatpush.bf16.msra.mxu0 %v5403
        %6397 = vmatpush.bf16.msra.mxu0 %v5402
        %6398 = vmatpush.bf16.msra.mxu0 %v5401
        %6399 = vmatpush.bf16.msra.mxu0 %v5400
        %6400 = vmatpush.bf16.msra.mxu0 %v5399
        %6401 = vmatpush.bf16.msra.mxu0 %v5398
        %6402 = vmatmul.bf16.gmra.mxu0 %v6392
        %v6403 = vpop.f32.mrf.mxu0
        %v6404 = vadd.f32 0.0, %v6403
        %v6405 = vpop.f32.mrf.mxu0
        %v6406 = vadd.f32 0.0, %v6405
        %6407 = vdwg.mxu0
        %v6408 = vadd.f32 %v6384, %v6404
        %v6409 = vadd.f32 %v6385, %v6406
        %6410 = vmatpush.bf16.msra.mxu0 %v5477
        %6411 = vmatpush.bf16.msra.mxu0 %v5476
        %6412 = vmatpush.bf16.msra.mxu0 %v5475
        %6413 = vmatpush.bf16.msra.mxu0 %v5474
        %6414 = vmatpush.bf16.msra.mxu0 %v5473
        %6415 = vmatpush.bf16.msra.mxu0 %v5472
        %6416 = vmatpush.bf16.msra.mxu0 %v5471
        %6417 = vmatpush.bf16.msra.mxu0 %v5470
        %6418 = vmatmul.bf16.gmra.mxu0 %v5508
        %v6419 = vpop.f32.mrf.mxu0
        %v6420 = vadd.f32 0.0, %v6419
        %v6421 = vpop.f32.mrf.mxu0
        %v6422 = vadd.f32 0.0, %v6421
        %6423 = vdwg.mxu0
        %v6424 = vadd.f32 %v6408, %v6420
        %v6425 = vadd.f32 %v6409, %v6422
        %6426 = vmatpush.bf16.msra.mxu0 %v5549
        %6427 = vmatpush.bf16.msra.mxu0 %v5548
        %6428 = vmatpush.bf16.msra.mxu0 %v5547
        %6429 = vmatpush.bf16.msra.mxu0 %v5546
        %6430 = vmatpush.bf16.msra.mxu0 %v5545
        %6431 = vmatpush.bf16.msra.mxu0 %v5544
        %6432 = vmatpush.bf16.msra.mxu0 %v5543
        %6433 = vmatpush.bf16.msra.mxu0 %v5542
        %6434 = vmatmul.bf16.gmra.mxu0 %v5580
        %v6435 = vpop.f32.mrf.mxu0
        %v6436 = vadd.f32 0.0, %v6435
        %v6437 = vpop.f32.mrf.mxu0
        %v6438 = vadd.f32 0.0, %v6437
        %6439 = vdwg.mxu0
        %v6440 = vadd.f32 %v6424, %v6436
        %v6441 = vadd.f32 %v6425, %v6438
        %6442 = vmatpush.bf16.msra.mxu0 %v5621
        %6443 = vmatpush.bf16.msra.mxu0 %v5620
        %6444 = vmatpush.bf16.msra.mxu0 %v5619
        %6445 = vmatpush.bf16.msra.mxu0 %v5618
        %6446 = vmatpush.bf16.msra.mxu0 %v5617
        %6447 = vmatpush.bf16.msra.mxu0 %v5616
        %6448 = vmatpush.bf16.msra.mxu0 %v5615
        %6449 = vmatpush.bf16.msra.mxu0 %v5614
        %6450 = vmatmul.bf16.gmra.mxu0 %v5652
        %v6451 = vpop.f32.mrf.mxu0
        %v6452 = vadd.f32 0.0, %v6451
        %v6453 = vpop.f32.mrf.mxu0
        %v6454 = vadd.f32 0.0, %v6453
        %6455 = vdwg.mxu0
        %v6456 = vadd.f32 %v6440, %v6452
        %v6457 = vadd.f32 %v6441, %v6454
        %6458 = vmatpush.bf16.msra.mxu0 %v5693
        %6459 = vmatpush.bf16.msra.mxu0 %v5692
        %6460 = vmatpush.bf16.msra.mxu0 %v5691
        %6461 = vmatpush.bf16.msra.mxu0 %v5690
        %6462 = vmatpush.bf16.msra.mxu0 %v5689
        %6463 = vmatpush.bf16.msra.mxu0 %v5688
        %6464 = vmatpush.bf16.msra.mxu0 %v5687
        %6465 = vmatpush.bf16.msra.mxu0 %v5686
        %6466 = vmatmul.bf16.gmra.mxu0 %v5724
        %v6467 = vpop.f32.mrf.mxu0
        %v6468 = vadd.f32 0.0, %v6467
        %v6469 = vpop.f32.mrf.mxu0
        %v6470 = vadd.f32 0.0, %v6469
        %6471 = vdwg.mxu0
        %v6472 = vadd.f32 %v6456, %v6468
        %v6473 = vadd.f32 %v6457, %v6470
        %v6474 = vld [vmem:[#allocation2 + $0xb8] sm:$0xf]
        %v6475 = vld [vmem:[#allocation2 + $0xbc] sm:$0xf]
        %v6478 = vunpack.c.l.b16 %v6474
        %v6479 = vunpack.c.l.b16 %v6475
        %v6480 = vpack.c.b16 %v6479, %v6478
        %6482 = vmatpush.bf16.msra.mxu0 %v5765
        %6483 = vmatpush.bf16.msra.mxu0 %v5764
        %6484 = vmatpush.bf16.msra.mxu0 %v5763
        %6485 = vmatpush.bf16.msra.mxu0 %v5762
        %6486 = vmatpush.bf16.msra.mxu0 %v5761
        %6487 = vmatpush.bf16.msra.mxu0 %v5760
        %6488 = vmatpush.bf16.msra.mxu0 %v5759
        %6489 = vmatpush.bf16.msra.mxu0 %v5758
        %6490 = vmatmul.bf16.gmra.mxu0 %v6480
        %v6491 = vpop.f32.mrf.mxu0
        %v6492 = vadd.f32 0.0, %v6491
        %v6493 = vpop.f32.mrf.mxu0
        %v6494 = vadd.f32 0.0, %v6493
        %6495 = vdwg.mxu0
        %v6496 = vadd.f32 %v6472, %v6492
        %v6497 = vadd.f32 %v6473, %v6494
        %6498 = vmatpush.bf16.msra.mxu0 %v5837
        %6499 = vmatpush.bf16.msra.mxu0 %v5836
        %6500 = vmatpush.bf16.msra.mxu0 %v5835
        %6501 = vmatpush.bf16.msra.mxu0 %v5834
        %6502 = vmatpush.bf16.msra.mxu0 %v5833
        %6503 = vmatpush.bf16.msra.mxu0 %v5832
        %6504 = vmatpush.bf16.msra.mxu0 %v5831
        %6505 = vmatpush.bf16.msra.mxu0 %v5830
        %6506 = vmatmul.bf16.gmra.mxu0 %v5868
        %v6507 = vpop.f32.mrf.mxu0
        %v6508 = vadd.f32 0.0, %v6507
        %v6509 = vpop.f32.mrf.mxu0
        %v6510 = vadd.f32 0.0, %v6509
        %6511 = vdwg.mxu0
        %v6512 = vadd.f32 %v6496, %v6508
        %v6513 = vadd.f32 %v6497, %v6510
        %6514 = vmatpush.bf16.msra.mxu0 %v5909
        %6515 = vmatpush.bf16.msra.mxu0 %v5908
        %6516 = vmatpush.bf16.msra.mxu0 %v5907
        %6517 = vmatpush.bf16.msra.mxu0 %v5906
        %6518 = vmatpush.bf16.msra.mxu0 %v5905
        %6519 = vmatpush.bf16.msra.mxu0 %v5904
        %6520 = vmatpush.bf16.msra.mxu0 %v5903
        %6521 = vmatpush.bf16.msra.mxu0 %v5902
        %6522 = vmatmul.bf16.gmra.mxu0 %v5940
        %v6523 = vpop.f32.mrf.mxu0
        %v6524 = vadd.f32 0.0, %v6523
        %v6525 = vpop.f32.mrf.mxu0
        %v6526 = vadd.f32 0.0, %v6525
        %6527 = vdwg.mxu0
        %v6528 = vadd.f32 %v6512, %v6524
        %v6529 = vadd.f32 %v6513, %v6526
        %6530 = vmatpush.bf16.msra.mxu0 %v5981
        %6531 = vmatpush.bf16.msra.mxu0 %v5980
        %6532 = vmatpush.bf16.msra.mxu0 %v5979
        %6533 = vmatpush.bf16.msra.mxu0 %v5978
        %6534 = vmatpush.bf16.msra.mxu0 %v5977
        %6535 = vmatpush.bf16.msra.mxu0 %v5976
        %6536 = vmatpush.bf16.msra.mxu0 %v5975
        %6537 = vmatpush.bf16.msra.mxu0 %v5974
        %6538 = vmatmul.bf16.gmra.mxu0 %v6012
        %v6539 = vpop.f32.mrf.mxu0
        %v6540 = vadd.f32 0.0, %v6539
        %v6541 = vpop.f32.mrf.mxu0
        %v6542 = vadd.f32 0.0, %v6541
        %6543 = vdwg.mxu0
        %v6544 = vadd.f32 %v6528, %v6540
        %v6545 = vadd.f32 %v6529, %v6542
        %6546 = vmatpush.bf16.msra.mxu0 %v6053
        %6547 = vmatpush.bf16.msra.mxu0 %v6052
        %6548 = vmatpush.bf16.msra.mxu0 %v6051
        %6549 = vmatpush.bf16.msra.mxu0 %v6050
        %6550 = vmatpush.bf16.msra.mxu0 %v6049
        %6551 = vmatpush.bf16.msra.mxu0 %v6048
        %6552 = vmatpush.bf16.msra.mxu0 %v6047
        %6553 = vmatpush.bf16.msra.mxu0 %v6046
        %6554 = vmatmul.bf16.gmra.mxu0 %v6084
        %v6555 = vpop.f32.mrf.mxu0
        %v6556 = vadd.f32 0.0, %v6555
        %v6557 = vpop.f32.mrf.mxu0
        %v6558 = vadd.f32 0.0, %v6557
        %6559 = vdwg.mxu0
        %v6560 = vadd.f32 %v6544, %v6556
        %v6561 = vadd.f32 %v6545, %v6558
        %v6562 = vld [vmem:[#allocation2 + $0xe8] sm:$0xf]
        %v6563 = vld [vmem:[#allocation2 + $0xec] sm:$0xf]
        %v6566 = vunpack.c.l.b16 %v6562
        %v6567 = vunpack.c.l.b16 %v6563
        %v6568 = vpack.c.b16 %v6567, %v6566
        %6570 = vmatpush.bf16.msra.mxu0 %v6125
        %6571 = vmatpush.bf16.msra.mxu0 %v6124
        %6572 = vmatpush.bf16.msra.mxu0 %v6123
        %6573 = vmatpush.bf16.msra.mxu0 %v6122
        %6574 = vmatpush.bf16.msra.mxu0 %v6121
        %6575 = vmatpush.bf16.msra.mxu0 %v6120
        %6576 = vmatpush.bf16.msra.mxu0 %v6119
        %6577 = vmatpush.bf16.msra.mxu0 %v6118
        %6578 = vmatmul.bf16.gmra.mxu0 %v6568
        %v6579 = vpop.f32.mrf.mxu0
        %v6580 = vadd.f32 0.0, %v6579
        %v6581 = vpop.f32.mrf.mxu0
        %v6582 = vadd.f32 0.0, %v6581
        %6583 = vdwg.mxu0
        %v6584 = vadd.f32 %v6560, %v6580
        %v6585 = vadd.f32 %v6561, %v6582
        %v6586 = vmax.f32 %v6148, %v6584
        %v6587 = vmax.f32 %v6149, %v6585
        %6588 = vmatpush.bf16.msra.mxu0 %v4403
        %6589 = vmatpush.bf16.msra.mxu0 %v4402
        %6590 = vmatpush.bf16.msra.mxu0 %v4401
        %6591 = vmatpush.bf16.msra.mxu0 %v4400
        %6592 = vmatpush.bf16.msra.mxu0 %v4399
        %6593 = vmatpush.bf16.msra.mxu0 %v4398
        %6594 = vmatpush.bf16.msra.mxu0 %v4397
        %6595 = vmatpush.bf16.msra.mxu0 %v4396
        %6596 = vmatmul.bf16.gmra.mxu0 %v4788
        %v6597 = vpop.f32.mrf.mxu0
        %v6598 = vadd.f32 0.0, %v6597
        %v6599 = vpop.f32.mrf.mxu0
        %v6600 = vadd.f32 0.0, %v6599
        %6601 = vdwg.mxu0
        %6602 = vmatpush.bf16.msra.mxu0 %v4471
        %6603 = vmatpush.bf16.msra.mxu0 %v4470
        %6604 = vmatpush.bf16.msra.mxu0 %v4469
        %6605 = vmatpush.bf16.msra.mxu0 %v4468
        %6606 = vmatpush.bf16.msra.mxu0 %v4467
        %6607 = vmatpush.bf16.msra.mxu0 %v4466
        %6608 = vmatpush.bf16.msra.mxu0 %v4465
        %6609 = vmatpush.bf16.msra.mxu0 %v4464
        %6610 = vmatmul.bf16.gmra.mxu0 %v4716
        %v6611 = vpop.f32.mrf.mxu0
        %v6612 = vadd.f32 %v6598, %v6611
        %v6613 = vpop.f32.mrf.mxu0
        %v6614 = vadd.f32 %v6600, %v6613
        %6615 = vdwg.mxu0
        %6616 = vmatpush.bf16.msra.mxu0 %v4541
        %6617 = vmatpush.bf16.msra.mxu0 %v4540
        %6618 = vmatpush.bf16.msra.mxu0 %v4539
        %6619 = vmatpush.bf16.msra.mxu0 %v4538
        %6620 = vmatpush.bf16.msra.mxu0 %v4537
        %6621 = vmatpush.bf16.msra.mxu0 %v4536
        %6622 = vmatpush.bf16.msra.mxu0 %v4535
        %6623 = vmatpush.bf16.msra.mxu0 %v4534
        %6624 = vmatmul.bf16.gmra.mxu0 %v4860
        %v6625 = vpop.f32.mrf.mxu0
        %v6626 = vadd.f32 0.0, %v6625
        %v6627 = vpop.f32.mrf.mxu0
        %v6628 = vadd.f32 0.0, %v6627
        %6629 = vdwg.mxu0
        %v6630 = vadd.f32 %v6612, %v6626
        %v6631 = vadd.f32 %v6614, %v6628
        %6632 = vmatpush.bf16.msra.mxu0 %v4613
        %6633 = vmatpush.bf16.msra.mxu0 %v4612
        %6634 = vmatpush.bf16.msra.mxu0 %v4611
        %6635 = vmatpush.bf16.msra.mxu0 %v4610
        %6636 = vmatpush.bf16.msra.mxu0 %v4609
        %6637 = vmatpush.bf16.msra.mxu0 %v4608
        %6638 = vmatpush.bf16.msra.mxu0 %v4607
        %6639 = vmatpush.bf16.msra.mxu0 %v4606
        %6640 = vmatmul.bf16.gmra.mxu0 %v4932
        %v6641 = vpop.f32.mrf.mxu0
        %v6642 = vadd.f32 0.0, %v6641
        %v6643 = vpop.f32.mrf.mxu0
        %v6644 = vadd.f32 0.0, %v6643
        %6645 = vdwg.mxu0
        %v6646 = vadd.f32 %v6630, %v6642
        %v6647 = vadd.f32 %v6631, %v6644
        %6648 = vmatpush.bf16.msra.mxu0 %v4685
        %6649 = vmatpush.bf16.msra.mxu0 %v4684
        %6650 = vmatpush.bf16.msra.mxu0 %v4683
        %6651 = vmatpush.bf16.msra.mxu0 %v4682
        %6652 = vmatpush.bf16.msra.mxu0 %v4681
        %6653 = vmatpush.bf16.msra.mxu0 %v4680
        %6654 = vmatpush.bf16.msra.mxu0 %v4679
        %6655 = vmatpush.bf16.msra.mxu0 %v4678
        %6656 = vmatmul.bf16.gmra.mxu0 %v5004
        %v6657 = vpop.f32.mrf.mxu0
        %v6658 = vadd.f32 0.0, %v6657
        %v6659 = vpop.f32.mrf.mxu0
        %v6660 = vadd.f32 0.0, %v6659
        %6661 = vdwg.mxu0
        %v6662 = vadd.f32 %v6646, %v6658
        %v6663 = vadd.f32 %v6647, %v6660
        %6664 = vmatpush.bf16.msra.mxu0 %v4757
        %6665 = vmatpush.bf16.msra.mxu0 %v4756
        %6666 = vmatpush.bf16.msra.mxu0 %v4755
        %6667 = vmatpush.bf16.msra.mxu0 %v4754
        %6668 = vmatpush.bf16.msra.mxu0 %v4753
        %6669 = vmatpush.bf16.msra.mxu0 %v4752
        %6670 = vmatpush.bf16.msra.mxu0 %v4751
        %6671 = vmatpush.bf16.msra.mxu0 %v4750
        %6672 = vmatmul.bf16.gmra.mxu0 %v5076
        %v6673 = vpop.f32.mrf.mxu0
        %v6674 = vadd.f32 0.0, %v6673
        %v6675 = vpop.f32.mrf.mxu0
        %v6676 = vadd.f32 0.0, %v6675
        %6677 = vdwg.mxu0
        %v6678 = vadd.f32 %v6662, %v6674
        %v6679 = vadd.f32 %v6663, %v6676
        %6680 = vmatpush.bf16.msra.mxu0 %v4829
        %6681 = vmatpush.bf16.msra.mxu0 %v4828
        %6682 = vmatpush.bf16.msra.mxu0 %v4827
        %6683 = vmatpush.bf16.msra.mxu0 %v4826
        %6684 = vmatpush.bf16.msra.mxu0 %v4825
        %6685 = vmatpush.bf16.msra.mxu0 %v4824
        %6686 = vmatpush.bf16.msra.mxu0 %v4823
        %6687 = vmatpush.bf16.msra.mxu0 %v4822
        %6688 = vmatmul.bf16.gmra.mxu0 %v5148
        %v6689 = vpop.f32.mrf.mxu0
        %v6690 = vadd.f32 0.0, %v6689
        %v6691 = vpop.f32.mrf.mxu0
        %v6692 = vadd.f32 0.0, %v6691
        %6693 = vdwg.mxu0
        %v6694 = vadd.f32 %v6678, %v6690
        %v6695 = vadd.f32 %v6679, %v6692
        %6696 = vmatpush.bf16.msra.mxu0 %v4901
        %6697 = vmatpush.bf16.msra.mxu0 %v4900
        %6698 = vmatpush.bf16.msra.mxu0 %v4899
        %6699 = vmatpush.bf16.msra.mxu0 %v4898
        %6700 = vmatpush.bf16.msra.mxu0 %v4897
        %6701 = vmatpush.bf16.msra.mxu0 %v4896
        %6702 = vmatpush.bf16.msra.mxu0 %v4895
        %6703 = vmatpush.bf16.msra.mxu0 %v4894
        %6704 = vmatmul.bf16.gmra.mxu0 %v5220
        %v6705 = vpop.f32.mrf.mxu0
        %v6706 = vadd.f32 0.0, %v6705
        %v6707 = vpop.f32.mrf.mxu0
        %v6708 = vadd.f32 0.0, %v6707
        %6709 = vdwg.mxu0
        %v6710 = vadd.f32 %v6694, %v6706
        %v6711 = vadd.f32 %v6695, %v6708
        %6712 = vmatpush.bf16.msra.mxu0 %v4973
        %6713 = vmatpush.bf16.msra.mxu0 %v4972
        %6714 = vmatpush.bf16.msra.mxu0 %v4971
        %6715 = vmatpush.bf16.msra.mxu0 %v4970
        %6716 = vmatpush.bf16.msra.mxu0 %v4969
        %6717 = vmatpush.bf16.msra.mxu0 %v4968
        %6718 = vmatpush.bf16.msra.mxu0 %v4967
        %6719 = vmatpush.bf16.msra.mxu0 %v4966
        %6720 = vmatmul.bf16.gmra.mxu0 %v5292
        %v6721 = vpop.f32.mrf.mxu0
        %v6722 = vadd.f32 0.0, %v6721
        %v6723 = vpop.f32.mrf.mxu0
        %v6724 = vadd.f32 0.0, %v6723
        %6725 = vdwg.mxu0
        %v6726 = vadd.f32 %v6710, %v6722
        %v6727 = vadd.f32 %v6711, %v6724
        %6728 = vmatpush.bf16.msra.mxu0 %v5045
        %6729 = vmatpush.bf16.msra.mxu0 %v5044
        %6730 = vmatpush.bf16.msra.mxu0 %v5043
        %6731 = vmatpush.bf16.msra.mxu0 %v5042
        %6732 = vmatpush.bf16.msra.mxu0 %v5041
        %6733 = vmatpush.bf16.msra.mxu0 %v5040
        %6734 = vmatpush.bf16.msra.mxu0 %v5039
        %6735 = vmatpush.bf16.msra.mxu0 %v5038
        %6736 = vmatmul.bf16.gmra.mxu0 %v5364
        %v6737 = vpop.f32.mrf.mxu0
        %v6738 = vadd.f32 0.0, %v6737
        %v6739 = vpop.f32.mrf.mxu0
        %v6740 = vadd.f32 0.0, %v6739
        %6741 = vdwg.mxu0
        %v6742 = vadd.f32 %v6726, %v6738
        %v6743 = vadd.f32 %v6727, %v6740
        %6744 = vmatpush.bf16.msra.mxu0 %v5117
        %6745 = vmatpush.bf16.msra.mxu0 %v5116
        %6746 = vmatpush.bf16.msra.mxu0 %v5115
        %6747 = vmatpush.bf16.msra.mxu0 %v5114
        %6748 = vmatpush.bf16.msra.mxu0 %v5113
        %6749 = vmatpush.bf16.msra.mxu0 %v5112
        %6750 = vmatpush.bf16.msra.mxu0 %v5111
        %6751 = vmatpush.bf16.msra.mxu0 %v5110
        %6752 = vmatmul.bf16.gmra.mxu0 %v5436
        %v6753 = vpop.f32.mrf.mxu0
        %v6754 = vadd.f32 0.0, %v6753
        %v6755 = vpop.f32.mrf.mxu0
        %v6756 = vadd.f32 0.0, %v6755
        %6757 = vdwg.mxu0
        %v6758 = vadd.f32 %v6742, %v6754
        %v6759 = vadd.f32 %v6743, %v6756
        %6760 = vmatpush.bf16.msra.mxu0 %v5189
        %6761 = vmatpush.bf16.msra.mxu0 %v5188
        %6762 = vmatpush.bf16.msra.mxu0 %v5187
        %6763 = vmatpush.bf16.msra.mxu0 %v5186
        %6764 = vmatpush.bf16.msra.mxu0 %v5185
        %6765 = vmatpush.bf16.msra.mxu0 %v5184
        %6766 = vmatpush.bf16.msra.mxu0 %v5183
        %6767 = vmatpush.bf16.msra.mxu0 %v5182
        %6768 = vmatmul.bf16.gmra.mxu0 %v5508
        %v6769 = vpop.f32.mrf.mxu0
        %v6770 = vadd.f32 0.0, %v6769
        %v6771 = vpop.f32.mrf.mxu0
        %v6772 = vadd.f32 0.0, %v6771
        %6773 = vdwg.mxu0
        %v6774 = vadd.f32 %v6758, %v6770
        %v6775 = vadd.f32 %v6759, %v6772
        %6776 = vmatpush.bf16.msra.mxu0 %v5261
        %6777 = vmatpush.bf16.msra.mxu0 %v5260
        %6778 = vmatpush.bf16.msra.mxu0 %v5259
        %6779 = vmatpush.bf16.msra.mxu0 %v5258
        %6780 = vmatpush.bf16.msra.mxu0 %v5257
        %6781 = vmatpush.bf16.msra.mxu0 %v5256
        %6782 = vmatpush.bf16.msra.mxu0 %v5255
        %6783 = vmatpush.bf16.msra.mxu0 %v5254
        %6784 = vmatmul.bf16.gmra.mxu0 %v5580
        %v6785 = vpop.f32.mrf.mxu0
        %v6786 = vadd.f32 0.0, %v6785
        %v6787 = vpop.f32.mrf.mxu0
        %v6788 = vadd.f32 0.0, %v6787
        %6789 = vdwg.mxu0
        %v6790 = vadd.f32 %v6774, %v6786
        %v6791 = vadd.f32 %v6775, %v6788
        %6792 = vmatpush.bf16.msra.mxu0 %v5333
        %6793 = vmatpush.bf16.msra.mxu0 %v5332
        %6794 = vmatpush.bf16.msra.mxu0 %v5331
        %6795 = vmatpush.bf16.msra.mxu0 %v5330
        %6796 = vmatpush.bf16.msra.mxu0 %v5329
        %6797 = vmatpush.bf16.msra.mxu0 %v5328
        %6798 = vmatpush.bf16.msra.mxu0 %v5327
        %6799 = vmatpush.bf16.msra.mxu0 %v5326
        %6800 = vmatmul.bf16.gmra.mxu0 %v5652
        %v6801 = vpop.f32.mrf.mxu0
        %v6802 = vadd.f32 0.0, %v6801
        %v6803 = vpop.f32.mrf.mxu0
        %v6804 = vadd.f32 0.0, %v6803
        %6805 = vdwg.mxu0
        %v6806 = vadd.f32 %v6790, %v6802
        %v6807 = vadd.f32 %v6791, %v6804
        %6808 = vmatpush.bf16.msra.mxu0 %v5405
        %6809 = vmatpush.bf16.msra.mxu0 %v5404
        %6810 = vmatpush.bf16.msra.mxu0 %v5403
        %6811 = vmatpush.bf16.msra.mxu0 %v5402
        %6812 = vmatpush.bf16.msra.mxu0 %v5401
        %6813 = vmatpush.bf16.msra.mxu0 %v5400
        %6814 = vmatpush.bf16.msra.mxu0 %v5399
        %6815 = vmatpush.bf16.msra.mxu0 %v5398
        %6816 = vmatmul.bf16.gmra.mxu0 %v5724
        %v6817 = vpop.f32.mrf.mxu0
        %v6818 = vadd.f32 0.0, %v6817
        %v6819 = vpop.f32.mrf.mxu0
        %v6820 = vadd.f32 0.0, %v6819
        %6821 = vdwg.mxu0
        %v6822 = vadd.f32 %v6806, %v6818
        %v6823 = vadd.f32 %v6807, %v6820
        %6824 = vmatpush.bf16.msra.mxu0 %v5477
        %6825 = vmatpush.bf16.msra.mxu0 %v5476
        %6826 = vmatpush.bf16.msra.mxu0 %v5475
        %6827 = vmatpush.bf16.msra.mxu0 %v5474
        %6828 = vmatpush.bf16.msra.mxu0 %v5473
        %6829 = vmatpush.bf16.msra.mxu0 %v5472
        %6830 = vmatpush.bf16.msra.mxu0 %v5471
        %6831 = vmatpush.bf16.msra.mxu0 %v5470
        %6832 = vmatmul.bf16.gmra.mxu0 %v5796
        %v6833 = vpop.f32.mrf.mxu0
        %v6834 = vadd.f32 0.0, %v6833
        %v6835 = vpop.f32.mrf.mxu0
        %v6836 = vadd.f32 0.0, %v6835
        %6837 = vdwg.mxu0
        %v6838 = vadd.f32 %v6822, %v6834
        %v6839 = vadd.f32 %v6823, %v6836
        %6840 = vmatpush.bf16.msra.mxu0 %v5549
        %6841 = vmatpush.bf16.msra.mxu0 %v5548
        %6842 = vmatpush.bf16.msra.mxu0 %v5547
        %6843 = vmatpush.bf16.msra.mxu0 %v5546
        %6844 = vmatpush.bf16.msra.mxu0 %v5545
        %6845 = vmatpush.bf16.msra.mxu0 %v5544
        %6846 = vmatpush.bf16.msra.mxu0 %v5543
        %6847 = vmatpush.bf16.msra.mxu0 %v5542
        %6848 = vmatmul.bf16.gmra.mxu0 %v5868
        %v6849 = vpop.f32.mrf.mxu0
        %v6850 = vadd.f32 0.0, %v6849
        %v6851 = vpop.f32.mrf.mxu0
        %v6852 = vadd.f32 0.0, %v6851
        %6853 = vdwg.mxu0
        %v6854 = vadd.f32 %v6838, %v6850
        %v6855 = vadd.f32 %v6839, %v6852
        %6856 = vmatpush.bf16.msra.mxu0 %v5621
        %6857 = vmatpush.bf16.msra.mxu0 %v5620
        %6858 = vmatpush.bf16.msra.mxu0 %v5619
        %6859 = vmatpush.bf16.msra.mxu0 %v5618
        %6860 = vmatpush.bf16.msra.mxu0 %v5617
        %6861 = vmatpush.bf16.msra.mxu0 %v5616
        %6862 = vmatpush.bf16.msra.mxu0 %v5615
        %6863 = vmatpush.bf16.msra.mxu0 %v5614
        %6864 = vmatmul.bf16.gmra.mxu0 %v5940
        %v6865 = vpop.f32.mrf.mxu0
        %v6866 = vadd.f32 0.0, %v6865
        %v6867 = vpop.f32.mrf.mxu0
        %v6868 = vadd.f32 0.0, %v6867
        %6869 = vdwg.mxu0
        %v6870 = vadd.f32 %v6854, %v6866
        %v6871 = vadd.f32 %v6855, %v6868
        %6872 = vmatpush.bf16.msra.mxu0 %v5693
        %6873 = vmatpush.bf16.msra.mxu0 %v5692
        %6874 = vmatpush.bf16.msra.mxu0 %v5691
        %6875 = vmatpush.bf16.msra.mxu0 %v5690
        %6876 = vmatpush.bf16.msra.mxu0 %v5689
        %6877 = vmatpush.bf16.msra.mxu0 %v5688
        %6878 = vmatpush.bf16.msra.mxu0 %v5687
        %6879 = vmatpush.bf16.msra.mxu0 %v5686
        %6880 = vmatmul.bf16.gmra.mxu0 %v6012
        %v6881 = vpop.f32.mrf.mxu0
        %v6882 = vadd.f32 0.0, %v6881
        %v6883 = vpop.f32.mrf.mxu0
        %v6884 = vadd.f32 0.0, %v6883
        %6885 = vdwg.mxu0
        %v6886 = vadd.f32 %v6870, %v6882
        %v6887 = vadd.f32 %v6871, %v6884
        %6888 = vmatpush.bf16.msra.mxu0 %v5765
        %6889 = vmatpush.bf16.msra.mxu0 %v5764
        %6890 = vmatpush.bf16.msra.mxu0 %v5763
        %6891 = vmatpush.bf16.msra.mxu0 %v5762
        %6892 = vmatpush.bf16.msra.mxu0 %v5761
        %6893 = vmatpush.bf16.msra.mxu0 %v5760
        %6894 = vmatpush.bf16.msra.mxu0 %v5759
        %6895 = vmatpush.bf16.msra.mxu0 %v5758
        %6896 = vmatmul.bf16.gmra.mxu0 %v6084
        %v6897 = vpop.f32.mrf.mxu0
        %v6898 = vadd.f32 0.0, %v6897
        %v6899 = vpop.f32.mrf.mxu0
        %v6900 = vadd.f32 0.0, %v6899
        %6901 = vdwg.mxu0
        %v6902 = vadd.f32 %v6886, %v6898
        %v6903 = vadd.f32 %v6887, %v6900
        %v6904 = vld [vmem:[#allocation2 + $0xf0] sm:$0xf]
        %v6905 = vld [vmem:[#allocation2 + $0xf4] sm:$0xf]
        %v6908 = vunpack.c.l.b16 %v6904
        %v6909 = vunpack.c.l.b16 %v6905
        %v6910 = vpack.c.b16 %v6909, %v6908
        %6912 = vmatpush.bf16.msra.mxu0 %v5837
        %6913 = vmatpush.bf16.msra.mxu0 %v5836
        %6914 = vmatpush.bf16.msra.mxu0 %v5835
        %6915 = vmatpush.bf16.msra.mxu0 %v5834
        %6916 = vmatpush.bf16.msra.mxu0 %v5833
        %6917 = vmatpush.bf16.msra.mxu0 %v5832
        %6918 = vmatpush.bf16.msra.mxu0 %v5831
        %6919 = vmatpush.bf16.msra.mxu0 %v5830
        %6920 = vmatmul.bf16.gmra.mxu0 %v6910
        %v6921 = vpop.f32.mrf.mxu0
        %v6922 = vadd.f32 0.0, %v6921
        %v6923 = vpop.f32.mrf.mxu0
        %v6924 = vadd.f32 0.0, %v6923
        %6925 = vdwg.mxu0
        %v6926 = vadd.f32 %v6902, %v6922
        %v6927 = vadd.f32 %v6903, %v6924
        %v6928 = vld [vmem:[#allocation2 + $0xf8] sm:$0xf]
        %v6929 = vld [vmem:[#allocation2 + $0xfc] sm:$0xf]
        %v6932 = vunpack.c.l.b16 %v6928
        %v6933 = vunpack.c.l.b16 %v6929
        %v6934 = vpack.c.b16 %v6933, %v6932
        %6936 = vmatpush.bf16.msra.mxu0 %v5909
        %6937 = vmatpush.bf16.msra.mxu0 %v5908
        %6938 = vmatpush.bf16.msra.mxu0 %v5907
        %6939 = vmatpush.bf16.msra.mxu0 %v5906
        %6940 = vmatpush.bf16.msra.mxu0 %v5905
        %6941 = vmatpush.bf16.msra.mxu0 %v5904
        %6942 = vmatpush.bf16.msra.mxu0 %v5903
        %6943 = vmatpush.bf16.msra.mxu0 %v5902
        %6944 = vmatmul.bf16.gmra.mxu0 %v6934
        %v6945 = vpop.f32.mrf.mxu0
        %v6946 = vadd.f32 0.0, %v6945
        %v6947 = vpop.f32.mrf.mxu0
        %v6948 = vadd.f32 0.0, %v6947
        %6949 = vdwg.mxu0
        %v6950 = vadd.f32 %v6926, %v6946
        %v6951 = vadd.f32 %v6927, %v6948
        %v6952 = vld [vmem:[#allocation2 + $0x100] sm:$0xf]
        %v6953 = vld [vmem:[#allocation2 + $0x104] sm:$0xf]
        %v6956 = vunpack.c.l.b16 %v6952
        %v6957 = vunpack.c.l.b16 %v6953
        %v6958 = vpack.c.b16 %v6957, %v6956
        %6960 = vmatpush.bf16.msra.mxu0 %v5981
        %6961 = vmatpush.bf16.msra.mxu0 %v5980
        %6962 = vmatpush.bf16.msra.mxu0 %v5979
        %6963 = vmatpush.bf16.msra.mxu0 %v5978
        %6964 = vmatpush.bf16.msra.mxu0 %v5977
        %6965 = vmatpush.bf16.msra.mxu0 %v5976
        %6966 = vmatpush.bf16.msra.mxu0 %v5975
        %6967 = vmatpush.bf16.msra.mxu0 %v5974
        %6968 = vmatmul.bf16.gmra.mxu0 %v6958
        %v6969 = vpop.f32.mrf.mxu0
        %v6970 = vadd.f32 0.0, %v6969
        %v6971 = vpop.f32.mrf.mxu0
        %v6972 = vadd.f32 0.0, %v6971
        %6973 = vdwg.mxu0
        %v6974 = vadd.f32 %v6950, %v6970
        %v6975 = vadd.f32 %v6951, %v6972
        %v6976 = vld [vmem:[#allocation2 + $0x108] sm:$0xf]
        %v6977 = vld [vmem:[#allocation2 + $0x10c] sm:$0xf]
        %v6980 = vunpack.c.l.b16 %v6976
        %v6981 = vunpack.c.l.b16 %v6977
        %v6982 = vpack.c.b16 %v6981, %v6980
        %6984 = vmatpush.bf16.msra.mxu0 %v6053
        %6985 = vmatpush.bf16.msra.mxu0 %v6052
        %6986 = vmatpush.bf16.msra.mxu0 %v6051
        %6987 = vmatpush.bf16.msra.mxu0 %v6050
        %6988 = vmatpush.bf16.msra.mxu0 %v6049
        %6989 = vmatpush.bf16.msra.mxu0 %v6048
        %6990 = vmatpush.bf16.msra.mxu0 %v6047
        %6991 = vmatpush.bf16.msra.mxu0 %v6046
        %6992 = vmatmul.bf16.gmra.mxu0 %v6982
        %v6993 = vpop.f32.mrf.mxu0
        %v6994 = vadd.f32 0.0, %v6993
        %v6995 = vpop.f32.mrf.mxu0
        %v6996 = vadd.f32 0.0, %v6995
        %6997 = vdwg.mxu0
        %v6998 = vadd.f32 %v6974, %v6994
        %v6999 = vadd.f32 %v6975, %v6996
        %v7000 = vld [vmem:[#allocation2 + $0x110] sm:$0xf]
        %v7001 = vld [vmem:[#allocation2 + $0x114] sm:$0xf]
        %v7004 = vunpack.c.l.b16 %v7000
        %v7005 = vunpack.c.l.b16 %v7001
        %v7006 = vpack.c.b16 %v7005, %v7004
        %7008 = vmatpush.bf16.msra.mxu0 %v6125
        %7009 = vmatpush.bf16.msra.mxu0 %v6124
        %7010 = vmatpush.bf16.msra.mxu0 %v6123
        %7011 = vmatpush.bf16.msra.mxu0 %v6122
        %7012 = vmatpush.bf16.msra.mxu0 %v6121
        %7013 = vmatpush.bf16.msra.mxu0 %v6120
        %7014 = vmatpush.bf16.msra.mxu0 %v6119
        %7015 = vmatpush.bf16.msra.mxu0 %v6118
        %7016 = vmatmul.bf16.gmra.mxu0 %v7006
        %v7017 = vpop.f32.mrf.mxu0
        %v7018 = vadd.f32 0.0, %v7017
        %v7019 = vpop.f32.mrf.mxu0
        %v7020 = vadd.f32 0.0, %v7019
        %7021 = vdwg.mxu0
        %v7022 = vadd.f32 %v6998, %v7018
        %v7023 = vadd.f32 %v6999, %v7020
        %v7024 = vmax.f32 %v6586, %v7022
        %v7025 = vmax.f32 %v6587, %v7023
        %7026 = vmatpush.bf16.msra.mxu0 %v4403
        %7027 = vmatpush.bf16.msra.mxu0 %v4402
        %7028 = vmatpush.bf16.msra.mxu0 %v4401
        %7029 = vmatpush.bf16.msra.mxu0 %v4400
        %7030 = vmatpush.bf16.msra.mxu0 %v4399
        %7031 = vmatpush.bf16.msra.mxu0 %v4398
        %7032 = vmatpush.bf16.msra.mxu0 %v4397
        %7033 = vmatpush.bf16.msra.mxu0 %v4396
        %7034 = vmatmul.bf16.gmra.mxu0 %v4860
        %v7035 = vpop.f32.mrf.mxu0
        %v7036 = vadd.f32 0.0, %v7035
        %v7037 = vpop.f32.mrf.mxu0
        %v7038 = vadd.f32 0.0, %v7037
        %7039 = vdwg.mxu0
        %7040 = vmatpush.bf16.msra.mxu0 %v4471
        %7041 = vmatpush.bf16.msra.mxu0 %v4470
        %7042 = vmatpush.bf16.msra.mxu0 %v4469
        %7043 = vmatpush.bf16.msra.mxu0 %v4468
        %7044 = vmatpush.bf16.msra.mxu0 %v4467
        %7045 = vmatpush.bf16.msra.mxu0 %v4466
        %7046 = vmatpush.bf16.msra.mxu0 %v4465
        %7047 = vmatpush.bf16.msra.mxu0 %v4464
        %7048 = vmatmul.bf16.gmra.mxu0 %v4788
        %v7049 = vpop.f32.mrf.mxu0
        %v7050 = vadd.f32 %v7036, %v7049
        %v7051 = vpop.f32.mrf.mxu0
        %v7052 = vadd.f32 %v7038, %v7051
        %7053 = vdwg.mxu0
        %7054 = vmatpush.bf16.msra.mxu0 %v4541
        %7055 = vmatpush.bf16.msra.mxu0 %v4540
        %7056 = vmatpush.bf16.msra.mxu0 %v4539
        %7057 = vmatpush.bf16.msra.mxu0 %v4538
        %7058 = vmatpush.bf16.msra.mxu0 %v4537
        %7059 = vmatpush.bf16.msra.mxu0 %v4536
        %7060 = vmatpush.bf16.msra.mxu0 %v4535
        %7061 = vmatpush.bf16.msra.mxu0 %v4534
        %7062 = vmatmul.bf16.gmra.mxu0 %v4932
        %v7063 = vpop.f32.mrf.mxu0
        %v7064 = vadd.f32 0.0, %v7063
        %v7065 = vpop.f32.mrf.mxu0
        %v7066 = vadd.f32 0.0, %v7065
        %7067 = vdwg.mxu0
        %v7068 = vadd.f32 %v7050, %v7064
        %v7069 = vadd.f32 %v7052, %v7066
        %7070 = vmatpush.bf16.msra.mxu0 %v4613
        %7071 = vmatpush.bf16.msra.mxu0 %v4612
        %7072 = vmatpush.bf16.msra.mxu0 %v4611
        %7073 = vmatpush.bf16.msra.mxu0 %v4610
        %7074 = vmatpush.bf16.msra.mxu0 %v4609
        %7075 = vmatpush.bf16.msra.mxu0 %v4608
        %7076 = vmatpush.bf16.msra.mxu0 %v4607
        %7077 = vmatpush.bf16.msra.mxu0 %v4606
        %7078 = vmatmul.bf16.gmra.mxu0 %v5004
        %v7079 = vpop.f32.mrf.mxu0
        %v7080 = vadd.f32 0.0, %v7079
        %v7081 = vpop.f32.mrf.mxu0
        %v7082 = vadd.f32 0.0, %v7081
        %7083 = vdwg.mxu0
        %v7084 = vadd.f32 %v7068, %v7080
        %v7085 = vadd.f32 %v7069, %v7082
        %7086 = vmatpush.bf16.msra.mxu0 %v4685
        %7087 = vmatpush.bf16.msra.mxu0 %v4684
        %7088 = vmatpush.bf16.msra.mxu0 %v4683
        %7089 = vmatpush.bf16.msra.mxu0 %v4682
        %7090 = vmatpush.bf16.msra.mxu0 %v4681
        %7091 = vmatpush.bf16.msra.mxu0 %v4680
        %7092 = vmatpush.bf16.msra.mxu0 %v4679
        %7093 = vmatpush.bf16.msra.mxu0 %v4678
        %7094 = vmatmul.bf16.gmra.mxu0 %v6304
        %v7095 = vpop.f32.mrf.mxu0
        %v7096 = vadd.f32 0.0, %v7095
        %v7097 = vpop.f32.mrf.mxu0
        %v7098 = vadd.f32 0.0, %v7097
        %7099 = vdwg.mxu0
        %v7100 = vadd.f32 %v7084, %v7096
        %v7101 = vadd.f32 %v7085, %v7098
        %7102 = vmatpush.bf16.msra.mxu0 %v4757
        %7103 = vmatpush.bf16.msra.mxu0 %v4756
        %7104 = vmatpush.bf16.msra.mxu0 %v4755
        %7105 = vmatpush.bf16.msra.mxu0 %v4754
        %7106 = vmatpush.bf16.msra.mxu0 %v4753
        %7107 = vmatpush.bf16.msra.mxu0 %v4752
        %7108 = vmatpush.bf16.msra.mxu0 %v4751
        %7109 = vmatpush.bf16.msra.mxu0 %v4750
        %7110 = vmatmul.bf16.gmra.mxu0 %v5148
        %v7111 = vpop.f32.mrf.mxu0
        %v7112 = vadd.f32 0.0, %v7111
        %v7113 = vpop.f32.mrf.mxu0
        %v7114 = vadd.f32 0.0, %v7113
        %7115 = vdwg.mxu0
        %v7116 = vadd.f32 %v7100, %v7112
        %v7117 = vadd.f32 %v7101, %v7114
        %7118 = vmatpush.bf16.msra.mxu0 %v4829
        %7119 = vmatpush.bf16.msra.mxu0 %v4828
        %7120 = vmatpush.bf16.msra.mxu0 %v4827
        %7121 = vmatpush.bf16.msra.mxu0 %v4826
        %7122 = vmatpush.bf16.msra.mxu0 %v4825
        %7123 = vmatpush.bf16.msra.mxu0 %v4824
        %7124 = vmatpush.bf16.msra.mxu0 %v4823
        %7125 = vmatpush.bf16.msra.mxu0 %v4822
        %7126 = vmatmul.bf16.gmra.mxu0 %v5220
        %v7127 = vpop.f32.mrf.mxu0
        %v7128 = vadd.f32 0.0, %v7127
        %v7129 = vpop.f32.mrf.mxu0
        %v7130 = vadd.f32 0.0, %v7129
        %7131 = vdwg.mxu0
        %v7132 = vadd.f32 %v7116, %v7128
        %v7133 = vadd.f32 %v7117, %v7130
        %7134 = vmatpush.bf16.msra.mxu0 %v4901
        %7135 = vmatpush.bf16.msra.mxu0 %v4900
        %7136 = vmatpush.bf16.msra.mxu0 %v4899
        %7137 = vmatpush.bf16.msra.mxu0 %v4898
        %7138 = vmatpush.bf16.msra.mxu0 %v4897
        %7139 = vmatpush.bf16.msra.mxu0 %v4896
        %7140 = vmatpush.bf16.msra.mxu0 %v4895
        %7141 = vmatpush.bf16.msra.mxu0 %v4894
        %7142 = vmatmul.bf16.gmra.mxu0 %v5292
        %v7143 = vpop.f32.mrf.mxu0
        %v7144 = vadd.f32 0.0, %v7143
        %v7145 = vpop.f32.mrf.mxu0
        %v7146 = vadd.f32 0.0, %v7145
        %7147 = vdwg.mxu0
        %v7148 = vadd.f32 %v7132, %v7144
        %v7149 = vadd.f32 %v7133, %v7146
        %7150 = vmatpush.bf16.msra.mxu0 %v4973
        %7151 = vmatpush.bf16.msra.mxu0 %v4972
        %7152 = vmatpush.bf16.msra.mxu0 %v4971
        %7153 = vmatpush.bf16.msra.mxu0 %v4970
        %7154 = vmatpush.bf16.msra.mxu0 %v4969
        %7155 = vmatpush.bf16.msra.mxu0 %v4968
        %7156 = vmatpush.bf16.msra.mxu0 %v4967
        %7157 = vmatpush.bf16.msra.mxu0 %v4966
        %7158 = vmatmul.bf16.gmra.mxu0 %v5364
        %v7159 = vpop.f32.mrf.mxu0
        %v7160 = vadd.f32 0.0, %v7159
        %v7161 = vpop.f32.mrf.mxu0
        %v7162 = vadd.f32 0.0, %v7161
        %7163 = vdwg.mxu0
        %v7164 = vadd.f32 %v7148, %v7160
        %v7165 = vadd.f32 %v7149, %v7162
        %7166 = vmatpush.bf16.msra.mxu0 %v5045
        %7167 = vmatpush.bf16.msra.mxu0 %v5044
        %7168 = vmatpush.bf16.msra.mxu0 %v5043
        %7169 = vmatpush.bf16.msra.mxu0 %v5042
        %7170 = vmatpush.bf16.msra.mxu0 %v5041
        %7171 = vmatpush.bf16.msra.mxu0 %v5040
        %7172 = vmatpush.bf16.msra.mxu0 %v5039
        %7173 = vmatpush.bf16.msra.mxu0 %v5038
        %7174 = vmatmul.bf16.gmra.mxu0 %v6392
        %v7175 = vpop.f32.mrf.mxu0
        %v7176 = vadd.f32 0.0, %v7175
        %v7177 = vpop.f32.mrf.mxu0
        %v7178 = vadd.f32 0.0, %v7177
        %7179 = vdwg.mxu0
        %v7180 = vadd.f32 %v7164, %v7176
        %v7181 = vadd.f32 %v7165, %v7178
        %7182 = vmatpush.bf16.msra.mxu0 %v5117
        %7183 = vmatpush.bf16.msra.mxu0 %v5116
        %7184 = vmatpush.bf16.msra.mxu0 %v5115
        %7185 = vmatpush.bf16.msra.mxu0 %v5114
        %7186 = vmatpush.bf16.msra.mxu0 %v5113
        %7187 = vmatpush.bf16.msra.mxu0 %v5112
        %7188 = vmatpush.bf16.msra.mxu0 %v5111
        %7189 = vmatpush.bf16.msra.mxu0 %v5110
        %7190 = vmatmul.bf16.gmra.mxu0 %v5508
        %v7191 = vpop.f32.mrf.mxu0
        %v7192 = vadd.f32 0.0, %v7191
        %v7193 = vpop.f32.mrf.mxu0
        %v7194 = vadd.f32 0.0, %v7193
        %7195 = vdwg.mxu0
        %v7196 = vadd.f32 %v7180, %v7192
        %v7197 = vadd.f32 %v7181, %v7194
        %7198 = vmatpush.bf16.msra.mxu0 %v5189
        %7199 = vmatpush.bf16.msra.mxu0 %v5188
        %7200 = vmatpush.bf16.msra.mxu0 %v5187
        %7201 = vmatpush.bf16.msra.mxu0 %v5186
        %7202 = vmatpush.bf16.msra.mxu0 %v5185
        %7203 = vmatpush.bf16.msra.mxu0 %v5184
        %7204 = vmatpush.bf16.msra.mxu0 %v5183
        %7205 = vmatpush.bf16.msra.mxu0 %v5182
        %7206 = vmatmul.bf16.gmra.mxu0 %v5580
        %v7207 = vpop.f32.mrf.mxu0
        %v7208 = vadd.f32 0.0, %v7207
        %v7209 = vpop.f32.mrf.mxu0
        %v7210 = vadd.f32 0.0, %v7209
        %7211 = vdwg.mxu0
        %v7212 = vadd.f32 %v7196, %v7208
        %v7213 = vadd.f32 %v7197, %v7210
        %7214 = vmatpush.bf16.msra.mxu0 %v5261
        %7215 = vmatpush.bf16.msra.mxu0 %v5260
        %7216 = vmatpush.bf16.msra.mxu0 %v5259
        %7217 = vmatpush.bf16.msra.mxu0 %v5258
        %7218 = vmatpush.bf16.msra.mxu0 %v5257
        %7219 = vmatpush.bf16.msra.mxu0 %v5256
        %7220 = vmatpush.bf16.msra.mxu0 %v5255
        %7221 = vmatpush.bf16.msra.mxu0 %v5254
        %7222 = vmatmul.bf16.gmra.mxu0 %v5652
        %v7223 = vpop.f32.mrf.mxu0
        %v7224 = vadd.f32 0.0, %v7223
        %v7225 = vpop.f32.mrf.mxu0
        %v7226 = vadd.f32 0.0, %v7225
        %7227 = vdwg.mxu0
        %v7228 = vadd.f32 %v7212, %v7224
        %v7229 = vadd.f32 %v7213, %v7226
        %7230 = vmatpush.bf16.msra.mxu0 %v5333
        %7231 = vmatpush.bf16.msra.mxu0 %v5332
        %7232 = vmatpush.bf16.msra.mxu0 %v5331
        %7233 = vmatpush.bf16.msra.mxu0 %v5330
        %7234 = vmatpush.bf16.msra.mxu0 %v5329
        %7235 = vmatpush.bf16.msra.mxu0 %v5328
        %7236 = vmatpush.bf16.msra.mxu0 %v5327
        %7237 = vmatpush.bf16.msra.mxu0 %v5326
        %7238 = vmatmul.bf16.gmra.mxu0 %v5724
        %v7239 = vpop.f32.mrf.mxu0
        %v7240 = vadd.f32 0.0, %v7239
        %v7241 = vpop.f32.mrf.mxu0
        %v7242 = vadd.f32 0.0, %v7241
        %7243 = vdwg.mxu0
        %v7244 = vadd.f32 %v7228, %v7240
        %v7245 = vadd.f32 %v7229, %v7242
        %7246 = vmatpush.bf16.msra.mxu0 %v5405
        %7247 = vmatpush.bf16.msra.mxu0 %v5404
        %7248 = vmatpush.bf16.msra.mxu0 %v5403
        %7249 = vmatpush.bf16.msra.mxu0 %v5402
        %7250 = vmatpush.bf16.msra.mxu0 %v5401
        %7251 = vmatpush.bf16.msra.mxu0 %v5400
        %7252 = vmatpush.bf16.msra.mxu0 %v5399
        %7253 = vmatpush.bf16.msra.mxu0 %v5398
        %7254 = vmatmul.bf16.gmra.mxu0 %v6480
        %v7255 = vpop.f32.mrf.mxu0
        %v7256 = vadd.f32 0.0, %v7255
        %v7257 = vpop.f32.mrf.mxu0
        %v7258 = vadd.f32 0.0, %v7257
        %7259 = vdwg.mxu0
        %v7260 = vadd.f32 %v7244, %v7256
        %v7261 = vadd.f32 %v7245, %v7258
        %7262 = vmatpush.bf16.msra.mxu0 %v5477
        %7263 = vmatpush.bf16.msra.mxu0 %v5476
        %7264 = vmatpush.bf16.msra.mxu0 %v5475
        %7265 = vmatpush.bf16.msra.mxu0 %v5474
        %7266 = vmatpush.bf16.msra.mxu0 %v5473
        %7267 = vmatpush.bf16.msra.mxu0 %v5472
        %7268 = vmatpush.bf16.msra.mxu0 %v5471
        %7269 = vmatpush.bf16.msra.mxu0 %v5470
        %7270 = vmatmul.bf16.gmra.mxu0 %v5868
        %v7271 = vpop.f32.mrf.mxu0
        %v7272 = vadd.f32 0.0, %v7271
        %v7273 = vpop.f32.mrf.mxu0
        %v7274 = vadd.f32 0.0, %v7273
        %7275 = vdwg.mxu0
        %v7276 = vadd.f32 %v7260, %v7272
        %v7277 = vadd.f32 %v7261, %v7274
        %7278 = vmatpush.bf16.msra.mxu0 %v5549
        %7279 = vmatpush.bf16.msra.mxu0 %v5548
        %7280 = vmatpush.bf16.msra.mxu0 %v5547
        %7281 = vmatpush.bf16.msra.mxu0 %v5546
        %7282 = vmatpush.bf16.msra.mxu0 %v5545
        %7283 = vmatpush.bf16.msra.mxu0 %v5544
        %7284 = vmatpush.bf16.msra.mxu0 %v5543
        %7285 = vmatpush.bf16.msra.mxu0 %v5542
        %7286 = vmatmul.bf16.gmra.mxu0 %v5940
        %v7287 = vpop.f32.mrf.mxu0
        %v7288 = vadd.f32 0.0, %v7287
        %v7289 = vpop.f32.mrf.mxu0
        %v7290 = vadd.f32 0.0, %v7289
        %7291 = vdwg.mxu0
        %v7292 = vadd.f32 %v7276, %v7288
        %v7293 = vadd.f32 %v7277, %v7290
        %7294 = vmatpush.bf16.msra.mxu0 %v5621
        %7295 = vmatpush.bf16.msra.mxu0 %v5620
        %7296 = vmatpush.bf16.msra.mxu0 %v5619
        %7297 = vmatpush.bf16.msra.mxu0 %v5618
        %7298 = vmatpush.bf16.msra.mxu0 %v5617
        %7299 = vmatpush.bf16.msra.mxu0 %v5616
        %7300 = vmatpush.bf16.msra.mxu0 %v5615
        %7301 = vmatpush.bf16.msra.mxu0 %v5614
        %7302 = vmatmul.bf16.gmra.mxu0 %v6012
        %v7303 = vpop.f32.mrf.mxu0
        %v7304 = vadd.f32 0.0, %v7303
        %v7305 = vpop.f32.mrf.mxu0
        %v7306 = vadd.f32 0.0, %v7305
        %7307 = vdwg.mxu0
        %v7308 = vadd.f32 %v7292, %v7304
        %v7309 = vadd.f32 %v7293, %v7306
        %7310 = vmatpush.bf16.msra.mxu0 %v5693
        %7311 = vmatpush.bf16.msra.mxu0 %v5692
        %7312 = vmatpush.bf16.msra.mxu0 %v5691
        %7313 = vmatpush.bf16.msra.mxu0 %v5690
        %7314 = vmatpush.bf16.msra.mxu0 %v5689
        %7315 = vmatpush.bf16.msra.mxu0 %v5688
        %7316 = vmatpush.bf16.msra.mxu0 %v5687
        %7317 = vmatpush.bf16.msra.mxu0 %v5686
        %7318 = vmatmul.bf16.gmra.mxu0 %v6084
        %v7319 = vpop.f32.mrf.mxu0
        %v7320 = vadd.f32 0.0, %v7319
        %v7321 = vpop.f32.mrf.mxu0
        %v7322 = vadd.f32 0.0, %v7321
        %7323 = vdwg.mxu0
        %v7324 = vadd.f32 %v7308, %v7320
        %v7325 = vadd.f32 %v7309, %v7322
        %7326 = vmatpush.bf16.msra.mxu0 %v5765
        %7327 = vmatpush.bf16.msra.mxu0 %v5764
        %7328 = vmatpush.bf16.msra.mxu0 %v5763
        %7329 = vmatpush.bf16.msra.mxu0 %v5762
        %7330 = vmatpush.bf16.msra.mxu0 %v5761
        %7331 = vmatpush.bf16.msra.mxu0 %v5760
        %7332 = vmatpush.bf16.msra.mxu0 %v5759
        %7333 = vmatpush.bf16.msra.mxu0 %v5758
        %7334 = vmatmul.bf16.gmra.mxu0 %v6568
        %v7335 = vpop.f32.mrf.mxu0
        %v7336 = vadd.f32 0.0, %v7335
        %v7337 = vpop.f32.mrf.mxu0
        %v7338 = vadd.f32 0.0, %v7337
        %7339 = vdwg.mxu0
        %v7340 = vadd.f32 %v7324, %v7336
        %v7341 = vadd.f32 %v7325, %v7338
        %7342 = vmatpush.bf16.msra.mxu0 %v5837
        %7343 = vmatpush.bf16.msra.mxu0 %v5836
        %7344 = vmatpush.bf16.msra.mxu0 %v5835
        %7345 = vmatpush.bf16.msra.mxu0 %v5834
        %7346 = vmatpush.bf16.msra.mxu0 %v5833
        %7347 = vmatpush.bf16.msra.mxu0 %v5832
        %7348 = vmatpush.bf16.msra.mxu0 %v5831
        %7349 = vmatpush.bf16.msra.mxu0 %v5830
        %7350 = vmatmul.bf16.gmra.mxu0 %v6934
        %v7351 = vpop.f32.mrf.mxu0
        %v7352 = vadd.f32 0.0, %v7351
        %v7353 = vpop.f32.mrf.mxu0
        %v7354 = vadd.f32 0.0, %v7353
        %7355 = vdwg.mxu0
        %v7356 = vadd.f32 %v7340, %v7352
        %v7357 = vadd.f32 %v7341, %v7354
        %7358 = vmatpush.bf16.msra.mxu0 %v5909
        %7359 = vmatpush.bf16.msra.mxu0 %v5908
        %7360 = vmatpush.bf16.msra.mxu0 %v5907
        %7361 = vmatpush.bf16.msra.mxu0 %v5906
        %7362 = vmatpush.bf16.msra.mxu0 %v5905
        %7363 = vmatpush.bf16.msra.mxu0 %v5904
        %7364 = vmatpush.bf16.msra.mxu0 %v5903
        %7365 = vmatpush.bf16.msra.mxu0 %v5902
        %7366 = vmatmul.bf16.gmra.mxu0 %v6958
        %v7367 = vpop.f32.mrf.mxu0
        %v7368 = vadd.f32 0.0, %v7367
        %v7369 = vpop.f32.mrf.mxu0
        %v7370 = vadd.f32 0.0, %v7369
        %7371 = vdwg.mxu0
        %v7372 = vadd.f32 %v7356, %v7368
        %v7373 = vadd.f32 %v7357, %v7370
        %7374 = vmatpush.bf16.msra.mxu0 %v5981
        %7375 = vmatpush.bf16.msra.mxu0 %v5980
        %7376 = vmatpush.bf16.msra.mxu0 %v5979
        %7377 = vmatpush.bf16.msra.mxu0 %v5978
        %7378 = vmatpush.bf16.msra.mxu0 %v5977
        %7379 = vmatpush.bf16.msra.mxu0 %v5976
        %7380 = vmatpush.bf16.msra.mxu0 %v5975
        %7381 = vmatpush.bf16.msra.mxu0 %v5974
        %7382 = vmatmul.bf16.gmra.mxu0 %v6982
        %v7383 = vpop.f32.mrf.mxu0
        %v7384 = vadd.f32 0.0, %v7383
        %v7385 = vpop.f32.mrf.mxu0
        %v7386 = vadd.f32 0.0, %v7385
        %7387 = vdwg.mxu0
        %v7388 = vadd.f32 %v7372, %v7384
        %v7389 = vadd.f32 %v7373, %v7386
        %7390 = vmatpush.bf16.msra.mxu0 %v6053
        %7391 = vmatpush.bf16.msra.mxu0 %v6052
        %7392 = vmatpush.bf16.msra.mxu0 %v6051
        %7393 = vmatpush.bf16.msra.mxu0 %v6050
        %7394 = vmatpush.bf16.msra.mxu0 %v6049
        %7395 = vmatpush.bf16.msra.mxu0 %v6048
        %7396 = vmatpush.bf16.msra.mxu0 %v6047
        %7397 = vmatpush.bf16.msra.mxu0 %v6046
        %7398 = vmatmul.bf16.gmra.mxu0 %v7006
        %v7399 = vpop.f32.mrf.mxu0
        %v7400 = vadd.f32 0.0, %v7399
        %v7401 = vpop.f32.mrf.mxu0
        %v7402 = vadd.f32 0.0, %v7401
        %7403 = vdwg.mxu0
        %v7404 = vadd.f32 %v7388, %v7400
        %v7405 = vadd.f32 %v7389, %v7402
        %v7406 = vld [vmem:[#allocation2 + $0x118] sm:$0xf]
        %v7407 = vld [vmem:[#allocation2 + $0x11c] sm:$0xf]
        %v7410 = vunpack.c.l.b16 %v7406
        %v7411 = vunpack.c.l.b16 %v7407
        %v7412 = vpack.c.b16 %v7411, %v7410
        %7414 = vmatpush.bf16.msra.mxu0 %v6125
        %7415 = vmatpush.bf16.msra.mxu0 %v6124
        %7416 = vmatpush.bf16.msra.mxu0 %v6123
        %7417 = vmatpush.bf16.msra.mxu0 %v6122
        %7418 = vmatpush.bf16.msra.mxu0 %v6121
        %7419 = vmatpush.bf16.msra.mxu0 %v6120
        %7420 = vmatpush.bf16.msra.mxu0 %v6119
        %7421 = vmatpush.bf16.msra.mxu0 %v6118
        %7422 = vmatmul.bf16.gmra.mxu0 %v7412
        %v7423 = vpop.f32.mrf.mxu0
        %v7424 = vadd.f32 0.0, %v7423
        %v7425 = vpop.f32.mrf.mxu0
        %v7426 = vadd.f32 0.0, %v7425
        %7427 = vdwg.mxu0
        %v7428 = vadd.f32 %v7404, %v7424
        %v7429 = vadd.f32 %v7405, %v7426
        %v7430 = vmax.f32 %v7024, %v7428
        %v7431 = vmax.f32 %v7025, %v7429
        %v7433 = vperm.slane %v4353, 0
        %v7435 = vadd.f32 %v7430, %v7433
        %v7436 = vadd.f32 %v7431, %v7433
        %v7437 = vmax.f32 %v7435, 0.0
        %v7438 = vmax.f32 %v7436, 0.0
        %7439 = vst [vmem:[%s217] sm:$0xff] %v7437
        %7440 = vst [vmem:[%s217 + $0x8] sm:$0xff] %v7438
        %s7441 = sand.u32 %s137, 1
        %s7442 = scalar_lea.sflag [#allocation4], %s7441
        %s7443 = sand.u32 %s137, 1
        %s7444 = smul.addr %s7443, 16
        %s7445 = scalar_lea.vmem [#allocation3], %s7444
        // Predicated region
        $region41: #{sub_model_forward.1} parent=39 // pred_check
          %p7446 = pneg %p147
        $region42: #{sub_model_forward.1} parent=39 // pred_check_branch
          %7448 = sbr.rel (%p7446) target = $region44
        $region43: #{sub_model_forward.1} parent=39 // pred_region
          %7450 = vsyncadd %s7442, 0
          %s7451 = smul.addr %s19, 2
          %s7452 = smul.addr %s7451, 8
          %s7453 = scalar_lea.hbm %s5, %s7452
          %s7454 = sshll.u32 %s7445, 4
          %s7455 = int_to_ptr.vmem [resolvable:$true] %s7454
          %s7456 = sshll.u32 %s7453, 4
          %s7457 = int_to_ptr.hbm [resolvable:$true] %s7456
          %7462 = dma.vmem_to_hbm [thread:$0]  %s7455, 256, %s7457, %s7442, 128, 128, 8
        $region44: #{sub_model_forward.1} parent=39 // pred_fallthru
          _
      $region40: #{sub_model_forward.1} parent=5 // pred_fallthru
        _
      %p7463 = scmp.le.s32.totalorder 2, %s14
      // Predicated region
      $region45: #{sub_model_forward.1} parent=5 // pred_check
        %p7464 = pneg %p7463
      $region46: #{sub_model_forward.1} parent=5 // pred_check_branch
        %7466 = sbr.rel (%p7464) target = $region48
      $region47: #{sub_model_forward.1} parent=5 // pred_region
        %s7467 = ssub.s32 %s14, 2
        // Predicated region
        $region49: #{sub_model_forward.1} parent=47 // pred_check
          %p7468 = pneg %p153
        $region50: #{sub_model_forward.1} parent=47 // pred_check_branch
          %7470 = sbr.rel (%p7468) target = $region52
        $region51: #{sub_model_forward.1} parent=47 // pred_region
          %s7471 = sand.u32 %s138, 1
          %s7472 = scalar_lea.sflag [#allocation4], %s7471
          %s7473 = sand.u32 %s138, 1
          %s7474 = smul.addr %s7473, 16
          %s7475 = scalar_lea.vmem [#allocation3], %s7474
          %7477 = dma.done %s7472, 256
        $region52: #{sub_model_forward.1} parent=47 // pred_fallthru
          _
      $region48: #{sub_model_forward.1} parent=5 // pred_fallthru
        _
    $region6: #{sub_model_forward.1} parent=1 // loop_footer
      %s18 = sadd.s32 1, %s14
    $region7: #{sub_model_forward.1} parent=1 // loop_footer_branch
      %13 = sbr.rel target = $region3
    $region8: #{sub_model_forward.1} parent=1 // loop_exit
      _
    %7478 = vsyncpa [#allocation4], 1
    %s7479 = scalar_lea.sflag [#allocation4], 1
    %7480 = vsyncpa %s7479, 1

</llo_original>
